<compile_context>
chip_gen: v6e
topology: v6e:2x2x1
jax: 0.10.0
libtpu: 0.0.40
codegen_flags: <defaults>
</compile_context>

<pallas_src>
import functools

import jax
import jax.numpy as jnp
from jax.experimental import pallas as pl
from jax.experimental.pallas import tpu as pltpu

EPS = 1e-5
LANE = 128
MATMUL_DTYPE = jnp.bfloat16   # MXU input dtype; accumulation and all BN math stay f32.


def _round_up(x, m):
    return (x + m - 1) // m * m


# ----------------------------- Pallas kernels ---------------------------------
def conv_bn_stats_kernel(x_ref, w_ref, scale_ref, shift_ref, y_ref, stats_ref,
                         xpad_ref, *, stride, h_out, w_out, relu_in, apply_affine):
    """One image:
       prologue : x <- relu(x * scale + shift)  (BN of the previous conv fused in),
                  written into the interior of a zero-bordered VMEM halo scratch.
       body     : 3x3/pad=1 conv as 3 kw-packed MXU matmuls (K = 3*Cin_p), value-
                  accumulated in f32 (no acc_ref round trips).
       epilogue : raw f32 conv output + per-image BN partial sums
                  (sum, per-image-mean-centred sum of squares) per channel."""
    h_in, w_in, cin_p = x_ref.shape[1], x_ref.shape[2], x_ref.shape[3]
    hp, wp = h_in + 2, w_in + 2
    hw = h_out * w_out

    # ---- prologue: fused affine (+ReLU) and in-kernel halo -----------------------
    x = x_ref[0]                                        # (h_in, w_in, cin_p)
    if apply_affine:
        x = x.astype(jnp.float32) * scale_ref[...] + shift_ref[...]
    if relu_in:
        x = jnp.maximum(x, 0)
    # Zero only the 1-px border every step (cheap, safe under core sharding), then
    # overwrite the interior with the normalized activation.
    zr = jnp.zeros((1, wp, cin_p), xpad_ref.dtype)
    zc = jnp.zeros((hp, 1, cin_p), xpad_ref.dtype)
    xpad_ref[0:1, :, :] = zr
    xpad_ref[hp - 1:hp, :, :] = zr
    xpad_ref[:, 0:1, :] = zc
    xpad_ref[:, wp - 1:wp, :] = zc
    xpad_ref[1:1 + h_in, 1:1 + w_in, :] = x.astype(xpad_ref.dtype)

    # ---- 3x3 conv: one K = 3*Cin_p matmul per kh tap row, value accumulation -----
    acc = None
    for kh in range(3):                                 # static unroll
        if stride == 1:
            parts = [xpad_ref[kh:kh + h_out, kw:kw + w_out, :] for kw in range(3)]
        else:
            # TODO(synk): stride>1 transition blocks use value-sliced strided windows;
            # not exercised in __main__ (numerics / codegen unvalidated).
            xpad = xpad_ref[...]
            parts = [jax.lax.slice(
                xpad, (kh, kw, 0),
                (kh + (h_out - 1) * stride + 1,
                 kw + (w_out - 1) * stride + 1, cin_p),
                (stride, stride, 1)) for kw in range(3)]
        a = jnp.concatenate(parts, axis=-1).reshape(hw, 3 * cin_p)
        d = jnp.dot(a, w_ref[kh], preferred_element_type=jnp.float32)
        acc = d if acc is None else acc + d             # (hw, cout_p) f32

    y_ref[0] = acc.astype(y_ref.dtype)

    # ---- per-image BN partial stats (shifted sum of squares) ----------------------
    s = jnp.sum(acc, axis=0, keepdims=True)             # (1, cout_p)
    mu = s * (1.0 / hw)
    dctr = acc - mu
    stats_ref[0, 0:1, :] = s
    stats_ref[0, 1:2, :] = jnp.sum(dctr * dctr, axis=0, keepdims=True)


def bn_affine_kernel(y_ref, scale_ref, shift_ref, o_ref):
    """BN2 second pass: y*scale + shift over a lane/sublane-dense row tile (f32)."""
    o_ref[...] = y_ref[...] * scale_ref[...] + shift_ref[...]


# ------------------------------ pallas_call wrappers ---------------------------
def conv_bn_stats(x, w_mat, scale, shift, *, stride, h_out, w_out,
                  relu_in, apply_affine):
    """x: (N, h_in, w_in, Cin_p) UNPADDED activations; w_mat: (3, 3*Cin_p, Cout_p).
    Returns raw conv y: (N, h_out*w_out, Cout_p) f32 and BN sums: (N, 2, Cout_p) f32."""
    n, h_in, w_in, cin_p = x.shape
    cout_p = w_mat.shape[-1]
    hw = h_out * w_out
    kernel = functools.partial(conv_bn_stats_kernel, stride=stride, h_out=h_out,
                               w_out=w_out, relu_in=relu_in, apply_affine=apply_affine)
    return pl.pallas_call(
        kernel,
        out_shape=(jax.ShapeDtypeStruct((n, hw, cout_p), jnp.float32),
                   jax.ShapeDtypeStruct((n, 2, cout_p), jnp.float32)),
        grid=(n,),
        in_specs=[
            pl.BlockSpec((1, h_in, w_in, cin_p), lambda i: (i, 0, 0, 0)),
            pl.BlockSpec((3, 3 * cin_p, cout_p), lambda i: (0, 0, 0)),  # VMEM-resident
            pl.BlockSpec((1, cin_p), lambda i: (0, 0)),                 # VMEM-resident
            pl.BlockSpec((1, cin_p), lambda i: (0, 0)),                 # VMEM-resident
        ],
        out_specs=(
            pl.BlockSpec((1, hw, cout_p), lambda i: (i, 0, 0)),
            pl.BlockSpec((1, 2, cout_p), lambda i: (i, 0, 0)),
        ),
        scratch_shapes=[pltpu.VMEM((h_in + 2, w_in + 2, cin_p), MATMUL_DTYPE)],
        compiler_params=pltpu.CompilerParams(
            dimension_semantics=("parallel",),
            vmem_limit_bytes=48 * 1024 * 1024),
    )(x, w_mat, scale, shift)


def _pick_row_tile(rows):
    for t in (1024, 512, 256, 128, 64, 32, 16, 8):
        if rows % t == 0:
            return t
    return rows


def bn_affine(y, scale, shift):
    """y: (N, HW, C) f32 raw conv2 output -> y*scale + shift over (N*HW, C) row tiles."""
    n, hw, c = y.shape
    rows = n * hw
    tile = _pick_row_tile(rows)
    return pl.pallas_call(
        bn_affine_kernel,
        out_shape=jax.ShapeDtypeStruct((rows, c), jnp.float32),
        grid=(rows // tile,),
        in_specs=[
            pl.BlockSpec((tile, c), lambda i: (i, 0)),
            pl.BlockSpec((1, c), lambda i: (0, 0)),                     # VMEM-resident
            pl.BlockSpec((1, c), lambda i: (0, 0)),
        ],
        out_specs=pl.BlockSpec((tile, c), lambda i: (i, 0)),
        compiler_params=pltpu.CompilerParams(
            dimension_semantics=("parallel",)),
    )(y.reshape(rows, c), scale.reshape(1, c), shift.reshape(1, c))


# ------------------------------- Glue (JAX) -----------------------------------
def conv_weight_to_mat(w_oihw, cin_p, cout_p):
    """PyTorch (Cout, Cin, 3, 3) -> kw-packed (3, 3*Cin_p, Cout_p) matmul slabs."""
    cout, cin = w_oihw.shape[0], w_oihw.shape[1]
    w = jnp.transpose(w_oihw, (2, 3, 1, 0))                      # (kh, kw, cin, cout)
    w = jnp.pad(w, ((0, 0), (0, 0), (0, cin_p - cin), (0, cout_p - cout)))
    return w.reshape(3, 3 * cin_p, cout_p).astype(MATMUL_DTYPE)


def bn_scale_shift(stats, gamma_p, beta_p, hw):
    """Combine per-image (sum, centred sumsq) into training-mode BN scale/shift (f32)
    via Chan's parallel-variance formula (avoids E[x^2] - mean^2 cancellation)."""
    n = stats.shape[0]
    count = n * hw
    sums = stats[:, 0, :]                                        # (N, C)
    m2s = stats[:, 1, :]
    mean = jnp.sum(sums, axis=0) / count
    img_mean = sums / hw
    m2 = jnp.sum(m2s, axis=0) + hw * jnp.sum(jnp.square(img_mean - mean), axis=0)
    var = jnp.maximum(m2 / count, 0.0)                           # biased batch variance
    scale = gamma_p * jax.lax.rsqrt(var + EPS)
    shift = beta_p - mean * scale
    return scale, shift


def basic_block_woskip(x_nchw, w1, w2, gamma1, beta1, gamma2, beta2, stride=1):
    n, cin, h, w = x_nchw.shape
    cout = w1.shape[0]
    cin_p = _round_up(cin, LANE)
    cout_p = _round_up(cout, LANE)
    h1 = (h + 2 - 3) // stride + 1
    w1o = (w + 2 - 3) // stride + 1
    hw = h1 * w1o

    # NCHW -> NHWC, lane-pad channels, cast for the MXU.  No spatial pre-pad and no
    # separate relu pass: the conv kernel builds its own halo and fuses the input relu.
    x = jnp.transpose(x_nchw, (0, 2, 3, 1))
    x = jnp.pad(x, ((0, 0), (0, 0), (0, 0), (0, cin_p - cin))).astype(MATMUL_DTYPE)

    g1 = jnp.pad(gamma1.astype(jnp.float32), (0, cout_p - cout))
    b1 = jnp.pad(beta1.astype(jnp.float32), (0, cout_p - cout))
    g2 = jnp.pad(gamma2.astype(jnp.float32), (0, cout_p - cout))
    b2 = jnp.pad(beta2.astype(jnp.float32), (0, cout_p - cout))

    dummy = jnp.zeros((1, cin_p), jnp.float32)                   # unused (no affine)
    wm1 = conv_weight_to_mat(w1, cin_p, cout_p)
    wm2 = conv_weight_to_mat(w2, cout_p, cout_p)

    # conv1 (relu on the raw input fused in) + BN1 partial stats.
    y1, st1 = conv_bn_stats(x, wm1, dummy, dummy, stride=stride, h_out=h1,
                            w_out=w1o, relu_in=True, apply_affine=False)
    scale1, shift1 = bn_scale_shift(st1, g1, b1, hw)

    # conv2: BN1 affine + ReLU + halo fused into its prologue.  The raw f32 y1 is the
    # only HBM round trip between the two convs (no bn_affine pass, no XLA pad copy).
    y2, st2 = conv_bn_stats(y1.reshape(n, h1, w1o, cout_p), wm2,
                            scale1.reshape(1, cout_p), shift1.reshape(1, cout_p),
                            stride=1, h_out=h1, w_out=w1o,
                            relu_in=True, apply_affine=True)
    scale2, shift2 = bn_scale_shift(st2, g2, b2, hw)

    # BN2 affine over lane/sublane-dense (N*H*W, C) row tiles; crop + NCHW in XLA.
    out = bn_affine(y2, scale2, shift2)
    out = out.reshape(n, h1, w1o, cout_p)[..., :cout]            # drop channel padding
    return jnp.transpose(out, (0, 3, 1, 2))                      # NHWC -> NCHW


# --------------------------- Pure-JAX reference --------------------------------
def ref_forward(x, w1, w2, g1, b1, g2, b2, stride=1):
    def conv(x, w, s):
        return jax.lax.conv_general_dilated(
            x, w, (s, s), ((1, 1), (1, 1)),
            dimension_numbers=("NCHW", "OIHW", "NCHW"))

    def bn(x, g, b):
        mean = jnp.mean(x, axis=(0, 2, 3), keepdims=True)
        var = jnp.mean(jnp.square(x - mean), axis=(0, 2, 3), keepdims=True)
        return ((x - mean) * jax.lax.rsqrt(var + EPS)
                * g.reshape(1, -1, 1, 1) + b.reshape(1, -1, 1, 1))

    x = jax.nn.relu(x)
    out = jax.nn.relu(bn(conv(x, w1, stride), g1, b1))
    return bn(conv(out, w2, 1), g2, b2)


# ---------------------------------- Main ---------------------------------------
if __name__ == "__main__":
    inplanes, planes, stride = 4, 8, 1
    N, H, W = 2, 16, 16

    key = jax.random.PRNGKey(0)
    kx, kw1, kw2, kg1, kb1, kg2, kb2 = jax.random.split(key, 7)

    x = jax.random.normal(kx, (N, inplanes, H, W), dtype=jnp.float32)
    w1 = jax.random.normal(kw1, (planes, inplanes, 3, 3), dtype=jnp.float32) * 0.1
    w2 = jax.random.normal(kw2, (planes, planes, 3, 3), dtype=jnp.float32) * 0.1
    gamma1 = 1.0 + 0.1 * jax.random.normal(kg1, (planes,), dtype=jnp.float32)
    beta1 = 0.1 * jax.random.normal(kb1, (planes,), dtype=jnp.float32)
    gamma2 = 1.0 + 0.1 * jax.random.normal(kg2, (planes,), dtype=jnp.float32)
    beta2 = 0.1 * jax.random.normal(kb2, (planes,), dtype=jnp.float32)

    fwd = jax.jit(functools.partial(basic_block_woskip, stride=stride))
    out = jax.block_until_ready(fwd(x, w1, w2, gamma1, beta1, gamma2, beta2))

    ref = ref_forward(x, w1, w2, gamma1, beta1, gamma2, beta2, stride)
    assert out.shape == (N, planes, H, W), out.shape
    # bf16 MXU inputs (f32 accumulation, f32 BN stats *and* f32 BN application) =>
    # ~1e-2 level agreement with the all-f32 reference; switch MATMUL_DTYPE to
    # jnp.float32 to recover 1e-4 agreement.
    tol = 1e-4 if MATMUL_DTYPE == jnp.float32 else 1e-1
    assert jnp.allclose(out, ref, atol=tol, rtol=tol), \
        float(jnp.max(jnp.abs(out - ref)))

    print("KERNEL_OK")
</pallas_src>

<mosaic_0001>
module attributes {stable_mosaic.version = 11 : i64} {
  func.func @conv_bn_stats_kernel(%arg0: i32, %arg1: memref<1x16x16x128xbf16, #tpu.memory_space<vmem>>, %arg2: memref<3x384x128xbf16, #tpu.memory_space<vmem>>, %arg3: memref<1x128xf32, #tpu.memory_space<vmem>>, %arg4: memref<1x128xf32, #tpu.memory_space<vmem>>, %arg5: memref<1x256x128xf32, #tpu.memory_space<vmem>>, %arg6: memref<1x2x128xf32, #tpu.memory_space<vmem>>, %arg7: memref<18x18x128xbf16, #tpu.memory_space<vmem>>) attributes {dimension_semantics = [#tpu.dimension_semantics<parallel>], iteration_bounds = array<i64: 2>, scalar_prefetch = 0 : i64, scratch_operands = 1 : i64, tpu.core_type = #tpu.core_type<tc>, window_params = [{transform_indices = @transform_0, window_bounds = array<i64: 1, 16, 16, 128>}, {pipeline_mode = #tpu.pipeline_mode<synchronous>, transform_indices = @transform_1, window_bounds = array<i64: 3, 384, 128>}, {pipeline_mode = #tpu.pipeline_mode<synchronous>, transform_indices = @transform_2, window_bounds = array<i64: 1, 128>}, {pipeline_mode = #tpu.pipeline_mode<synchronous>, transform_indices = @transform_3, window_bounds = array<i64: 1, 128>}, {transform_indices = @transform_4, window_bounds = array<i64: 1, 256, 128>}, {transform_indices = @transform_5, window_bounds = array<i64: 1, 2, 128>}]} {
    %c0 = arith.constant 0 : index
    %c0_0 = arith.constant 0 : index
    %c0_1 = arith.constant 0 : index
    %c0_2 = arith.constant 0 : index
    %0 = vector.load %arg1[%c0, %c0_0, %c0_1, %c0_2] : memref<1x16x16x128xbf16, #tpu.memory_space<vmem>>, vector<1x16x16x128xbf16>
    %1 = vector.shape_cast %0 : vector<1x16x16x128xbf16> to vector<16x16x128xbf16>
    %cst = arith.constant 0.000000e+00 : bf16
    %2 = vector.broadcast %cst : bf16 to vector<16x16x128xbf16>
    %3 = arith.maximumf %1, %2 : vector<16x16x128xbf16>
    %cst_3 = arith.constant 0.000000e+00 : bf16
    %4 = vector.broadcast %cst_3 : bf16 to vector<1x18x128xbf16>
    %cst_4 = arith.constant 0.000000e+00 : bf16
    %5 = vector.broadcast %cst_4 : bf16 to vector<18x1x128xbf16>
    %c0_5 = arith.constant 0 : index
    %c0_6 = arith.constant 0 : index
    %c0_7 = arith.constant 0 : index
    %6 = vector.load %arg7[%c0_5, %c0_6, %c0_7] : memref<18x18x128xbf16, #tpu.memory_space<vmem>>, vector<1x18x128xbf16>
    tpu.vector_store %arg7[%c0_5, %c0_6, %c0_7], %4 {strides = array<i32>} : memref<18x18x128xbf16, #tpu.memory_space<vmem>>, vector<1x18x128xbf16>,
    %c17 = arith.constant 17 : index
    %c0_8 = arith.constant 0 : index
    %c0_9 = arith.constant 0 : index
    %7 = vector.load %arg7[%c17, %c0_8, %c0_9] : memref<18x18x128xbf16, #tpu.memory_space<vmem>>, vector<1x18x128xbf16>
    tpu.vector_store %arg7[%c17, %c0_8, %c0_9], %4 {strides = array<i32>} : memref<18x18x128xbf16, #tpu.memory_space<vmem>>, vector<1x18x128xbf16>,
    %c0_10 = arith.constant 0 : index
    %c0_11 = arith.constant 0 : index
    %c0_12 = arith.constant 0 : index
    %8 = vector.load %arg7[%c0_10, %c0_11, %c0_12] : memref<18x18x128xbf16, #tpu.memory_space<vmem>>, vector<18x1x128xbf16>
    tpu.vector_store %arg7[%c0_10, %c0_11, %c0_12], %5 {strides = array<i32>} : memref<18x18x128xbf16, #tpu.memory_space<vmem>>, vector<18x1x128xbf16>,
    %c0_13 = arith.constant 0 : index
    %c17_14 = arith.constant 17 : index
    %c0_15 = arith.constant 0 : index
    %9 = vector.load %arg7[%c0_13, %c17_14, %c0_15] : memref<18x18x128xbf16, #tpu.memory_space<vmem>>, vector<18x1x128xbf16>
    tpu.vector_store %arg7[%c0_13, %c17_14, %c0_15], %5 {strides = array<i32>} : memref<18x18x128xbf16, #tpu.memory_space<vmem>>, vector<18x1x128xbf16>,
    %c1 = arith.constant 1 : index
    %c1_16 = arith.constant 1 : index
    %c0_17 = arith.constant 0 : index
    %10 = vector.load %arg7[%c1, %c1_16, %c0_17] : memref<18x18x128xbf16, #tpu.memory_space<vmem>>, vector<16x16x128xbf16>
    tpu.vector_store %arg7[%c1, %c1_16, %c0_17], %3 {strides = array<i32>} : memref<18x18x128xbf16, #tpu.memory_space<vmem>>, vector<16x16x128xbf16>,
    %c0_18 = arith.constant 0 : index
    %c0_19 = arith.constant 0 : index
    %c0_20 = arith.constant 0 : index
    %11 = vector.load %arg7[%c0_18, %c0_19, %c0_20] : memref<18x18x128xbf16, #tpu.memory_space<vmem>>, vector<16x16x128xbf16>
    %c0_21 = arith.constant 0 : index
    %c1_22 = arith.constant 1 : index
    %c0_23 = arith.constant 0 : index
    %12 = vector.load %arg7[%c0_21, %c1_22, %c0_23] : memref<18x18x128xbf16, #tpu.memory_space<vmem>>, vector<16x16x128xbf16>
    %c0_24 = arith.constant 0 : index
    %c2 = arith.constant 2 : index
    %c0_25 = arith.constant 0 : index
    %13 = vector.load %arg7[%c0_24, %c2, %c0_25] : memref<18x18x128xbf16, #tpu.memory_space<vmem>>, vector<16x16x128xbf16>
    %14 = tpu.concatenate %11, %12, %13 in 2 : vector<16x16x128xbf16>, vector<16x16x128xbf16>, vector<16x16x128xbf16> -> vector<16x16x384xbf16>
    %15 = vector.shape_cast %14 : vector<16x16x384xbf16> to vector<256x384xbf16>
    %c0_26 = arith.constant 0 : index
    %c0_27 = arith.constant 0 : index
    %c0_28 = arith.constant 0 : index
    %16 = vector.load %arg2[%c0_26, %c0_27, %c0_28] : memref<3x384x128xbf16, #tpu.memory_space<vmem>>, vector<1x384x128xbf16>
    %17 = vector.shape_cast %16 : vector<1x384x128xbf16> to vector<384x128xbf16>
    %cst_29 = arith.constant dense<0.000000e+00> : vector<256x128xf32>
    %18 = tpu.matmul %15, %17, %cst_29 {dimension_numbers = #tpu.dot_dimension_numbers<[1], [0], [0], [1], [0, 0, 1, 1], [], []>} : vector<256x384xbf16>, vector<384x128xbf16>, vector<256x128xf32> -> vector<256x128xf32>
    %c1_30 = arith.constant 1 : index
    %c0_31 = arith.constant 0 : index
    %c0_32 = arith.constant 0 : index
    %19 = vector.load %arg7[%c1_30, %c0_31, %c0_32] : memref<18x18x128xbf16, #tpu.memory_space<vmem>>, vector<16x16x128xbf16>
    %c1_33 = arith.constant 1 : index
    %c1_34 = arith.constant 1 : index
    %c0_35 = arith.constant 0 : index
    %20 = vector.load %arg7[%c1_33, %c1_34, %c0_35] : memref<18x18x128xbf16, #tpu.memory_space<vmem>>, vector<16x16x128xbf16>
    %c1_36 = arith.constant 1 : index
    %c2_37 = arith.constant 2 : index
    %c0_38 = arith.constant 0 : index
    %21 = vector.load %arg7[%c1_36, %c2_37, %c0_38] : memref<18x18x128xbf16, #tpu.memory_space<vmem>>, vector<16x16x128xbf16>
    %22 = tpu.concatenate %19, %20, %21 in 2 : vector<16x16x128xbf16>, vector<16x16x128xbf16>, vector<16x16x128xbf16> -> vector<16x16x384xbf16>
    %23 = vector.shape_cast %22 : vector<16x16x384xbf16> to vector<256x384xbf16>
    %c1_39 = arith.constant 1 : index
    %c0_40 = arith.constant 0 : index
    %c0_41 = arith.constant 0 : index
    %24 = vector.load %arg2[%c1_39, %c0_40, %c0_41] : memref<3x384x128xbf16, #tpu.memory_space<vmem>>, vector<1x384x128xbf16>
    %25 = vector.shape_cast %24 : vector<1x384x128xbf16> to vector<384x128xbf16>
    %cst_42 = arith.constant dense<0.000000e+00> : vector<256x128xf32>
    %26 = tpu.matmul %23, %25, %cst_42 {dimension_numbers = #tpu.dot_dimension_numbers<[1], [0], [0], [1], [0, 0, 1, 1], [], []>} : vector<256x384xbf16>, vector<384x128xbf16>, vector<256x128xf32> -> vector<256x128xf32>
    %27 = arith.addf %18, %26 : vector<256x128xf32>
    %c2_43 = arith.constant 2 : index
    %c0_44 = arith.constant 0 : index
    %c0_45 = arith.constant 0 : index
    %28 = vector.load %arg7[%c2_43, %c0_44, %c0_45] : memref<18x18x128xbf16, #tpu.memory_space<vmem>>, vector<16x16x128xbf16>
    %c2_46 = arith.constant 2 : index
    %c1_47 = arith.constant 1 : index
    %c0_48 = arith.constant 0 : index
    %29 = vector.load %arg7[%c2_46, %c1_47, %c0_48] : memref<18x18x128xbf16, #tpu.memory_space<vmem>>, vector<16x16x128xbf16>
    %c2_49 = arith.constant 2 : index
    %c2_50 = arith.constant 2 : index
    %c0_51 = arith.constant 0 : index
    %30 = vector.load %arg7[%c2_49, %c2_50, %c0_51] : memref<18x18x128xbf16, #tpu.memory_space<vmem>>, vector<16x16x128xbf16>
    %31 = tpu.concatenate %28, %29, %30 in 2 : vector<16x16x128xbf16>, vector<16x16x128xbf16>, vector<16x16x128xbf16> -> vector<16x16x384xbf16>
    %32 = vector.shape_cast %31 : vector<16x16x384xbf16> to vector<256x384xbf16>
    %c2_52 = arith.constant 2 : index
    %c0_53 = arith.constant 0 : index
    %c0_54 = arith.constant 0 : index
    %33 = vector.load %arg2[%c2_52, %c0_53, %c0_54] : memref<3x384x128xbf16, #tpu.memory_space<vmem>>, vector<1x384x128xbf16>
    %34 = vector.shape_cast %33 : vector<1x384x128xbf16> to vector<384x128xbf16>
    %cst_55 = arith.constant dense<0.000000e+00> : vector<256x128xf32>
    %35 = tpu.matmul %32, %34, %cst_55 {dimension_numbers = #tpu.dot_dimension_numbers<[1], [0], [0], [1], [0, 0, 1, 1], [], []>} : vector<256x384xbf16>, vector<384x128xbf16>, vector<256x128xf32> -> vector<256x128xf32>
    %36 = arith.addf %27, %35 : vector<256x128xf32>
    %c0_56 = arith.constant 0 : index
    %c0_57 = arith.constant 0 : index
    %c0_58 = arith.constant 0 : index
    %37 = vector.load %arg5[%c0_56, %c0_57, %c0_58] : memref<1x256x128xf32, #tpu.memory_space<vmem>>, vector<1x256x128xf32>
    %38 = vector.shape_cast %37 : vector<1x256x128xf32> to vector<256x128xf32>
    %39 = vector.shape_cast %36 : vector<256x128xf32> to vector<1x256x128xf32>
    tpu.vector_store %arg5[%c0_56, %c0_57, %c0_58], %39 {strides = array<i32>} : memref<1x256x128xf32, #tpu.memory_space<vmem>>, vector<1x256x128xf32>,
    %cst_59 = arith.constant dense<0.000000e+00> : vector<128xf32>
    %40 = vector.multi_reduction <add>, %36, %cst_59 [0] : vector<256x128xf32> to vector<128xf32>
    %41 = vector.shape_cast %40 : vector<128xf32> to vector<1x128xf32>
    %cst_60 = arith.constant 3.906250e-03 : f32
    %42 = vector.broadcast %cst_60 : f32 to vector<1x128xf32>
    %43 = arith.mulf %41, %42 : vector<1x128xf32>
    %44 = vector.broadcast %43 : vector<1x128xf32> to vector<256x128xf32>
    %45 = arith.subf %36, %44 : vector<256x128xf32>
    %c0_61 = arith.constant 0 : index
    %c0_62 = arith.constant 0 : index
    %c0_63 = arith.constant 0 : index
    %46 = vector.load %arg6[%c0_61, %c0_62, %c0_63] : memref<1x2x128xf32, #tpu.memory_space<vmem>>, vector<1x1x128xf32>
    %47 = vector.shape_cast %46 : vector<1x1x128xf32> to vector<1x128xf32>
    %48 = vector.shape_cast %41 : vector<1x128xf32> to vector<1x1x128xf32>
    tpu.vector_store %arg6[%c0_61, %c0_62, %c0_63], %48 {strides = array<i32>} : memref<1x2x128xf32, #tpu.memory_space<vmem>>, vector<1x1x128xf32>,
    %49 = arith.mulf %45, %45 : vector<256x128xf32>
    %cst_64 = arith.constant dense<0.000000e+00> : vector<128xf32>
    %50 = vector.multi_reduction <add>, %49, %cst_64 [0] : vector<256x128xf32> to vector<128xf32>
    %51 = vector.shape_cast %50 : vector<128xf32> to vector<1x128xf32>
    %c0_65 = arith.constant 0 : index
    %c1_66 = arith.constant 1 : index
    %c0_67 = arith.constant 0 : index
    %52 = vector.load %arg6[%c0_65, %c1_66, %c0_67] : memref<1x2x128xf32, #tpu.memory_space<vmem>>, vector<1x1x128xf32>
    %53 = vector.shape_cast %52 : vector<1x1x128xf32> to vector<1x128xf32>
    %54 = vector.shape_cast %51 : vector<1x128xf32> to vector<1x1x128xf32>
    tpu.vector_store %arg6[%c0_65, %c1_66, %c0_67], %54 {strides = array<i32>} : memref<1x2x128xf32, #tpu.memory_space<vmem>>, vector<1x1x128xf32>,
    return
  }
  func.func @transform_0(%arg0: i32) -> (i32, i32, i32, i32) {
    %c0_i32 = arith.constant 0 : i32
    %c0_i32_0 = arith.constant 0 : i32
    %c0_i32_1 = arith.constant 0 : i32
    %c0_i32_2 = arith.constant 0 : i32
    return %arg0, %c0_i32, %c0_i32_0, %c0_i32_1 : i32, i32, i32, i32
  }
  func.func @transform_1(%arg0: i32) -> (i32, i32, i32) {
    %c0_i32 = arith.constant 0 : i32
    %c0_i32_0 = arith.constant 0 : i32
    %c0_i32_1 = arith.constant 0 : i32
    %c0_i32_2 = arith.constant 0 : i32
    return %c0_i32, %c0_i32_0, %c0_i32_1 : i32, i32, i32
  }
  func.func @transform_2(%arg0: i32) -> (i32, i32) {
    %c0_i32 = arith.constant 0 : i32
    %c0_i32_0 = arith.constant 0 : i32
    %c0_i32_1 = arith.constant 0 : i32
    return %c0_i32, %c0_i32_0 : i32, i32
  }
  func.func @transform_3(%arg0: i32) -> (i32, i32) {
    %c0_i32 = arith.constant 0 : i32
    %c0_i32_0 = arith.constant 0 : i32
    %c0_i32_1 = arith.constant 0 : i32
    return %c0_i32, %c0_i32_0 : i32, i32
  }
  func.func @transform_4(%arg0: i32) -> (i32, i32, i32) {
    %c0_i32 = arith.constant 0 : i32
    %c0_i32_0 = arith.constant 0 : i32
    %c0_i32_1 = arith.constant 0 : i32
    return %arg0, %c0_i32, %c0_i32_0 : i32, i32, i32
  }
  func.func @transform_5(%arg0: i32) -> (i32, i32, i32) {
    %c0_i32 = arith.constant 0 : i32
    %c0_i32_0 = arith.constant 0 : i32
    %c0_i32_1 = arith.constant 0 : i32
    return %arg0, %c0_i32, %c0_i32_0 : i32, i32, i32
  }
}

module attributes {stable_mosaic.version = 11 : i64} {
  func.func @conv_bn_stats_kernel(%arg0: i32, %arg1: memref<1x16x16x128xf32, #tpu.memory_space<vmem>>, %arg2: memref<3x384x128xbf16, #tpu.memory_space<vmem>>, %arg3: memref<1x128xf32, #tpu.memory_space<vmem>>, %arg4: memref<1x128xf32, #tpu.memory_space<vmem>>, %arg5: memref<1x256x128xf32, #tpu.memory_space<vmem>>, %arg6: memref<1x2x128xf32, #tpu.memory_space<vmem>>, %arg7: memref<18x18x128xbf16, #tpu.memory_space<vmem>>) attributes {dimension_semantics = [#tpu.dimension_semantics<parallel>], iteration_bounds = array<i64: 2>, scalar_prefetch = 0 : i64, scratch_operands = 1 : i64, tpu.core_type = #tpu.core_type<tc>, window_params = [{transform_indices = @transform_0, window_bounds = array<i64: 1, 16, 16, 128>}, {pipeline_mode = #tpu.pipeline_mode<synchronous>, transform_indices = @transform_1, window_bounds = array<i64: 3, 384, 128>}, {pipeline_mode = #tpu.pipeline_mode<synchronous>, transform_indices = @transform_2, window_bounds = array<i64: 1, 128>}, {pipeline_mode = #tpu.pipeline_mode<synchronous>, transform_indices = @transform_3, window_bounds = array<i64: 1, 128>}, {transform_indices = @transform_4, window_bounds = array<i64: 1, 256, 128>}, {transform_indices = @transform_5, window_bounds = array<i64: 1, 2, 128>}]} {
    %c0 = arith.constant 0 : index
    %c0_0 = arith.constant 0 : index
    %c0_1 = arith.constant 0 : index
    %c0_2 = arith.constant 0 : index
    %0 = vector.load %arg1[%c0, %c0_0, %c0_1, %c0_2] : memref<1x16x16x128xf32, #tpu.memory_space<vmem>>, vector<1x16x16x128xf32>
    %1 = vector.shape_cast %0 : vector<1x16x16x128xf32> to vector<16x16x128xf32>
    %c0_3 = arith.constant 0 : index
    %c0_4 = arith.constant 0 : index
    %2 = vector.load %arg3[%c0_3, %c0_4] : memref<1x128xf32, #tpu.memory_space<vmem>>, vector<1x128xf32>
    %3 = vector.shape_cast %2 : vector<1x128xf32> to vector<1x1x128xf32>
    %4 = vector.broadcast %3 : vector<1x1x128xf32> to vector<16x16x128xf32>
    %5 = arith.mulf %1, %4 : vector<16x16x128xf32>
    %c0_5 = arith.constant 0 : index
    %c0_6 = arith.constant 0 : index
    %6 = vector.load %arg4[%c0_5, %c0_6] : memref<1x128xf32, #tpu.memory_space<vmem>>, vector<1x128xf32>
    %7 = vector.shape_cast %6 : vector<1x128xf32> to vector<1x1x128xf32>
    %8 = vector.broadcast %7 : vector<1x1x128xf32> to vector<16x16x128xf32>
    %9 = arith.addf %5, %8 : vector<16x16x128xf32>
    %cst = arith.constant 0.000000e+00 : f32
    %10 = vector.broadcast %cst : f32 to vector<16x16x128xf32>
    %11 = arith.maximumf %9, %10 : vector<16x16x128xf32>
    %cst_7 = arith.constant 0.000000e+00 : bf16
    %12 = vector.broadcast %cst_7 : bf16 to vector<1x18x128xbf16>
    %cst_8 = arith.constant 0.000000e+00 : bf16
    %13 = vector.broadcast %cst_8 : bf16 to vector<18x1x128xbf16>
    %c0_9 = arith.constant 0 : index
    %c0_10 = arith.constant 0 : index
    %c0_11 = arith.constant 0 : index
    %14 = vector.load %arg7[%c0_9, %c0_10, %c0_11] : memref<18x18x128xbf16, #tpu.memory_space<vmem>>, vector<1x18x128xbf16>
    tpu.vector_store %arg7[%c0_9, %c0_10, %c0_11], %12 {strides = array<i32>} : memref<18x18x128xbf16, #tpu.memory_space<vmem>>, vector<1x18x128xbf16>,
    %c17 = arith.constant 17 : index
    %c0_12 = arith.constant 0 : index
    %c0_13 = arith.constant 0 : index
    %15 = vector.load %arg7[%c17, %c0_12, %c0_13] : memref<18x18x128xbf16, #tpu.memory_space<vmem>>, vector<1x18x128xbf16>
    tpu.vector_store %arg7[%c17, %c0_12, %c0_13], %12 {strides = array<i32>} : memref<18x18x128xbf16, #tpu.memory_space<vmem>>, vector<1x18x128xbf16>,
    %c0_14 = arith.constant 0 : index
    %c0_15 = arith.constant 0 : index
    %c0_16 = arith.constant 0 : index
    %16 = vector.load %arg7[%c0_14, %c0_15, %c0_16] : memref<18x18x128xbf16, #tpu.memory_space<vmem>>, vector<18x1x128xbf16>
    tpu.vector_store %arg7[%c0_14, %c0_15, %c0_16], %13 {strides = array<i32>} : memref<18x18x128xbf16, #tpu.memory_space<vmem>>, vector<18x1x128xbf16>,
    %c0_17 = arith.constant 0 : index
    %c17_18 = arith.constant 17 : index
    %c0_19 = arith.constant 0 : index
    %17 = vector.load %arg7[%c0_17, %c17_18, %c0_19] : memref<18x18x128xbf16, #tpu.memory_space<vmem>>, vector<18x1x128xbf16>
    tpu.vector_store %arg7[%c0_17, %c17_18, %c0_19], %13 {strides = array<i32>} : memref<18x18x128xbf16, #tpu.memory_space<vmem>>, vector<18x1x128xbf16>,
    %18 = arith.truncf %11 : vector<16x16x128xf32> to vector<16x16x128xbf16>
    %c1 = arith.constant 1 : index
    %c1_20 = arith.constant 1 : index
    %c0_21 = arith.constant 0 : index
    %19 = vector.load %arg7[%c1, %c1_20, %c0_21] : memref<18x18x128xbf16, #tpu.memory_space<vmem>>, vector<16x16x128xbf16>
    tpu.vector_store %arg7[%c1, %c1_20, %c0_21], %18 {strides = array<i32>} : memref<18x18x128xbf16, #tpu.memory_space<vmem>>, vector<16x16x128xbf16>,
    %c0_22 = arith.constant 0 : index
    %c0_23 = arith.constant 0 : index
    %c0_24 = arith.constant 0 : index
    %20 = vector.load %arg7[%c0_22, %c0_23, %c0_24] : memref<18x18x128xbf16, #tpu.memory_space<vmem>>, vector<16x16x128xbf16>
    %c0_25 = arith.constant 0 : index
    %c1_26 = arith.constant 1 : index
    %c0_27 = arith.constant 0 : index
    %21 = vector.load %arg7[%c0_25, %c1_26, %c0_27] : memref<18x18x128xbf16, #tpu.memory_space<vmem>>, vector<16x16x128xbf16>
    %c0_28 = arith.constant 0 : index
    %c2 = arith.constant 2 : index
    %c0_29 = arith.constant 0 : index
    %22 = vector.load %arg7[%c0_28, %c2, %c0_29] : memref<18x18x128xbf16, #tpu.memory_space<vmem>>, vector<16x16x128xbf16>
    %23 = tpu.concatenate %20, %21, %22 in 2 : vector<16x16x128xbf16>, vector<16x16x128xbf16>, vector<16x16x128xbf16> -> vector<16x16x384xbf16>
    %24 = vector.shape_cast %23 : vector<16x16x384xbf16> to vector<256x384xbf16>
    %c0_30 = arith.constant 0 : index
    %c0_31 = arith.constant 0 : index
    %c0_32 = arith.constant 0 : index
    %25 = vector.load %arg2[%c0_30, %c0_31, %c0_32] : memref<3x384x128xbf16, #tpu.memory_space<vmem>>, vector<1x384x128xbf16>
    %26 = vector.shape_cast %25 : vector<1x384x128xbf16> to vector<384x128xbf16>
    %cst_33 = arith.constant dense<0.000000e+00> : vector<256x128xf32>
    %27 = tpu.matmul %24, %26, %cst_33 {dimension_numbers = #tpu.dot_dimension_numbers<[1], [0], [0], [1], [0, 0, 1, 1], [], []>} : vector<256x384xbf16>, vector<384x128xbf16>, vector<256x128xf32> -> vector<256x128xf32>
    %c1_34 = arith.constant 1 : index
    %c0_35 = arith.constant 0 : index
    %c0_36 = arith.constant 0 : index
    %28 = vector.load %arg7[%c1_34, %c0_35, %c0_36] : memref<18x18x128xbf16, #tpu.memory_space<vmem>>, vector<16x16x128xbf16>
    %c1_37 = arith.constant 1 : index
    %c1_38 = arith.constant 1 : index
    %c0_39 = arith.constant 0 : index
    %29 = vector.load %arg7[%c1_37, %c1_38, %c0_39] : memref<18x18x128xbf16, #tpu.memory_space<vmem>>, vector<16x16x128xbf16>
    %c1_40 = arith.constant 1 : index
    %c2_41 = arith.constant 2 : index
    %c0_42 = arith.constant 0 : index
    %30 = vector.load %arg7[%c1_40, %c2_41, %c0_42] : memref<18x18x128xbf16, #tpu.memory_space<vmem>>, vector<16x16x128xbf16>
    %31 = tpu.concatenate %28, %29, %30 in 2 : vector<16x16x128xbf16>, vector<16x16x128xbf16>, vector<16x16x128xbf16> -> vector<16x16x384xbf16>
    %32 = vector.shape_cast %31 : vector<16x16x384xbf16> to vector<256x384xbf16>
    %c1_43 = arith.constant 1 : index
    %c0_44 = arith.constant 0 : index
    %c0_45 = arith.constant 0 : index
    %33 = vector.load %arg2[%c1_43, %c0_44, %c0_45] : memref<3x384x128xbf16, #tpu.memory_space<vmem>>, vector<1x384x128xbf16>
    %34 = vector.shape_cast %33 : vector<1x384x128xbf16> to vector<384x128xbf16>
    %cst_46 = arith.constant dense<0.000000e+00> : vector<256x128xf32>
    %35 = tpu.matmul %32, %34, %cst_46 {dimension_numbers = #tpu.dot_dimension_numbers<[1], [0], [0], [1], [0, 0, 1, 1], [], []>} : vector<256x384xbf16>, vector<384x128xbf16>, vector<256x128xf32> -> vector<256x128xf32>
    %36 = arith.addf %27, %35 : vector<256x128xf32>
    %c2_47 = arith.constant 2 : index
    %c0_48 = arith.constant 0 : index
    %c0_49 = arith.constant 0 : index
    %37 = vector.load %arg7[%c2_47, %c0_48, %c0_49] : memref<18x18x128xbf16, #tpu.memory_space<vmem>>, vector<16x16x128xbf16>
    %c2_50 = arith.constant 2 : index
    %c1_51 = arith.constant 1 : index
    %c0_52 = arith.constant 0 : index
    %38 = vector.load %arg7[%c2_50, %c1_51, %c0_52] : memref<18x18x128xbf16, #tpu.memory_space<vmem>>, vector<16x16x128xbf16>
    %c2_53 = arith.constant 2 : index
    %c2_54 = arith.constant 2 : index
    %c0_55 = arith.constant 0 : index
    %39 = vector.load %arg7[%c2_53, %c2_54, %c0_55] : memref<18x18x128xbf16, #tpu.memory_space<vmem>>, vector<16x16x128xbf16>
    %40 = tpu.concatenate %37, %38, %39 in 2 : vector<16x16x128xbf16>, vector<16x16x128xbf16>, vector<16x16x128xbf16> -> vector<16x16x384xbf16>
    %41 = vector.shape_cast %40 : vector<16x16x384xbf16> to vector<256x384xbf16>
    %c2_56 = arith.constant 2 : index
    %c0_57 = arith.constant 0 : index
    %c0_58 = arith.constant 0 : index
    %42 = vector.load %arg2[%c2_56, %c0_57, %c0_58] : memref<3x384x128xbf16, #tpu.memory_space<vmem>>, vector<1x384x128xbf16>
    %43 = vector.shape_cast %42 : vector<1x384x128xbf16> to vector<384x128xbf16>
    %cst_59 = arith.constant dense<0.000000e+00> : vector<256x128xf32>
    %44 = tpu.matmul %41, %43, %cst_59 {dimension_numbers = #tpu.dot_dimension_numbers<[1], [0], [0], [1], [0, 0, 1, 1], [], []>} : vector<256x384xbf16>, vector<384x128xbf16>, vector<256x128xf32> -> vector<256x128xf32>
    %45 = arith.addf %36, %44 : vector<256x128xf32>
    %c0_60 = arith.constant 0 : index
    %c0_61 = arith.constant 0 : index
    %c0_62 = arith.constant 0 : index
    %46 = vector.load %arg5[%c0_60, %c0_61, %c0_62] : memref<1x256x128xf32, #tpu.memory_space<vmem>>, vector<1x256x128xf32>
    %47 = vector.shape_cast %46 : vector<1x256x128xf32> to vector<256x128xf32>
    %48 = vector.shape_cast %45 : vector<256x128xf32> to vector<1x256x128xf32>
    tpu.vector_store %arg5[%c0_60, %c0_61, %c0_62], %48 {strides = array<i32>} : memref<1x256x128xf32, #tpu.memory_space<vmem>>, vector<1x256x128xf32>,
    %cst_63 = arith.constant dense<0.000000e+00> : vector<128xf32>
    %49 = vector.multi_reduction <add>, %45, %cst_63 [0] : vector<256x128xf32> to vector<128xf32>
    %50 = vector.shape_cast %49 : vector<128xf32> to vector<1x128xf32>
    %cst_64 = arith.constant 3.906250e-03 : f32
    %51 = vector.broadcast %cst_64 : f32 to vector<1x128xf32>
    %52 = arith.mulf %50, %51 : vector<1x128xf32>
    %53 = vector.broadcast %52 : vector<1x128xf32> to vector<256x128xf32>
    %54 = arith.subf %45, %53 : vector<256x128xf32>
    %c0_65 = arith.constant 0 : index
    %c0_66 = arith.constant 0 : index
    %c0_67 = arith.constant 0 : index
    %55 = vector.load %arg6[%c0_65, %c0_66, %c0_67] : memref<1x2x128xf32, #tpu.memory_space<vmem>>, vector<1x1x128xf32>
    %56 = vector.shape_cast %55 : vector<1x1x128xf32> to vector<1x128xf32>
    %57 = vector.shape_cast %50 : vector<1x128xf32> to vector<1x1x128xf32>
    tpu.vector_store %arg6[%c0_65, %c0_66, %c0_67], %57 {strides = array<i32>} : memref<1x2x128xf32, #tpu.memory_space<vmem>>, vector<1x1x128xf32>,
    %58 = arith.mulf %54, %54 : vector<256x128xf32>
    %cst_68 = arith.constant dense<0.000000e+00> : vector<128xf32>
    %59 = vector.multi_reduction <add>, %58, %cst_68 [0] : vector<256x128xf32> to vector<128xf32>
    %60 = vector.shape_cast %59 : vector<128xf32> to vector<1x128xf32>
    %c0_69 = arith.constant 0 : index
    %c1_70 = arith.constant 1 : index
    %c0_71 = arith.constant 0 : index
    %61 = vector.load %arg6[%c0_69, %c1_70, %c0_71] : memref<1x2x128xf32, #tpu.memory_space<vmem>>, vector<1x1x128xf32>
    %62 = vector.shape_cast %61 : vector<1x1x128xf32> to vector<1x128xf32>
    %63 = vector.shape_cast %60 : vector<1x128xf32> to vector<1x1x128xf32>
    tpu.vector_store %arg6[%c0_69, %c1_70, %c0_71], %63 {strides = array<i32>} : memref<1x2x128xf32, #tpu.memory_space<vmem>>, vector<1x1x128xf32>,
    return
  }
  func.func @transform_0(%arg0: i32) -> (i32, i32, i32, i32) {
    %c0_i32 = arith.constant 0 : i32
    %c0_i32_0 = arith.constant 0 : i32
    %c0_i32_1 = arith.constant 0 : i32
    %c0_i32_2 = arith.constant 0 : i32
    return %arg0, %c0_i32, %c0_i32_0, %c0_i32_1 : i32, i32, i32, i32
  }
  func.func @transform_1(%arg0: i32) -> (i32, i32, i32) {
    %c0_i32 = arith.constant 0 : i32
    %c0_i32_0 = arith.constant 0 : i32
    %c0_i32_1 = arith.constant 0 : i32
    %c0_i32_2 = arith.constant 0 : i32
    return %c0_i32, %c0_i32_0, %c0_i32_1 : i32, i32, i32
  }
  func.func @transform_2(%arg0: i32) -> (i32, i32) {
    %c0_i32 = arith.constant 0 : i32
    %c0_i32_0 = arith.constant 0 : i32
    %c0_i32_1 = arith.constant 0 : i32
    return %c0_i32, %c0_i32_0 : i32, i32
  }
  func.func @transform_3(%arg0: i32) -> (i32, i32) {
    %c0_i32 = arith.constant 0 : i32
    %c0_i32_0 = arith.constant 0 : i32
    %c0_i32_1 = arith.constant 0 : i32
    return %c0_i32, %c0_i32_0 : i32, i32
  }
  func.func @transform_4(%arg0: i32) -> (i32, i32, i32) {
    %c0_i32 = arith.constant 0 : i32
    %c0_i32_0 = arith.constant 0 : i32
    %c0_i32_1 = arith.constant 0 : i32
    return %arg0, %c0_i32, %c0_i32_0 : i32, i32, i32
  }
  func.func @transform_5(%arg0: i32) -> (i32, i32, i32) {
    %c0_i32 = arith.constant 0 : i32
    %c0_i32_0 = arith.constant 0 : i32
    %c0_i32_1 = arith.constant 0 : i32
    return %arg0, %c0_i32, %c0_i32_0 : i32, i32, i32
  }
}

module attributes {stable_mosaic.version = 11 : i64} {
  func.func @bn_affine_kernel(%arg0: i32, %arg1: memref<512x128xf32, #tpu.memory_space<vmem>>, %arg2: memref<1x128xf32, #tpu.memory_space<vmem>>, %arg3: memref<1x128xf32, #tpu.memory_space<vmem>>, %arg4: memref<512x128xf32, #tpu.memory_space<vmem>>) attributes {dimension_semantics = [#tpu.dimension_semantics<parallel>], iteration_bounds = array<i64: 1>, scalar_prefetch = 0 : i64, scratch_operands = 0 : i64, tpu.core_type = #tpu.core_type<tc>, window_params = [{transform_indices = @transform_0, window_bounds = array<i64: 512, 128>}, {pipeline_mode = #tpu.pipeline_mode<synchronous>, transform_indices = @transform_1, window_bounds = array<i64: 1, 128>}, {pipeline_mode = #tpu.pipeline_mode<synchronous>, transform_indices = @transform_2, window_bounds = array<i64: 1, 128>}, {transform_indices = @transform_3, window_bounds = array<i64: 512, 128>}]} {
    %c0 = arith.constant 0 : index
    %c0_0 = arith.constant 0 : index
    %0 = vector.load %arg1[%c0, %c0_0] : memref<512x128xf32, #tpu.memory_space<vmem>>, vector<512x128xf32>
    %c0_1 = arith.constant 0 : index
    %c0_2 = arith.constant 0 : index
    %1 = vector.load %arg2[%c0_1, %c0_2] : memref<1x128xf32, #tpu.memory_space<vmem>>, vector<1x128xf32>
    %2 = vector.broadcast %1 : vector<1x128xf32> to vector<512x128xf32>
    %3 = arith.mulf %0, %2 : vector<512x128xf32>
    %c0_3 = arith.constant 0 : index
    %c0_4 = arith.constant 0 : index
    %4 = vector.load %arg3[%c0_3, %c0_4] : memref<1x128xf32, #tpu.memory_space<vmem>>, vector<1x128xf32>
    %5 = vector.broadcast %4 : vector<1x128xf32> to vector<512x128xf32>
    %6 = arith.addf %3, %5 : vector<512x128xf32>
    %c0_5 = arith.constant 0 : index
    %c0_6 = arith.constant 0 : index
    %7 = vector.load %arg4[%c0_5, %c0_6] : memref<512x128xf32, #tpu.memory_space<vmem>>, vector<512x128xf32>
    tpu.vector_store %arg4[%c0_5, %c0_6], %6 {strides = array<i32>} : memref<512x128xf32, #tpu.memory_space<vmem>>, vector<512x128xf32>,
    return
  }
  func.func @transform_0(%arg0: i32) -> (i32, i32) {
    %c0_i32 = arith.constant 0 : i32
    %c0_i32_0 = arith.constant 0 : i32
    return %arg0, %c0_i32 : i32, i32
  }
  func.func @transform_1(%arg0: i32) -> (i32, i32) {
    %c0_i32 = arith.constant 0 : i32
    %c0_i32_0 = arith.constant 0 : i32
    %c0_i32_1 = arith.constant 0 : i32
    return %c0_i32, %c0_i32_0 : i32, i32
  }
  func.func @transform_2(%arg0: i32) -> (i32, i32) {
    %c0_i32 = arith.constant 0 : i32
    %c0_i32_0 = arith.constant 0 : i32
    %c0_i32_1 = arith.constant 0 : i32
    return %c0_i32, %c0_i32_0 : i32, i32
  }
  func.func @transform_3(%arg0: i32) -> (i32, i32) {
    %c0_i32 = arith.constant 0 : i32
    %c0_i32_0 = arith.constant 0 : i32
    return %arg0, %c0_i32 : i32, i32
  }
}

</mosaic_0001>

<llo_original>
// kernel: basic_block_woskip.5
$region0: #{basic_block_woskip.5}
  #allocation0 [shape = 'u32[]', space=smem, size = 0x4, offset = 0x4, fixed_abs, tag = 'smem constant byte address 0x4 - core index']
  #allocation1 [shape = 'u32[144,128]{1,0:T(1,128)}', space=vmem, size = 0x12000, scoped, tag = 'internal scratch']
  %s0 = inlined_call_operand.vmem [shape: f32[512,128], index: 0, kind: input, shape index: {}]
  %s1 = inlined_call_operand.vmem [shape: f32[1,128], index: 1, kind: input, shape index: {}]
  %s2 = inlined_call_operand.vmem [shape: f32[1,128], index: 2, kind: input, shape index: {}]
  %s3 = inlined_call_operand.vmem [shape: f32[512,128], index: 3, kind: output, shape index: {}]
  %s4 = sld [smem:[#allocation0]]
  $region22: #{basic_block_woskip.5} parent=0
    _
  %s6 = ssub.s32 1, %s4
  %s7 = scalar_select 0, %s6, %s4
  // Predicated region
  $region2: #{basic_block_woskip.5} parent=0 // pred_check
    _
  $region3: #{basic_block_woskip.5} parent=0 // pred_check_branch
    %9 = sbr.rel (0) target = $region5
  $region4: #{basic_block_woskip.5} parent=0 // pred_region
    _
  $region5: #{basic_block_woskip.5} parent=0 // pred_fallthru
    _
  // Predicated region
  $region6: #{basic_block_woskip.5} parent=0 // pred_check
    _
  $region7: #{basic_block_woskip.5} parent=0 // pred_check_branch
    %11 = sbr.rel (0) target = $region9
  $region8: #{basic_block_woskip.5} parent=0 // pred_region
    _
  $region9: #{basic_block_woskip.5} parent=0 // pred_fallthru
    _
  // Predicated region
  $region10: #{basic_block_woskip.5} parent=0 // pred_check
    _
  $region11: #{basic_block_woskip.5} parent=0 // pred_check_branch
    %13 = sbr.rel (0) target = $region13
  $region12: #{basic_block_woskip.5} parent=0 // pred_region
    _
  $region13: #{basic_block_woskip.5} parent=0 // pred_fallthru
    _
  %v14 = vld [vmem:[%s0] sm:$0xff]
  %v15 = vld [vmem:[%s0 + $0x8] sm:$0xff]
  %v16 = vld [vmem:[%s0 + $0x10] sm:$0xff]
  %v17 = vld [vmem:[%s0 + $0x18] sm:$0xff]
  %v18 = vld [vmem:[%s0 + $0x20] sm:$0xff]
  %v19 = vld [vmem:[%s0 + $0x28] sm:$0xff]
  %v20 = vld [vmem:[%s0 + $0x30] sm:$0xff]
  %v21 = vld [vmem:[%s0 + $0x38] sm:$0xff]
  %v22 = vld [vmem:[%s0 + $0x40] sm:$0xff]
  %v23 = vld [vmem:[%s0 + $0x48] sm:$0xff]
  %v24 = vld [vmem:[%s0 + $0x50] sm:$0xff]
  %v25 = vld [vmem:[%s0 + $0x58] sm:$0xff]
  %v26 = vld [vmem:[%s0 + $0x60] sm:$0xff]
  %v27 = vld [vmem:[%s0 + $0x68] sm:$0xff]
  %v28 = vld [vmem:[%s0 + $0x70] sm:$0xff]
  %v29 = vld [vmem:[%s0 + $0x78] sm:$0xff]
  %v30 = vld [vmem:[%s0 + $0x80] sm:$0xff]
  %v31 = vld [vmem:[%s0 + $0x88] sm:$0xff]
  %v32 = vld [vmem:[%s0 + $0x90] sm:$0xff]
  %v33 = vld [vmem:[%s0 + $0x98] sm:$0xff]
  %v34 = vld [vmem:[%s0 + $0xa0] sm:$0xff]
  %v35 = vld [vmem:[%s0 + $0xa8] sm:$0xff]
  %v36 = vld [vmem:[%s0 + $0xb0] sm:$0xff]
  %v37 = vld [vmem:[%s0 + $0xb8] sm:$0xff]
  %v38 = vld [vmem:[%s0 + $0xc0] sm:$0xff]
  %v39 = vld [vmem:[%s0 + $0xc8] sm:$0xff]
  %v40 = vld [vmem:[%s0 + $0xd0] sm:$0xff]
  %v41 = vld [vmem:[%s0 + $0xd8] sm:$0xff]
  %v42 = vld [vmem:[%s0 + $0xe0] sm:$0xff]
  %v43 = vld [vmem:[%s0 + $0xe8] sm:$0xff]
  %v44 = vld [vmem:[%s0 + $0xf0] sm:$0xff]
  %v45 = vld [vmem:[%s0 + $0xf8] sm:$0xff]
  %v46 = vld [vmem:[%s0 + $0x100] sm:$0xff]
  %v47 = vld [vmem:[%s0 + $0x108] sm:$0xff]
  %v48 = vld [vmem:[%s0 + $0x110] sm:$0xff]
  %v49 = vld [vmem:[%s0 + $0x118] sm:$0xff]
  %v50 = vld [vmem:[%s0 + $0x120] sm:$0xff]
  %v51 = vld [vmem:[%s0 + $0x128] sm:$0xff]
  %v52 = vld [vmem:[%s0 + $0x130] sm:$0xff]
  %v53 = vld [vmem:[%s0 + $0x138] sm:$0xff]
  %v54 = vld [vmem:[%s0 + $0x140] sm:$0xff]
  %v55 = vld [vmem:[%s0 + $0x148] sm:$0xff]
  %v56 = vld [vmem:[%s0 + $0x150] sm:$0xff]
  %v57 = vld [vmem:[%s0 + $0x158] sm:$0xff]
  %v58 = vld [vmem:[%s0 + $0x160] sm:$0xff]
  %v59 = vld [vmem:[%s0 + $0x168] sm:$0xff]
  %v60 = vld [vmem:[%s0 + $0x170] sm:$0xff]
  %v61 = vld [vmem:[%s0 + $0x178] sm:$0xff]
  %v62 = vld [vmem:[%s0 + $0x180] sm:$0xff]
  %v63 = vld [vmem:[%s0 + $0x188] sm:$0xff]
  %v64 = vld [vmem:[%s0 + $0x190] sm:$0xff]
  %v65 = vld [vmem:[%s0 + $0x198] sm:$0xff]
  %v66 = vld [vmem:[%s0 + $0x1a0] sm:$0xff]
  %v67 = vld [vmem:[%s0 + $0x1a8] sm:$0xff]
  %v68 = vld [vmem:[%s0 + $0x1b0] sm:$0xff]
  %v69 = vld [vmem:[%s0 + $0x1b8] sm:$0xff]
  %v70 = vld [vmem:[%s0 + $0x1c0] sm:$0xff]
  %v71 = vld [vmem:[%s0 + $0x1c8] sm:$0xff]
  %v72 = vld [vmem:[%s0 + $0x1d0] sm:$0xff]
  %v73 = vld [vmem:[%s0 + $0x1d8] sm:$0xff]
  %v74 = vld [vmem:[%s0 + $0x1e0] sm:$0xff]
  %v75 = vld [vmem:[%s0 + $0x1e8] sm:$0xff]
  %v76 = vld [vmem:[%s0 + $0x1f0] sm:$0xff]
  %v77 = vld [vmem:[%s0 + $0x1f8] sm:$0xff]
  %v78 = vld [vmem:[%s1] sm:$0x1]
  %v80 = vlaneseq
  %v81 = vshrl.u32 %v80, 7
  %v82 = vsub.s32 0, %v81
  %v83 = vrot.slane %v78, %v82
  %v85 = vmul.f32 %v14, %v83
  %v86 = vmul.f32 %v15, %v83
  %v87 = vmul.f32 %v16, %v83
  %v88 = vmul.f32 %v17, %v83
  %v89 = vmul.f32 %v18, %v83
  %v90 = vmul.f32 %v19, %v83
  %v91 = vmul.f32 %v20, %v83
  %v92 = vmul.f32 %v21, %v83
  %v93 = vmul.f32 %v22, %v83
  %v94 = vmul.f32 %v23, %v83
  %v95 = vmul.f32 %v24, %v83
  %v96 = vmul.f32 %v25, %v83
  %v97 = vmul.f32 %v26, %v83
  %v98 = vmul.f32 %v27, %v83
  %v99 = vmul.f32 %v28, %v83
  %v100 = vmul.f32 %v29, %v83
  %v101 = vmul.f32 %v30, %v83
  %v102 = vmul.f32 %v31, %v83
  %v103 = vmul.f32 %v32, %v83
  %v104 = vmul.f32 %v33, %v83
  %v105 = vmul.f32 %v34, %v83
  %v106 = vmul.f32 %v35, %v83
  %v107 = vmul.f32 %v36, %v83
  %v108 = vmul.f32 %v37, %v83
  %v109 = vmul.f32 %v38, %v83
  %v110 = vmul.f32 %v39, %v83
  %v111 = vmul.f32 %v40, %v83
  %v112 = vmul.f32 %v41, %v83
  %v113 = vmul.f32 %v42, %v83
  %v114 = vmul.f32 %v43, %v83
  %v115 = vmul.f32 %v44, %v83
  %v116 = vmul.f32 %v45, %v83
  %v117 = vmul.f32 %v46, %v83
  %v118 = vmul.f32 %v47, %v83
  %v119 = vmul.f32 %v48, %v83
  %v120 = vmul.f32 %v49, %v83
  %v121 = vmul.f32 %v50, %v83
  %v122 = vmul.f32 %v51, %v83
  %v123 = vmul.f32 %v52, %v83
  %v124 = vmul.f32 %v53, %v83
  %v125 = vmul.f32 %v54, %v83
  %v126 = vmul.f32 %v55, %v83
  %v127 = vmul.f32 %v56, %v83
  %v128 = vmul.f32 %v57, %v83
  %v129 = vmul.f32 %v58, %v83
  %v130 = vmul.f32 %v59, %v83
  %v131 = vmul.f32 %v60, %v83
  %v132 = vmul.f32 %v61, %v83
  %v133 = vmul.f32 %v62, %v83
  %v134 = vmul.f32 %v63, %v83
  %v135 = vmul.f32 %v64, %v83
  %v136 = vmul.f32 %v65, %v83
  %v137 = vmul.f32 %v66, %v83
  %v138 = vmul.f32 %v67, %v83
  %v139 = vmul.f32 %v68, %v83
  %v140 = vmul.f32 %v69, %v83
  %v141 = vmul.f32 %v70, %v83
  %v142 = vmul.f32 %v71, %v83
  %v143 = vmul.f32 %v72, %v83
  %v144 = vmul.f32 %v73, %v83
  %v145 = vmul.f32 %v74, %v83
  %v146 = vmul.f32 %v75, %v83
  %v147 = vmul.f32 %v76, %v83
  %v148 = vmul.f32 %v77, %v83
  %v149 = vld [vmem:[%s2] sm:$0x1]
  %v151 = vlaneseq
  %v152 = vshrl.u32 %v151, 7
  %v153 = vsub.s32 0, %v152
  %v154 = vrot.slane %v149, %v153
  %v156 = vadd.f32 %v85, %v154
  %v157 = vadd.f32 %v86, %v154
  %v158 = vadd.f32 %v87, %v154
  %v159 = vadd.f32 %v88, %v154
  %v160 = vadd.f32 %v89, %v154
  %v161 = vadd.f32 %v90, %v154
  %v162 = vadd.f32 %v91, %v154
  %v163 = vadd.f32 %v92, %v154
  %v164 = vadd.f32 %v93, %v154
  %v165 = vadd.f32 %v94, %v154
  %v166 = vadd.f32 %v95, %v154
  %v167 = vadd.f32 %v96, %v154
  %v168 = vadd.f32 %v97, %v154
  %v169 = vadd.f32 %v98, %v154
  %v170 = vadd.f32 %v99, %v154
  %v171 = vadd.f32 %v100, %v154
  %v172 = vadd.f32 %v101, %v154
  %v173 = vadd.f32 %v102, %v154
  %v174 = vadd.f32 %v103, %v154
  %v175 = vadd.f32 %v104, %v154
  %v176 = vadd.f32 %v105, %v154
  %v177 = vadd.f32 %v106, %v154
  %v178 = vadd.f32 %v107, %v154
  %v179 = vadd.f32 %v108, %v154
  %v180 = vadd.f32 %v109, %v154
  %v181 = vadd.f32 %v110, %v154
  %v182 = vadd.f32 %v111, %v154
  %v183 = vadd.f32 %v112, %v154
  %v184 = vadd.f32 %v113, %v154
  %v185 = vadd.f32 %v114, %v154
  %v186 = vadd.f32 %v115, %v154
  %v187 = vadd.f32 %v116, %v154
  %v188 = vadd.f32 %v117, %v154
  %v189 = vadd.f32 %v118, %v154
  %v190 = vadd.f32 %v119, %v154
  %v191 = vadd.f32 %v120, %v154
  %v192 = vadd.f32 %v121, %v154
  %v193 = vadd.f32 %v122, %v154
  %v194 = vadd.f32 %v123, %v154
  %v195 = vadd.f32 %v124, %v154
  %v196 = vadd.f32 %v125, %v154
  %v197 = vadd.f32 %v126, %v154
  %v198 = vadd.f32 %v127, %v154
  %v199 = vadd.f32 %v128, %v154
  %v200 = vadd.f32 %v129, %v154
  %v201 = vadd.f32 %v130, %v154
  %v202 = vadd.f32 %v131, %v154
  %v203 = vadd.f32 %v132, %v154
  %v204 = vadd.f32 %v133, %v154
  %v205 = vadd.f32 %v134, %v154
  %v206 = vadd.f32 %v135, %v154
  %v207 = vadd.f32 %v136, %v154
  %v208 = vadd.f32 %v137, %v154
  %v209 = vadd.f32 %v138, %v154
  %v210 = vadd.f32 %v139, %v154
  %v211 = vadd.f32 %v140, %v154
  %v212 = vadd.f32 %v141, %v154
  %v213 = vadd.f32 %v142, %v154
  %v214 = vadd.f32 %v143, %v154
  %v215 = vadd.f32 %v144, %v154
  %v216 = vadd.f32 %v145, %v154
  %v217 = vadd.f32 %v146, %v154
  %v218 = vadd.f32 %v147, %v154
  %v219 = vadd.f32 %v148, %v154
  %220 = vst [vmem:[%s3] sm:$0xff] %v156
  %221 = vst [vmem:[%s3 + $0x8] sm:$0xff] %v157
  %222 = vst [vmem:[%s3 + $0x10] sm:$0xff] %v158
  %223 = vst [vmem:[%s3 + $0x18] sm:$0xff] %v159
  %224 = vst [vmem:[%s3 + $0x20] sm:$0xff] %v160
  %225 = vst [vmem:[%s3 + $0x28] sm:$0xff] %v161
  %226 = vst [vmem:[%s3 + $0x30] sm:$0xff] %v162
  %227 = vst [vmem:[%s3 + $0x38] sm:$0xff] %v163
  %228 = vst [vmem:[%s3 + $0x40] sm:$0xff] %v164
  %229 = vst [vmem:[%s3 + $0x48] sm:$0xff] %v165
  %230 = vst [vmem:[%s3 + $0x50] sm:$0xff] %v166
  %231 = vst [vmem:[%s3 + $0x58] sm:$0xff] %v167
  %232 = vst [vmem:[%s3 + $0x60] sm:$0xff] %v168
  %233 = vst [vmem:[%s3 + $0x68] sm:$0xff] %v169
  %234 = vst [vmem:[%s3 + $0x70] sm:$0xff] %v170
  %235 = vst [vmem:[%s3 + $0x78] sm:$0xff] %v171
  %236 = vst [vmem:[%s3 + $0x80] sm:$0xff] %v172
  %237 = vst [vmem:[%s3 + $0x88] sm:$0xff] %v173
  %238 = vst [vmem:[%s3 + $0x90] sm:$0xff] %v174
  %239 = vst [vmem:[%s3 + $0x98] sm:$0xff] %v175
  %240 = vst [vmem:[%s3 + $0xa0] sm:$0xff] %v176
  %241 = vst [vmem:[%s3 + $0xa8] sm:$0xff] %v177
  %242 = vst [vmem:[%s3 + $0xb0] sm:$0xff] %v178
  %243 = vst [vmem:[%s3 + $0xb8] sm:$0xff] %v179
  %244 = vst [vmem:[%s3 + $0xc0] sm:$0xff] %v180
  %245 = vst [vmem:[%s3 + $0xc8] sm:$0xff] %v181
  %246 = vst [vmem:[%s3 + $0xd0] sm:$0xff] %v182
  %247 = vst [vmem:[%s3 + $0xd8] sm:$0xff] %v183
  %248 = vst [vmem:[%s3 + $0xe0] sm:$0xff] %v184
  %249 = vst [vmem:[%s3 + $0xe8] sm:$0xff] %v185
  %250 = vst [vmem:[%s3 + $0xf0] sm:$0xff] %v186
  %251 = vst [vmem:[%s3 + $0xf8] sm:$0xff] %v187
  %252 = vst [vmem:[%s3 + $0x100] sm:$0xff] %v188
  %253 = vst [vmem:[%s3 + $0x108] sm:$0xff] %v189
  %254 = vst [vmem:[%s3 + $0x110] sm:$0xff] %v190
  %255 = vst [vmem:[%s3 + $0x118] sm:$0xff] %v191
  %256 = vst [vmem:[%s3 + $0x120] sm:$0xff] %v192
  %257 = vst [vmem:[%s3 + $0x128] sm:$0xff] %v193
  %258 = vst [vmem:[%s3 + $0x130] sm:$0xff] %v194
  %259 = vst [vmem:[%s3 + $0x138] sm:$0xff] %v195
  %260 = vst [vmem:[%s3 + $0x140] sm:$0xff] %v196
  %261 = vst [vmem:[%s3 + $0x148] sm:$0xff] %v197
  %262 = vst [vmem:[%s3 + $0x150] sm:$0xff] %v198
  %263 = vst [vmem:[%s3 + $0x158] sm:$0xff] %v199
  %264 = vst [vmem:[%s3 + $0x160] sm:$0xff] %v200
  %265 = vst [vmem:[%s3 + $0x168] sm:$0xff] %v201
  %266 = vst [vmem:[%s3 + $0x170] sm:$0xff] %v202
  %267 = vst [vmem:[%s3 + $0x178] sm:$0xff] %v203
  %268 = vst [vmem:[%s3 + $0x180] sm:$0xff] %v204
  %269 = vst [vmem:[%s3 + $0x188] sm:$0xff] %v205
  %270 = vst [vmem:[%s3 + $0x190] sm:$0xff] %v206
  %271 = vst [vmem:[%s3 + $0x198] sm:$0xff] %v207
  %272 = vst [vmem:[%s3 + $0x1a0] sm:$0xff] %v208
  %273 = vst [vmem:[%s3 + $0x1a8] sm:$0xff] %v209
  %274 = vst [vmem:[%s3 + $0x1b0] sm:$0xff] %v210
  %275 = vst [vmem:[%s3 + $0x1b8] sm:$0xff] %v211
  %276 = vst [vmem:[%s3 + $0x1c0] sm:$0xff] %v212
  %277 = vst [vmem:[%s3 + $0x1c8] sm:$0xff] %v213
  %278 = vst [vmem:[%s3 + $0x1d0] sm:$0xff] %v214
  %279 = vst [vmem:[%s3 + $0x1d8] sm:$0xff] %v215
  %280 = vst [vmem:[%s3 + $0x1e0] sm:$0xff] %v216
  %281 = vst [vmem:[%s3 + $0x1e8] sm:$0xff] %v217
  %282 = vst [vmem:[%s3 + $0x1f0] sm:$0xff] %v218
  %283 = vst [vmem:[%s3 + $0x1f8] sm:$0xff] %v219
  // Predicated region
  $region14: #{basic_block_woskip.5} parent=0 // pred_check
    _
  $region15: #{basic_block_woskip.5} parent=0 // pred_check_branch
    %285 = sbr.rel (0) target = $region17
  $region16: #{basic_block_woskip.5} parent=0 // pred_region
    _
  $region17: #{basic_block_woskip.5} parent=0 // pred_fallthru
    _
  // Predicated region
  $region18: #{basic_block_woskip.5} parent=0 // pred_check
    _
  $region19: #{basic_block_woskip.5} parent=0 // pred_check_branch
    %287 = sbr.rel (0) target = $region21
  $region20: #{basic_block_woskip.5} parent=0 // pred_region
    _
  $region21: #{basic_block_woskip.5} parent=0 // pred_fallthru
    _

// kernel: basic_block_woskip.3
$region0: #{basic_block_woskip.3}
  #allocation0 [shape = 'u32[]', space=smem, size = 0x4, offset = 0x4, fixed_abs, tag = 'smem constant byte address 0x4 - core index']
  #allocation1 [shape = 'u32[144,128]{1,0:T(1,128)}', space=vmem, size = 0x12000, scoped, tag = 'internal scratch']
  #allocation2 [shape = 'bf16[18,18,128]{2,1,0:T(8,128)(2,1)}', space=vmem, size = 0x1b000, scoped, tag = 'scratch operand']
  %s0 = inlined_call_operand.vmem [shape: bf16[2,16,16,128], index: 0, kind: input, shape index: {}]
  %s1 = inlined_call_operand.vmem [shape: bf16[3,384,128], index: 1, kind: input, shape index: {}]
  %s2 = inlined_call_operand.vmem [shape: f32[1,128], index: 2, kind: input, shape index: {}, may-alias: {2,3}]
  %s3 = inlined_call_operand.vmem [shape: f32[1,128], index: 3, kind: input, shape index: {}, may-alias: {2,3}]
  %s4 = inlined_call_operand.vmem [shape: f32[2,256,128], index: 4, kind: output, shape index: {0}]
  %s5 = inlined_call_operand.vmem [shape: f32[2,2,128], index: 5, kind: output, shape index: {1}]
  %6 = xla_tuple %s4, %s5
  %s7 = sld [smem:[#allocation0]]
  $region57: #{basic_block_woskip.3} parent=0
    _
  %s9 = ssub.s32 1, %s7
  %s10 = scalar_select 0, %s9, %s7
  loop: start=0, step=1, limit=4
  $region2: #{basic_block_woskip.3} parent=0 // loop_pre_header
    _
  $region3: #{basic_block_woskip.3} parent=0 // loop_header
    %s12 = sphi 0, %s16
    %p13 = scmp.ge.s32.totalorder %s12, 4
    %s22 = sphi 0, %s24
    %s25 = sphi 0, %s22
    %s26 = sphi 0, %s25
    %s42 = sphi 0, %s26
    %s46 = sphi 0, %s46
    %s48 = sphi 0, %s46
    %s49 = sphi 0, %s48
    %s63 = sphi 0, %s49
    %s67 = sphi 0, %s67
    %s69 = sphi 0, %s67
    %s70 = sphi 0, %s69
    %s84 = sphi 0, %s70
    %s88 = sphi 0, %s88
    %s90 = sphi 0, %s88
    %s91 = sphi 0, %s90
    %s105 = sphi 0, %s91
    %s111 = sphi 0, %s113
    %s114 = sphi 0, %s111
    %s115 = sphi 0, %s114
    %s131 = sphi 0, %s115
    %s137 = sphi 0, %s139
    %s140 = sphi 0, %s137
    %s141 = sphi 0, %s140
    %s157 = sphi 0, %s141
  $region4: #{basic_block_woskip.3} parent=0 // loop_header_branch
    %15 = sbr.rel (%p13) target = $region8
  $region5: #{basic_block_woskip.3} parent=0 // loop_body
    %s17 = ssub.s32 %s12, 1
    %s18 = ssub.s32 %s12, 2
    %s19 = sadd.s32 %s12, 1
    %s20 = ssub.s32 %s12, %s19
    %p21 = scmp.eq.s32.totalorder %s20, 0
    %s23 = sadd.s32 %s22, 1
    %s24 = scalar_select %p21, %s22, %s23
    %p27 = pneg %p21
    %p28 = scmp.eq.s32.totalorder %s12, 1
    %p29 = por %p27, %p28
    %p30 = scmp.ne.s32.totalorder %s22, %s25
    %p31 = scmp.eq.s32.totalorder %s12, 0
    %p32 = por %p30, %p31
    %p33 = scmp.ne.s32.totalorder %s22, %s25
    %p34 = scmp.eq.s32.totalorder %s17, 1
    %p35 = por %p33, %p34
    %p36 = scmp.ne.s32.totalorder %s25, %s26
    %p37 = scmp.eq.s32.totalorder %s17, 0
    %p38 = por %p36, %p37
    %p39 = scmp.ne.s32.totalorder %s25, %s26
    %p40 = scmp.eq.s32.totalorder %s18, 1
    %p41 = por %p39, %p40
    %p43 = scmp.ne.s32.totalorder %s26, %s42
    %p44 = scmp.eq.s32.totalorder %s18, 0
    %p45 = por %p43, %p44
    %s47 = sadd.s32 %s46, 1
    %p50 = scmp.eq.s32.totalorder %s12, 1
    %p51 = scmp.ne.s32.totalorder %s46, %s48
    %p52 = scmp.eq.s32.totalorder %s12, 0
    %p53 = por %p51, %p52
    %p54 = scmp.ne.s32.totalorder %s46, %s48
    %p55 = scmp.eq.s32.totalorder %s17, 1
    %p56 = por %p54, %p55
    %p57 = scmp.ne.s32.totalorder %s48, %s49
    %p58 = scmp.eq.s32.totalorder %s17, 0
    %p59 = por %p57, %p58
    %p60 = scmp.ne.s32.totalorder %s48, %s49
    %p61 = scmp.eq.s32.totalorder %s18, 1
    %p62 = por %p60, %p61
    %p64 = scmp.ne.s32.totalorder %s49, %s63
    %p65 = scmp.eq.s32.totalorder %s18, 0
    %p66 = por %p64, %p65
    %s68 = sadd.s32 %s67, 1
    %p71 = scmp.eq.s32.totalorder %s12, 1
    %p72 = scmp.ne.s32.totalorder %s67, %s69
    %p73 = scmp.eq.s32.totalorder %s12, 0
    %p74 = por %p72, %p73
    %p75 = scmp.ne.s32.totalorder %s67, %s69
    %p76 = scmp.eq.s32.totalorder %s17, 1
    %p77 = por %p75, %p76
    %p78 = scmp.ne.s32.totalorder %s69, %s70
    %p79 = scmp.eq.s32.totalorder %s17, 0
    %p80 = por %p78, %p79
    %p81 = scmp.ne.s32.totalorder %s69, %s70
    %p82 = scmp.eq.s32.totalorder %s18, 1
    %p83 = por %p81, %p82
    %p85 = scmp.ne.s32.totalorder %s70, %s84
    %p86 = scmp.eq.s32.totalorder %s18, 0
    %p87 = por %p85, %p86
    %s89 = sadd.s32 %s88, 1
    %p92 = scmp.eq.s32.totalorder %s12, 1
    %p93 = scmp.ne.s32.totalorder %s88, %s90
    %p94 = scmp.eq.s32.totalorder %s12, 0
    %p95 = por %p93, %p94
    %p96 = scmp.ne.s32.totalorder %s88, %s90
    %p97 = scmp.eq.s32.totalorder %s17, 1
    %p98 = por %p96, %p97
    %p99 = scmp.ne.s32.totalorder %s90, %s91
    %p100 = scmp.eq.s32.totalorder %s17, 0
    %p101 = por %p99, %p100
    %p102 = scmp.ne.s32.totalorder %s90, %s91
    %p103 = scmp.eq.s32.totalorder %s18, 1
    %p104 = por %p102, %p103
    %p106 = scmp.ne.s32.totalorder %s91, %s105
    %p107 = scmp.eq.s32.totalorder %s18, 0
    %p108 = por %p106, %p107
    %s109 = ssub.s32 %s12, %s19
    %p110 = scmp.eq.s32.totalorder %s109, 0
    %s112 = sadd.s32 %s111, 1
    %s113 = scalar_select %p110, %s111, %s112
    %p116 = pneg %p110
    %p117 = scmp.eq.s32.totalorder %s12, 1
    %p118 = por %p116, %p117
    %p119 = scmp.ne.s32.totalorder %s111, %s114
    %p120 = scmp.eq.s32.totalorder %s12, 0
    %p121 = por %p119, %p120
    %p122 = scmp.ne.s32.totalorder %s111, %s114
    %p123 = scmp.eq.s32.totalorder %s17, 1
    %p124 = por %p122, %p123
    %p125 = scmp.ne.s32.totalorder %s114, %s115
    %p126 = scmp.eq.s32.totalorder %s17, 0
    %p127 = por %p125, %p126
    %p128 = scmp.ne.s32.totalorder %s114, %s115
    %p129 = scmp.eq.s32.totalorder %s18, 1
    %p130 = por %p128, %p129
    %p132 = scmp.ne.s32.totalorder %s115, %s131
    %p133 = scmp.eq.s32.totalorder %s18, 0
    %p134 = por %p132, %p133
    %s135 = ssub.s32 %s12, %s19
    %p136 = scmp.eq.s32.totalorder %s135, 0
    %s138 = sadd.s32 %s137, 1
    %s139 = scalar_select %p136, %s137, %s138
    %p142 = pneg %p136
    %p143 = scmp.eq.s32.totalorder %s12, 1
    %p144 = por %p142, %p143
    %p145 = scmp.ne.s32.totalorder %s137, %s140
    %p146 = scmp.eq.s32.totalorder %s12, 0
    %p147 = por %p145, %p146
    %p148 = scmp.ne.s32.totalorder %s137, %s140
    %p149 = scmp.eq.s32.totalorder %s17, 1
    %p150 = por %p148, %p149
    %p151 = scmp.ne.s32.totalorder %s140, %s141
    %p152 = scmp.eq.s32.totalorder %s17, 0
    %p153 = por %p151, %p152
    %p154 = scmp.ne.s32.totalorder %s140, %s141
    %p155 = scmp.eq.s32.totalorder %s18, 1
    %p156 = por %p154, %p155
    %p158 = scmp.ne.s32.totalorder %s141, %s157
    %p159 = scmp.eq.s32.totalorder %s18, 0
    %p160 = por %p158, %p159
    %p161 = scmp.le.s32.totalorder 1, %s12
    %p162 = scmp.lt.s32.totalorder %s12, 3
    %p163 = pnand %p161, %p162
    %p164 = pneg %p163
    // Predicated region
    $region9: #{basic_block_woskip.3} parent=5 // pred_check
      _
    $region10: #{basic_block_woskip.3} parent=5 // pred_check_branch
      %166 = sbr.rel (%p163) target = $region12
    $region11: #{basic_block_woskip.3} parent=5 // pred_region
      %s167 = ssub.s32 %s12, 1
      // Predicated region
      $region13: #{basic_block_woskip.3} parent=11 // pred_check
        %p168 = pneg %p59
      $region14: #{basic_block_woskip.3} parent=11 // pred_check_branch
        %170 = sbr.rel (%p168) target = $region16
      $region15: #{basic_block_woskip.3} parent=11 // pred_region
        _
      $region16: #{basic_block_woskip.3} parent=11 // pred_fallthru
        _
      // Predicated region
      $region17: #{basic_block_woskip.3} parent=11 // pred_check
        %p171 = pneg %p80
      $region18: #{basic_block_woskip.3} parent=11 // pred_check_branch
        %173 = sbr.rel (%p171) target = $region20
      $region19: #{basic_block_woskip.3} parent=11 // pred_region
        _
      $region20: #{basic_block_woskip.3} parent=11 // pred_fallthru
        _
      // Predicated region
      $region21: #{basic_block_woskip.3} parent=11 // pred_check
        %p174 = pneg %p101
      $region22: #{basic_block_woskip.3} parent=11 // pred_check_branch
        %176 = sbr.rel (%p174) target = $region24
      $region23: #{basic_block_woskip.3} parent=11 // pred_region
        _
      $region24: #{basic_block_woskip.3} parent=11 // pred_fallthru
        _
    $region12: #{basic_block_woskip.3} parent=5 // pred_fallthru
      _
    %p177 = scmp.lt.s32.totalorder %s12, 2
    // Predicated region
    $region25: #{basic_block_woskip.3} parent=5 // pred_check
      %p178 = pneg %p177
    $region26: #{basic_block_woskip.3} parent=5 // pred_check_branch
      %180 = sbr.rel (%p178) target = $region28
    $region27: #{basic_block_woskip.3} parent=5 // pred_region
      // Predicated region
      $region29: #{basic_block_woskip.3} parent=27 // pred_check
        %p181 = pneg %p32
      $region30: #{basic_block_woskip.3} parent=27 // pred_check_branch
        %183 = sbr.rel (%p181) target = $region32
      $region31: #{basic_block_woskip.3} parent=27 // pred_region
        %p184 = scmp.lt.s32.totalorder %s12, 1
        %s185 = scalar_select %p184, %s12, 1
        %s186 = smul.addr %s185, 32
        %s187 = smul.addr %s186, 4
        %s188 = scalar_lea.vmem %s0, %s187
      $region32: #{basic_block_woskip.3} parent=27 // pred_fallthru
        _
    $region28: #{basic_block_woskip.3} parent=5 // pred_fallthru
      _
    %p189 = scmp.le.s32.totalorder 1, %s12
    %p190 = scmp.lt.s32.totalorder %s12, 3
    %p191 = pnand %p189, %p190
    %p192 = pneg %p191
    // Predicated region
    $region33: #{basic_block_woskip.3} parent=5 // pred_check
      _
    $region34: #{basic_block_woskip.3} parent=5 // pred_check_branch
      %194 = sbr.rel (%p191) target = $region36
    $region35: #{basic_block_woskip.3} parent=5 // pred_region
      %s195 = ssub.s32 %s12, 1
      %p196 = scmp.lt.s32.totalorder %s17, 1
      %s197 = scalar_select %p196, %s17, 1
      %s198 = smul.addr %s197, 32
      %s199 = smul.addr %s198, 4
      %s200 = scalar_lea.vmem %s0, %s199
      %p201 = pneg %p38
      %p202 = pneg %p35
      %p203 = pneg %p59
      %p204 = pneg %p56
      %p205 = pneg %p80
      %p206 = pneg %p77
      %p207 = pneg %p101
      %p208 = pneg %p98
      %p209 = pneg %p127
      %p210 = pneg %p124
      %p211 = scmp.lt.s32.totalorder %s17, 1
      %s212 = scalar_select %p211, %s17, 1
      %s213 = smul.addr %s212, 32
      %s214 = smul.addr %s213, 8
      %s215 = scalar_lea.vmem %s4, %s214
      %p216 = pneg %p153
      %p217 = pneg %p150
      %p218 = scmp.lt.s32.totalorder %s17, 1
      %s219 = scalar_select %p218, %s17, 1
      %s220 = smul.addr %s219, 2
      %s221 = scalar_lea.vmem %s5, %s220
      %p222 = scmp.lt.s32.totalorder %s17, 1
      %s223 = scalar_select %p222, %s17, 1
      %s224 = smul.addr %s223, 32
      %s225 = smul.addr %s224, 4
      %s226 = scalar_lea.vmem %s0, %s225
      %p227 = scmp.lt.s32.totalorder %s17, 1
      %s228 = scalar_select %p227, %s17, 1
      %s229 = smul.addr %s228, 32
      %s230 = smul.addr %s229, 8
      %s231 = scalar_lea.vmem %s4, %s230
      %p232 = scmp.lt.s32.totalorder %s17, 1
      %s233 = scalar_select %p232, %s17, 1
      %s234 = smul.addr %s233, 2
      %s235 = scalar_lea.vmem %s5, %s234
      %v237 = vld [vmem:[%s226] sm:$0xf]
      %v238 = vld [vmem:[%s226 + $0x4] sm:$0xf]
      %v239 = vld [vmem:[%s226 + $0x8] sm:$0xf]
      %v240 = vld [vmem:[%s226 + $0xc] sm:$0xf]
      %v241 = vld [vmem:[%s226 + $0x10] sm:$0xf]
      %v242 = vld [vmem:[%s226 + $0x14] sm:$0xf]
      %v243 = vld [vmem:[%s226 + $0x18] sm:$0xf]
      %v244 = vld [vmem:[%s226 + $0x1c] sm:$0xf]
      %v245 = vld [vmem:[%s226 + $0x20] sm:$0xf]
      %v246 = vld [vmem:[%s226 + $0x24] sm:$0xf]
      %v247 = vld [vmem:[%s226 + $0x28] sm:$0xf]
      %v248 = vld [vmem:[%s226 + $0x2c] sm:$0xf]
      %v249 = vld [vmem:[%s226 + $0x30] sm:$0xf]
      %v250 = vld [vmem:[%s226 + $0x34] sm:$0xf]
      %v251 = vld [vmem:[%s226 + $0x38] sm:$0xf]
      %v252 = vld [vmem:[%s226 + $0x3c] sm:$0xf]
      %v253 = vld [vmem:[%s226 + $0x40] sm:$0xf]
      %v254 = vld [vmem:[%s226 + $0x44] sm:$0xf]
      %v255 = vld [vmem:[%s226 + $0x48] sm:$0xf]
      %v256 = vld [vmem:[%s226 + $0x4c] sm:$0xf]
      %v257 = vld [vmem:[%s226 + $0x50] sm:$0xf]
      %v258 = vld [vmem:[%s226 + $0x54] sm:$0xf]
      %v259 = vld [vmem:[%s226 + $0x58] sm:$0xf]
      %v260 = vld [vmem:[%s226 + $0x5c] sm:$0xf]
      %v261 = vld [vmem:[%s226 + $0x60] sm:$0xf]
      %v262 = vld [vmem:[%s226 + $0x64] sm:$0xf]
      %v263 = vld [vmem:[%s226 + $0x68] sm:$0xf]
      %v264 = vld [vmem:[%s226 + $0x6c] sm:$0xf]
      %v265 = vld [vmem:[%s226 + $0x70] sm:$0xf]
      %v266 = vld [vmem:[%s226 + $0x74] sm:$0xf]
      %v267 = vld [vmem:[%s226 + $0x78] sm:$0xf]
      %v268 = vld [vmem:[%s226 + $0x7c] sm:$0xf]
      %v269 = vmax.bf16 %v237, 0
      %v270 = vmax.bf16 %v238, 0
      %v271 = vmax.bf16 %v239, 0
      %v272 = vmax.bf16 %v240, 0
      %v273 = vmax.bf16 %v241, 0
      %v274 = vmax.bf16 %v242, 0
      %v275 = vmax.bf16 %v243, 0
      %v276 = vmax.bf16 %v244, 0
      %v277 = vmax.bf16 %v245, 0
      %v278 = vmax.bf16 %v246, 0
      %v279 = vmax.bf16 %v247, 0
      %v280 = vmax.bf16 %v248, 0
      %v281 = vmax.bf16 %v249, 0
      %v282 = vmax.bf16 %v250, 0
      %v283 = vmax.bf16 %v251, 0
      %v284 = vmax.bf16 %v252, 0
      %v285 = vmax.bf16 %v253, 0
      %v286 = vmax.bf16 %v254, 0
      %v287 = vmax.bf16 %v255, 0
      %v288 = vmax.bf16 %v256, 0
      %v289 = vmax.bf16 %v257, 0
      %v290 = vmax.bf16 %v258, 0
      %v291 = vmax.bf16 %v259, 0
      %v292 = vmax.bf16 %v260, 0
      %v293 = vmax.bf16 %v261, 0
      %v294 = vmax.bf16 %v262, 0
      %v295 = vmax.bf16 %v263, 0
      %v296 = vmax.bf16 %v264, 0
      %v297 = vmax.bf16 %v265, 0
      %v298 = vmax.bf16 %v266, 0
      %v299 = vmax.bf16 %v267, 0
      %v300 = vmax.bf16 %v268, 0
      %301 = vst [vmem:[#allocation2] sm:$0xf] 0
      %302 = vst [vmem:[#allocation2 + $0x4] sm:$0xf] 0
      %303 = vst [vmem:[#allocation2 + $0x8] sm:$0x1] 0
      %s304 = scalar_lea.vmem [#allocation2], 204
      %305 = vst [vmem:[%s304] sm:$0xf] 0
      %306 = vst [vmem:[%s304 + $0x4] sm:$0xf] 0
      %307 = vst [vmem:[%s304 + $0x8] sm:$0x1] 0
      %vm308 = vcmask 1040384
      %vm309 = vsmask.f32 256
      %vm310 = vmand %vm308, %vm309
      %v311 = vld [vmem:[#allocation2] sm:$0x1]
      %v312 = vsel %vm310, 0, %v311
      %313 = vst [vmem:[#allocation2] sm:$0x1] %v312
      %v314 = vld [vmem:[#allocation2 + $0xc] sm:$0x1]
      %v315 = vsel %vm310, 0, %v314
      %316 = vst [vmem:[#allocation2 + $0xc] sm:$0x1] %v315
      %v317 = vld [vmem:[#allocation2 + $0x18] sm:$0x1]
      %v318 = vsel %vm310, 0, %v317
      %319 = vst [vmem:[#allocation2 + $0x18] sm:$0x1] %v318
      %v320 = vld [vmem:[#allocation2 + $0x24] sm:$0x1]
      %v321 = vsel %vm310, 0, %v320
      %322 = vst [vmem:[#allocation2 + $0x24] sm:$0x1] %v321
      %v323 = vld [vmem:[#allocation2 + $0x30] sm:$0x1]
      %v324 = vsel %vm310, 0, %v323
      %325 = vst [vmem:[#allocation2 + $0x30] sm:$0x1] %v324
      %v326 = vld [vmem:[#allocation2 + $0x3c] sm:$0x1]
      %v327 = vsel %vm310, 0, %v326
      %328 = vst [vmem:[#allocation2 + $0x3c] sm:$0x1] %v327
      %v329 = vld [vmem:[#allocation2 + $0x48] sm:$0x1]
      %v330 = vsel %vm310, 0, %v329
      %331 = vst [vmem:[#allocation2 + $0x48] sm:$0x1] %v330
      %v332 = vld [vmem:[#allocation2 + $0x54] sm:$0x1]
      %v333 = vsel %vm310, 0, %v332
      %334 = vst [vmem:[#allocation2 + $0x54] sm:$0x1] %v333
      %v335 = vld [vmem:[#allocation2 + $0x60] sm:$0x1]
      %v336 = vsel %vm310, 0, %v335
      %337 = vst [vmem:[#allocation2 + $0x60] sm:$0x1] %v336
      %v338 = vld [vmem:[#allocation2 + $0x6c] sm:$0x1]
      %v339 = vsel %vm310, 0, %v338
      %340 = vst [vmem:[#allocation2 + $0x6c] sm:$0x1] %v339
      %v341 = vld [vmem:[#allocation2 + $0x78] sm:$0x1]
      %v342 = vsel %vm310, 0, %v341
      %343 = vst [vmem:[#allocation2 + $0x78] sm:$0x1] %v342
      %v344 = vld [vmem:[#allocation2 + $0x84] sm:$0x1]
      %v345 = vsel %vm310, 0, %v344
      %346 = vst [vmem:[#allocation2 + $0x84] sm:$0x1] %v345
      %v347 = vld [vmem:[#allocation2 + $0x90] sm:$0x1]
      %v348 = vsel %vm310, 0, %v347
      %349 = vst [vmem:[#allocation2 + $0x90] sm:$0x1] %v348
      %v350 = vld [vmem:[#allocation2 + $0x9c] sm:$0x1]
      %v351 = vsel %vm310, 0, %v350
      %352 = vst [vmem:[#allocation2 + $0x9c] sm:$0x1] %v351
      %v353 = vld [vmem:[#allocation2 + $0xa8] sm:$0x1]
      %v354 = vsel %vm310, 0, %v353
      %355 = vst [vmem:[#allocation2 + $0xa8] sm:$0x1] %v354
      %v356 = vld [vmem:[#allocation2 + $0xb4] sm:$0x1]
      %v357 = vsel %vm310, 0, %v356
      %358 = vst [vmem:[#allocation2 + $0xb4] sm:$0x1] %v357
      %v359 = vld [vmem:[#allocation2 + $0xc0] sm:$0x1]
      %v360 = vsel %vm310, 0, %v359
      %361 = vst [vmem:[#allocation2 + $0xc0] sm:$0x1] %v360
      %v362 = vld [vmem:[#allocation2 + $0xcc] sm:$0x1]
      %v363 = vsel %vm310, 0, %v362
      %364 = vst [vmem:[#allocation2 + $0xcc] sm:$0x1] %v363
      %vm365 = vsmask.f32 7938
      %vm366 = vmand %vm308, %vm365
      %v367 = vld [vmem:[#allocation2 + $0x8] sm:$0x1]
      %v368 = vsel %vm366, 0, %v367
      %369 = vst [vmem:[#allocation2 + $0x8] sm:$0x1] %v368
      %v370 = vld [vmem:[#allocation2 + $0x14] sm:$0x1]
      %v371 = vsel %vm366, 0, %v370
      %372 = vst [vmem:[#allocation2 + $0x14] sm:$0x1] %v371
      %v373 = vld [vmem:[#allocation2 + $0x20] sm:$0x1]
      %v374 = vsel %vm366, 0, %v373
      %375 = vst [vmem:[#allocation2 + $0x20] sm:$0x1] %v374
      %v376 = vld [vmem:[#allocation2 + $0x2c] sm:$0x1]
      %v377 = vsel %vm366, 0, %v376
      %378 = vst [vmem:[#allocation2 + $0x2c] sm:$0x1] %v377
      %v379 = vld [vmem:[#allocation2 + $0x38] sm:$0x1]
      %v380 = vsel %vm366, 0, %v379
      %381 = vst [vmem:[#allocation2 + $0x38] sm:$0x1] %v380
      %v382 = vld [vmem:[#allocation2 + $0x44] sm:$0x1]
      %v383 = vsel %vm366, 0, %v382
      %384 = vst [vmem:[#allocation2 + $0x44] sm:$0x1] %v383
      %v385 = vld [vmem:[#allocation2 + $0x50] sm:$0x1]
      %v386 = vsel %vm366, 0, %v385
      %387 = vst [vmem:[#allocation2 + $0x50] sm:$0x1] %v386
      %v388 = vld [vmem:[#allocation2 + $0x5c] sm:$0x1]
      %v389 = vsel %vm366, 0, %v388
      %390 = vst [vmem:[#allocation2 + $0x5c] sm:$0x1] %v389
      %v391 = vld [vmem:[#allocation2 + $0x68] sm:$0x1]
      %v392 = vsel %vm366, 0, %v391
      %393 = vst [vmem:[#allocation2 + $0x68] sm:$0x1] %v392
      %v394 = vld [vmem:[#allocation2 + $0x74] sm:$0x1]
      %v395 = vsel %vm366, 0, %v394
      %396 = vst [vmem:[#allocation2 + $0x74] sm:$0x1] %v395
      %v397 = vld [vmem:[#allocation2 + $0x80] sm:$0x1]
      %v398 = vsel %vm366, 0, %v397
      %399 = vst [vmem:[#allocation2 + $0x80] sm:$0x1] %v398
      %v400 = vld [vmem:[#allocation2 + $0x8c] sm:$0x1]
      %v401 = vsel %vm366, 0, %v400
      %402 = vst [vmem:[#allocation2 + $0x8c] sm:$0x1] %v401
      %v403 = vld [vmem:[#allocation2 + $0x98] sm:$0x1]
      %v404 = vsel %vm366, 0, %v403
      %405 = vst [vmem:[#allocation2 + $0x98] sm:$0x1] %v404
      %v406 = vld [vmem:[#allocation2 + $0xa4] sm:$0x1]
      %v407 = vsel %vm366, 0, %v406
      %408 = vst [vmem:[#allocation2 + $0xa4] sm:$0x1] %v407
      %v409 = vld [vmem:[#allocation2 + $0xb0] sm:$0x1]
      %v410 = vsel %vm366, 0, %v409
      %411 = vst [vmem:[#allocation2 + $0xb0] sm:$0x1] %v410
      %v412 = vld [vmem:[#allocation2 + $0xbc] sm:$0x1]
      %v413 = vsel %vm366, 0, %v412
      %414 = vst [vmem:[#allocation2 + $0xbc] sm:$0x1] %v413
      %v415 = vld [vmem:[#allocation2 + $0xc8] sm:$0x1]
      %v416 = vsel %vm366, 0, %v415
      %417 = vst [vmem:[#allocation2 + $0xc8] sm:$0x1] %v416
      %v418 = vld [vmem:[#allocation2 + $0xd4] sm:$0x1]
      %v419 = vsel %vm366, 0, %v418
      %420 = vst [vmem:[#allocation2 + $0xd4] sm:$0x1] %v419
      %vm421 = vsmask.f32 4368
      %vm422 = vmor %vm309, %vm421
      %v424 = vshrl.u32 %v269, 16
      %v426 = vrot.slane %v424, 7
      %v427 = vshll.u32 %v269, 16
      %v429 = vor.u32 %v426, %v427
      %v430 = vrot.slane %v426, 4
      %v432 = vshrl.u32 %v270, 16
      %v434 = vrot.slane %v432, 7
      %v435 = vshll.u32 %v270, 16
      %v437 = vor.u32 %v434, %v435
      %v438 = vsel %vm422, %v430, %v437
      %v439 = vrot.slane %v434, 4
      %v441 = vshrl.u32 %v271, 16
      %v443 = vrot.slane %v441, 7
      %v444 = vshll.u32 %v271, 16
      %v446 = vor.u32 %v443, %v444
      %v447 = vrot.slane %v443, 4
      %v449 = vshrl.u32 %v272, 16
      %v451 = vrot.slane %v449, 7
      %v452 = vshll.u32 %v272, 16
      %v454 = vor.u32 %v451, %v452
      %v455 = vsel %vm422, %v447, %v454
      %v456 = vrot.slane %v451, 4
      %v458 = vshrl.u32 %v273, 16
      %v460 = vrot.slane %v458, 7
      %v461 = vshll.u32 %v273, 16
      %v463 = vor.u32 %v460, %v461
      %v464 = vrot.slane %v460, 4
      %v466 = vshrl.u32 %v274, 16
      %v468 = vrot.slane %v466, 7
      %v469 = vshll.u32 %v274, 16
      %v471 = vor.u32 %v468, %v469
      %v472 = vsel %vm422, %v464, %v471
      %v473 = vrot.slane %v468, 4
      %v475 = vshrl.u32 %v275, 16
      %v477 = vrot.slane %v475, 7
      %v478 = vshll.u32 %v275, 16
      %v480 = vor.u32 %v477, %v478
      %v481 = vrot.slane %v477, 4
      %v483 = vshrl.u32 %v276, 16
      %v485 = vrot.slane %v483, 7
      %v486 = vshll.u32 %v276, 16
      %v488 = vor.u32 %v485, %v486
      %v489 = vsel %vm422, %v481, %v488
      %v490 = vrot.slane %v485, 4
      %v492 = vshrl.u32 %v277, 16
      %v494 = vrot.slane %v492, 7
      %v495 = vshll.u32 %v277, 16
      %v497 = vor.u32 %v494, %v495
      %v498 = vrot.slane %v494, 4
      %v500 = vshrl.u32 %v278, 16
      %v502 = vrot.slane %v500, 7
      %v503 = vshll.u32 %v278, 16
      %v505 = vor.u32 %v502, %v503
      %v506 = vsel %vm422, %v498, %v505
      %v507 = vrot.slane %v502, 4
      %v509 = vshrl.u32 %v279, 16
      %v511 = vrot.slane %v509, 7
      %v512 = vshll.u32 %v279, 16
      %v514 = vor.u32 %v511, %v512
      %v515 = vrot.slane %v511, 4
      %v517 = vshrl.u32 %v280, 16
      %v519 = vrot.slane %v517, 7
      %v520 = vshll.u32 %v280, 16
      %v522 = vor.u32 %v519, %v520
      %v523 = vsel %vm422, %v515, %v522
      %v524 = vrot.slane %v519, 4
      %v526 = vshrl.u32 %v281, 16
      %v528 = vrot.slane %v526, 7
      %v529 = vshll.u32 %v281, 16
      %v531 = vor.u32 %v528, %v529
      %v532 = vrot.slane %v528, 4
      %v534 = vshrl.u32 %v282, 16
      %v536 = vrot.slane %v534, 7
      %v537 = vshll.u32 %v282, 16
      %v539 = vor.u32 %v536, %v537
      %v540 = vsel %vm422, %v532, %v539
      %v541 = vrot.slane %v536, 4
      %v543 = vshrl.u32 %v283, 16
      %v545 = vrot.slane %v543, 7
      %v546 = vshll.u32 %v283, 16
      %v548 = vor.u32 %v545, %v546
      %v549 = vrot.slane %v545, 4
      %v551 = vshrl.u32 %v284, 16
      %v553 = vrot.slane %v551, 7
      %v554 = vshll.u32 %v284, 16
      %v556 = vor.u32 %v553, %v554
      %v557 = vsel %vm422, %v549, %v556
      %v558 = vrot.slane %v553, 4
      %v560 = vshrl.u32 %v285, 16
      %v562 = vrot.slane %v560, 7
      %v563 = vshll.u32 %v285, 16
      %v565 = vor.u32 %v562, %v563
      %v566 = vrot.slane %v562, 4
      %v568 = vshrl.u32 %v286, 16
      %v570 = vrot.slane %v568, 7
      %v571 = vshll.u32 %v286, 16
      %v573 = vor.u32 %v570, %v571
      %v574 = vsel %vm422, %v566, %v573
      %v575 = vrot.slane %v570, 4
      %v577 = vshrl.u32 %v287, 16
      %v579 = vrot.slane %v577, 7
      %v580 = vshll.u32 %v287, 16
      %v582 = vor.u32 %v579, %v580
      %v583 = vrot.slane %v579, 4
      %v585 = vshrl.u32 %v288, 16
      %v587 = vrot.slane %v585, 7
      %v588 = vshll.u32 %v288, 16
      %v590 = vor.u32 %v587, %v588
      %v591 = vsel %vm422, %v583, %v590
      %v592 = vrot.slane %v587, 4
      %v594 = vshrl.u32 %v289, 16
      %v596 = vrot.slane %v594, 7
      %v597 = vshll.u32 %v289, 16
      %v599 = vor.u32 %v596, %v597
      %v600 = vrot.slane %v596, 4
      %v602 = vshrl.u32 %v290, 16
      %v604 = vrot.slane %v602, 7
      %v605 = vshll.u32 %v290, 16
      %v607 = vor.u32 %v604, %v605
      %v608 = vsel %vm422, %v600, %v607
      %v609 = vrot.slane %v604, 4
      %v611 = vshrl.u32 %v291, 16
      %v613 = vrot.slane %v611, 7
      %v614 = vshll.u32 %v291, 16
      %v616 = vor.u32 %v613, %v614
      %v617 = vrot.slane %v613, 4
      %v619 = vshrl.u32 %v292, 16
      %v621 = vrot.slane %v619, 7
      %v622 = vshll.u32 %v292, 16
      %v624 = vor.u32 %v621, %v622
      %v625 = vsel %vm422, %v617, %v624
      %v626 = vrot.slane %v621, 4
      %v628 = vshrl.u32 %v293, 16
      %v630 = vrot.slane %v628, 7
      %v631 = vshll.u32 %v293, 16
      %v633 = vor.u32 %v630, %v631
      %v634 = vrot.slane %v630, 4
      %v636 = vshrl.u32 %v294, 16
      %v638 = vrot.slane %v636, 7
      %v639 = vshll.u32 %v294, 16
      %v641 = vor.u32 %v638, %v639
      %v642 = vsel %vm422, %v634, %v641
      %v643 = vrot.slane %v638, 4
      %v645 = vshrl.u32 %v295, 16
      %v647 = vrot.slane %v645, 7
      %v648 = vshll.u32 %v295, 16
      %v650 = vor.u32 %v647, %v648
      %v651 = vrot.slane %v647, 4
      %v653 = vshrl.u32 %v296, 16
      %v655 = vrot.slane %v653, 7
      %v656 = vshll.u32 %v296, 16
      %v658 = vor.u32 %v655, %v656
      %v659 = vsel %vm422, %v651, %v658
      %v660 = vrot.slane %v655, 4
      %v662 = vshrl.u32 %v297, 16
      %v664 = vrot.slane %v662, 7
      %v665 = vshll.u32 %v297, 16
      %v667 = vor.u32 %v664, %v665
      %v668 = vrot.slane %v664, 4
      %v670 = vshrl.u32 %v298, 16
      %v672 = vrot.slane %v670, 7
      %v673 = vshll.u32 %v298, 16
      %v675 = vor.u32 %v672, %v673
      %v676 = vsel %vm422, %v668, %v675
      %v677 = vrot.slane %v672, 4
      %v679 = vshrl.u32 %v299, 16
      %v681 = vrot.slane %v679, 7
      %v682 = vshll.u32 %v299, 16
      %v684 = vor.u32 %v681, %v682
      %v685 = vrot.slane %v681, 4
      %v687 = vshrl.u32 %v300, 16
      %v689 = vrot.slane %v687, 7
      %v690 = vshll.u32 %v300, 16
      %v692 = vor.u32 %v689, %v690
      %v693 = vsel %vm422, %v685, %v692
      %v694 = vrot.slane %v689, 4
      %s743 = scalar_lea.vmem [#allocation2], 12
      %vm744 = vcmask 1043456
      %vm745 = vmand %vm744, %vm365
      %v746 = vld [vmem:[%s743] sm:$0xf]
      %v747 = vsel %vm745, %v429, %v746
      %748 = vst [vmem:[%s743] sm:$0xf] %v747
      %749 = vst [vmem:[%s743 + $0x4] sm:$0xf] %v438
      %v750 = vld [vmem:[%s743 + $0x8] sm:$0x1]
      %v751 = vsel %vm310, %v439, %v750
      %752 = vst [vmem:[%s743 + $0x8] sm:$0x1] %v751
      %v753 = vld [vmem:[%s743 + $0xc] sm:$0xf]
      %v754 = vsel %vm745, %v446, %v753
      %755 = vst [vmem:[%s743 + $0xc] sm:$0xf] %v754
      %756 = vst [vmem:[%s743 + $0x10] sm:$0xf] %v455
      %v757 = vld [vmem:[%s743 + $0x14] sm:$0x1]
      %v758 = vsel %vm310, %v456, %v757
      %759 = vst [vmem:[%s743 + $0x14] sm:$0x1] %v758
      %v760 = vld [vmem:[%s743 + $0x18] sm:$0xf]
      %v761 = vsel %vm745, %v463, %v760
      %762 = vst [vmem:[%s743 + $0x18] sm:$0xf] %v761
      %763 = vst [vmem:[%s743 + $0x1c] sm:$0xf] %v472
      %v764 = vld [vmem:[%s743 + $0x20] sm:$0x1]
      %v765 = vsel %vm310, %v473, %v764
      %766 = vst [vmem:[%s743 + $0x20] sm:$0x1] %v765
      %v767 = vld [vmem:[%s743 + $0x24] sm:$0xf]
      %v768 = vsel %vm745, %v480, %v767
      %769 = vst [vmem:[%s743 + $0x24] sm:$0xf] %v768
      %770 = vst [vmem:[%s743 + $0x28] sm:$0xf] %v489
      %v771 = vld [vmem:[%s743 + $0x2c] sm:$0x1]
      %v772 = vsel %vm310, %v490, %v771
      %773 = vst [vmem:[%s743 + $0x2c] sm:$0x1] %v772
      %v774 = vld [vmem:[%s743 + $0x30] sm:$0xf]
      %v775 = vsel %vm745, %v497, %v774
      %776 = vst [vmem:[%s743 + $0x30] sm:$0xf] %v775
      %777 = vst [vmem:[%s743 + $0x34] sm:$0xf] %v506
      %v778 = vld [vmem:[%s743 + $0x38] sm:$0x1]
      %v779 = vsel %vm310, %v507, %v778
      %780 = vst [vmem:[%s743 + $0x38] sm:$0x1] %v779
      %v781 = vld [vmem:[%s743 + $0x3c] sm:$0xf]
      %v782 = vsel %vm745, %v514, %v781
      %783 = vst [vmem:[%s743 + $0x3c] sm:$0xf] %v782
      %784 = vst [vmem:[%s743 + $0x40] sm:$0xf] %v523
      %v785 = vld [vmem:[%s743 + $0x44] sm:$0x1]
      %v786 = vsel %vm310, %v524, %v785
      %787 = vst [vmem:[%s743 + $0x44] sm:$0x1] %v786
      %v788 = vld [vmem:[%s743 + $0x48] sm:$0xf]
      %v789 = vsel %vm745, %v531, %v788
      %790 = vst [vmem:[%s743 + $0x48] sm:$0xf] %v789
      %791 = vst [vmem:[%s743 + $0x4c] sm:$0xf] %v540
      %v792 = vld [vmem:[%s743 + $0x50] sm:$0x1]
      %v793 = vsel %vm310, %v541, %v792
      %794 = vst [vmem:[%s743 + $0x50] sm:$0x1] %v793
      %v795 = vld [vmem:[%s743 + $0x54] sm:$0xf]
      %v796 = vsel %vm745, %v548, %v795
      %797 = vst [vmem:[%s743 + $0x54] sm:$0xf] %v796
      %798 = vst [vmem:[%s743 + $0x58] sm:$0xf] %v557
      %v799 = vld [vmem:[%s743 + $0x5c] sm:$0x1]
      %v800 = vsel %vm310, %v558, %v799
      %801 = vst [vmem:[%s743 + $0x5c] sm:$0x1] %v800
      %v802 = vld [vmem:[%s743 + $0x60] sm:$0xf]
      %v803 = vsel %vm745, %v565, %v802
      %804 = vst [vmem:[%s743 + $0x60] sm:$0xf] %v803
      %805 = vst [vmem:[%s743 + $0x64] sm:$0xf] %v574
      %v806 = vld [vmem:[%s743 + $0x68] sm:$0x1]
      %v807 = vsel %vm310, %v575, %v806
      %808 = vst [vmem:[%s743 + $0x68] sm:$0x1] %v807
      %v809 = vld [vmem:[%s743 + $0x6c] sm:$0xf]
      %v810 = vsel %vm745, %v582, %v809
      %811 = vst [vmem:[%s743 + $0x6c] sm:$0xf] %v810
      %812 = vst [vmem:[%s743 + $0x70] sm:$0xf] %v591
      %v813 = vld [vmem:[%s743 + $0x74] sm:$0x1]
      %v814 = vsel %vm310, %v592, %v813
      %815 = vst [vmem:[%s743 + $0x74] sm:$0x1] %v814
      %v816 = vld [vmem:[%s743 + $0x78] sm:$0xf]
      %v817 = vsel %vm745, %v599, %v816
      %818 = vst [vmem:[%s743 + $0x78] sm:$0xf] %v817
      %819 = vst [vmem:[%s743 + $0x7c] sm:$0xf] %v608
      %v820 = vld [vmem:[%s743 + $0x80] sm:$0x1]
      %v821 = vsel %vm310, %v609, %v820
      %822 = vst [vmem:[%s743 + $0x80] sm:$0x1] %v821
      %v823 = vld [vmem:[%s743 + $0x84] sm:$0xf]
      %v824 = vsel %vm745, %v616, %v823
      %825 = vst [vmem:[%s743 + $0x84] sm:$0xf] %v824
      %826 = vst [vmem:[%s743 + $0x88] sm:$0xf] %v625
      %v827 = vld [vmem:[%s743 + $0x8c] sm:$0x1]
      %v828 = vsel %vm310, %v626, %v827
      %829 = vst [vmem:[%s743 + $0x8c] sm:$0x1] %v828
      %v830 = vld [vmem:[%s743 + $0x90] sm:$0xf]
      %v831 = vsel %vm745, %v633, %v830
      %832 = vst [vmem:[%s743 + $0x90] sm:$0xf] %v831
      %833 = vst [vmem:[%s743 + $0x94] sm:$0xf] %v642
      %v834 = vld [vmem:[%s743 + $0x98] sm:$0x1]
      %v835 = vsel %vm310, %v643, %v834
      %836 = vst [vmem:[%s743 + $0x98] sm:$0x1] %v835
      %v837 = vld [vmem:[%s743 + $0x9c] sm:$0xf]
      %v838 = vsel %vm745, %v650, %v837
      %839 = vst [vmem:[%s743 + $0x9c] sm:$0xf] %v838
      %840 = vst [vmem:[%s743 + $0xa0] sm:$0xf] %v659
      %v841 = vld [vmem:[%s743 + $0xa4] sm:$0x1]
      %v842 = vsel %vm310, %v660, %v841
      %843 = vst [vmem:[%s743 + $0xa4] sm:$0x1] %v842
      %v844 = vld [vmem:[%s743 + $0xa8] sm:$0xf]
      %v845 = vsel %vm745, %v667, %v844
      %846 = vst [vmem:[%s743 + $0xa8] sm:$0xf] %v845
      %847 = vst [vmem:[%s743 + $0xac] sm:$0xf] %v676
      %v848 = vld [vmem:[%s743 + $0xb0] sm:$0x1]
      %v849 = vsel %vm310, %v677, %v848
      %850 = vst [vmem:[%s743 + $0xb0] sm:$0x1] %v849
      %v851 = vld [vmem:[%s743 + $0xb4] sm:$0xf]
      %v852 = vsel %vm745, %v684, %v851
      %853 = vst [vmem:[%s743 + $0xb4] sm:$0xf] %v852
      %854 = vst [vmem:[%s743 + $0xb8] sm:$0xf] %v693
      %v855 = vld [vmem:[%s743 + $0xbc] sm:$0x1]
      %v856 = vsel %vm310, %v694, %v855
      %857 = vst [vmem:[%s743 + $0xbc] sm:$0x1] %v856
      %v858 = vld [vmem:[#allocation2] sm:$0xf]
      %v859 = vld [vmem:[#allocation2 + $0x4] sm:$0xf]
      %v860 = vld [vmem:[#allocation2 + $0xc] sm:$0xf]
      %v861 = vld [vmem:[#allocation2 + $0x10] sm:$0xf]
      %v862 = vld [vmem:[#allocation2 + $0x18] sm:$0xf]
      %v863 = vld [vmem:[#allocation2 + $0x1c] sm:$0xf]
      %v864 = vld [vmem:[#allocation2 + $0x24] sm:$0xf]
      %v865 = vld [vmem:[#allocation2 + $0x28] sm:$0xf]
      %v866 = vld [vmem:[#allocation2 + $0x30] sm:$0xf]
      %v867 = vld [vmem:[#allocation2 + $0x34] sm:$0xf]
      %v868 = vld [vmem:[#allocation2 + $0x3c] sm:$0xf]
      %v869 = vld [vmem:[#allocation2 + $0x40] sm:$0xf]
      %v870 = vld [vmem:[#allocation2 + $0x48] sm:$0xf]
      %v871 = vld [vmem:[#allocation2 + $0x4c] sm:$0xf]
      %v872 = vld [vmem:[#allocation2 + $0x54] sm:$0xf]
      %v873 = vld [vmem:[#allocation2 + $0x58] sm:$0xf]
      %v874 = vld [vmem:[#allocation2 + $0x60] sm:$0xf]
      %v875 = vld [vmem:[#allocation2 + $0x64] sm:$0xf]
      %v876 = vld [vmem:[#allocation2 + $0x6c] sm:$0xf]
      %v877 = vld [vmem:[#allocation2 + $0x70] sm:$0xf]
      %v878 = vld [vmem:[#allocation2 + $0x78] sm:$0xf]
      %v879 = vld [vmem:[#allocation2 + $0x7c] sm:$0xf]
      %v880 = vld [vmem:[#allocation2 + $0x84] sm:$0xf]
      %v881 = vld [vmem:[#allocation2 + $0x88] sm:$0xf]
      %v882 = vld [vmem:[#allocation2 + $0x90] sm:$0xf]
      %v883 = vld [vmem:[#allocation2 + $0x94] sm:$0xf]
      %v884 = vld [vmem:[#allocation2 + $0x9c] sm:$0xf]
      %v885 = vld [vmem:[#allocation2 + $0xa0] sm:$0xf]
      %v886 = vld [vmem:[#allocation2 + $0xa8] sm:$0xf]
      %v887 = vld [vmem:[#allocation2 + $0xac] sm:$0xf]
      %v888 = vld [vmem:[#allocation2 + $0xb4] sm:$0xf]
      %v889 = vld [vmem:[#allocation2 + $0xb8] sm:$0xf]
      %v890 = vld [vmem:[#allocation2 + $0x8] sm:$0x1]
      %v891 = vld [vmem:[#allocation2 + $0x14] sm:$0x1]
      %v892 = vld [vmem:[#allocation2 + $0x20] sm:$0x1]
      %v893 = vld [vmem:[#allocation2 + $0x2c] sm:$0x1]
      %v894 = vld [vmem:[#allocation2 + $0x38] sm:$0x1]
      %v895 = vld [vmem:[#allocation2 + $0x44] sm:$0x1]
      %v896 = vld [vmem:[#allocation2 + $0x50] sm:$0x1]
      %v897 = vld [vmem:[#allocation2 + $0x5c] sm:$0x1]
      %v898 = vld [vmem:[#allocation2 + $0x68] sm:$0x1]
      %v899 = vld [vmem:[#allocation2 + $0x74] sm:$0x1]
      %v900 = vld [vmem:[#allocation2 + $0x80] sm:$0x1]
      %v901 = vld [vmem:[#allocation2 + $0x8c] sm:$0x1]
      %v902 = vld [vmem:[#allocation2 + $0x98] sm:$0x1]
      %v903 = vld [vmem:[#allocation2 + $0xa4] sm:$0x1]
      %v904 = vld [vmem:[#allocation2 + $0xb0] sm:$0x1]
      %v905 = vld [vmem:[#allocation2 + $0xbc] sm:$0x1]
      %v906 = vld [vmem:[#allocation2] sm:$0xe]
      %v907 = vld [vmem:[#allocation2 + $0xc] sm:$0xe]
      %v908 = vld [vmem:[#allocation2 + $0x18] sm:$0xe]
      %v909 = vld [vmem:[#allocation2 + $0x24] sm:$0xe]
      %v910 = vld [vmem:[#allocation2 + $0x30] sm:$0xe]
      %v911 = vld [vmem:[#allocation2 + $0x3c] sm:$0xe]
      %v912 = vld [vmem:[#allocation2 + $0x48] sm:$0xe]
      %v913 = vld [vmem:[#allocation2 + $0x54] sm:$0xe]
      %v914 = vld [vmem:[#allocation2 + $0x60] sm:$0xe]
      %v915 = vld [vmem:[#allocation2 + $0x6c] sm:$0xe]
      %v916 = vld [vmem:[#allocation2 + $0x78] sm:$0xe]
      %v917 = vld [vmem:[#allocation2 + $0x84] sm:$0xe]
      %v918 = vld [vmem:[#allocation2 + $0x90] sm:$0xe]
      %v919 = vld [vmem:[#allocation2 + $0x9c] sm:$0xe]
      %v920 = vld [vmem:[#allocation2 + $0xa8] sm:$0xe]
      %v921 = vld [vmem:[#allocation2 + $0xb4] sm:$0xe]
      %v954 = vunpack.c.l.b16 %v858
      %v955 = vunpack.c.l.b16 %v859
      %v956 = vunpack.c.l.b16 %v860
      %v957 = vunpack.c.l.b16 %v861
      %v958 = vunpack.c.l.b16 %v862
      %v959 = vunpack.c.l.b16 %v863
      %v960 = vunpack.c.l.b16 %v864
      %v961 = vunpack.c.l.b16 %v865
      %v962 = vunpack.c.l.b16 %v866
      %v963 = vunpack.c.l.b16 %v867
      %v964 = vunpack.c.l.b16 %v868
      %v965 = vunpack.c.l.b16 %v869
      %v966 = vunpack.c.l.b16 %v870
      %v967 = vunpack.c.l.b16 %v871
      %v968 = vunpack.c.l.b16 %v872
      %v969 = vunpack.c.l.b16 %v873
      %v970 = vunpack.c.l.b16 %v874
      %v971 = vunpack.c.l.b16 %v875
      %v972 = vunpack.c.l.b16 %v876
      %v973 = vunpack.c.l.b16 %v877
      %v974 = vunpack.c.l.b16 %v878
      %v975 = vunpack.c.l.b16 %v879
      %v976 = vunpack.c.l.b16 %v880
      %v977 = vunpack.c.l.b16 %v881
      %v978 = vunpack.c.l.b16 %v882
      %v979 = vunpack.c.l.b16 %v883
      %v980 = vunpack.c.l.b16 %v884
      %v981 = vunpack.c.l.b16 %v885
      %v982 = vunpack.c.l.b16 %v886
      %v983 = vunpack.c.l.b16 %v887
      %v984 = vunpack.c.l.b16 %v888
      %v985 = vunpack.c.l.b16 %v889
      %v986 = vpack.c.b16 %v955, %v954
      %v987 = vpack.c.b16 %v957, %v956
      %v988 = vpack.c.b16 %v959, %v958
      %v989 = vpack.c.b16 %v961, %v960
      %v990 = vpack.c.b16 %v963, %v962
      %v991 = vpack.c.b16 %v965, %v964
      %v992 = vpack.c.b16 %v967, %v966
      %v993 = vpack.c.b16 %v969, %v968
      %v994 = vpack.c.b16 %v971, %v970
      %v995 = vpack.c.b16 %v973, %v972
      %v996 = vpack.c.b16 %v975, %v974
      %v997 = vpack.c.b16 %v977, %v976
      %v998 = vpack.c.b16 %v979, %v978
      %v999 = vpack.c.b16 %v981, %v980
      %v1000 = vpack.c.b16 %v983, %v982
      %v1001 = vpack.c.b16 %v985, %v984
      %v1034 = vunpack.c.l.b16 %v890
      %v1035 = vunpack.c.l.b16 %v891
      %v1036 = vunpack.c.l.b16 %v892
      %v1037 = vunpack.c.l.b16 %v893
      %v1038 = vunpack.c.l.b16 %v894
      %v1039 = vunpack.c.l.b16 %v895
      %v1040 = vunpack.c.l.b16 %v896
      %v1041 = vunpack.c.l.b16 %v897
      %v1042 = vunpack.c.l.b16 %v898
      %v1043 = vunpack.c.l.b16 %v899
      %v1044 = vunpack.c.l.b16 %v900
      %v1045 = vunpack.c.l.b16 %v901
      %v1046 = vunpack.c.l.b16 %v902
      %v1047 = vunpack.c.l.b16 %v903
      %v1048 = vunpack.c.l.b16 %v904
      %v1049 = vunpack.c.l.b16 %v905
      %v1050 = vpack.c.b16 %v1034, %v1034
      %v1051 = vpack.c.b16 %v1035, %v1035
      %v1052 = vpack.c.b16 %v1036, %v1036
      %v1053 = vpack.c.b16 %v1037, %v1037
      %v1054 = vpack.c.b16 %v1038, %v1038
      %v1055 = vpack.c.b16 %v1039, %v1039
      %v1056 = vpack.c.b16 %v1040, %v1040
      %v1057 = vpack.c.b16 %v1041, %v1041
      %v1058 = vpack.c.b16 %v1042, %v1042
      %v1059 = vpack.c.b16 %v1043, %v1043
      %v1060 = vpack.c.b16 %v1044, %v1044
      %v1061 = vpack.c.b16 %v1045, %v1045
      %v1062 = vpack.c.b16 %v1046, %v1046
      %v1063 = vpack.c.b16 %v1047, %v1047
      %v1064 = vpack.c.b16 %v1048, %v1048
      %v1065 = vpack.c.b16 %v1049, %v1049
      %vm1066 = vsmask.f32 7424
      %v1068 = vshrl.u32 %v986, 16
      %v1070 = vshll.u32 %v986, 16
      %v1072 = vrot.slane %v1070, 1
      %v1073 = vor.u32 %v1068, %v1072
      %v1075 = vshll.u32 %v1050, 16
      %v1077 = vrot.slane %v1075, 1
      %v1078 = vsel %vm1066, %v1073, %v1077
      %v1080 = vshrl.u32 %v987, 16
      %v1082 = vshll.u32 %v987, 16
      %v1084 = vrot.slane %v1082, 1
      %v1085 = vor.u32 %v1080, %v1084
      %v1087 = vshll.u32 %v1051, 16
      %v1089 = vrot.slane %v1087, 1
      %v1090 = vsel %vm1066, %v1085, %v1089
      %v1092 = vshrl.u32 %v988, 16
      %v1094 = vshll.u32 %v988, 16
      %v1096 = vrot.slane %v1094, 1
      %v1097 = vor.u32 %v1092, %v1096
      %v1099 = vshll.u32 %v1052, 16
      %v1101 = vrot.slane %v1099, 1
      %v1102 = vsel %vm1066, %v1097, %v1101
      %v1104 = vshrl.u32 %v989, 16
      %v1106 = vshll.u32 %v989, 16
      %v1108 = vrot.slane %v1106, 1
      %v1109 = vor.u32 %v1104, %v1108
      %v1111 = vshll.u32 %v1053, 16
      %v1113 = vrot.slane %v1111, 1
      %v1114 = vsel %vm1066, %v1109, %v1113
      %v1116 = vshrl.u32 %v990, 16
      %v1118 = vshll.u32 %v990, 16
      %v1120 = vrot.slane %v1118, 1
      %v1121 = vor.u32 %v1116, %v1120
      %v1123 = vshll.u32 %v1054, 16
      %v1125 = vrot.slane %v1123, 1
      %v1126 = vsel %vm1066, %v1121, %v1125
      %v1128 = vshrl.u32 %v991, 16
      %v1130 = vshll.u32 %v991, 16
      %v1132 = vrot.slane %v1130, 1
      %v1133 = vor.u32 %v1128, %v1132
      %v1135 = vshll.u32 %v1055, 16
      %v1137 = vrot.slane %v1135, 1
      %v1138 = vsel %vm1066, %v1133, %v1137
      %v1140 = vshrl.u32 %v992, 16
      %v1142 = vshll.u32 %v992, 16
      %v1144 = vrot.slane %v1142, 1
      %v1145 = vor.u32 %v1140, %v1144
      %v1147 = vshll.u32 %v1056, 16
      %v1149 = vrot.slane %v1147, 1
      %v1150 = vsel %vm1066, %v1145, %v1149
      %v1152 = vshrl.u32 %v993, 16
      %v1154 = vshll.u32 %v993, 16
      %v1156 = vrot.slane %v1154, 1
      %v1157 = vor.u32 %v1152, %v1156
      %v1159 = vshll.u32 %v1057, 16
      %v1161 = vrot.slane %v1159, 1
      %v1162 = vsel %vm1066, %v1157, %v1161
      %v1164 = vshrl.u32 %v994, 16
      %v1166 = vshll.u32 %v994, 16
      %v1168 = vrot.slane %v1166, 1
      %v1169 = vor.u32 %v1164, %v1168
      %v1171 = vshll.u32 %v1058, 16
      %v1173 = vrot.slane %v1171, 1
      %v1174 = vsel %vm1066, %v1169, %v1173
      %v1176 = vshrl.u32 %v995, 16
      %v1178 = vshll.u32 %v995, 16
      %v1180 = vrot.slane %v1178, 1
      %v1181 = vor.u32 %v1176, %v1180
      %v1183 = vshll.u32 %v1059, 16
      %v1185 = vrot.slane %v1183, 1
      %v1186 = vsel %vm1066, %v1181, %v1185
      %v1188 = vshrl.u32 %v996, 16
      %v1190 = vshll.u32 %v996, 16
      %v1192 = vrot.slane %v1190, 1
      %v1193 = vor.u32 %v1188, %v1192
      %v1195 = vshll.u32 %v1060, 16
      %v1197 = vrot.slane %v1195, 1
      %v1198 = vsel %vm1066, %v1193, %v1197
      %v1200 = vshrl.u32 %v997, 16
      %v1202 = vshll.u32 %v997, 16
      %v1204 = vrot.slane %v1202, 1
      %v1205 = vor.u32 %v1200, %v1204
      %v1207 = vshll.u32 %v1061, 16
      %v1209 = vrot.slane %v1207, 1
      %v1210 = vsel %vm1066, %v1205, %v1209
      %v1212 = vshrl.u32 %v998, 16
      %v1214 = vshll.u32 %v998, 16
      %v1216 = vrot.slane %v1214, 1
      %v1217 = vor.u32 %v1212, %v1216
      %v1219 = vshll.u32 %v1062, 16
      %v1221 = vrot.slane %v1219, 1
      %v1222 = vsel %vm1066, %v1217, %v1221
      %v1224 = vshrl.u32 %v999, 16
      %v1226 = vshll.u32 %v999, 16
      %v1228 = vrot.slane %v1226, 1
      %v1229 = vor.u32 %v1224, %v1228
      %v1231 = vshll.u32 %v1063, 16
      %v1233 = vrot.slane %v1231, 1
      %v1234 = vsel %vm1066, %v1229, %v1233
      %v1236 = vshrl.u32 %v1000, 16
      %v1238 = vshll.u32 %v1000, 16
      %v1240 = vrot.slane %v1238, 1
      %v1241 = vor.u32 %v1236, %v1240
      %v1243 = vshll.u32 %v1064, 16
      %v1245 = vrot.slane %v1243, 1
      %v1246 = vsel %vm1066, %v1241, %v1245
      %v1248 = vshrl.u32 %v1001, 16
      %v1250 = vshll.u32 %v1001, 16
      %v1252 = vrot.slane %v1250, 1
      %v1253 = vor.u32 %v1248, %v1252
      %v1255 = vshll.u32 %v1065, 16
      %v1257 = vrot.slane %v1255, 1
      %v1258 = vsel %vm1066, %v1253, %v1257
      %v1291 = vunpack.c.l.b16 %v906
      %v1292 = vunpack.c.l.b16 %v907
      %v1293 = vunpack.c.l.b16 %v908
      %v1294 = vunpack.c.l.b16 %v909
      %v1295 = vunpack.c.l.b16 %v910
      %v1296 = vunpack.c.l.b16 %v911
      %v1297 = vunpack.c.l.b16 %v912
      %v1298 = vunpack.c.l.b16 %v913
      %v1299 = vunpack.c.l.b16 %v914
      %v1300 = vunpack.c.l.b16 %v915
      %v1301 = vunpack.c.l.b16 %v916
      %v1302 = vunpack.c.l.b16 %v917
      %v1303 = vunpack.c.l.b16 %v918
      %v1304 = vunpack.c.l.b16 %v919
      %v1305 = vunpack.c.l.b16 %v920
      %v1306 = vunpack.c.l.b16 %v921
      %v1307 = vpack.c.b16 %v955, %v1291
      %v1308 = vpack.c.b16 %v957, %v1292
      %v1309 = vpack.c.b16 %v959, %v1293
      %v1310 = vpack.c.b16 %v961, %v1294
      %v1311 = vpack.c.b16 %v963, %v1295
      %v1312 = vpack.c.b16 %v965, %v1296
      %v1313 = vpack.c.b16 %v967, %v1297
      %v1314 = vpack.c.b16 %v969, %v1298
      %v1315 = vpack.c.b16 %v971, %v1299
      %v1316 = vpack.c.b16 %v973, %v1300
      %v1317 = vpack.c.b16 %v975, %v1301
      %v1318 = vpack.c.b16 %v977, %v1302
      %v1319 = vpack.c.b16 %v979, %v1303
      %v1320 = vpack.c.b16 %v981, %v1304
      %v1321 = vpack.c.b16 %v983, %v1305
      %v1322 = vpack.c.b16 %v985, %v1306
      %vm1323 = vcmask 1046528
      %v1324 = vrot.slane %v1307, 1
      %v1325 = vrot.slane %v1050, 1
      %v1326 = vsel %vm1323, %v1324, %v1325
      %v1327 = vrot.slane %v1308, 1
      %v1328 = vrot.slane %v1051, 1
      %v1329 = vsel %vm1323, %v1327, %v1328
      %v1330 = vrot.slane %v1309, 1
      %v1331 = vrot.slane %v1052, 1
      %v1332 = vsel %vm1323, %v1330, %v1331
      %v1333 = vrot.slane %v1310, 1
      %v1334 = vrot.slane %v1053, 1
      %v1335 = vsel %vm1323, %v1333, %v1334
      %v1336 = vrot.slane %v1311, 1
      %v1337 = vrot.slane %v1054, 1
      %v1338 = vsel %vm1323, %v1336, %v1337
      %v1339 = vrot.slane %v1312, 1
      %v1340 = vrot.slane %v1055, 1
      %v1341 = vsel %vm1323, %v1339, %v1340
      %v1342 = vrot.slane %v1313, 1
      %v1343 = vrot.slane %v1056, 1
      %v1344 = vsel %vm1323, %v1342, %v1343
      %v1345 = vrot.slane %v1314, 1
      %v1346 = vrot.slane %v1057, 1
      %v1347 = vsel %vm1323, %v1345, %v1346
      %v1348 = vrot.slane %v1315, 1
      %v1349 = vrot.slane %v1058, 1
      %v1350 = vsel %vm1323, %v1348, %v1349
      %v1351 = vrot.slane %v1316, 1
      %v1352 = vrot.slane %v1059, 1
      %v1353 = vsel %vm1323, %v1351, %v1352
      %v1354 = vrot.slane %v1317, 1
      %v1355 = vrot.slane %v1060, 1
      %v1356 = vsel %vm1323, %v1354, %v1355
      %v1357 = vrot.slane %v1318, 1
      %v1358 = vrot.slane %v1061, 1
      %v1359 = vsel %vm1323, %v1357, %v1358
      %v1360 = vrot.slane %v1319, 1
      %v1361 = vrot.slane %v1062, 1
      %v1362 = vsel %vm1323, %v1360, %v1361
      %v1363 = vrot.slane %v1320, 1
      %v1364 = vrot.slane %v1063, 1
      %v1365 = vsel %vm1323, %v1363, %v1364
      %v1366 = vrot.slane %v1321, 1
      %v1367 = vrot.slane %v1064, 1
      %v1368 = vsel %vm1323, %v1366, %v1367
      %v1369 = vrot.slane %v1322, 1
      %v1370 = vrot.slane %v1065, 1
      %v1371 = vsel %vm1323, %v1369, %v1370
      %v1388 = vld [vmem:[%s1] sm:$0xf]
      %v1389 = vld [vmem:[%s1 + $0x4] sm:$0xf]
      %v1390 = vld [vmem:[%s1 + $0x8] sm:$0xf]
      %v1391 = vld [vmem:[%s1 + $0xc] sm:$0xf]
      %v1392 = vld [vmem:[%s1 + $0x10] sm:$0xf]
      %v1393 = vld [vmem:[%s1 + $0x14] sm:$0xf]
      %v1394 = vld [vmem:[%s1 + $0x18] sm:$0xf]
      %v1395 = vld [vmem:[%s1 + $0x1c] sm:$0xf]
      %v1396 = vld [vmem:[%s1 + $0x20] sm:$0xf]
      %v1397 = vld [vmem:[%s1 + $0x24] sm:$0xf]
      %v1398 = vld [vmem:[%s1 + $0x28] sm:$0xf]
      %v1399 = vld [vmem:[%s1 + $0x2c] sm:$0xf]
      %v1400 = vld [vmem:[%s1 + $0x30] sm:$0xf]
      %v1401 = vld [vmem:[%s1 + $0x34] sm:$0xf]
      %v1402 = vld [vmem:[%s1 + $0x38] sm:$0xf]
      %v1403 = vld [vmem:[%s1 + $0x3c] sm:$0xf]
      %v1404 = vld [vmem:[%s1 + $0x40] sm:$0xf]
      %v1405 = vld [vmem:[%s1 + $0x44] sm:$0xf]
      %v1406 = vld [vmem:[%s1 + $0x48] sm:$0xf]
      %v1407 = vld [vmem:[%s1 + $0x4c] sm:$0xf]
      %v1408 = vld [vmem:[%s1 + $0x50] sm:$0xf]
      %v1409 = vld [vmem:[%s1 + $0x54] sm:$0xf]
      %v1410 = vld [vmem:[%s1 + $0x58] sm:$0xf]
      %v1411 = vld [vmem:[%s1 + $0x5c] sm:$0xf]
      %v1412 = vld [vmem:[%s1 + $0x60] sm:$0xf]
      %v1413 = vld [vmem:[%s1 + $0x64] sm:$0xf]
      %v1414 = vld [vmem:[%s1 + $0x68] sm:$0xf]
      %v1415 = vld [vmem:[%s1 + $0x6c] sm:$0xf]
      %v1416 = vld [vmem:[%s1 + $0x70] sm:$0xf]
      %v1417 = vld [vmem:[%s1 + $0x74] sm:$0xf]
      %v1418 = vld [vmem:[%s1 + $0x78] sm:$0xf]
      %v1419 = vld [vmem:[%s1 + $0x7c] sm:$0xf]
      %v1420 = vld [vmem:[%s1 + $0x80] sm:$0xf]
      %v1421 = vld [vmem:[%s1 + $0x84] sm:$0xf]
      %v1422 = vld [vmem:[%s1 + $0x88] sm:$0xf]
      %v1423 = vld [vmem:[%s1 + $0x8c] sm:$0xf]
      %v1424 = vld [vmem:[%s1 + $0x90] sm:$0xf]
      %v1425 = vld [vmem:[%s1 + $0x94] sm:$0xf]
      %v1426 = vld [vmem:[%s1 + $0x98] sm:$0xf]
      %v1427 = vld [vmem:[%s1 + $0x9c] sm:$0xf]
      %v1428 = vld [vmem:[%s1 + $0xa0] sm:$0xf]
      %v1429 = vld [vmem:[%s1 + $0xa4] sm:$0xf]
      %v1430 = vld [vmem:[%s1 + $0xa8] sm:$0xf]
      %v1431 = vld [vmem:[%s1 + $0xac] sm:$0xf]
      %v1432 = vld [vmem:[%s1 + $0xb0] sm:$0xf]
      %v1433 = vld [vmem:[%s1 + $0xb4] sm:$0xf]
      %v1434 = vld [vmem:[%s1 + $0xb8] sm:$0xf]
      %v1435 = vld [vmem:[%s1 + $0xbc] sm:$0xf]
      %v1436 = vld [vmem:[%s743] sm:$0xf]
      %v1437 = vld [vmem:[%s743 + $0x4] sm:$0xf]
      %v1438 = vld [vmem:[%s743 + $0xc] sm:$0xf]
      %v1439 = vld [vmem:[%s743 + $0x10] sm:$0xf]
      %v1440 = vld [vmem:[%s743 + $0x18] sm:$0xf]
      %v1441 = vld [vmem:[%s743 + $0x1c] sm:$0xf]
      %v1442 = vld [vmem:[%s743 + $0x24] sm:$0xf]
      %v1443 = vld [vmem:[%s743 + $0x28] sm:$0xf]
      %v1444 = vld [vmem:[%s743 + $0x30] sm:$0xf]
      %v1445 = vld [vmem:[%s743 + $0x34] sm:$0xf]
      %v1446 = vld [vmem:[%s743 + $0x3c] sm:$0xf]
      %v1447 = vld [vmem:[%s743 + $0x40] sm:$0xf]
      %v1448 = vld [vmem:[%s743 + $0x48] sm:$0xf]
      %v1449 = vld [vmem:[%s743 + $0x4c] sm:$0xf]
      %v1450 = vld [vmem:[%s743 + $0x54] sm:$0xf]
      %v1451 = vld [vmem:[%s743 + $0x58] sm:$0xf]
      %v1452 = vld [vmem:[%s743 + $0x60] sm:$0xf]
      %v1453 = vld [vmem:[%s743 + $0x64] sm:$0xf]
      %v1454 = vld [vmem:[%s743 + $0x6c] sm:$0xf]
      %v1455 = vld [vmem:[%s743 + $0x70] sm:$0xf]
      %v1456 = vld [vmem:[%s743 + $0x78] sm:$0xf]
      %v1457 = vld [vmem:[%s743 + $0x7c] sm:$0xf]
      %v1458 = vld [vmem:[%s743 + $0x84] sm:$0xf]
      %v1459 = vld [vmem:[%s743 + $0x88] sm:$0xf]
      %v1460 = vld [vmem:[%s743 + $0x90] sm:$0xf]
      %v1461 = vld [vmem:[%s743 + $0x94] sm:$0xf]
      %v1462 = vld [vmem:[%s743 + $0x9c] sm:$0xf]
      %v1463 = vld [vmem:[%s743 + $0xa0] sm:$0xf]
      %v1464 = vld [vmem:[%s743 + $0xa8] sm:$0xf]
      %v1465 = vld [vmem:[%s743 + $0xac] sm:$0xf]
      %v1466 = vld [vmem:[%s743 + $0xb4] sm:$0xf]
      %v1467 = vld [vmem:[%s743 + $0xb8] sm:$0xf]
      %v1468 = vld [vmem:[%s743 + $0x8] sm:$0x1]
      %v1469 = vld [vmem:[%s743 + $0x14] sm:$0x1]
      %v1470 = vld [vmem:[%s743 + $0x20] sm:$0x1]
      %v1471 = vld [vmem:[%s743 + $0x2c] sm:$0x1]
      %v1472 = vld [vmem:[%s743 + $0x38] sm:$0x1]
      %v1473 = vld [vmem:[%s743 + $0x44] sm:$0x1]
      %v1474 = vld [vmem:[%s743 + $0x50] sm:$0x1]
      %v1475 = vld [vmem:[%s743 + $0x5c] sm:$0x1]
      %v1476 = vld [vmem:[%s743 + $0x68] sm:$0x1]
      %v1477 = vld [vmem:[%s743 + $0x74] sm:$0x1]
      %v1478 = vld [vmem:[%s743 + $0x80] sm:$0x1]
      %v1479 = vld [vmem:[%s743 + $0x8c] sm:$0x1]
      %v1480 = vld [vmem:[%s743 + $0x98] sm:$0x1]
      %v1481 = vld [vmem:[%s743 + $0xa4] sm:$0x1]
      %v1482 = vld [vmem:[%s743 + $0xb0] sm:$0x1]
      %v1483 = vld [vmem:[%s743 + $0xbc] sm:$0x1]
      %v1484 = vld [vmem:[%s743] sm:$0xe]
      %v1485 = vld [vmem:[%s743 + $0xc] sm:$0xe]
      %v1486 = vld [vmem:[%s743 + $0x18] sm:$0xe]
      %v1487 = vld [vmem:[%s743 + $0x24] sm:$0xe]
      %v1488 = vld [vmem:[%s743 + $0x30] sm:$0xe]
      %v1489 = vld [vmem:[%s743 + $0x3c] sm:$0xe]
      %v1490 = vld [vmem:[%s743 + $0x48] sm:$0xe]
      %v1491 = vld [vmem:[%s743 + $0x54] sm:$0xe]
      %v1492 = vld [vmem:[%s743 + $0x60] sm:$0xe]
      %v1493 = vld [vmem:[%s743 + $0x6c] sm:$0xe]
      %v1494 = vld [vmem:[%s743 + $0x78] sm:$0xe]
      %v1495 = vld [vmem:[%s743 + $0x84] sm:$0xe]
      %v1496 = vld [vmem:[%s743 + $0x90] sm:$0xe]
      %v1497 = vld [vmem:[%s743 + $0x9c] sm:$0xe]
      %v1498 = vld [vmem:[%s743 + $0xa8] sm:$0xe]
      %v1499 = vld [vmem:[%s743 + $0xb4] sm:$0xe]
      %v1532 = vunpack.c.l.b16 %v1436
      %v1533 = vunpack.c.l.b16 %v1437
      %v1534 = vunpack.c.l.b16 %v1438
      %v1535 = vunpack.c.l.b16 %v1439
      %v1536 = vunpack.c.l.b16 %v1440
      %v1537 = vunpack.c.l.b16 %v1441
      %v1538 = vunpack.c.l.b16 %v1442
      %v1539 = vunpack.c.l.b16 %v1443
      %v1540 = vunpack.c.l.b16 %v1444
      %v1541 = vunpack.c.l.b16 %v1445
      %v1542 = vunpack.c.l.b16 %v1446
      %v1543 = vunpack.c.l.b16 %v1447
      %v1544 = vunpack.c.l.b16 %v1448
      %v1545 = vunpack.c.l.b16 %v1449
      %v1546 = vunpack.c.l.b16 %v1450
      %v1547 = vunpack.c.l.b16 %v1451
      %v1548 = vunpack.c.l.b16 %v1452
      %v1549 = vunpack.c.l.b16 %v1453
      %v1550 = vunpack.c.l.b16 %v1454
      %v1551 = vunpack.c.l.b16 %v1455
      %v1552 = vunpack.c.l.b16 %v1456
      %v1553 = vunpack.c.l.b16 %v1457
      %v1554 = vunpack.c.l.b16 %v1458
      %v1555 = vunpack.c.l.b16 %v1459
      %v1556 = vunpack.c.l.b16 %v1460
      %v1557 = vunpack.c.l.b16 %v1461
      %v1558 = vunpack.c.l.b16 %v1462
      %v1559 = vunpack.c.l.b16 %v1463
      %v1560 = vunpack.c.l.b16 %v1464
      %v1561 = vunpack.c.l.b16 %v1465
      %v1562 = vunpack.c.l.b16 %v1466
      %v1563 = vunpack.c.l.b16 %v1467
      %v1564 = vpack.c.b16 %v1533, %v1532
      %v1565 = vpack.c.b16 %v1535, %v1534
      %v1566 = vpack.c.b16 %v1537, %v1536
      %v1567 = vpack.c.b16 %v1539, %v1538
      %v1568 = vpack.c.b16 %v1541, %v1540
      %v1569 = vpack.c.b16 %v1543, %v1542
      %v1570 = vpack.c.b16 %v1545, %v1544
      %v1571 = vpack.c.b16 %v1547, %v1546
      %v1572 = vpack.c.b16 %v1549, %v1548
      %v1573 = vpack.c.b16 %v1551, %v1550
      %v1574 = vpack.c.b16 %v1553, %v1552
      %v1575 = vpack.c.b16 %v1555, %v1554
      %v1576 = vpack.c.b16 %v1557, %v1556
      %v1577 = vpack.c.b16 %v1559, %v1558
      %v1578 = vpack.c.b16 %v1561, %v1560
      %v1579 = vpack.c.b16 %v1563, %v1562
      %v1612 = vunpack.c.l.b16 %v1468
      %v1613 = vunpack.c.l.b16 %v1469
      %v1614 = vunpack.c.l.b16 %v1470
      %v1615 = vunpack.c.l.b16 %v1471
      %v1616 = vunpack.c.l.b16 %v1472
      %v1617 = vunpack.c.l.b16 %v1473
      %v1618 = vunpack.c.l.b16 %v1474
      %v1619 = vunpack.c.l.b16 %v1475
      %v1620 = vunpack.c.l.b16 %v1476
      %v1621 = vunpack.c.l.b16 %v1477
      %v1622 = vunpack.c.l.b16 %v1478
      %v1623 = vunpack.c.l.b16 %v1479
      %v1624 = vunpack.c.l.b16 %v1480
      %v1625 = vunpack.c.l.b16 %v1481
      %v1626 = vunpack.c.l.b16 %v1482
      %v1627 = vunpack.c.l.b16 %v1483
      %v1628 = vpack.c.b16 %v1612, %v1612
      %v1629 = vpack.c.b16 %v1613, %v1613
      %v1630 = vpack.c.b16 %v1614, %v1614
      %v1631 = vpack.c.b16 %v1615, %v1615
      %v1632 = vpack.c.b16 %v1616, %v1616
      %v1633 = vpack.c.b16 %v1617, %v1617
      %v1634 = vpack.c.b16 %v1618, %v1618
      %v1635 = vpack.c.b16 %v1619, %v1619
      %v1636 = vpack.c.b16 %v1620, %v1620
      %v1637 = vpack.c.b16 %v1621, %v1621
      %v1638 = vpack.c.b16 %v1622, %v1622
      %v1639 = vpack.c.b16 %v1623, %v1623
      %v1640 = vpack.c.b16 %v1624, %v1624
      %v1641 = vpack.c.b16 %v1625, %v1625
      %v1642 = vpack.c.b16 %v1626, %v1626
      %v1643 = vpack.c.b16 %v1627, %v1627
      %v1645 = vshrl.u32 %v1564, 16
      %v1647 = vshll.u32 %v1564, 16
      %v1649 = vrot.slane %v1647, 1
      %v1650 = vor.u32 %v1645, %v1649
      %v1652 = vshll.u32 %v1628, 16
      %v1654 = vrot.slane %v1652, 1
      %v1655 = vsel %vm1066, %v1650, %v1654
      %v1657 = vshrl.u32 %v1565, 16
      %v1659 = vshll.u32 %v1565, 16
      %v1661 = vrot.slane %v1659, 1
      %v1662 = vor.u32 %v1657, %v1661
      %v1664 = vshll.u32 %v1629, 16
      %v1666 = vrot.slane %v1664, 1
      %v1667 = vsel %vm1066, %v1662, %v1666
      %v1669 = vshrl.u32 %v1566, 16
      %v1671 = vshll.u32 %v1566, 16
      %v1673 = vrot.slane %v1671, 1
      %v1674 = vor.u32 %v1669, %v1673
      %v1676 = vshll.u32 %v1630, 16
      %v1678 = vrot.slane %v1676, 1
      %v1679 = vsel %vm1066, %v1674, %v1678
      %v1681 = vshrl.u32 %v1567, 16
      %v1683 = vshll.u32 %v1567, 16
      %v1685 = vrot.slane %v1683, 1
      %v1686 = vor.u32 %v1681, %v1685
      %v1688 = vshll.u32 %v1631, 16
      %v1690 = vrot.slane %v1688, 1
      %v1691 = vsel %vm1066, %v1686, %v1690
      %v1693 = vshrl.u32 %v1568, 16
      %v1695 = vshll.u32 %v1568, 16
      %v1697 = vrot.slane %v1695, 1
      %v1698 = vor.u32 %v1693, %v1697
      %v1700 = vshll.u32 %v1632, 16
      %v1702 = vrot.slane %v1700, 1
      %v1703 = vsel %vm1066, %v1698, %v1702
      %v1705 = vshrl.u32 %v1569, 16
      %v1707 = vshll.u32 %v1569, 16
      %v1709 = vrot.slane %v1707, 1
      %v1710 = vor.u32 %v1705, %v1709
      %v1712 = vshll.u32 %v1633, 16
      %v1714 = vrot.slane %v1712, 1
      %v1715 = vsel %vm1066, %v1710, %v1714
      %v1717 = vshrl.u32 %v1570, 16
      %v1719 = vshll.u32 %v1570, 16
      %v1721 = vrot.slane %v1719, 1
      %v1722 = vor.u32 %v1717, %v1721
      %v1724 = vshll.u32 %v1634, 16
      %v1726 = vrot.slane %v1724, 1
      %v1727 = vsel %vm1066, %v1722, %v1726
      %v1729 = vshrl.u32 %v1571, 16
      %v1731 = vshll.u32 %v1571, 16
      %v1733 = vrot.slane %v1731, 1
      %v1734 = vor.u32 %v1729, %v1733
      %v1736 = vshll.u32 %v1635, 16
      %v1738 = vrot.slane %v1736, 1
      %v1739 = vsel %vm1066, %v1734, %v1738
      %v1741 = vshrl.u32 %v1572, 16
      %v1743 = vshll.u32 %v1572, 16
      %v1745 = vrot.slane %v1743, 1
      %v1746 = vor.u32 %v1741, %v1745
      %v1748 = vshll.u32 %v1636, 16
      %v1750 = vrot.slane %v1748, 1
      %v1751 = vsel %vm1066, %v1746, %v1750
      %v1753 = vshrl.u32 %v1573, 16
      %v1755 = vshll.u32 %v1573, 16
      %v1757 = vrot.slane %v1755, 1
      %v1758 = vor.u32 %v1753, %v1757
      %v1760 = vshll.u32 %v1637, 16
      %v1762 = vrot.slane %v1760, 1
      %v1763 = vsel %vm1066, %v1758, %v1762
      %v1765 = vshrl.u32 %v1574, 16
      %v1767 = vshll.u32 %v1574, 16
      %v1769 = vrot.slane %v1767, 1
      %v1770 = vor.u32 %v1765, %v1769
      %v1772 = vshll.u32 %v1638, 16
      %v1774 = vrot.slane %v1772, 1
      %v1775 = vsel %vm1066, %v1770, %v1774
      %v1777 = vshrl.u32 %v1575, 16
      %v1779 = vshll.u32 %v1575, 16
      %v1781 = vrot.slane %v1779, 1
      %v1782 = vor.u32 %v1777, %v1781
      %v1784 = vshll.u32 %v1639, 16
      %v1786 = vrot.slane %v1784, 1
      %v1787 = vsel %vm1066, %v1782, %v1786
      %v1789 = vshrl.u32 %v1576, 16
      %v1791 = vshll.u32 %v1576, 16
      %v1793 = vrot.slane %v1791, 1
      %v1794 = vor.u32 %v1789, %v1793
      %v1796 = vshll.u32 %v1640, 16
      %v1798 = vrot.slane %v1796, 1
      %v1799 = vsel %vm1066, %v1794, %v1798
      %v1801 = vshrl.u32 %v1577, 16
      %v1803 = vshll.u32 %v1577, 16
      %v1805 = vrot.slane %v1803, 1
      %v1806 = vor.u32 %v1801, %v1805
      %v1808 = vshll.u32 %v1641, 16
      %v1810 = vrot.slane %v1808, 1
      %v1811 = vsel %vm1066, %v1806, %v1810
      %v1813 = vshrl.u32 %v1578, 16
      %v1815 = vshll.u32 %v1578, 16
      %v1817 = vrot.slane %v1815, 1
      %v1818 = vor.u32 %v1813, %v1817
      %v1820 = vshll.u32 %v1642, 16
      %v1822 = vrot.slane %v1820, 1
      %v1823 = vsel %vm1066, %v1818, %v1822
      %v1825 = vshrl.u32 %v1579, 16
      %v1827 = vshll.u32 %v1579, 16
      %v1829 = vrot.slane %v1827, 1
      %v1830 = vor.u32 %v1825, %v1829
      %v1832 = vshll.u32 %v1643, 16
      %v1834 = vrot.slane %v1832, 1
      %v1835 = vsel %vm1066, %v1830, %v1834
      %v1868 = vunpack.c.l.b16 %v1484
      %v1869 = vunpack.c.l.b16 %v1485
      %v1870 = vunpack.c.l.b16 %v1486
      %v1871 = vunpack.c.l.b16 %v1487
      %v1872 = vunpack.c.l.b16 %v1488
      %v1873 = vunpack.c.l.b16 %v1489
      %v1874 = vunpack.c.l.b16 %v1490
      %v1875 = vunpack.c.l.b16 %v1491
      %v1876 = vunpack.c.l.b16 %v1492
      %v1877 = vunpack.c.l.b16 %v1493
      %v1878 = vunpack.c.l.b16 %v1494
      %v1879 = vunpack.c.l.b16 %v1495
      %v1880 = vunpack.c.l.b16 %v1496
      %v1881 = vunpack.c.l.b16 %v1497
      %v1882 = vunpack.c.l.b16 %v1498
      %v1883 = vunpack.c.l.b16 %v1499
      %v1884 = vpack.c.b16 %v1533, %v1868
      %v1885 = vpack.c.b16 %v1535, %v1869
      %v1886 = vpack.c.b16 %v1537, %v1870
      %v1887 = vpack.c.b16 %v1539, %v1871
      %v1888 = vpack.c.b16 %v1541, %v1872
      %v1889 = vpack.c.b16 %v1543, %v1873
      %v1890 = vpack.c.b16 %v1545, %v1874
      %v1891 = vpack.c.b16 %v1547, %v1875
      %v1892 = vpack.c.b16 %v1549, %v1876
      %v1893 = vpack.c.b16 %v1551, %v1877
      %v1894 = vpack.c.b16 %v1553, %v1878
      %v1895 = vpack.c.b16 %v1555, %v1879
      %v1896 = vpack.c.b16 %v1557, %v1880
      %v1897 = vpack.c.b16 %v1559, %v1881
      %v1898 = vpack.c.b16 %v1561, %v1882
      %v1899 = vpack.c.b16 %v1563, %v1883
      %v1900 = vrot.slane %v1884, 1
      %v1901 = vrot.slane %v1628, 1
      %v1902 = vsel %vm1323, %v1900, %v1901
      %v1903 = vrot.slane %v1885, 1
      %v1904 = vrot.slane %v1629, 1
      %v1905 = vsel %vm1323, %v1903, %v1904
      %v1906 = vrot.slane %v1886, 1
      %v1907 = vrot.slane %v1630, 1
      %v1908 = vsel %vm1323, %v1906, %v1907
      %v1909 = vrot.slane %v1887, 1
      %v1910 = vrot.slane %v1631, 1
      %v1911 = vsel %vm1323, %v1909, %v1910
      %v1912 = vrot.slane %v1888, 1
      %v1913 = vrot.slane %v1632, 1
      %v1914 = vsel %vm1323, %v1912, %v1913
      %v1915 = vrot.slane %v1889, 1
      %v1916 = vrot.slane %v1633, 1
      %v1917 = vsel %vm1323, %v1915, %v1916
      %v1918 = vrot.slane %v1890, 1
      %v1919 = vrot.slane %v1634, 1
      %v1920 = vsel %vm1323, %v1918, %v1919
      %v1921 = vrot.slane %v1891, 1
      %v1922 = vrot.slane %v1635, 1
      %v1923 = vsel %vm1323, %v1921, %v1922
      %v1924 = vrot.slane %v1892, 1
      %v1925 = vrot.slane %v1636, 1
      %v1926 = vsel %vm1323, %v1924, %v1925
      %v1927 = vrot.slane %v1893, 1
      %v1928 = vrot.slane %v1637, 1
      %v1929 = vsel %vm1323, %v1927, %v1928
      %v1930 = vrot.slane %v1894, 1
      %v1931 = vrot.slane %v1638, 1
      %v1932 = vsel %vm1323, %v1930, %v1931
      %v1933 = vrot.slane %v1895, 1
      %v1934 = vrot.slane %v1639, 1
      %v1935 = vsel %vm1323, %v1933, %v1934
      %v1936 = vrot.slane %v1896, 1
      %v1937 = vrot.slane %v1640, 1
      %v1938 = vsel %vm1323, %v1936, %v1937
      %v1939 = vrot.slane %v1897, 1
      %v1940 = vrot.slane %v1641, 1
      %v1941 = vsel %vm1323, %v1939, %v1940
      %v1942 = vrot.slane %v1898, 1
      %v1943 = vrot.slane %v1642, 1
      %v1944 = vsel %vm1323, %v1942, %v1943
      %v1945 = vrot.slane %v1899, 1
      %v1946 = vrot.slane %v1643, 1
      %v1947 = vsel %vm1323, %v1945, %v1946
      %s1964 = scalar_lea.vmem %s1, 192
      %v1965 = vld [vmem:[%s1964] sm:$0xf]
      %v1966 = vld [vmem:[%s1964 + $0x4] sm:$0xf]
      %v1967 = vld [vmem:[%s1964 + $0x8] sm:$0xf]
      %v1968 = vld [vmem:[%s1964 + $0xc] sm:$0xf]
      %v1969 = vld [vmem:[%s1964 + $0x10] sm:$0xf]
      %v1970 = vld [vmem:[%s1964 + $0x14] sm:$0xf]
      %v1971 = vld [vmem:[%s1964 + $0x18] sm:$0xf]
      %v1972 = vld [vmem:[%s1964 + $0x1c] sm:$0xf]
      %v1973 = vld [vmem:[%s1964 + $0x20] sm:$0xf]
      %v1974 = vld [vmem:[%s1964 + $0x24] sm:$0xf]
      %v1975 = vld [vmem:[%s1964 + $0x28] sm:$0xf]
      %v1976 = vld [vmem:[%s1964 + $0x2c] sm:$0xf]
      %v1977 = vld [vmem:[%s1964 + $0x30] sm:$0xf]
      %v1978 = vld [vmem:[%s1964 + $0x34] sm:$0xf]
      %v1979 = vld [vmem:[%s1964 + $0x38] sm:$0xf]
      %v1980 = vld [vmem:[%s1964 + $0x3c] sm:$0xf]
      %v1981 = vld [vmem:[%s1964 + $0x40] sm:$0xf]
      %v1982 = vld [vmem:[%s1964 + $0x44] sm:$0xf]
      %v1983 = vld [vmem:[%s1964 + $0x48] sm:$0xf]
      %v1984 = vld [vmem:[%s1964 + $0x4c] sm:$0xf]
      %v1985 = vld [vmem:[%s1964 + $0x50] sm:$0xf]
      %v1986 = vld [vmem:[%s1964 + $0x54] sm:$0xf]
      %v1987 = vld [vmem:[%s1964 + $0x58] sm:$0xf]
      %v1988 = vld [vmem:[%s1964 + $0x5c] sm:$0xf]
      %v1989 = vld [vmem:[%s1964 + $0x60] sm:$0xf]
      %v1990 = vld [vmem:[%s1964 + $0x64] sm:$0xf]
      %v1991 = vld [vmem:[%s1964 + $0x68] sm:$0xf]
      %v1992 = vld [vmem:[%s1964 + $0x6c] sm:$0xf]
      %v1993 = vld [vmem:[%s1964 + $0x70] sm:$0xf]
      %v1994 = vld [vmem:[%s1964 + $0x74] sm:$0xf]
      %v1995 = vld [vmem:[%s1964 + $0x78] sm:$0xf]
      %v1996 = vld [vmem:[%s1964 + $0x7c] sm:$0xf]
      %v1997 = vld [vmem:[%s1964 + $0x80] sm:$0xf]
      %v1998 = vld [vmem:[%s1964 + $0x84] sm:$0xf]
      %v1999 = vld [vmem:[%s1964 + $0x88] sm:$0xf]
      %v2000 = vld [vmem:[%s1964 + $0x8c] sm:$0xf]
      %v2001 = vld [vmem:[%s1964 + $0x90] sm:$0xf]
      %v2002 = vld [vmem:[%s1964 + $0x94] sm:$0xf]
      %v2003 = vld [vmem:[%s1964 + $0x98] sm:$0xf]
      %v2004 = vld [vmem:[%s1964 + $0x9c] sm:$0xf]
      %v2005 = vld [vmem:[%s1964 + $0xa0] sm:$0xf]
      %v2006 = vld [vmem:[%s1964 + $0xa4] sm:$0xf]
      %v2007 = vld [vmem:[%s1964 + $0xa8] sm:$0xf]
      %v2008 = vld [vmem:[%s1964 + $0xac] sm:$0xf]
      %v2009 = vld [vmem:[%s1964 + $0xb0] sm:$0xf]
      %v2010 = vld [vmem:[%s1964 + $0xb4] sm:$0xf]
      %v2011 = vld [vmem:[%s1964 + $0xb8] sm:$0xf]
      %v2012 = vld [vmem:[%s1964 + $0xbc] sm:$0xf]
      %v2061 = vunpack.c.l.b16 %v1965
      %v2062 = vunpack.c.l.b16 %v1966
      %v2063 = vunpack.c.l.b16 %v1967
      %v2064 = vunpack.c.l.b16 %v1968
      %v2065 = vunpack.c.l.b16 %v1969
      %v2066 = vunpack.c.l.b16 %v1970
      %v2067 = vunpack.c.l.b16 %v1971
      %v2068 = vunpack.c.l.b16 %v1972
      %v2069 = vunpack.c.l.b16 %v1973
      %v2070 = vunpack.c.l.b16 %v1974
      %v2071 = vunpack.c.l.b16 %v1975
      %v2072 = vunpack.c.l.b16 %v1976
      %v2073 = vunpack.c.l.b16 %v1977
      %v2074 = vunpack.c.l.b16 %v1978
      %v2075 = vunpack.c.l.b16 %v1979
      %v2076 = vunpack.c.l.b16 %v1980
      %v2077 = vunpack.c.l.b16 %v1981
      %v2078 = vunpack.c.l.b16 %v1982
      %v2079 = vunpack.c.l.b16 %v1983
      %v2080 = vunpack.c.l.b16 %v1984
      %v2081 = vunpack.c.l.b16 %v1985
      %v2082 = vunpack.c.l.b16 %v1986
      %v2083 = vunpack.c.l.b16 %v1987
      %v2084 = vunpack.c.l.b16 %v1988
      %v2085 = vunpack.c.l.b16 %v1989
      %v2086 = vunpack.c.l.b16 %v1990
      %v2087 = vunpack.c.l.b16 %v1991
      %v2088 = vunpack.c.l.b16 %v1992
      %v2089 = vunpack.c.l.b16 %v1993
      %v2090 = vunpack.c.l.b16 %v1994
      %v2091 = vunpack.c.l.b16 %v1995
      %v2092 = vunpack.c.l.b16 %v1996
      %v2093 = vunpack.c.l.b16 %v1997
      %v2094 = vunpack.c.l.b16 %v1998
      %v2095 = vunpack.c.l.b16 %v1999
      %v2096 = vunpack.c.l.b16 %v2000
      %v2097 = vunpack.c.l.b16 %v2001
      %v2098 = vunpack.c.l.b16 %v2002
      %v2099 = vunpack.c.l.b16 %v2003
      %v2100 = vunpack.c.l.b16 %v2004
      %v2101 = vunpack.c.l.b16 %v2005
      %v2102 = vunpack.c.l.b16 %v2006
      %v2103 = vunpack.c.l.b16 %v2007
      %v2104 = vunpack.c.l.b16 %v2008
      %v2105 = vunpack.c.l.b16 %v2009
      %v2106 = vunpack.c.l.b16 %v2010
      %v2107 = vunpack.c.l.b16 %v2011
      %v2108 = vunpack.c.l.b16 %v2012
      %v2109 = vpack.c.b16 %v2062, %v2061
      %v2110 = vpack.c.b16 %v2064, %v2063
      %v2111 = vpack.c.b16 %v2066, %v2065
      %v2112 = vpack.c.b16 %v2068, %v2067
      %v2113 = vpack.c.b16 %v2070, %v2069
      %v2114 = vpack.c.b16 %v2072, %v2071
      %v2115 = vpack.c.b16 %v2074, %v2073
      %v2116 = vpack.c.b16 %v2076, %v2075
      %v2117 = vpack.c.b16 %v2078, %v2077
      %v2118 = vpack.c.b16 %v2080, %v2079
      %v2119 = vpack.c.b16 %v2082, %v2081
      %v2120 = vpack.c.b16 %v2084, %v2083
      %v2121 = vpack.c.b16 %v2086, %v2085
      %v2122 = vpack.c.b16 %v2088, %v2087
      %v2123 = vpack.c.b16 %v2090, %v2089
      %v2124 = vpack.c.b16 %v2092, %v2091
      %v2125 = vpack.c.b16 %v2094, %v2093
      %v2126 = vpack.c.b16 %v2096, %v2095
      %v2127 = vpack.c.b16 %v2098, %v2097
      %v2128 = vpack.c.b16 %v2100, %v2099
      %v2129 = vpack.c.b16 %v2102, %v2101
      %v2130 = vpack.c.b16 %v2104, %v2103
      %v2131 = vpack.c.b16 %v2106, %v2105
      %v2132 = vpack.c.b16 %v2108, %v2107
      %2157 = vmatprep.subr.bf16.mxu0 0
      %2158 = vmatpush1.bf16.msra.mxu0 %v2116
      %2159 = vmatprep.subr.bf16.mxu0 0
      %2160 = vmatpush1.bf16.msra.mxu0 %v2115
      %2161 = vmatprep.subr.bf16.mxu0 0
      %2162 = vmatpush1.bf16.msra.mxu0 %v2114
      %2163 = vmatprep.subr.bf16.mxu0 0
      %2164 = vmatpush1.bf16.msra.mxu0 %v2113
      %2165 = vmatprep.subr.bf16.mxu0 0
      %2166 = vmatpush1.bf16.msra.mxu0 %v2112
      %2167 = vmatprep.subr.bf16.mxu0 0
      %2168 = vmatpush1.bf16.msra.mxu0 %v2111
      %2169 = vmatprep.subr.bf16.mxu0 0
      %2170 = vmatpush1.bf16.msra.mxu0 %v2110
      %2171 = vmatprep.subr.bf16.mxu0 0
      %2172 = vmatpush1.bf16.msra.mxu0 %v2109
      %2173 = vmatprep.subr.bf16.mxu0 0
      %2174 = vmatpush2.bf16.msra.mxu0 %v2124
      %2175 = vmatprep.subr.bf16.mxu0 0
      %2176 = vmatpush2.bf16.msra.mxu0 %v2123
      %2177 = vmatprep.subr.bf16.mxu0 0
      %2178 = vmatpush2.bf16.msra.mxu0 %v2122
      %2179 = vmatprep.subr.bf16.mxu0 0
      %2180 = vmatpush2.bf16.msra.mxu0 %v2121
      %2181 = vmatprep.subr.bf16.mxu0 0
      %2182 = vmatpush2.bf16.msra.mxu0 %v2120
      %2183 = vmatprep.subr.bf16.mxu0 0
      %2184 = vmatpush2.bf16.msra.mxu0 %v2119
      %2185 = vmatprep.subr.bf16.mxu0 0
      %2186 = vmatpush2.bf16.msra.mxu0 %v2118
      %2187 = vmatprep.subr.bf16.mxu0 0
      %2188 = vmatpush2.bf16.msra.mxu0 %v2117
      %2189 = vmatprep.mubr.bf16.mxu0 %v1655
      %2190 = vmatmul.mubr.bf16.gmra.mxu0 %v1564
      %v2191 = vpop.f32.mrf.mxu0
      %v2192 = vadd.f32 0.0, %v2191
      %v2193 = vpop.f32.mrf.mxu0
      %v2194 = vpop.f32.mrf.mxu0
      %v2195 = vadd.f32 0.0, %v2194
      %v2196 = vpop.f32.mrf.mxu0
      %2197 = vmatprep.mubr.bf16.mxu0 %v1667
      %2198 = vmatmul.mubr.bf16.gmra.mxu0 %v1565
      %v2199 = vpop.f32.mrf.mxu0
      %v2200 = vadd.f32 0.0, %v2199
      %v2201 = vpop.f32.mrf.mxu0
      %v2202 = vpop.f32.mrf.mxu0
      %v2203 = vadd.f32 0.0, %v2202
      %v2204 = vpop.f32.mrf.mxu0
      %2205 = vmatprep.mubr.bf16.mxu0 %v1679
      %2206 = vmatmul.mubr.bf16.gmra.mxu0 %v1566
      %v2207 = vpop.f32.mrf.mxu0
      %v2208 = vadd.f32 0.0, %v2207
      %v2209 = vpop.f32.mrf.mxu0
      %v2210 = vpop.f32.mrf.mxu0
      %v2211 = vadd.f32 0.0, %v2210
      %v2212 = vpop.f32.mrf.mxu0
      %2213 = vmatprep.mubr.bf16.mxu0 %v1691
      %2214 = vmatmul.mubr.bf16.gmra.mxu0 %v1567
      %v2215 = vpop.f32.mrf.mxu0
      %v2216 = vadd.f32 0.0, %v2215
      %v2217 = vpop.f32.mrf.mxu0
      %v2218 = vpop.f32.mrf.mxu0
      %v2219 = vadd.f32 0.0, %v2218
      %v2220 = vpop.f32.mrf.mxu0
      %2221 = vmatprep.mubr.bf16.mxu0 %v1703
      %2222 = vmatmul.mubr.bf16.gmra.mxu0 %v1568
      %v2223 = vpop.f32.mrf.mxu0
      %v2224 = vadd.f32 0.0, %v2223
      %v2225 = vpop.f32.mrf.mxu0
      %v2226 = vpop.f32.mrf.mxu0
      %v2227 = vadd.f32 0.0, %v2226
      %v2228 = vpop.f32.mrf.mxu0
      %2229 = vmatprep.mubr.bf16.mxu0 %v1715
      %2230 = vmatmul.mubr.bf16.gmra.mxu0 %v1569
      %v2231 = vpop.f32.mrf.mxu0
      %v2232 = vadd.f32 0.0, %v2231
      %v2233 = vpop.f32.mrf.mxu0
      %v2234 = vpop.f32.mrf.mxu0
      %v2235 = vadd.f32 0.0, %v2234
      %v2236 = vpop.f32.mrf.mxu0
      %2237 = vmatprep.mubr.bf16.mxu0 %v1727
      %2238 = vmatmul.mubr.bf16.gmra.mxu0 %v1570
      %v2239 = vpop.f32.mrf.mxu0
      %v2240 = vadd.f32 0.0, %v2239
      %v2241 = vpop.f32.mrf.mxu0
      %v2242 = vpop.f32.mrf.mxu0
      %v2243 = vadd.f32 0.0, %v2242
      %v2244 = vpop.f32.mrf.mxu0
      %2245 = vmatprep.mubr.bf16.mxu0 %v1739
      %2246 = vmatmul.mubr.bf16.gmra.mxu0 %v1571
      %v2247 = vpop.f32.mrf.mxu0
      %v2248 = vadd.f32 0.0, %v2247
      %v2249 = vpop.f32.mrf.mxu0
      %v2250 = vpop.f32.mrf.mxu0
      %v2251 = vadd.f32 0.0, %v2250
      %v2252 = vpop.f32.mrf.mxu0
      %2253 = vmatprep.mubr.bf16.mxu0 %v1751
      %2254 = vmatmul.mubr.bf16.gmra.mxu0 %v1572
      %v2255 = vpop.f32.mrf.mxu0
      %v2256 = vadd.f32 0.0, %v2255
      %v2257 = vpop.f32.mrf.mxu0
      %v2258 = vpop.f32.mrf.mxu0
      %v2259 = vadd.f32 0.0, %v2258
      %v2260 = vpop.f32.mrf.mxu0
      %2261 = vmatprep.mubr.bf16.mxu0 %v1763
      %2262 = vmatmul.mubr.bf16.gmra.mxu0 %v1573
      %v2263 = vpop.f32.mrf.mxu0
      %v2264 = vadd.f32 0.0, %v2263
      %v2265 = vpop.f32.mrf.mxu0
      %v2266 = vpop.f32.mrf.mxu0
      %v2267 = vadd.f32 0.0, %v2266
      %v2268 = vpop.f32.mrf.mxu0
      %2269 = vmatprep.mubr.bf16.mxu0 %v1775
      %2270 = vmatmul.mubr.bf16.gmra.mxu0 %v1574
      %v2271 = vpop.f32.mrf.mxu0
      %v2272 = vadd.f32 0.0, %v2271
      %v2273 = vpop.f32.mrf.mxu0
      %v2274 = vpop.f32.mrf.mxu0
      %v2275 = vadd.f32 0.0, %v2274
      %v2276 = vpop.f32.mrf.mxu0
      %2277 = vmatprep.mubr.bf16.mxu0 %v1787
      %2278 = vmatmul.mubr.bf16.gmra.mxu0 %v1575
      %v2279 = vpop.f32.mrf.mxu0
      %v2280 = vadd.f32 0.0, %v2279
      %v2281 = vpop.f32.mrf.mxu0
      %v2282 = vpop.f32.mrf.mxu0
      %v2283 = vadd.f32 0.0, %v2282
      %v2284 = vpop.f32.mrf.mxu0
      %2285 = vmatprep.mubr.bf16.mxu0 %v1799
      %2286 = vmatmul.mubr.bf16.gmra.mxu0 %v1576
      %v2287 = vpop.f32.mrf.mxu0
      %v2288 = vadd.f32 0.0, %v2287
      %v2289 = vpop.f32.mrf.mxu0
      %v2290 = vpop.f32.mrf.mxu0
      %v2291 = vadd.f32 0.0, %v2290
      %v2292 = vpop.f32.mrf.mxu0
      %2293 = vmatprep.mubr.bf16.mxu0 %v1811
      %2294 = vmatmul.mubr.bf16.gmra.mxu0 %v1577
      %v2295 = vpop.f32.mrf.mxu0
      %v2296 = vadd.f32 0.0, %v2295
      %v2297 = vpop.f32.mrf.mxu0
      %v2298 = vpop.f32.mrf.mxu0
      %v2299 = vadd.f32 0.0, %v2298
      %v2300 = vpop.f32.mrf.mxu0
      %2301 = vmatprep.mubr.bf16.mxu0 %v1823
      %2302 = vmatmul.mubr.bf16.gmra.mxu0 %v1578
      %v2303 = vpop.f32.mrf.mxu0
      %v2304 = vadd.f32 0.0, %v2303
      %v2305 = vpop.f32.mrf.mxu0
      %v2306 = vpop.f32.mrf.mxu0
      %v2307 = vadd.f32 0.0, %v2306
      %v2308 = vpop.f32.mrf.mxu0
      %2309 = vmatprep.mubr.bf16.mxu0 %v1835
      %2310 = vmatmul.mubr.bf16.gmra.mxu0 %v1579
      %v2311 = vpop.f32.mrf.mxu0
      %v2312 = vadd.f32 0.0, %v2311
      %v2313 = vpop.f32.mrf.mxu0
      %v2314 = vpop.f32.mrf.mxu0
      %v2315 = vadd.f32 0.0, %v2314
      %v2316 = vpop.f32.mrf.mxu0
      %2317 = vdwg.mxu0
      %2318 = vmatprep.subr.bf16.mxu0 0
      %2319 = vmatpush1.bf16.msra.mxu0 %v2132
      %2320 = vmatprep.subr.bf16.mxu0 0
      %2321 = vmatpush1.bf16.msra.mxu0 %v2131
      %2322 = vmatprep.subr.bf16.mxu0 0
      %2323 = vmatpush1.bf16.msra.mxu0 %v2130
      %2324 = vmatprep.subr.bf16.mxu0 0
      %2325 = vmatpush1.bf16.msra.mxu0 %v2129
      %2326 = vmatprep.subr.bf16.mxu0 0
      %2327 = vmatpush1.bf16.msra.mxu0 %v2128
      %2328 = vmatprep.subr.bf16.mxu0 0
      %2329 = vmatpush1.bf16.msra.mxu0 %v2127
      %2330 = vmatprep.subr.bf16.mxu0 0
      %2331 = vmatpush1.bf16.msra.mxu0 %v2126
      %2332 = vmatprep.subr.bf16.mxu0 0
      %2333 = vmatpush1.bf16.msra.mxu0 %v2125
      %2334 = vmatprep.subr.bf16.mxu0 0
      %2335 = vmatpush2.bf16.msra.mxu0 0
      %2336 = vmatprep.subr.bf16.mxu0 0
      %2337 = vmatpush2.bf16.msra.mxu0 0
      %2338 = vmatprep.subr.bf16.mxu0 0
      %2339 = vmatpush2.bf16.msra.mxu0 0
      %2340 = vmatprep.subr.bf16.mxu0 0
      %2341 = vmatpush2.bf16.msra.mxu0 0
      %2342 = vmatprep.subr.bf16.mxu0 0
      %2343 = vmatpush2.bf16.msra.mxu0 0
      %2344 = vmatprep.subr.bf16.mxu0 0
      %2345 = vmatpush2.bf16.msra.mxu0 0
      %2346 = vmatprep.subr.bf16.mxu0 0
      %2347 = vmatpush2.bf16.msra.mxu0 0
      %2348 = vmatprep.subr.bf16.mxu0 0
      %2349 = vmatpush2.bf16.msra.mxu0 0
      %2350 = vmatprep.mubr.bf16.mxu0 0
      %2351 = vmatmul.mubr.bf16.gmra.mxu0 %v1902
      %v2352 = vpop.f32.mrf.mxu0
      %v2353 = vadd.f32 %v2192, %v2352
      %v2354 = vpop.f32.mrf.mxu0
      %v2355 = vpop.f32.mrf.mxu0
      %v2356 = vadd.f32 %v2195, %v2355
      %v2357 = vpop.f32.mrf.mxu0
      %2358 = vmatprep.mubr.bf16.mxu0 0
      %2359 = vmatmul.mubr.bf16.gmra.mxu0 %v1905
      %v2360 = vpop.f32.mrf.mxu0
      %v2361 = vadd.f32 %v2200, %v2360
      %v2362 = vpop.f32.mrf.mxu0
      %v2363 = vpop.f32.mrf.mxu0
      %v2364 = vadd.f32 %v2203, %v2363
      %v2365 = vpop.f32.mrf.mxu0
      %2366 = vmatprep.mubr.bf16.mxu0 0
      %2367 = vmatmul.mubr.bf16.gmra.mxu0 %v1908
      %v2368 = vpop.f32.mrf.mxu0
      %v2369 = vadd.f32 %v2208, %v2368
      %v2370 = vpop.f32.mrf.mxu0
      %v2371 = vpop.f32.mrf.mxu0
      %v2372 = vadd.f32 %v2211, %v2371
      %v2373 = vpop.f32.mrf.mxu0
      %2374 = vmatprep.mubr.bf16.mxu0 0
      %2375 = vmatmul.mubr.bf16.gmra.mxu0 %v1911
      %v2376 = vpop.f32.mrf.mxu0
      %v2377 = vadd.f32 %v2216, %v2376
      %v2378 = vpop.f32.mrf.mxu0
      %v2379 = vpop.f32.mrf.mxu0
      %v2380 = vadd.f32 %v2219, %v2379
      %v2381 = vpop.f32.mrf.mxu0
      %2382 = vmatprep.mubr.bf16.mxu0 0
      %2383 = vmatmul.mubr.bf16.gmra.mxu0 %v1914
      %v2384 = vpop.f32.mrf.mxu0
      %v2385 = vadd.f32 %v2224, %v2384
      %v2386 = vpop.f32.mrf.mxu0
      %v2387 = vpop.f32.mrf.mxu0
      %v2388 = vadd.f32 %v2227, %v2387
      %v2389 = vpop.f32.mrf.mxu0
      %2390 = vmatprep.mubr.bf16.mxu0 0
      %2391 = vmatmul.mubr.bf16.gmra.mxu0 %v1917
      %v2392 = vpop.f32.mrf.mxu0
      %v2393 = vadd.f32 %v2232, %v2392
      %v2394 = vpop.f32.mrf.mxu0
      %v2395 = vpop.f32.mrf.mxu0
      %v2396 = vadd.f32 %v2235, %v2395
      %v2397 = vpop.f32.mrf.mxu0
      %2398 = vmatprep.mubr.bf16.mxu0 0
      %2399 = vmatmul.mubr.bf16.gmra.mxu0 %v1920
      %v2400 = vpop.f32.mrf.mxu0
      %v2401 = vadd.f32 %v2240, %v2400
      %v2402 = vpop.f32.mrf.mxu0
      %v2403 = vpop.f32.mrf.mxu0
      %v2404 = vadd.f32 %v2243, %v2403
      %v2405 = vpop.f32.mrf.mxu0
      %2406 = vmatprep.mubr.bf16.mxu0 0
      %2407 = vmatmul.mubr.bf16.gmra.mxu0 %v1923
      %v2408 = vpop.f32.mrf.mxu0
      %v2409 = vadd.f32 %v2248, %v2408
      %v2410 = vpop.f32.mrf.mxu0
      %v2411 = vpop.f32.mrf.mxu0
      %v2412 = vadd.f32 %v2251, %v2411
      %v2413 = vpop.f32.mrf.mxu0
      %2414 = vmatprep.mubr.bf16.mxu0 0
      %2415 = vmatmul.mubr.bf16.gmra.mxu0 %v1926
      %v2416 = vpop.f32.mrf.mxu0
      %v2417 = vadd.f32 %v2256, %v2416
      %v2418 = vpop.f32.mrf.mxu0
      %v2419 = vpop.f32.mrf.mxu0
      %v2420 = vadd.f32 %v2259, %v2419
      %v2421 = vpop.f32.mrf.mxu0
      %2422 = vmatprep.mubr.bf16.mxu0 0
      %2423 = vmatmul.mubr.bf16.gmra.mxu0 %v1929
      %v2424 = vpop.f32.mrf.mxu0
      %v2425 = vadd.f32 %v2264, %v2424
      %v2426 = vpop.f32.mrf.mxu0
      %v2427 = vpop.f32.mrf.mxu0
      %v2428 = vadd.f32 %v2267, %v2427
      %v2429 = vpop.f32.mrf.mxu0
      %2430 = vmatprep.mubr.bf16.mxu0 0
      %2431 = vmatmul.mubr.bf16.gmra.mxu0 %v1932
      %v2432 = vpop.f32.mrf.mxu0
      %v2433 = vadd.f32 %v2272, %v2432
      %v2434 = vpop.f32.mrf.mxu0
      %v2435 = vpop.f32.mrf.mxu0
      %v2436 = vadd.f32 %v2275, %v2435
      %v2437 = vpop.f32.mrf.mxu0
      %2438 = vmatprep.mubr.bf16.mxu0 0
      %2439 = vmatmul.mubr.bf16.gmra.mxu0 %v1935
      %v2440 = vpop.f32.mrf.mxu0
      %v2441 = vadd.f32 %v2280, %v2440
      %v2442 = vpop.f32.mrf.mxu0
      %v2443 = vpop.f32.mrf.mxu0
      %v2444 = vadd.f32 %v2283, %v2443
      %v2445 = vpop.f32.mrf.mxu0
      %2446 = vmatprep.mubr.bf16.mxu0 0
      %2447 = vmatmul.mubr.bf16.gmra.mxu0 %v1938
      %v2448 = vpop.f32.mrf.mxu0
      %v2449 = vadd.f32 %v2288, %v2448
      %v2450 = vpop.f32.mrf.mxu0
      %v2451 = vpop.f32.mrf.mxu0
      %v2452 = vadd.f32 %v2291, %v2451
      %v2453 = vpop.f32.mrf.mxu0
      %2454 = vmatprep.mubr.bf16.mxu0 0
      %2455 = vmatmul.mubr.bf16.gmra.mxu0 %v1941
      %v2456 = vpop.f32.mrf.mxu0
      %v2457 = vadd.f32 %v2296, %v2456
      %v2458 = vpop.f32.mrf.mxu0
      %v2459 = vpop.f32.mrf.mxu0
      %v2460 = vadd.f32 %v2299, %v2459
      %v2461 = vpop.f32.mrf.mxu0
      %2462 = vmatprep.mubr.bf16.mxu0 0
      %2463 = vmatmul.mubr.bf16.gmra.mxu0 %v1944
      %v2464 = vpop.f32.mrf.mxu0
      %v2465 = vadd.f32 %v2304, %v2464
      %v2466 = vpop.f32.mrf.mxu0
      %v2467 = vpop.f32.mrf.mxu0
      %v2468 = vadd.f32 %v2307, %v2467
      %v2469 = vpop.f32.mrf.mxu0
      %2470 = vmatprep.mubr.bf16.mxu0 0
      %2471 = vmatmul.mubr.bf16.gmra.mxu0 %v1947
      %v2472 = vpop.f32.mrf.mxu0
      %v2473 = vadd.f32 %v2312, %v2472
      %v2474 = vpop.f32.mrf.mxu0
      %v2475 = vpop.f32.mrf.mxu0
      %v2476 = vadd.f32 %v2315, %v2475
      %v2477 = vpop.f32.mrf.mxu0
      %2478 = vdwg.mxu0
      %v2527 = vunpack.c.l.b16 %v1388
      %v2528 = vunpack.c.l.b16 %v1389
      %v2529 = vunpack.c.l.b16 %v1390
      %v2530 = vunpack.c.l.b16 %v1391
      %v2531 = vunpack.c.l.b16 %v1392
      %v2532 = vunpack.c.l.b16 %v1393
      %v2533 = vunpack.c.l.b16 %v1394
      %v2534 = vunpack.c.l.b16 %v1395
      %v2535 = vunpack.c.l.b16 %v1396
      %v2536 = vunpack.c.l.b16 %v1397
      %v2537 = vunpack.c.l.b16 %v1398
      %v2538 = vunpack.c.l.b16 %v1399
      %v2539 = vunpack.c.l.b16 %v1400
      %v2540 = vunpack.c.l.b16 %v1401
      %v2541 = vunpack.c.l.b16 %v1402
      %v2542 = vunpack.c.l.b16 %v1403
      %v2543 = vunpack.c.l.b16 %v1404
      %v2544 = vunpack.c.l.b16 %v1405
      %v2545 = vunpack.c.l.b16 %v1406
      %v2546 = vunpack.c.l.b16 %v1407
      %v2547 = vunpack.c.l.b16 %v1408
      %v2548 = vunpack.c.l.b16 %v1409
      %v2549 = vunpack.c.l.b16 %v1410
      %v2550 = vunpack.c.l.b16 %v1411
      %v2551 = vunpack.c.l.b16 %v1412
      %v2552 = vunpack.c.l.b16 %v1413
      %v2553 = vunpack.c.l.b16 %v1414
      %v2554 = vunpack.c.l.b16 %v1415
      %v2555 = vunpack.c.l.b16 %v1416
      %v2556 = vunpack.c.l.b16 %v1417
      %v2557 = vunpack.c.l.b16 %v1418
      %v2558 = vunpack.c.l.b16 %v1419
      %v2559 = vunpack.c.l.b16 %v1420
      %v2560 = vunpack.c.l.b16 %v1421
      %v2561 = vunpack.c.l.b16 %v1422
      %v2562 = vunpack.c.l.b16 %v1423
      %v2563 = vunpack.c.l.b16 %v1424
      %v2564 = vunpack.c.l.b16 %v1425
      %v2565 = vunpack.c.l.b16 %v1426
      %v2566 = vunpack.c.l.b16 %v1427
      %v2567 = vunpack.c.l.b16 %v1428
      %v2568 = vunpack.c.l.b16 %v1429
      %v2569 = vunpack.c.l.b16 %v1430
      %v2570 = vunpack.c.l.b16 %v1431
      %v2571 = vunpack.c.l.b16 %v1432
      %v2572 = vunpack.c.l.b16 %v1433
      %v2573 = vunpack.c.l.b16 %v1434
      %v2574 = vunpack.c.l.b16 %v1435
      %v2575 = vpack.c.b16 %v2528, %v2527
      %v2576 = vpack.c.b16 %v2530, %v2529
      %v2577 = vpack.c.b16 %v2532, %v2531
      %v2578 = vpack.c.b16 %v2534, %v2533
      %v2579 = vpack.c.b16 %v2536, %v2535
      %v2580 = vpack.c.b16 %v2538, %v2537
      %v2581 = vpack.c.b16 %v2540, %v2539
      %v2582 = vpack.c.b16 %v2542, %v2541
      %v2583 = vpack.c.b16 %v2544, %v2543
      %v2584 = vpack.c.b16 %v2546, %v2545
      %v2585 = vpack.c.b16 %v2548, %v2547
      %v2586 = vpack.c.b16 %v2550, %v2549
      %v2587 = vpack.c.b16 %v2552, %v2551
      %v2588 = vpack.c.b16 %v2554, %v2553
      %v2589 = vpack.c.b16 %v2556, %v2555
      %v2590 = vpack.c.b16 %v2558, %v2557
      %v2591 = vpack.c.b16 %v2560, %v2559
      %v2592 = vpack.c.b16 %v2562, %v2561
      %v2593 = vpack.c.b16 %v2564, %v2563
      %v2594 = vpack.c.b16 %v2566, %v2565
      %v2595 = vpack.c.b16 %v2568, %v2567
      %v2596 = vpack.c.b16 %v2570, %v2569
      %v2597 = vpack.c.b16 %v2572, %v2571
      %v2598 = vpack.c.b16 %v2574, %v2573
      %2623 = vmatprep.subr.bf16.mxu0 0
      %2624 = vmatpush1.bf16.msra.mxu0 %v2582
      %2625 = vmatprep.subr.bf16.mxu0 0
      %2626 = vmatpush1.bf16.msra.mxu0 %v2581
      %2627 = vmatprep.subr.bf16.mxu0 0
      %2628 = vmatpush1.bf16.msra.mxu0 %v2580
      %2629 = vmatprep.subr.bf16.mxu0 0
      %2630 = vmatpush1.bf16.msra.mxu0 %v2579
      %2631 = vmatprep.subr.bf16.mxu0 0
      %2632 = vmatpush1.bf16.msra.mxu0 %v2578
      %2633 = vmatprep.subr.bf16.mxu0 0
      %2634 = vmatpush1.bf16.msra.mxu0 %v2577
      %2635 = vmatprep.subr.bf16.mxu0 0
      %2636 = vmatpush1.bf16.msra.mxu0 %v2576
      %2637 = vmatprep.subr.bf16.mxu0 0
      %2638 = vmatpush1.bf16.msra.mxu0 %v2575
      %2639 = vmatprep.subr.bf16.mxu0 0
      %2640 = vmatpush2.bf16.msra.mxu0 %v2590
      %2641 = vmatprep.subr.bf16.mxu0 0
      %2642 = vmatpush2.bf16.msra.mxu0 %v2589
      %2643 = vmatprep.subr.bf16.mxu0 0
      %2644 = vmatpush2.bf16.msra.mxu0 %v2588
      %2645 = vmatprep.subr.bf16.mxu0 0
      %2646 = vmatpush2.bf16.msra.mxu0 %v2587
      %2647 = vmatprep.subr.bf16.mxu0 0
      %2648 = vmatpush2.bf16.msra.mxu0 %v2586
      %2649 = vmatprep.subr.bf16.mxu0 0
      %2650 = vmatpush2.bf16.msra.mxu0 %v2585
      %2651 = vmatprep.subr.bf16.mxu0 0
      %2652 = vmatpush2.bf16.msra.mxu0 %v2584
      %2653 = vmatprep.subr.bf16.mxu0 0
      %2654 = vmatpush2.bf16.msra.mxu0 %v2583
      %2655 = vmatprep.mubr.bf16.mxu0 %v1078
      %2656 = vmatmul.mubr.bf16.gmra.mxu0 %v986
      %v2657 = vpop.f32.mrf.mxu0
      %v2658 = vadd.f32 %v2353, %v2657
      %v2659 = vpop.f32.mrf.mxu0
      %v2660 = vpop.f32.mrf.mxu0
      %v2661 = vadd.f32 %v2356, %v2660
      %v2662 = vpop.f32.mrf.mxu0
      %2663 = vmatprep.mubr.bf16.mxu0 %v1090
      %2664 = vmatmul.mubr.bf16.gmra.mxu0 %v987
      %v2665 = vpop.f32.mrf.mxu0
      %v2666 = vadd.f32 %v2361, %v2665
      %v2667 = vpop.f32.mrf.mxu0
      %v2668 = vpop.f32.mrf.mxu0
      %v2669 = vadd.f32 %v2364, %v2668
      %v2670 = vpop.f32.mrf.mxu0
      %2671 = vmatprep.mubr.bf16.mxu0 %v1102
      %2672 = vmatmul.mubr.bf16.gmra.mxu0 %v988
      %v2673 = vpop.f32.mrf.mxu0
      %v2674 = vadd.f32 %v2369, %v2673
      %v2675 = vpop.f32.mrf.mxu0
      %v2676 = vpop.f32.mrf.mxu0
      %v2677 = vadd.f32 %v2372, %v2676
      %v2678 = vpop.f32.mrf.mxu0
      %2679 = vmatprep.mubr.bf16.mxu0 %v1114
      %2680 = vmatmul.mubr.bf16.gmra.mxu0 %v989
      %v2681 = vpop.f32.mrf.mxu0
      %v2682 = vadd.f32 %v2377, %v2681
      %v2683 = vpop.f32.mrf.mxu0
      %v2684 = vpop.f32.mrf.mxu0
      %v2685 = vadd.f32 %v2380, %v2684
      %v2686 = vpop.f32.mrf.mxu0
      %2687 = vmatprep.mubr.bf16.mxu0 %v1126
      %2688 = vmatmul.mubr.bf16.gmra.mxu0 %v990
      %v2689 = vpop.f32.mrf.mxu0
      %v2690 = vadd.f32 %v2385, %v2689
      %v2691 = vpop.f32.mrf.mxu0
      %v2692 = vpop.f32.mrf.mxu0
      %v2693 = vadd.f32 %v2388, %v2692
      %v2694 = vpop.f32.mrf.mxu0
      %2695 = vmatprep.mubr.bf16.mxu0 %v1138
      %2696 = vmatmul.mubr.bf16.gmra.mxu0 %v991
      %v2697 = vpop.f32.mrf.mxu0
      %v2698 = vadd.f32 %v2393, %v2697
      %v2699 = vpop.f32.mrf.mxu0
      %v2700 = vpop.f32.mrf.mxu0
      %v2701 = vadd.f32 %v2396, %v2700
      %v2702 = vpop.f32.mrf.mxu0
      %2703 = vmatprep.mubr.bf16.mxu0 %v1150
      %2704 = vmatmul.mubr.bf16.gmra.mxu0 %v992
      %v2705 = vpop.f32.mrf.mxu0
      %v2706 = vadd.f32 %v2401, %v2705
      %v2707 = vpop.f32.mrf.mxu0
      %v2708 = vpop.f32.mrf.mxu0
      %v2709 = vadd.f32 %v2404, %v2708
      %v2710 = vpop.f32.mrf.mxu0
      %2711 = vmatprep.mubr.bf16.mxu0 %v1162
      %2712 = vmatmul.mubr.bf16.gmra.mxu0 %v993
      %v2713 = vpop.f32.mrf.mxu0
      %v2714 = vadd.f32 %v2409, %v2713
      %v2715 = vpop.f32.mrf.mxu0
      %v2716 = vpop.f32.mrf.mxu0
      %v2717 = vadd.f32 %v2412, %v2716
      %v2718 = vpop.f32.mrf.mxu0
      %2719 = vmatprep.mubr.bf16.mxu0 %v1174
      %2720 = vmatmul.mubr.bf16.gmra.mxu0 %v994
      %v2721 = vpop.f32.mrf.mxu0
      %v2722 = vadd.f32 %v2417, %v2721
      %v2723 = vpop.f32.mrf.mxu0
      %v2724 = vpop.f32.mrf.mxu0
      %v2725 = vadd.f32 %v2420, %v2724
      %v2726 = vpop.f32.mrf.mxu0
      %2727 = vmatprep.mubr.bf16.mxu0 %v1186
      %2728 = vmatmul.mubr.bf16.gmra.mxu0 %v995
      %v2729 = vpop.f32.mrf.mxu0
      %v2730 = vadd.f32 %v2425, %v2729
      %v2731 = vpop.f32.mrf.mxu0
      %v2732 = vpop.f32.mrf.mxu0
      %v2733 = vadd.f32 %v2428, %v2732
      %v2734 = vpop.f32.mrf.mxu0
      %2735 = vmatprep.mubr.bf16.mxu0 %v1198
      %2736 = vmatmul.mubr.bf16.gmra.mxu0 %v996
      %v2737 = vpop.f32.mrf.mxu0
      %v2738 = vadd.f32 %v2433, %v2737
      %v2739 = vpop.f32.mrf.mxu0
      %v2740 = vpop.f32.mrf.mxu0
      %v2741 = vadd.f32 %v2436, %v2740
      %v2742 = vpop.f32.mrf.mxu0
      %2743 = vmatprep.mubr.bf16.mxu0 %v1210
      %2744 = vmatmul.mubr.bf16.gmra.mxu0 %v997
      %v2745 = vpop.f32.mrf.mxu0
      %v2746 = vadd.f32 %v2441, %v2745
      %v2747 = vpop.f32.mrf.mxu0
      %v2748 = vpop.f32.mrf.mxu0
      %v2749 = vadd.f32 %v2444, %v2748
      %v2750 = vpop.f32.mrf.mxu0
      %2751 = vmatprep.mubr.bf16.mxu0 %v1222
      %2752 = vmatmul.mubr.bf16.gmra.mxu0 %v998
      %v2753 = vpop.f32.mrf.mxu0
      %v2754 = vadd.f32 %v2449, %v2753
      %v2755 = vpop.f32.mrf.mxu0
      %v2756 = vpop.f32.mrf.mxu0
      %v2757 = vadd.f32 %v2452, %v2756
      %v2758 = vpop.f32.mrf.mxu0
      %2759 = vmatprep.mubr.bf16.mxu0 %v1234
      %2760 = vmatmul.mubr.bf16.gmra.mxu0 %v999
      %v2761 = vpop.f32.mrf.mxu0
      %v2762 = vadd.f32 %v2457, %v2761
      %v2763 = vpop.f32.mrf.mxu0
      %v2764 = vpop.f32.mrf.mxu0
      %v2765 = vadd.f32 %v2460, %v2764
      %v2766 = vpop.f32.mrf.mxu0
      %2767 = vmatprep.mubr.bf16.mxu0 %v1246
      %2768 = vmatmul.mubr.bf16.gmra.mxu0 %v1000
      %v2769 = vpop.f32.mrf.mxu0
      %v2770 = vadd.f32 %v2465, %v2769
      %v2771 = vpop.f32.mrf.mxu0
      %v2772 = vpop.f32.mrf.mxu0
      %v2773 = vadd.f32 %v2468, %v2772
      %v2774 = vpop.f32.mrf.mxu0
      %2775 = vmatprep.mubr.bf16.mxu0 %v1258
      %2776 = vmatmul.mubr.bf16.gmra.mxu0 %v1001
      %v2777 = vpop.f32.mrf.mxu0
      %v2778 = vadd.f32 %v2473, %v2777
      %v2779 = vpop.f32.mrf.mxu0
      %v2780 = vpop.f32.mrf.mxu0
      %v2781 = vadd.f32 %v2476, %v2780
      %v2782 = vpop.f32.mrf.mxu0
      %2783 = vdwg.mxu0
      %2784 = vmatprep.subr.bf16.mxu0 0
      %2785 = vmatpush1.bf16.msra.mxu0 %v2598
      %2786 = vmatprep.subr.bf16.mxu0 0
      %2787 = vmatpush1.bf16.msra.mxu0 %v2597
      %2788 = vmatprep.subr.bf16.mxu0 0
      %2789 = vmatpush1.bf16.msra.mxu0 %v2596
      %2790 = vmatprep.subr.bf16.mxu0 0
      %2791 = vmatpush1.bf16.msra.mxu0 %v2595
      %2792 = vmatprep.subr.bf16.mxu0 0
      %2793 = vmatpush1.bf16.msra.mxu0 %v2594
      %2794 = vmatprep.subr.bf16.mxu0 0
      %2795 = vmatpush1.bf16.msra.mxu0 %v2593
      %2796 = vmatprep.subr.bf16.mxu0 0
      %2797 = vmatpush1.bf16.msra.mxu0 %v2592
      %2798 = vmatprep.subr.bf16.mxu0 0
      %2799 = vmatpush1.bf16.msra.mxu0 %v2591
      %2800 = vmatprep.subr.bf16.mxu0 0
      %2801 = vmatpush2.bf16.msra.mxu0 0
      %2802 = vmatprep.subr.bf16.mxu0 0
      %2803 = vmatpush2.bf16.msra.mxu0 0
      %2804 = vmatprep.subr.bf16.mxu0 0
      %2805 = vmatpush2.bf16.msra.mxu0 0
      %2806 = vmatprep.subr.bf16.mxu0 0
      %2807 = vmatpush2.bf16.msra.mxu0 0
      %2808 = vmatprep.subr.bf16.mxu0 0
      %2809 = vmatpush2.bf16.msra.mxu0 0
      %2810 = vmatprep.subr.bf16.mxu0 0
      %2811 = vmatpush2.bf16.msra.mxu0 0
      %2812 = vmatprep.subr.bf16.mxu0 0
      %2813 = vmatpush2.bf16.msra.mxu0 0
      %2814 = vmatprep.subr.bf16.mxu0 0
      %2815 = vmatpush2.bf16.msra.mxu0 0
      %2816 = vmatprep.mubr.bf16.mxu0 0
      %2817 = vmatmul.mubr.bf16.gmra.mxu0 %v1326
      %v2818 = vpop.f32.mrf.mxu0
      %v2819 = vadd.f32 %v2658, %v2818
      %v2820 = vpop.f32.mrf.mxu0
      %v2821 = vpop.f32.mrf.mxu0
      %v2822 = vadd.f32 %v2661, %v2821
      %v2823 = vpop.f32.mrf.mxu0
      %2824 = vmatprep.mubr.bf16.mxu0 0
      %2825 = vmatmul.mubr.bf16.gmra.mxu0 %v1329
      %v2826 = vpop.f32.mrf.mxu0
      %v2827 = vadd.f32 %v2666, %v2826
      %v2828 = vpop.f32.mrf.mxu0
      %v2829 = vpop.f32.mrf.mxu0
      %v2830 = vadd.f32 %v2669, %v2829
      %v2831 = vpop.f32.mrf.mxu0
      %2832 = vmatprep.mubr.bf16.mxu0 0
      %2833 = vmatmul.mubr.bf16.gmra.mxu0 %v1332
      %v2834 = vpop.f32.mrf.mxu0
      %v2835 = vadd.f32 %v2674, %v2834
      %v2836 = vpop.f32.mrf.mxu0
      %v2837 = vpop.f32.mrf.mxu0
      %v2838 = vadd.f32 %v2677, %v2837
      %v2839 = vpop.f32.mrf.mxu0
      %2840 = vmatprep.mubr.bf16.mxu0 0
      %2841 = vmatmul.mubr.bf16.gmra.mxu0 %v1335
      %v2842 = vpop.f32.mrf.mxu0
      %v2843 = vadd.f32 %v2682, %v2842
      %v2844 = vpop.f32.mrf.mxu0
      %v2845 = vpop.f32.mrf.mxu0
      %v2846 = vadd.f32 %v2685, %v2845
      %v2847 = vpop.f32.mrf.mxu0
      %2848 = vmatprep.mubr.bf16.mxu0 0
      %2849 = vmatmul.mubr.bf16.gmra.mxu0 %v1338
      %v2850 = vpop.f32.mrf.mxu0
      %v2851 = vadd.f32 %v2690, %v2850
      %v2852 = vpop.f32.mrf.mxu0
      %v2853 = vpop.f32.mrf.mxu0
      %v2854 = vadd.f32 %v2693, %v2853
      %v2855 = vpop.f32.mrf.mxu0
      %2856 = vmatprep.mubr.bf16.mxu0 0
      %2857 = vmatmul.mubr.bf16.gmra.mxu0 %v1341
      %v2858 = vpop.f32.mrf.mxu0
      %v2859 = vadd.f32 %v2698, %v2858
      %v2860 = vpop.f32.mrf.mxu0
      %v2861 = vpop.f32.mrf.mxu0
      %v2862 = vadd.f32 %v2701, %v2861
      %v2863 = vpop.f32.mrf.mxu0
      %2864 = vmatprep.mubr.bf16.mxu0 0
      %2865 = vmatmul.mubr.bf16.gmra.mxu0 %v1344
      %v2866 = vpop.f32.mrf.mxu0
      %v2867 = vadd.f32 %v2706, %v2866
      %v2868 = vpop.f32.mrf.mxu0
      %v2869 = vpop.f32.mrf.mxu0
      %v2870 = vadd.f32 %v2709, %v2869
      %v2871 = vpop.f32.mrf.mxu0
      %2872 = vmatprep.mubr.bf16.mxu0 0
      %2873 = vmatmul.mubr.bf16.gmra.mxu0 %v1347
      %v2874 = vpop.f32.mrf.mxu0
      %v2875 = vadd.f32 %v2714, %v2874
      %v2876 = vpop.f32.mrf.mxu0
      %v2877 = vpop.f32.mrf.mxu0
      %v2878 = vadd.f32 %v2717, %v2877
      %v2879 = vpop.f32.mrf.mxu0
      %2880 = vmatprep.mubr.bf16.mxu0 0
      %2881 = vmatmul.mubr.bf16.gmra.mxu0 %v1350
      %v2882 = vpop.f32.mrf.mxu0
      %v2883 = vadd.f32 %v2722, %v2882
      %v2884 = vpop.f32.mrf.mxu0
      %v2885 = vpop.f32.mrf.mxu0
      %v2886 = vadd.f32 %v2725, %v2885
      %v2887 = vpop.f32.mrf.mxu0
      %2888 = vmatprep.mubr.bf16.mxu0 0
      %2889 = vmatmul.mubr.bf16.gmra.mxu0 %v1353
      %v2890 = vpop.f32.mrf.mxu0
      %v2891 = vadd.f32 %v2730, %v2890
      %v2892 = vpop.f32.mrf.mxu0
      %v2893 = vpop.f32.mrf.mxu0
      %v2894 = vadd.f32 %v2733, %v2893
      %v2895 = vpop.f32.mrf.mxu0
      %2896 = vmatprep.mubr.bf16.mxu0 0
      %2897 = vmatmul.mubr.bf16.gmra.mxu0 %v1356
      %v2898 = vpop.f32.mrf.mxu0
      %v2899 = vadd.f32 %v2738, %v2898
      %v2900 = vpop.f32.mrf.mxu0
      %v2901 = vpop.f32.mrf.mxu0
      %v2902 = vadd.f32 %v2741, %v2901
      %v2903 = vpop.f32.mrf.mxu0
      %2904 = vmatprep.mubr.bf16.mxu0 0
      %2905 = vmatmul.mubr.bf16.gmra.mxu0 %v1359
      %v2906 = vpop.f32.mrf.mxu0
      %v2907 = vadd.f32 %v2746, %v2906
      %v2908 = vpop.f32.mrf.mxu0
      %v2909 = vpop.f32.mrf.mxu0
      %v2910 = vadd.f32 %v2749, %v2909
      %v2911 = vpop.f32.mrf.mxu0
      %2912 = vmatprep.mubr.bf16.mxu0 0
      %2913 = vmatmul.mubr.bf16.gmra.mxu0 %v1362
      %v2914 = vpop.f32.mrf.mxu0
      %v2915 = vadd.f32 %v2754, %v2914
      %v2916 = vpop.f32.mrf.mxu0
      %v2917 = vpop.f32.mrf.mxu0
      %v2918 = vadd.f32 %v2757, %v2917
      %v2919 = vpop.f32.mrf.mxu0
      %2920 = vmatprep.mubr.bf16.mxu0 0
      %2921 = vmatmul.mubr.bf16.gmra.mxu0 %v1365
      %v2922 = vpop.f32.mrf.mxu0
      %v2923 = vadd.f32 %v2762, %v2922
      %v2924 = vpop.f32.mrf.mxu0
      %v2925 = vpop.f32.mrf.mxu0
      %v2926 = vadd.f32 %v2765, %v2925
      %v2927 = vpop.f32.mrf.mxu0
      %2928 = vmatprep.mubr.bf16.mxu0 0
      %2929 = vmatmul.mubr.bf16.gmra.mxu0 %v1368
      %v2930 = vpop.f32.mrf.mxu0
      %v2931 = vadd.f32 %v2770, %v2930
      %v2932 = vpop.f32.mrf.mxu0
      %v2933 = vpop.f32.mrf.mxu0
      %v2934 = vadd.f32 %v2773, %v2933
      %v2935 = vpop.f32.mrf.mxu0
      %2936 = vmatprep.mubr.bf16.mxu0 0
      %2937 = vmatmul.mubr.bf16.gmra.mxu0 %v1371
      %v2938 = vpop.f32.mrf.mxu0
      %v2939 = vadd.f32 %v2778, %v2938
      %v2940 = vpop.f32.mrf.mxu0
      %v2941 = vpop.f32.mrf.mxu0
      %v2942 = vadd.f32 %v2781, %v2941
      %v2943 = vpop.f32.mrf.mxu0
      %2944 = vdwg.mxu0
      %s2945 = scalar_lea.vmem [#allocation2], 24
      %v2946 = vld [vmem:[%s2945] sm:$0xf]
      %v2947 = vld [vmem:[%s2945 + $0x4] sm:$0xf]
      %v2948 = vld [vmem:[%s2945 + $0xc] sm:$0xf]
      %v2949 = vld [vmem:[%s2945 + $0x10] sm:$0xf]
      %v2950 = vld [vmem:[%s2945 + $0x18] sm:$0xf]
      %v2951 = vld [vmem:[%s2945 + $0x1c] sm:$0xf]
      %v2952 = vld [vmem:[%s2945 + $0x24] sm:$0xf]
      %v2953 = vld [vmem:[%s2945 + $0x28] sm:$0xf]
      %v2954 = vld [vmem:[%s2945 + $0x30] sm:$0xf]
      %v2955 = vld [vmem:[%s2945 + $0x34] sm:$0xf]
      %v2956 = vld [vmem:[%s2945 + $0x3c] sm:$0xf]
      %v2957 = vld [vmem:[%s2945 + $0x40] sm:$0xf]
      %v2958 = vld [vmem:[%s2945 + $0x48] sm:$0xf]
      %v2959 = vld [vmem:[%s2945 + $0x4c] sm:$0xf]
      %v2960 = vld [vmem:[%s2945 + $0x54] sm:$0xf]
      %v2961 = vld [vmem:[%s2945 + $0x58] sm:$0xf]
      %v2962 = vld [vmem:[%s2945 + $0x60] sm:$0xf]
      %v2963 = vld [vmem:[%s2945 + $0x64] sm:$0xf]
      %v2964 = vld [vmem:[%s2945 + $0x6c] sm:$0xf]
      %v2965 = vld [vmem:[%s2945 + $0x70] sm:$0xf]
      %v2966 = vld [vmem:[%s2945 + $0x78] sm:$0xf]
      %v2967 = vld [vmem:[%s2945 + $0x7c] sm:$0xf]
      %v2968 = vld [vmem:[%s2945 + $0x84] sm:$0xf]
      %v2969 = vld [vmem:[%s2945 + $0x88] sm:$0xf]
      %v2970 = vld [vmem:[%s2945 + $0x90] sm:$0xf]
      %v2971 = vld [vmem:[%s2945 + $0x94] sm:$0xf]
      %v2972 = vld [vmem:[%s2945 + $0x9c] sm:$0xf]
      %v2973 = vld [vmem:[%s2945 + $0xa0] sm:$0xf]
      %v2974 = vld [vmem:[%s2945 + $0xa8] sm:$0xf]
      %v2975 = vld [vmem:[%s2945 + $0xac] sm:$0xf]
      %v2976 = vld [vmem:[%s2945 + $0xb4] sm:$0xf]
      %v2977 = vld [vmem:[%s2945 + $0xb8] sm:$0xf]
      %v2978 = vld [vmem:[%s2945 + $0x8] sm:$0x1]
      %v2979 = vld [vmem:[%s2945 + $0x14] sm:$0x1]
      %v2980 = vld [vmem:[%s2945 + $0x20] sm:$0x1]
      %v2981 = vld [vmem:[%s2945 + $0x2c] sm:$0x1]
      %v2982 = vld [vmem:[%s2945 + $0x38] sm:$0x1]
      %v2983 = vld [vmem:[%s2945 + $0x44] sm:$0x1]
      %v2984 = vld [vmem:[%s2945 + $0x50] sm:$0x1]
      %v2985 = vld [vmem:[%s2945 + $0x5c] sm:$0x1]
      %v2986 = vld [vmem:[%s2945 + $0x68] sm:$0x1]
      %v2987 = vld [vmem:[%s2945 + $0x74] sm:$0x1]
      %v2988 = vld [vmem:[%s2945 + $0x80] sm:$0x1]
      %v2989 = vld [vmem:[%s2945 + $0x8c] sm:$0x1]
      %v2990 = vld [vmem:[%s2945 + $0x98] sm:$0x1]
      %v2991 = vld [vmem:[%s2945 + $0xa4] sm:$0x1]
      %v2992 = vld [vmem:[%s2945 + $0xb0] sm:$0x1]
      %v2993 = vld [vmem:[%s2945 + $0xbc] sm:$0x1]
      %v2994 = vld [vmem:[%s2945] sm:$0xe]
      %v2995 = vld [vmem:[%s2945 + $0xc] sm:$0xe]
      %v2996 = vld [vmem:[%s2945 + $0x18] sm:$0xe]
      %v2997 = vld [vmem:[%s2945 + $0x24] sm:$0xe]
      %v2998 = vld [vmem:[%s2945 + $0x30] sm:$0xe]
      %v2999 = vld [vmem:[%s2945 + $0x3c] sm:$0xe]
      %v3000 = vld [vmem:[%s2945 + $0x48] sm:$0xe]
      %v3001 = vld [vmem:[%s2945 + $0x54] sm:$0xe]
      %v3002 = vld [vmem:[%s2945 + $0x60] sm:$0xe]
      %v3003 = vld [vmem:[%s2945 + $0x6c] sm:$0xe]
      %v3004 = vld [vmem:[%s2945 + $0x78] sm:$0xe]
      %v3005 = vld [vmem:[%s2945 + $0x84] sm:$0xe]
      %v3006 = vld [vmem:[%s2945 + $0x90] sm:$0xe]
      %v3007 = vld [vmem:[%s2945 + $0x9c] sm:$0xe]
      %v3008 = vld [vmem:[%s2945 + $0xa8] sm:$0xe]
      %v3009 = vld [vmem:[%s2945 + $0xb4] sm:$0xe]
      %v3042 = vunpack.c.l.b16 %v2946
      %v3043 = vunpack.c.l.b16 %v2947
      %v3044 = vunpack.c.l.b16 %v2948
      %v3045 = vunpack.c.l.b16 %v2949
      %v3046 = vunpack.c.l.b16 %v2950
      %v3047 = vunpack.c.l.b16 %v2951
      %v3048 = vunpack.c.l.b16 %v2952
      %v3049 = vunpack.c.l.b16 %v2953
      %v3050 = vunpack.c.l.b16 %v2954
      %v3051 = vunpack.c.l.b16 %v2955
      %v3052 = vunpack.c.l.b16 %v2956
      %v3053 = vunpack.c.l.b16 %v2957
      %v3054 = vunpack.c.l.b16 %v2958
      %v3055 = vunpack.c.l.b16 %v2959
      %v3056 = vunpack.c.l.b16 %v2960
      %v3057 = vunpack.c.l.b16 %v2961
      %v3058 = vunpack.c.l.b16 %v2962
      %v3059 = vunpack.c.l.b16 %v2963
      %v3060 = vunpack.c.l.b16 %v2964
      %v3061 = vunpack.c.l.b16 %v2965
      %v3062 = vunpack.c.l.b16 %v2966
      %v3063 = vunpack.c.l.b16 %v2967
      %v3064 = vunpack.c.l.b16 %v2968
      %v3065 = vunpack.c.l.b16 %v2969
      %v3066 = vunpack.c.l.b16 %v2970
      %v3067 = vunpack.c.l.b16 %v2971
      %v3068 = vunpack.c.l.b16 %v2972
      %v3069 = vunpack.c.l.b16 %v2973
      %v3070 = vunpack.c.l.b16 %v2974
      %v3071 = vunpack.c.l.b16 %v2975
      %v3072 = vunpack.c.l.b16 %v2976
      %v3073 = vunpack.c.l.b16 %v2977
      %v3074 = vpack.c.b16 %v3043, %v3042
      %v3075 = vpack.c.b16 %v3045, %v3044
      %v3076 = vpack.c.b16 %v3047, %v3046
      %v3077 = vpack.c.b16 %v3049, %v3048
      %v3078 = vpack.c.b16 %v3051, %v3050
      %v3079 = vpack.c.b16 %v3053, %v3052
      %v3080 = vpack.c.b16 %v3055, %v3054
      %v3081 = vpack.c.b16 %v3057, %v3056
      %v3082 = vpack.c.b16 %v3059, %v3058
      %v3083 = vpack.c.b16 %v3061, %v3060
      %v3084 = vpack.c.b16 %v3063, %v3062
      %v3085 = vpack.c.b16 %v3065, %v3064
      %v3086 = vpack.c.b16 %v3067, %v3066
      %v3087 = vpack.c.b16 %v3069, %v3068
      %v3088 = vpack.c.b16 %v3071, %v3070
      %v3089 = vpack.c.b16 %v3073, %v3072
      %v3122 = vunpack.c.l.b16 %v2978
      %v3123 = vunpack.c.l.b16 %v2979
      %v3124 = vunpack.c.l.b16 %v2980
      %v3125 = vunpack.c.l.b16 %v2981
      %v3126 = vunpack.c.l.b16 %v2982
      %v3127 = vunpack.c.l.b16 %v2983
      %v3128 = vunpack.c.l.b16 %v2984
      %v3129 = vunpack.c.l.b16 %v2985
      %v3130 = vunpack.c.l.b16 %v2986
      %v3131 = vunpack.c.l.b16 %v2987
      %v3132 = vunpack.c.l.b16 %v2988
      %v3133 = vunpack.c.l.b16 %v2989
      %v3134 = vunpack.c.l.b16 %v2990
      %v3135 = vunpack.c.l.b16 %v2991
      %v3136 = vunpack.c.l.b16 %v2992
      %v3137 = vunpack.c.l.b16 %v2993
      %v3138 = vpack.c.b16 %v3122, %v3122
      %v3139 = vpack.c.b16 %v3123, %v3123
      %v3140 = vpack.c.b16 %v3124, %v3124
      %v3141 = vpack.c.b16 %v3125, %v3125
      %v3142 = vpack.c.b16 %v3126, %v3126
      %v3143 = vpack.c.b16 %v3127, %v3127
      %v3144 = vpack.c.b16 %v3128, %v3128
      %v3145 = vpack.c.b16 %v3129, %v3129
      %v3146 = vpack.c.b16 %v3130, %v3130
      %v3147 = vpack.c.b16 %v3131, %v3131
      %v3148 = vpack.c.b16 %v3132, %v3132
      %v3149 = vpack.c.b16 %v3133, %v3133
      %v3150 = vpack.c.b16 %v3134, %v3134
      %v3151 = vpack.c.b16 %v3135, %v3135
      %v3152 = vpack.c.b16 %v3136, %v3136
      %v3153 = vpack.c.b16 %v3137, %v3137
      %v3155 = vshrl.u32 %v3074, 16
      %v3157 = vshll.u32 %v3074, 16
      %v3159 = vrot.slane %v3157, 1
      %v3160 = vor.u32 %v3155, %v3159
      %v3162 = vshll.u32 %v3138, 16
      %v3164 = vrot.slane %v3162, 1
      %v3165 = vsel %vm1066, %v3160, %v3164
      %v3167 = vshrl.u32 %v3075, 16
      %v3169 = vshll.u32 %v3075, 16
      %v3171 = vrot.slane %v3169, 1
      %v3172 = vor.u32 %v3167, %v3171
      %v3174 = vshll.u32 %v3139, 16
      %v3176 = vrot.slane %v3174, 1
      %v3177 = vsel %vm1066, %v3172, %v3176
      %v3179 = vshrl.u32 %v3076, 16
      %v3181 = vshll.u32 %v3076, 16
      %v3183 = vrot.slane %v3181, 1
      %v3184 = vor.u32 %v3179, %v3183
      %v3186 = vshll.u32 %v3140, 16
      %v3188 = vrot.slane %v3186, 1
      %v3189 = vsel %vm1066, %v3184, %v3188
      %v3191 = vshrl.u32 %v3077, 16
      %v3193 = vshll.u32 %v3077, 16
      %v3195 = vrot.slane %v3193, 1
      %v3196 = vor.u32 %v3191, %v3195
      %v3198 = vshll.u32 %v3141, 16
      %v3200 = vrot.slane %v3198, 1
      %v3201 = vsel %vm1066, %v3196, %v3200
      %v3203 = vshrl.u32 %v3078, 16
      %v3205 = vshll.u32 %v3078, 16
      %v3207 = vrot.slane %v3205, 1
      %v3208 = vor.u32 %v3203, %v3207
      %v3210 = vshll.u32 %v3142, 16
      %v3212 = vrot.slane %v3210, 1
      %v3213 = vsel %vm1066, %v3208, %v3212
      %v3215 = vshrl.u32 %v3079, 16
      %v3217 = vshll.u32 %v3079, 16
      %v3219 = vrot.slane %v3217, 1
      %v3220 = vor.u32 %v3215, %v3219
      %v3222 = vshll.u32 %v3143, 16
      %v3224 = vrot.slane %v3222, 1
      %v3225 = vsel %vm1066, %v3220, %v3224
      %v3227 = vshrl.u32 %v3080, 16
      %v3229 = vshll.u32 %v3080, 16
      %v3231 = vrot.slane %v3229, 1
      %v3232 = vor.u32 %v3227, %v3231
      %v3234 = vshll.u32 %v3144, 16
      %v3236 = vrot.slane %v3234, 1
      %v3237 = vsel %vm1066, %v3232, %v3236
      %v3239 = vshrl.u32 %v3081, 16
      %v3241 = vshll.u32 %v3081, 16
      %v3243 = vrot.slane %v3241, 1
      %v3244 = vor.u32 %v3239, %v3243
      %v3246 = vshll.u32 %v3145, 16
      %v3248 = vrot.slane %v3246, 1
      %v3249 = vsel %vm1066, %v3244, %v3248
      %v3251 = vshrl.u32 %v3082, 16
      %v3253 = vshll.u32 %v3082, 16
      %v3255 = vrot.slane %v3253, 1
      %v3256 = vor.u32 %v3251, %v3255
      %v3258 = vshll.u32 %v3146, 16
      %v3260 = vrot.slane %v3258, 1
      %v3261 = vsel %vm1066, %v3256, %v3260
      %v3263 = vshrl.u32 %v3083, 16
      %v3265 = vshll.u32 %v3083, 16
      %v3267 = vrot.slane %v3265, 1
      %v3268 = vor.u32 %v3263, %v3267
      %v3270 = vshll.u32 %v3147, 16
      %v3272 = vrot.slane %v3270, 1
      %v3273 = vsel %vm1066, %v3268, %v3272
      %v3275 = vshrl.u32 %v3084, 16
      %v3277 = vshll.u32 %v3084, 16
      %v3279 = vrot.slane %v3277, 1
      %v3280 = vor.u32 %v3275, %v3279
      %v3282 = vshll.u32 %v3148, 16
      %v3284 = vrot.slane %v3282, 1
      %v3285 = vsel %vm1066, %v3280, %v3284
      %v3287 = vshrl.u32 %v3085, 16
      %v3289 = vshll.u32 %v3085, 16
      %v3291 = vrot.slane %v3289, 1
      %v3292 = vor.u32 %v3287, %v3291
      %v3294 = vshll.u32 %v3149, 16
      %v3296 = vrot.slane %v3294, 1
      %v3297 = vsel %vm1066, %v3292, %v3296
      %v3299 = vshrl.u32 %v3086, 16
      %v3301 = vshll.u32 %v3086, 16
      %v3303 = vrot.slane %v3301, 1
      %v3304 = vor.u32 %v3299, %v3303
      %v3306 = vshll.u32 %v3150, 16
      %v3308 = vrot.slane %v3306, 1
      %v3309 = vsel %vm1066, %v3304, %v3308
      %v3311 = vshrl.u32 %v3087, 16
      %v3313 = vshll.u32 %v3087, 16
      %v3315 = vrot.slane %v3313, 1
      %v3316 = vor.u32 %v3311, %v3315
      %v3318 = vshll.u32 %v3151, 16
      %v3320 = vrot.slane %v3318, 1
      %v3321 = vsel %vm1066, %v3316, %v3320
      %v3323 = vshrl.u32 %v3088, 16
      %v3325 = vshll.u32 %v3088, 16
      %v3327 = vrot.slane %v3325, 1
      %v3328 = vor.u32 %v3323, %v3327
      %v3330 = vshll.u32 %v3152, 16
      %v3332 = vrot.slane %v3330, 1
      %v3333 = vsel %vm1066, %v3328, %v3332
      %v3335 = vshrl.u32 %v3089, 16
      %v3337 = vshll.u32 %v3089, 16
      %v3339 = vrot.slane %v3337, 1
      %v3340 = vor.u32 %v3335, %v3339
      %v3342 = vshll.u32 %v3153, 16
      %v3344 = vrot.slane %v3342, 1
      %v3345 = vsel %vm1066, %v3340, %v3344
      %v3378 = vunpack.c.l.b16 %v2994
      %v3379 = vunpack.c.l.b16 %v2995
      %v3380 = vunpack.c.l.b16 %v2996
      %v3381 = vunpack.c.l.b16 %v2997
      %v3382 = vunpack.c.l.b16 %v2998
      %v3383 = vunpack.c.l.b16 %v2999
      %v3384 = vunpack.c.l.b16 %v3000
      %v3385 = vunpack.c.l.b16 %v3001
      %v3386 = vunpack.c.l.b16 %v3002
      %v3387 = vunpack.c.l.b16 %v3003
      %v3388 = vunpack.c.l.b16 %v3004
      %v3389 = vunpack.c.l.b16 %v3005
      %v3390 = vunpack.c.l.b16 %v3006
      %v3391 = vunpack.c.l.b16 %v3007
      %v3392 = vunpack.c.l.b16 %v3008
      %v3393 = vunpack.c.l.b16 %v3009
      %v3394 = vpack.c.b16 %v3043, %v3378
      %v3395 = vpack.c.b16 %v3045, %v3379
      %v3396 = vpack.c.b16 %v3047, %v3380
      %v3397 = vpack.c.b16 %v3049, %v3381
      %v3398 = vpack.c.b16 %v3051, %v3382
      %v3399 = vpack.c.b16 %v3053, %v3383
      %v3400 = vpack.c.b16 %v3055, %v3384
      %v3401 = vpack.c.b16 %v3057, %v3385
      %v3402 = vpack.c.b16 %v3059, %v3386
      %v3403 = vpack.c.b16 %v3061, %v3387
      %v3404 = vpack.c.b16 %v3063, %v3388
      %v3405 = vpack.c.b16 %v3065, %v3389
      %v3406 = vpack.c.b16 %v3067, %v3390
      %v3407 = vpack.c.b16 %v3069, %v3391
      %v3408 = vpack.c.b16 %v3071, %v3392
      %v3409 = vpack.c.b16 %v3073, %v3393
      %v3410 = vrot.slane %v3394, 1
      %v3411 = vrot.slane %v3138, 1
      %v3412 = vsel %vm1323, %v3410, %v3411
      %v3413 = vrot.slane %v3395, 1
      %v3414 = vrot.slane %v3139, 1
      %v3415 = vsel %vm1323, %v3413, %v3414
      %v3416 = vrot.slane %v3396, 1
      %v3417 = vrot.slane %v3140, 1
      %v3418 = vsel %vm1323, %v3416, %v3417
      %v3419 = vrot.slane %v3397, 1
      %v3420 = vrot.slane %v3141, 1
      %v3421 = vsel %vm1323, %v3419, %v3420
      %v3422 = vrot.slane %v3398, 1
      %v3423 = vrot.slane %v3142, 1
      %v3424 = vsel %vm1323, %v3422, %v3423
      %v3425 = vrot.slane %v3399, 1
      %v3426 = vrot.slane %v3143, 1
      %v3427 = vsel %vm1323, %v3425, %v3426
      %v3428 = vrot.slane %v3400, 1
      %v3429 = vrot.slane %v3144, 1
      %v3430 = vsel %vm1323, %v3428, %v3429
      %v3431 = vrot.slane %v3401, 1
      %v3432 = vrot.slane %v3145, 1
      %v3433 = vsel %vm1323, %v3431, %v3432
      %v3434 = vrot.slane %v3402, 1
      %v3435 = vrot.slane %v3146, 1
      %v3436 = vsel %vm1323, %v3434, %v3435
      %v3437 = vrot.slane %v3403, 1
      %v3438 = vrot.slane %v3147, 1
      %v3439 = vsel %vm1323, %v3437, %v3438
      %v3440 = vrot.slane %v3404, 1
      %v3441 = vrot.slane %v3148, 1
      %v3442 = vsel %vm1323, %v3440, %v3441
      %v3443 = vrot.slane %v3405, 1
      %v3444 = vrot.slane %v3149, 1
      %v3445 = vsel %vm1323, %v3443, %v3444
      %v3446 = vrot.slane %v3406, 1
      %v3447 = vrot.slane %v3150, 1
      %v3448 = vsel %vm1323, %v3446, %v3447
      %v3449 = vrot.slane %v3407, 1
      %v3450 = vrot.slane %v3151, 1
      %v3451 = vsel %vm1323, %v3449, %v3450
      %v3452 = vrot.slane %v3408, 1
      %v3453 = vrot.slane %v3152, 1
      %v3454 = vsel %vm1323, %v3452, %v3453
      %v3455 = vrot.slane %v3409, 1
      %v3456 = vrot.slane %v3153, 1
      %v3457 = vsel %vm1323, %v3455, %v3456
      %s3474 = scalar_lea.vmem %s1, 384
      %v3475 = vld [vmem:[%s3474] sm:$0xf]
      %v3476 = vld [vmem:[%s3474 + $0x4] sm:$0xf]
      %v3477 = vld [vmem:[%s3474 + $0x8] sm:$0xf]
      %v3478 = vld [vmem:[%s3474 + $0xc] sm:$0xf]
      %v3479 = vld [vmem:[%s3474 + $0x10] sm:$0xf]
      %v3480 = vld [vmem:[%s3474 + $0x14] sm:$0xf]
      %v3481 = vld [vmem:[%s3474 + $0x18] sm:$0xf]
      %v3482 = vld [vmem:[%s3474 + $0x1c] sm:$0xf]
      %v3483 = vld [vmem:[%s3474 + $0x20] sm:$0xf]
      %v3484 = vld [vmem:[%s3474 + $0x24] sm:$0xf]
      %v3485 = vld [vmem:[%s3474 + $0x28] sm:$0xf]
      %v3486 = vld [vmem:[%s3474 + $0x2c] sm:$0xf]
      %v3487 = vld [vmem:[%s3474 + $0x30] sm:$0xf]
      %v3488 = vld [vmem:[%s3474 + $0x34] sm:$0xf]
      %v3489 = vld [vmem:[%s3474 + $0x38] sm:$0xf]
      %v3490 = vld [vmem:[%s3474 + $0x3c] sm:$0xf]
      %v3491 = vld [vmem:[%s3474 + $0x40] sm:$0xf]
      %v3492 = vld [vmem:[%s3474 + $0x44] sm:$0xf]
      %v3493 = vld [vmem:[%s3474 + $0x48] sm:$0xf]
      %v3494 = vld [vmem:[%s3474 + $0x4c] sm:$0xf]
      %v3495 = vld [vmem:[%s3474 + $0x50] sm:$0xf]
      %v3496 = vld [vmem:[%s3474 + $0x54] sm:$0xf]
      %v3497 = vld [vmem:[%s3474 + $0x58] sm:$0xf]
      %v3498 = vld [vmem:[%s3474 + $0x5c] sm:$0xf]
      %v3499 = vld [vmem:[%s3474 + $0x60] sm:$0xf]
      %v3500 = vld [vmem:[%s3474 + $0x64] sm:$0xf]
      %v3501 = vld [vmem:[%s3474 + $0x68] sm:$0xf]
      %v3502 = vld [vmem:[%s3474 + $0x6c] sm:$0xf]
      %v3503 = vld [vmem:[%s3474 + $0x70] sm:$0xf]
      %v3504 = vld [vmem:[%s3474 + $0x74] sm:$0xf]
      %v3505 = vld [vmem:[%s3474 + $0x78] sm:$0xf]
      %v3506 = vld [vmem:[%s3474 + $0x7c] sm:$0xf]
      %v3507 = vld [vmem:[%s3474 + $0x80] sm:$0xf]
      %v3508 = vld [vmem:[%s3474 + $0x84] sm:$0xf]
      %v3509 = vld [vmem:[%s3474 + $0x88] sm:$0xf]
      %v3510 = vld [vmem:[%s3474 + $0x8c] sm:$0xf]
      %v3511 = vld [vmem:[%s3474 + $0x90] sm:$0xf]
      %v3512 = vld [vmem:[%s3474 + $0x94] sm:$0xf]
      %v3513 = vld [vmem:[%s3474 + $0x98] sm:$0xf]
      %v3514 = vld [vmem:[%s3474 + $0x9c] sm:$0xf]
      %v3515 = vld [vmem:[%s3474 + $0xa0] sm:$0xf]
      %v3516 = vld [vmem:[%s3474 + $0xa4] sm:$0xf]
      %v3517 = vld [vmem:[%s3474 + $0xa8] sm:$0xf]
      %v3518 = vld [vmem:[%s3474 + $0xac] sm:$0xf]
      %v3519 = vld [vmem:[%s3474 + $0xb0] sm:$0xf]
      %v3520 = vld [vmem:[%s3474 + $0xb4] sm:$0xf]
      %v3521 = vld [vmem:[%s3474 + $0xb8] sm:$0xf]
      %v3522 = vld [vmem:[%s3474 + $0xbc] sm:$0xf]
      %v3571 = vunpack.c.l.b16 %v3475
      %v3572 = vunpack.c.l.b16 %v3476
      %v3573 = vunpack.c.l.b16 %v3477
      %v3574 = vunpack.c.l.b16 %v3478
      %v3575 = vunpack.c.l.b16 %v3479
      %v3576 = vunpack.c.l.b16 %v3480
      %v3577 = vunpack.c.l.b16 %v3481
      %v3578 = vunpack.c.l.b16 %v3482
      %v3579 = vunpack.c.l.b16 %v3483
      %v3580 = vunpack.c.l.b16 %v3484
      %v3581 = vunpack.c.l.b16 %v3485
      %v3582 = vunpack.c.l.b16 %v3486
      %v3583 = vunpack.c.l.b16 %v3487
      %v3584 = vunpack.c.l.b16 %v3488
      %v3585 = vunpack.c.l.b16 %v3489
      %v3586 = vunpack.c.l.b16 %v3490
      %v3587 = vunpack.c.l.b16 %v3491
      %v3588 = vunpack.c.l.b16 %v3492
      %v3589 = vunpack.c.l.b16 %v3493
      %v3590 = vunpack.c.l.b16 %v3494
      %v3591 = vunpack.c.l.b16 %v3495
      %v3592 = vunpack.c.l.b16 %v3496
      %v3593 = vunpack.c.l.b16 %v3497
      %v3594 = vunpack.c.l.b16 %v3498
      %v3595 = vunpack.c.l.b16 %v3499
      %v3596 = vunpack.c.l.b16 %v3500
      %v3597 = vunpack.c.l.b16 %v3501
      %v3598 = vunpack.c.l.b16 %v3502
      %v3599 = vunpack.c.l.b16 %v3503
      %v3600 = vunpack.c.l.b16 %v3504
      %v3601 = vunpack.c.l.b16 %v3505
      %v3602 = vunpack.c.l.b16 %v3506
      %v3603 = vunpack.c.l.b16 %v3507
      %v3604 = vunpack.c.l.b16 %v3508
      %v3605 = vunpack.c.l.b16 %v3509
      %v3606 = vunpack.c.l.b16 %v3510
      %v3607 = vunpack.c.l.b16 %v3511
      %v3608 = vunpack.c.l.b16 %v3512
      %v3609 = vunpack.c.l.b16 %v3513
      %v3610 = vunpack.c.l.b16 %v3514
      %v3611 = vunpack.c.l.b16 %v3515
      %v3612 = vunpack.c.l.b16 %v3516
      %v3613 = vunpack.c.l.b16 %v3517
      %v3614 = vunpack.c.l.b16 %v3518
      %v3615 = vunpack.c.l.b16 %v3519
      %v3616 = vunpack.c.l.b16 %v3520
      %v3617 = vunpack.c.l.b16 %v3521
      %v3618 = vunpack.c.l.b16 %v3522
      %v3619 = vpack.c.b16 %v3572, %v3571
      %v3620 = vpack.c.b16 %v3574, %v3573
      %v3621 = vpack.c.b16 %v3576, %v3575
      %v3622 = vpack.c.b16 %v3578, %v3577
      %v3623 = vpack.c.b16 %v3580, %v3579
      %v3624 = vpack.c.b16 %v3582, %v3581
      %v3625 = vpack.c.b16 %v3584, %v3583
      %v3626 = vpack.c.b16 %v3586, %v3585
      %v3627 = vpack.c.b16 %v3588, %v3587
      %v3628 = vpack.c.b16 %v3590, %v3589
      %v3629 = vpack.c.b16 %v3592, %v3591
      %v3630 = vpack.c.b16 %v3594, %v3593
      %v3631 = vpack.c.b16 %v3596, %v3595
      %v3632 = vpack.c.b16 %v3598, %v3597
      %v3633 = vpack.c.b16 %v3600, %v3599
      %v3634 = vpack.c.b16 %v3602, %v3601
      %v3635 = vpack.c.b16 %v3604, %v3603
      %v3636 = vpack.c.b16 %v3606, %v3605
      %v3637 = vpack.c.b16 %v3608, %v3607
      %v3638 = vpack.c.b16 %v3610, %v3609
      %v3639 = vpack.c.b16 %v3612, %v3611
      %v3640 = vpack.c.b16 %v3614, %v3613
      %v3641 = vpack.c.b16 %v3616, %v3615
      %v3642 = vpack.c.b16 %v3618, %v3617
      %3667 = vmatprep.subr.bf16.mxu0 0
      %3668 = vmatpush1.bf16.msra.mxu0 %v3626
      %3669 = vmatprep.subr.bf16.mxu0 0
      %3670 = vmatpush1.bf16.msra.mxu0 %v3625
      %3671 = vmatprep.subr.bf16.mxu0 0
      %3672 = vmatpush1.bf16.msra.mxu0 %v3624
      %3673 = vmatprep.subr.bf16.mxu0 0
      %3674 = vmatpush1.bf16.msra.mxu0 %v3623
      %3675 = vmatprep.subr.bf16.mxu0 0
      %3676 = vmatpush1.bf16.msra.mxu0 %v3622
      %3677 = vmatprep.subr.bf16.mxu0 0
      %3678 = vmatpush1.bf16.msra.mxu0 %v3621
      %3679 = vmatprep.subr.bf16.mxu0 0
      %3680 = vmatpush1.bf16.msra.mxu0 %v3620
      %3681 = vmatprep.subr.bf16.mxu0 0
      %3682 = vmatpush1.bf16.msra.mxu0 %v3619
      %3683 = vmatprep.subr.bf16.mxu0 0
      %3684 = vmatpush2.bf16.msra.mxu0 %v3634
      %3685 = vmatprep.subr.bf16.mxu0 0
      %3686 = vmatpush2.bf16.msra.mxu0 %v3633
      %3687 = vmatprep.subr.bf16.mxu0 0
      %3688 = vmatpush2.bf16.msra.mxu0 %v3632
      %3689 = vmatprep.subr.bf16.mxu0 0
      %3690 = vmatpush2.bf16.msra.mxu0 %v3631
      %3691 = vmatprep.subr.bf16.mxu0 0
      %3692 = vmatpush2.bf16.msra.mxu0 %v3630
      %3693 = vmatprep.subr.bf16.mxu0 0
      %3694 = vmatpush2.bf16.msra.mxu0 %v3629
      %3695 = vmatprep.subr.bf16.mxu0 0
      %3696 = vmatpush2.bf16.msra.mxu0 %v3628
      %3697 = vmatprep.subr.bf16.mxu0 0
      %3698 = vmatpush2.bf16.msra.mxu0 %v3627
      %3699 = vmatprep.mubr.bf16.mxu0 %v3165
      %3700 = vmatmul.mubr.bf16.gmra.mxu0 %v3074
      %v3701 = vpop.f32.mrf.mxu0
      %v3702 = vadd.f32 0.0, %v3701
      %v3703 = vpop.f32.mrf.mxu0
      %v3704 = vpop.f32.mrf.mxu0
      %v3705 = vadd.f32 0.0, %v3704
      %v3706 = vpop.f32.mrf.mxu0
      %3707 = vmatprep.mubr.bf16.mxu0 %v3177
      %3708 = vmatmul.mubr.bf16.gmra.mxu0 %v3075
      %v3709 = vpop.f32.mrf.mxu0
      %v3710 = vadd.f32 0.0, %v3709
      %v3711 = vpop.f32.mrf.mxu0
      %v3712 = vpop.f32.mrf.mxu0
      %v3713 = vadd.f32 0.0, %v3712
      %v3714 = vpop.f32.mrf.mxu0
      %3715 = vmatprep.mubr.bf16.mxu0 %v3189
      %3716 = vmatmul.mubr.bf16.gmra.mxu0 %v3076
      %v3717 = vpop.f32.mrf.mxu0
      %v3718 = vadd.f32 0.0, %v3717
      %v3719 = vpop.f32.mrf.mxu0
      %v3720 = vpop.f32.mrf.mxu0
      %v3721 = vadd.f32 0.0, %v3720
      %v3722 = vpop.f32.mrf.mxu0
      %3723 = vmatprep.mubr.bf16.mxu0 %v3201
      %3724 = vmatmul.mubr.bf16.gmra.mxu0 %v3077
      %v3725 = vpop.f32.mrf.mxu0
      %v3726 = vadd.f32 0.0, %v3725
      %v3727 = vpop.f32.mrf.mxu0
      %v3728 = vpop.f32.mrf.mxu0
      %v3729 = vadd.f32 0.0, %v3728
      %v3730 = vpop.f32.mrf.mxu0
      %3731 = vmatprep.mubr.bf16.mxu0 %v3213
      %3732 = vmatmul.mubr.bf16.gmra.mxu0 %v3078
      %v3733 = vpop.f32.mrf.mxu0
      %v3734 = vadd.f32 0.0, %v3733
      %v3735 = vpop.f32.mrf.mxu0
      %v3736 = vpop.f32.mrf.mxu0
      %v3737 = vadd.f32 0.0, %v3736
      %v3738 = vpop.f32.mrf.mxu0
      %3739 = vmatprep.mubr.bf16.mxu0 %v3225
      %3740 = vmatmul.mubr.bf16.gmra.mxu0 %v3079
      %v3741 = vpop.f32.mrf.mxu0
      %v3742 = vadd.f32 0.0, %v3741
      %v3743 = vpop.f32.mrf.mxu0
      %v3744 = vpop.f32.mrf.mxu0
      %v3745 = vadd.f32 0.0, %v3744
      %v3746 = vpop.f32.mrf.mxu0
      %3747 = vmatprep.mubr.bf16.mxu0 %v3237
      %3748 = vmatmul.mubr.bf16.gmra.mxu0 %v3080
      %v3749 = vpop.f32.mrf.mxu0
      %v3750 = vadd.f32 0.0, %v3749
      %v3751 = vpop.f32.mrf.mxu0
      %v3752 = vpop.f32.mrf.mxu0
      %v3753 = vadd.f32 0.0, %v3752
      %v3754 = vpop.f32.mrf.mxu0
      %3755 = vmatprep.mubr.bf16.mxu0 %v3249
      %3756 = vmatmul.mubr.bf16.gmra.mxu0 %v3081
      %v3757 = vpop.f32.mrf.mxu0
      %v3758 = vadd.f32 0.0, %v3757
      %v3759 = vpop.f32.mrf.mxu0
      %v3760 = vpop.f32.mrf.mxu0
      %v3761 = vadd.f32 0.0, %v3760
      %v3762 = vpop.f32.mrf.mxu0
      %3763 = vmatprep.mubr.bf16.mxu0 %v3261
      %3764 = vmatmul.mubr.bf16.gmra.mxu0 %v3082
      %v3765 = vpop.f32.mrf.mxu0
      %v3766 = vadd.f32 0.0, %v3765
      %v3767 = vpop.f32.mrf.mxu0
      %v3768 = vpop.f32.mrf.mxu0
      %v3769 = vadd.f32 0.0, %v3768
      %v3770 = vpop.f32.mrf.mxu0
      %3771 = vmatprep.mubr.bf16.mxu0 %v3273
      %3772 = vmatmul.mubr.bf16.gmra.mxu0 %v3083
      %v3773 = vpop.f32.mrf.mxu0
      %v3774 = vadd.f32 0.0, %v3773
      %v3775 = vpop.f32.mrf.mxu0
      %v3776 = vpop.f32.mrf.mxu0
      %v3777 = vadd.f32 0.0, %v3776
      %v3778 = vpop.f32.mrf.mxu0
      %3779 = vmatprep.mubr.bf16.mxu0 %v3285
      %3780 = vmatmul.mubr.bf16.gmra.mxu0 %v3084
      %v3781 = vpop.f32.mrf.mxu0
      %v3782 = vadd.f32 0.0, %v3781
      %v3783 = vpop.f32.mrf.mxu0
      %v3784 = vpop.f32.mrf.mxu0
      %v3785 = vadd.f32 0.0, %v3784
      %v3786 = vpop.f32.mrf.mxu0
      %3787 = vmatprep.mubr.bf16.mxu0 %v3297
      %3788 = vmatmul.mubr.bf16.gmra.mxu0 %v3085
      %v3789 = vpop.f32.mrf.mxu0
      %v3790 = vadd.f32 0.0, %v3789
      %v3791 = vpop.f32.mrf.mxu0
      %v3792 = vpop.f32.mrf.mxu0
      %v3793 = vadd.f32 0.0, %v3792
      %v3794 = vpop.f32.mrf.mxu0
      %3795 = vmatprep.mubr.bf16.mxu0 %v3309
      %3796 = vmatmul.mubr.bf16.gmra.mxu0 %v3086
      %v3797 = vpop.f32.mrf.mxu0
      %v3798 = vadd.f32 0.0, %v3797
      %v3799 = vpop.f32.mrf.mxu0
      %v3800 = vpop.f32.mrf.mxu0
      %v3801 = vadd.f32 0.0, %v3800
      %v3802 = vpop.f32.mrf.mxu0
      %3803 = vmatprep.mubr.bf16.mxu0 %v3321
      %3804 = vmatmul.mubr.bf16.gmra.mxu0 %v3087
      %v3805 = vpop.f32.mrf.mxu0
      %v3806 = vadd.f32 0.0, %v3805
      %v3807 = vpop.f32.mrf.mxu0
      %v3808 = vpop.f32.mrf.mxu0
      %v3809 = vadd.f32 0.0, %v3808
      %v3810 = vpop.f32.mrf.mxu0
      %3811 = vmatprep.mubr.bf16.mxu0 %v3333
      %3812 = vmatmul.mubr.bf16.gmra.mxu0 %v3088
      %v3813 = vpop.f32.mrf.mxu0
      %v3814 = vadd.f32 0.0, %v3813
      %v3815 = vpop.f32.mrf.mxu0
      %v3816 = vpop.f32.mrf.mxu0
      %v3817 = vadd.f32 0.0, %v3816
      %v3818 = vpop.f32.mrf.mxu0
      %3819 = vmatprep.mubr.bf16.mxu0 %v3345
      %3820 = vmatmul.mubr.bf16.gmra.mxu0 %v3089
      %v3821 = vpop.f32.mrf.mxu0
      %v3822 = vadd.f32 0.0, %v3821
      %v3823 = vpop.f32.mrf.mxu0
      %v3824 = vpop.f32.mrf.mxu0
      %v3825 = vadd.f32 0.0, %v3824
      %v3826 = vpop.f32.mrf.mxu0
      %3827 = vdwg.mxu0
      %3828 = vmatprep.subr.bf16.mxu0 0
      %3829 = vmatpush1.bf16.msra.mxu0 %v3642
      %3830 = vmatprep.subr.bf16.mxu0 0
      %3831 = vmatpush1.bf16.msra.mxu0 %v3641
      %3832 = vmatprep.subr.bf16.mxu0 0
      %3833 = vmatpush1.bf16.msra.mxu0 %v3640
      %3834 = vmatprep.subr.bf16.mxu0 0
      %3835 = vmatpush1.bf16.msra.mxu0 %v3639
      %3836 = vmatprep.subr.bf16.mxu0 0
      %3837 = vmatpush1.bf16.msra.mxu0 %v3638
      %3838 = vmatprep.subr.bf16.mxu0 0
      %3839 = vmatpush1.bf16.msra.mxu0 %v3637
      %3840 = vmatprep.subr.bf16.mxu0 0
      %3841 = vmatpush1.bf16.msra.mxu0 %v3636
      %3842 = vmatprep.subr.bf16.mxu0 0
      %3843 = vmatpush1.bf16.msra.mxu0 %v3635
      %3844 = vmatprep.subr.bf16.mxu0 0
      %3845 = vmatpush2.bf16.msra.mxu0 0
      %3846 = vmatprep.subr.bf16.mxu0 0
      %3847 = vmatpush2.bf16.msra.mxu0 0
      %3848 = vmatprep.subr.bf16.mxu0 0
      %3849 = vmatpush2.bf16.msra.mxu0 0
      %3850 = vmatprep.subr.bf16.mxu0 0
      %3851 = vmatpush2.bf16.msra.mxu0 0
      %3852 = vmatprep.subr.bf16.mxu0 0
      %3853 = vmatpush2.bf16.msra.mxu0 0
      %3854 = vmatprep.subr.bf16.mxu0 0
      %3855 = vmatpush2.bf16.msra.mxu0 0
      %3856 = vmatprep.subr.bf16.mxu0 0
      %3857 = vmatpush2.bf16.msra.mxu0 0
      %3858 = vmatprep.subr.bf16.mxu0 0
      %3859 = vmatpush2.bf16.msra.mxu0 0
      %3860 = vmatprep.mubr.bf16.mxu0 0
      %3861 = vmatmul.mubr.bf16.gmra.mxu0 %v3412
      %v3862 = vpop.f32.mrf.mxu0
      %v3863 = vadd.f32 %v3702, %v3862
      %v3864 = vpop.f32.mrf.mxu0
      %v3865 = vpop.f32.mrf.mxu0
      %v3866 = vadd.f32 %v3705, %v3865
      %v3867 = vpop.f32.mrf.mxu0
      %3868 = vmatprep.mubr.bf16.mxu0 0
      %3869 = vmatmul.mubr.bf16.gmra.mxu0 %v3415
      %v3870 = vpop.f32.mrf.mxu0
      %v3871 = vadd.f32 %v3710, %v3870
      %v3872 = vpop.f32.mrf.mxu0
      %v3873 = vpop.f32.mrf.mxu0
      %v3874 = vadd.f32 %v3713, %v3873
      %v3875 = vpop.f32.mrf.mxu0
      %3876 = vmatprep.mubr.bf16.mxu0 0
      %3877 = vmatmul.mubr.bf16.gmra.mxu0 %v3418
      %v3878 = vpop.f32.mrf.mxu0
      %v3879 = vadd.f32 %v3718, %v3878
      %v3880 = vpop.f32.mrf.mxu0
      %v3881 = vpop.f32.mrf.mxu0
      %v3882 = vadd.f32 %v3721, %v3881
      %v3883 = vpop.f32.mrf.mxu0
      %3884 = vmatprep.mubr.bf16.mxu0 0
      %3885 = vmatmul.mubr.bf16.gmra.mxu0 %v3421
      %v3886 = vpop.f32.mrf.mxu0
      %v3887 = vadd.f32 %v3726, %v3886
      %v3888 = vpop.f32.mrf.mxu0
      %v3889 = vpop.f32.mrf.mxu0
      %v3890 = vadd.f32 %v3729, %v3889
      %v3891 = vpop.f32.mrf.mxu0
      %3892 = vmatprep.mubr.bf16.mxu0 0
      %3893 = vmatmul.mubr.bf16.gmra.mxu0 %v3424
      %v3894 = vpop.f32.mrf.mxu0
      %v3895 = vadd.f32 %v3734, %v3894
      %v3896 = vpop.f32.mrf.mxu0
      %v3897 = vpop.f32.mrf.mxu0
      %v3898 = vadd.f32 %v3737, %v3897
      %v3899 = vpop.f32.mrf.mxu0
      %3900 = vmatprep.mubr.bf16.mxu0 0
      %3901 = vmatmul.mubr.bf16.gmra.mxu0 %v3427
      %v3902 = vpop.f32.mrf.mxu0
      %v3903 = vadd.f32 %v3742, %v3902
      %v3904 = vpop.f32.mrf.mxu0
      %v3905 = vpop.f32.mrf.mxu0
      %v3906 = vadd.f32 %v3745, %v3905
      %v3907 = vpop.f32.mrf.mxu0
      %3908 = vmatprep.mubr.bf16.mxu0 0
      %3909 = vmatmul.mubr.bf16.gmra.mxu0 %v3430
      %v3910 = vpop.f32.mrf.mxu0
      %v3911 = vadd.f32 %v3750, %v3910
      %v3912 = vpop.f32.mrf.mxu0
      %v3913 = vpop.f32.mrf.mxu0
      %v3914 = vadd.f32 %v3753, %v3913
      %v3915 = vpop.f32.mrf.mxu0
      %3916 = vmatprep.mubr.bf16.mxu0 0
      %3917 = vmatmul.mubr.bf16.gmra.mxu0 %v3433
      %v3918 = vpop.f32.mrf.mxu0
      %v3919 = vadd.f32 %v3758, %v3918
      %v3920 = vpop.f32.mrf.mxu0
      %v3921 = vpop.f32.mrf.mxu0
      %v3922 = vadd.f32 %v3761, %v3921
      %v3923 = vpop.f32.mrf.mxu0
      %3924 = vmatprep.mubr.bf16.mxu0 0
      %3925 = vmatmul.mubr.bf16.gmra.mxu0 %v3436
      %v3926 = vpop.f32.mrf.mxu0
      %v3927 = vadd.f32 %v3766, %v3926
      %v3928 = vpop.f32.mrf.mxu0
      %v3929 = vpop.f32.mrf.mxu0
      %v3930 = vadd.f32 %v3769, %v3929
      %v3931 = vpop.f32.mrf.mxu0
      %3932 = vmatprep.mubr.bf16.mxu0 0
      %3933 = vmatmul.mubr.bf16.gmra.mxu0 %v3439
      %v3934 = vpop.f32.mrf.mxu0
      %v3935 = vadd.f32 %v3774, %v3934
      %v3936 = vpop.f32.mrf.mxu0
      %v3937 = vpop.f32.mrf.mxu0
      %v3938 = vadd.f32 %v3777, %v3937
      %v3939 = vpop.f32.mrf.mxu0
      %3940 = vmatprep.mubr.bf16.mxu0 0
      %3941 = vmatmul.mubr.bf16.gmra.mxu0 %v3442
      %v3942 = vpop.f32.mrf.mxu0
      %v3943 = vadd.f32 %v3782, %v3942
      %v3944 = vpop.f32.mrf.mxu0
      %v3945 = vpop.f32.mrf.mxu0
      %v3946 = vadd.f32 %v3785, %v3945
      %v3947 = vpop.f32.mrf.mxu0
      %3948 = vmatprep.mubr.bf16.mxu0 0
      %3949 = vmatmul.mubr.bf16.gmra.mxu0 %v3445
      %v3950 = vpop.f32.mrf.mxu0
      %v3951 = vadd.f32 %v3790, %v3950
      %v3952 = vpop.f32.mrf.mxu0
      %v3953 = vpop.f32.mrf.mxu0
      %v3954 = vadd.f32 %v3793, %v3953
      %v3955 = vpop.f32.mrf.mxu0
      %3956 = vmatprep.mubr.bf16.mxu0 0
      %3957 = vmatmul.mubr.bf16.gmra.mxu0 %v3448
      %v3958 = vpop.f32.mrf.mxu0
      %v3959 = vadd.f32 %v3798, %v3958
      %v3960 = vpop.f32.mrf.mxu0
      %v3961 = vpop.f32.mrf.mxu0
      %v3962 = vadd.f32 %v3801, %v3961
      %v3963 = vpop.f32.mrf.mxu0
      %3964 = vmatprep.mubr.bf16.mxu0 0
      %3965 = vmatmul.mubr.bf16.gmra.mxu0 %v3451
      %v3966 = vpop.f32.mrf.mxu0
      %v3967 = vadd.f32 %v3806, %v3966
      %v3968 = vpop.f32.mrf.mxu0
      %v3969 = vpop.f32.mrf.mxu0
      %v3970 = vadd.f32 %v3809, %v3969
      %v3971 = vpop.f32.mrf.mxu0
      %3972 = vmatprep.mubr.bf16.mxu0 0
      %3973 = vmatmul.mubr.bf16.gmra.mxu0 %v3454
      %v3974 = vpop.f32.mrf.mxu0
      %v3975 = vadd.f32 %v3814, %v3974
      %v3976 = vpop.f32.mrf.mxu0
      %v3977 = vpop.f32.mrf.mxu0
      %v3978 = vadd.f32 %v3817, %v3977
      %v3979 = vpop.f32.mrf.mxu0
      %3980 = vmatprep.mubr.bf16.mxu0 0
      %3981 = vmatmul.mubr.bf16.gmra.mxu0 %v3457
      %v3982 = vpop.f32.mrf.mxu0
      %v3983 = vadd.f32 %v3822, %v3982
      %v3984 = vpop.f32.mrf.mxu0
      %v3985 = vpop.f32.mrf.mxu0
      %v3986 = vadd.f32 %v3825, %v3985
      %v3987 = vpop.f32.mrf.mxu0
      %3988 = vdwg.mxu0
      %v3989 = vadd.f32 %v2819, %v3863
      %v3990 = vadd.f32 %v2822, %v3866
      %v3991 = vadd.f32 %v2827, %v3871
      %v3992 = vadd.f32 %v2830, %v3874
      %v3993 = vadd.f32 %v2835, %v3879
      %v3994 = vadd.f32 %v2838, %v3882
      %v3995 = vadd.f32 %v2843, %v3887
      %v3996 = vadd.f32 %v2846, %v3890
      %v3997 = vadd.f32 %v2851, %v3895
      %v3998 = vadd.f32 %v2854, %v3898
      %v3999 = vadd.f32 %v2859, %v3903
      %v4000 = vadd.f32 %v2862, %v3906
      %v4001 = vadd.f32 %v2867, %v3911
      %v4002 = vadd.f32 %v2870, %v3914
      %v4003 = vadd.f32 %v2875, %v3919
      %v4004 = vadd.f32 %v2878, %v3922
      %v4005 = vadd.f32 %v2883, %v3927
      %v4006 = vadd.f32 %v2886, %v3930
      %v4007 = vadd.f32 %v2891, %v3935
      %v4008 = vadd.f32 %v2894, %v3938
      %v4009 = vadd.f32 %v2899, %v3943
      %v4010 = vadd.f32 %v2902, %v3946
      %v4011 = vadd.f32 %v2907, %v3951
      %v4012 = vadd.f32 %v2910, %v3954
      %v4013 = vadd.f32 %v2915, %v3959
      %v4014 = vadd.f32 %v2918, %v3962
      %v4015 = vadd.f32 %v2923, %v3967
      %v4016 = vadd.f32 %v2926, %v3970
      %v4017 = vadd.f32 %v2931, %v3975
      %v4018 = vadd.f32 %v2934, %v3978
      %v4019 = vadd.f32 %v2939, %v3983
      %v4020 = vadd.f32 %v2942, %v3986
      %4021 = vst [vmem:[%s231] sm:$0xff] %v3989
      %4022 = vst [vmem:[%s231 + $0x8] sm:$0xff] %v3990
      %4023 = vst [vmem:[%s231 + $0x10] sm:$0xff] %v3991
      %4024 = vst [vmem:[%s231 + $0x18] sm:$0xff] %v3992
      %4025 = vst [vmem:[%s231 + $0x20] sm:$0xff] %v3993
      %4026 = vst [vmem:[%s231 + $0x28] sm:$0xff] %v3994
      %4027 = vst [vmem:[%s231 + $0x30] sm:$0xff] %v3995
      %4028 = vst [vmem:[%s231 + $0x38] sm:$0xff] %v3996
      %4029 = vst [vmem:[%s231 + $0x40] sm:$0xff] %v3997
      %4030 = vst [vmem:[%s231 + $0x48] sm:$0xff] %v3998
      %4031 = vst [vmem:[%s231 + $0x50] sm:$0xff] %v3999
      %4032 = vst [vmem:[%s231 + $0x58] sm:$0xff] %v4000
      %4033 = vst [vmem:[%s231 + $0x60] sm:$0xff] %v4001
      %4034 = vst [vmem:[%s231 + $0x68] sm:$0xff] %v4002
      %4035 = vst [vmem:[%s231 + $0x70] sm:$0xff] %v4003
      %4036 = vst [vmem:[%s231 + $0x78] sm:$0xff] %v4004
      %4037 = vst [vmem:[%s231 + $0x80] sm:$0xff] %v4005
      %4038 = vst [vmem:[%s231 + $0x88] sm:$0xff] %v4006
      %4039 = vst [vmem:[%s231 + $0x90] sm:$0xff] %v4007
      %4040 = vst [vmem:[%s231 + $0x98] sm:$0xff] %v4008
      %4041 = vst [vmem:[%s231 + $0xa0] sm:$0xff] %v4009
      %4042 = vst [vmem:[%s231 + $0xa8] sm:$0xff] %v4010
      %4043 = vst [vmem:[%s231 + $0xb0] sm:$0xff] %v4011
      %4044 = vst [vmem:[%s231 + $0xb8] sm:$0xff] %v4012
      %4045 = vst [vmem:[%s231 + $0xc0] sm:$0xff] %v4013
      %4046 = vst [vmem:[%s231 + $0xc8] sm:$0xff] %v4014
      %4047 = vst [vmem:[%s231 + $0xd0] sm:$0xff] %v4015
      %4048 = vst [vmem:[%s231 + $0xd8] sm:$0xff] %v4016
      %4049 = vst [vmem:[%s231 + $0xe0] sm:$0xff] %v4017
      %4050 = vst [vmem:[%s231 + $0xe8] sm:$0xff] %v4018
      %4051 = vst [vmem:[%s231 + $0xf0] sm:$0xff] %v4019
      %4052 = vst [vmem:[%s231 + $0xf8] sm:$0xff] %v4020
      %v4053 = vadd.f32 %v3989, %v3990
      %v4054 = vadd.f32 %v4053, %v3991
      %v4055 = vadd.f32 %v4054, %v3992
      %v4056 = vadd.f32 %v4055, %v3993
      %v4057 = vadd.f32 %v4056, %v3994
      %v4058 = vadd.f32 %v4057, %v3995
      %v4059 = vadd.f32 %v4058, %v3996
      %v4060 = vadd.f32 %v4059, %v3997
      %v4061 = vadd.f32 %v4060, %v3998
      %v4062 = vadd.f32 %v4061, %v3999
      %v4063 = vadd.f32 %v4062, %v4000
      %v4064 = vadd.f32 %v4063, %v4001
      %v4065 = vadd.f32 %v4064, %v4002
      %v4066 = vadd.f32 %v4065, %v4003
      %v4067 = vadd.f32 %v4066, %v4004
      %v4068 = vadd.f32 %v4067, %v4005
      %v4069 = vadd.f32 %v4068, %v4006
      %v4070 = vadd.f32 %v4069, %v4007
      %v4071 = vadd.f32 %v4070, %v4008
      %v4072 = vadd.f32 %v4071, %v4009
      %v4073 = vadd.f32 %v4072, %v4010
      %v4074 = vadd.f32 %v4073, %v4011
      %v4075 = vadd.f32 %v4074, %v4012
      %v4076 = vadd.f32 %v4075, %v4013
      %v4077 = vadd.f32 %v4076, %v4014
      %v4078 = vadd.f32 %v4077, %v4015
      %v4079 = vadd.f32 %v4078, %v4016
      %v4080 = vadd.f32 %v4079, %v4017
      %v4081 = vadd.f32 %v4080, %v4018
      %v4082 = vadd.f32 %v4081, %v4019
      %v4083 = vadd.f32 %v4082, %v4020
      %v4084 = vrot.slane %v4083, 4
      %v4085 = vadd.f32 %v4083, %v4084
      %v4086 = vrot.slane %v4085, 2
      %v4087 = vadd.f32 %v4085, %v4086
      %v4088 = vrot.slane %v4087, 1
      %v4089 = vadd.f32 %v4087, %v4088
      %v4090 = vmul.f32 %v4089, 0.00390625
      %v4091 = vsub.f32 %v3989, %v4090
      %v4092 = vsub.f32 %v3990, %v4090
      %v4093 = vsub.f32 %v3991, %v4090
      %v4094 = vsub.f32 %v3992, %v4090
      %v4095 = vsub.f32 %v3993, %v4090
      %v4096 = vsub.f32 %v3994, %v4090
      %v4097 = vsub.f32 %v3995, %v4090
      %v4098 = vsub.f32 %v3996, %v4090
      %v4099 = vsub.f32 %v3997, %v4090
      %v4100 = vsub.f32 %v3998, %v4090
      %v4101 = vsub.f32 %v3999, %v4090
      %v4102 = vsub.f32 %v4000, %v4090
      %v4103 = vsub.f32 %v4001, %v4090
      %v4104 = vsub.f32 %v4002, %v4090
      %v4105 = vsub.f32 %v4003, %v4090
      %v4106 = vsub.f32 %v4004, %v4090
      %v4107 = vsub.f32 %v4005, %v4090
      %v4108 = vsub.f32 %v4006, %v4090
      %v4109 = vsub.f32 %v4007, %v4090
      %v4110 = vsub.f32 %v4008, %v4090
      %v4111 = vsub.f32 %v4009, %v4090
      %v4112 = vsub.f32 %v4010, %v4090
      %v4113 = vsub.f32 %v4011, %v4090
      %v4114 = vsub.f32 %v4012, %v4090
      %v4115 = vsub.f32 %v4013, %v4090
      %v4116 = vsub.f32 %v4014, %v4090
      %v4117 = vsub.f32 %v4015, %v4090
      %v4118 = vsub.f32 %v4016, %v4090
      %v4119 = vsub.f32 %v4017, %v4090
      %v4120 = vsub.f32 %v4018, %v4090
      %v4121 = vsub.f32 %v4019, %v4090
      %v4122 = vsub.f32 %v4020, %v4090
      %4123 = vst [vmem:[%s235] sm:$0x1] %v4089
      %v4124 = vmul.f32 %v4091, %v4091
      %v4125 = vmul.f32 %v4092, %v4092
      %v4126 = vmul.f32 %v4093, %v4093
      %v4127 = vmul.f32 %v4094, %v4094
      %v4128 = vmul.f32 %v4095, %v4095
      %v4129 = vmul.f32 %v4096, %v4096
      %v4130 = vmul.f32 %v4097, %v4097
      %v4131 = vmul.f32 %v4098, %v4098
      %v4132 = vmul.f32 %v4099, %v4099
      %v4133 = vmul.f32 %v4100, %v4100
      %v4134 = vmul.f32 %v4101, %v4101
      %v4135 = vmul.f32 %v4102, %v4102
      %v4136 = vmul.f32 %v4103, %v4103
      %v4137 = vmul.f32 %v4104, %v4104
      %v4138 = vmul.f32 %v4105, %v4105
      %v4139 = vmul.f32 %v4106, %v4106
      %v4140 = vmul.f32 %v4107, %v4107
      %v4141 = vmul.f32 %v4108, %v4108
      %v4142 = vmul.f32 %v4109, %v4109
      %v4143 = vmul.f32 %v4110, %v4110
      %v4144 = vmul.f32 %v4111, %v4111
      %v4145 = vmul.f32 %v4112, %v4112
      %v4146 = vmul.f32 %v4113, %v4113
      %v4147 = vmul.f32 %v4114, %v4114
      %v4148 = vmul.f32 %v4115, %v4115
      %v4149 = vmul.f32 %v4116, %v4116
      %v4150 = vmul.f32 %v4117, %v4117
      %v4151 = vmul.f32 %v4118, %v4118
      %v4152 = vmul.f32 %v4119, %v4119
      %v4153 = vmul.f32 %v4120, %v4120
      %v4154 = vmul.f32 %v4121, %v4121
      %v4155 = vmul.f32 %v4122, %v4122
      %v4156 = vadd.f32 %v4124, %v4125
      %v4157 = vadd.f32 %v4156, %v4126
      %v4158 = vadd.f32 %v4157, %v4127
      %v4159 = vadd.f32 %v4158, %v4128
      %v4160 = vadd.f32 %v4159, %v4129
      %v4161 = vadd.f32 %v4160, %v4130
      %v4162 = vadd.f32 %v4161, %v4131
      %v4163 = vadd.f32 %v4162, %v4132
      %v4164 = vadd.f32 %v4163, %v4133
      %v4165 = vadd.f32 %v4164, %v4134
      %v4166 = vadd.f32 %v4165, %v4135
      %v4167 = vadd.f32 %v4166, %v4136
      %v4168 = vadd.f32 %v4167, %v4137
      %v4169 = vadd.f32 %v4168, %v4138
      %v4170 = vadd.f32 %v4169, %v4139
      %v4171 = vadd.f32 %v4170, %v4140
      %v4172 = vadd.f32 %v4171, %v4141
      %v4173 = vadd.f32 %v4172, %v4142
      %v4174 = vadd.f32 %v4173, %v4143
      %v4175 = vadd.f32 %v4174, %v4144
      %v4176 = vadd.f32 %v4175, %v4145
      %v4177 = vadd.f32 %v4176, %v4146
      %v4178 = vadd.f32 %v4177, %v4147
      %v4179 = vadd.f32 %v4178, %v4148
      %v4180 = vadd.f32 %v4179, %v4149
      %v4181 = vadd.f32 %v4180, %v4150
      %v4182 = vadd.f32 %v4181, %v4151
      %v4183 = vadd.f32 %v4182, %v4152
      %v4184 = vadd.f32 %v4183, %v4153
      %v4185 = vadd.f32 %v4184, %v4154
      %v4186 = vadd.f32 %v4185, %v4155
      %v4187 = vrot.slane %v4186, 4
      %v4188 = vadd.f32 %v4186, %v4187
      %v4189 = vrot.slane %v4188, 2
      %v4190 = vadd.f32 %v4188, %v4189
      %v4191 = vrot.slane %v4190, 1
      %v4192 = vadd.f32 %v4190, %v4191
      %4193 = vst [vmem:[%s235 + $0x1] sm:$0x1] %v4192
      %p4194 = scmp.lt.s32.totalorder %s17, 1
      %s4195 = scalar_select %p4194, %s17, 1
      %s4196 = smul.addr %s4195, 32
      %s4197 = smul.addr %s4196, 8
      %s4198 = scalar_lea.vmem %s4, %s4197
      %p4199 = scmp.lt.s32.totalorder %s17, 1
      %s4200 = scalar_select %p4199, %s17, 1
      %s4201 = smul.addr %s4200, 2
      %s4202 = scalar_lea.vmem %s5, %s4201
      // Predicated region
      $region37: #{basic_block_woskip.3} parent=35 // pred_check
        %p4203 = pneg %p124
      $region38: #{basic_block_woskip.3} parent=35 // pred_check_branch
        %4205 = sbr.rel (%p4203) target = $region40
      $region39: #{basic_block_woskip.3} parent=35 // pred_region
        _
      $region40: #{basic_block_woskip.3} parent=35 // pred_fallthru
        _
      // Predicated region
      $region41: #{basic_block_woskip.3} parent=35 // pred_check
        %p4206 = pneg %p150
      $region42: #{basic_block_woskip.3} parent=35 // pred_check_branch
        %4208 = sbr.rel (%p4206) target = $region44
      $region43: #{basic_block_woskip.3} parent=35 // pred_region
        _
      $region44: #{basic_block_woskip.3} parent=35 // pred_fallthru
        _
    $region36: #{basic_block_woskip.3} parent=5 // pred_fallthru
      _
    %p4209 = scmp.le.s32.totalorder 2, %s12
    // Predicated region
    $region45: #{basic_block_woskip.3} parent=5 // pred_check
      %p4210 = pneg %p4209
    $region46: #{basic_block_woskip.3} parent=5 // pred_check_branch
      %4212 = sbr.rel (%p4210) target = $region48
    $region47: #{basic_block_woskip.3} parent=5 // pred_region
      %s4213 = ssub.s32 %s12, 2
      // Predicated region
      $region49: #{basic_block_woskip.3} parent=47 // pred_check
        %p4214 = pneg %p130
      $region50: #{basic_block_woskip.3} parent=47 // pred_check_branch
        %4216 = sbr.rel (%p4214) target = $region52
      $region51: #{basic_block_woskip.3} parent=47 // pred_region
        %p4217 = scmp.lt.s32.totalorder %s18, 1
        %s4218 = scalar_select %p4217, %s18, 1
        %s4219 = smul.addr %s4218, 32
        %s4220 = smul.addr %s4219, 8
        %s4221 = scalar_lea.vmem %s4, %s4220
      $region52: #{basic_block_woskip.3} parent=47 // pred_fallthru
        _
      // Predicated region
      $region53: #{basic_block_woskip.3} parent=47 // pred_check
        %p4222 = pneg %p156
      $region54: #{basic_block_woskip.3} parent=47 // pred_check_branch
        %4224 = sbr.rel (%p4222) target = $region56
      $region55: #{basic_block_woskip.3} parent=47 // pred_region
        %p4225 = scmp.lt.s32.totalorder %s18, 1
        %s4226 = scalar_select %p4225, %s18, 1
        %s4227 = smul.addr %s4226, 2
        %s4228 = scalar_lea.vmem %s5, %s4227
      $region56: #{basic_block_woskip.3} parent=47 // pred_fallthru
        _
    $region48: #{basic_block_woskip.3} parent=5 // pred_fallthru
      _
  $region6: #{basic_block_woskip.3} parent=0 // loop_footer
    %s16 = sadd.s32 1, %s12
  $region7: #{basic_block_woskip.3} parent=0 // loop_footer_branch
    %11 = sbr.rel target = $region3
  $region8: #{basic_block_woskip.3} parent=0 // loop_exit
    _

// kernel: basic_block_woskip.4
$region0: #{basic_block_woskip.4}
  #allocation0 [shape = 'u32[]', space=smem, size = 0x4, offset = 0x4, fixed_abs, tag = 'smem constant byte address 0x4 - core index']
  #allocation1 [shape = 'u32[144,128]{1,0:T(1,128)}', space=vmem, size = 0x12000, scoped, tag = 'internal scratch']
  #allocation2 [shape = 'bf16[18,18,128]{2,1,0:T(8,128)(2,1)}', space=vmem, size = 0x1b000, scoped, tag = 'scratch operand']
  %s0 = inlined_call_operand.vmem [shape: f32[2,16,16,128], index: 0, kind: input, shape index: {}]
  %s1 = inlined_call_operand.vmem [shape: bf16[3,384,128], index: 1, kind: input, shape index: {}]
  %s2 = inlined_call_operand.vmem [shape: f32[1,128], index: 2, kind: input, shape index: {}]
  %s3 = inlined_call_operand.vmem [shape: f32[1,128], index: 3, kind: input, shape index: {}]
  %s4 = inlined_call_operand.vmem [shape: f32[2,256,128], index: 4, kind: output, shape index: {0}]
  %s5 = inlined_call_operand.vmem [shape: f32[2,2,128], index: 5, kind: output, shape index: {1}]
  %6 = xla_tuple %s4, %s5
  %s7 = sld [smem:[#allocation0]]
  $region57: #{basic_block_woskip.4} parent=0
    _
  %s9 = ssub.s32 1, %s7
  %s10 = scalar_select 0, %s9, %s7
  loop: start=0, step=1, limit=4
  $region2: #{basic_block_woskip.4} parent=0 // loop_pre_header
    _
  $region3: #{basic_block_woskip.4} parent=0 // loop_header
    %s12 = sphi 0, %s16
    %p13 = scmp.ge.s32.totalorder %s12, 4
    %s22 = sphi 0, %s24
    %s25 = sphi 0, %s22
    %s26 = sphi 0, %s25
    %s42 = sphi 0, %s26
    %s46 = sphi 0, %s46
    %s48 = sphi 0, %s46
    %s49 = sphi 0, %s48
    %s63 = sphi 0, %s49
    %s67 = sphi 0, %s67
    %s69 = sphi 0, %s67
    %s70 = sphi 0, %s69
    %s84 = sphi 0, %s70
    %s88 = sphi 0, %s88
    %s90 = sphi 0, %s88
    %s91 = sphi 0, %s90
    %s105 = sphi 0, %s91
    %s111 = sphi 0, %s113
    %s114 = sphi 0, %s111
    %s115 = sphi 0, %s114
    %s131 = sphi 0, %s115
    %s137 = sphi 0, %s139
    %s140 = sphi 0, %s137
    %s141 = sphi 0, %s140
    %s157 = sphi 0, %s141
  $region4: #{basic_block_woskip.4} parent=0 // loop_header_branch
    %15 = sbr.rel (%p13) target = $region8
  $region5: #{basic_block_woskip.4} parent=0 // loop_body
    %s17 = ssub.s32 %s12, 1
    %s18 = ssub.s32 %s12, 2
    %s19 = sadd.s32 %s12, 1
    %s20 = ssub.s32 %s12, %s19
    %p21 = scmp.eq.s32.totalorder %s20, 0
    %s23 = sadd.s32 %s22, 1
    %s24 = scalar_select %p21, %s22, %s23
    %p27 = pneg %p21
    %p28 = scmp.eq.s32.totalorder %s12, 1
    %p29 = por %p27, %p28
    %p30 = scmp.ne.s32.totalorder %s22, %s25
    %p31 = scmp.eq.s32.totalorder %s12, 0
    %p32 = por %p30, %p31
    %p33 = scmp.ne.s32.totalorder %s22, %s25
    %p34 = scmp.eq.s32.totalorder %s17, 1
    %p35 = por %p33, %p34
    %p36 = scmp.ne.s32.totalorder %s25, %s26
    %p37 = scmp.eq.s32.totalorder %s17, 0
    %p38 = por %p36, %p37
    %p39 = scmp.ne.s32.totalorder %s25, %s26
    %p40 = scmp.eq.s32.totalorder %s18, 1
    %p41 = por %p39, %p40
    %p43 = scmp.ne.s32.totalorder %s26, %s42
    %p44 = scmp.eq.s32.totalorder %s18, 0
    %p45 = por %p43, %p44
    %s47 = sadd.s32 %s46, 1
    %p50 = scmp.eq.s32.totalorder %s12, 1
    %p51 = scmp.ne.s32.totalorder %s46, %s48
    %p52 = scmp.eq.s32.totalorder %s12, 0
    %p53 = por %p51, %p52
    %p54 = scmp.ne.s32.totalorder %s46, %s48
    %p55 = scmp.eq.s32.totalorder %s17, 1
    %p56 = por %p54, %p55
    %p57 = scmp.ne.s32.totalorder %s48, %s49
    %p58 = scmp.eq.s32.totalorder %s17, 0
    %p59 = por %p57, %p58
    %p60 = scmp.ne.s32.totalorder %s48, %s49
    %p61 = scmp.eq.s32.totalorder %s18, 1
    %p62 = por %p60, %p61
    %p64 = scmp.ne.s32.totalorder %s49, %s63
    %p65 = scmp.eq.s32.totalorder %s18, 0
    %p66 = por %p64, %p65
    %s68 = sadd.s32 %s67, 1
    %p71 = scmp.eq.s32.totalorder %s12, 1
    %p72 = scmp.ne.s32.totalorder %s67, %s69
    %p73 = scmp.eq.s32.totalorder %s12, 0
    %p74 = por %p72, %p73
    %p75 = scmp.ne.s32.totalorder %s67, %s69
    %p76 = scmp.eq.s32.totalorder %s17, 1
    %p77 = por %p75, %p76
    %p78 = scmp.ne.s32.totalorder %s69, %s70
    %p79 = scmp.eq.s32.totalorder %s17, 0
    %p80 = por %p78, %p79
    %p81 = scmp.ne.s32.totalorder %s69, %s70
    %p82 = scmp.eq.s32.totalorder %s18, 1
    %p83 = por %p81, %p82
    %p85 = scmp.ne.s32.totalorder %s70, %s84
    %p86 = scmp.eq.s32.totalorder %s18, 0
    %p87 = por %p85, %p86
    %s89 = sadd.s32 %s88, 1
    %p92 = scmp.eq.s32.totalorder %s12, 1
    %p93 = scmp.ne.s32.totalorder %s88, %s90
    %p94 = scmp.eq.s32.totalorder %s12, 0
    %p95 = por %p93, %p94
    %p96 = scmp.ne.s32.totalorder %s88, %s90
    %p97 = scmp.eq.s32.totalorder %s17, 1
    %p98 = por %p96, %p97
    %p99 = scmp.ne.s32.totalorder %s90, %s91
    %p100 = scmp.eq.s32.totalorder %s17, 0
    %p101 = por %p99, %p100
    %p102 = scmp.ne.s32.totalorder %s90, %s91
    %p103 = scmp.eq.s32.totalorder %s18, 1
    %p104 = por %p102, %p103
    %p106 = scmp.ne.s32.totalorder %s91, %s105
    %p107 = scmp.eq.s32.totalorder %s18, 0
    %p108 = por %p106, %p107
    %s109 = ssub.s32 %s12, %s19
    %p110 = scmp.eq.s32.totalorder %s109, 0
    %s112 = sadd.s32 %s111, 1
    %s113 = scalar_select %p110, %s111, %s112
    %p116 = pneg %p110
    %p117 = scmp.eq.s32.totalorder %s12, 1
    %p118 = por %p116, %p117
    %p119 = scmp.ne.s32.totalorder %s111, %s114
    %p120 = scmp.eq.s32.totalorder %s12, 0
    %p121 = por %p119, %p120
    %p122 = scmp.ne.s32.totalorder %s111, %s114
    %p123 = scmp.eq.s32.totalorder %s17, 1
    %p124 = por %p122, %p123
    %p125 = scmp.ne.s32.totalorder %s114, %s115
    %p126 = scmp.eq.s32.totalorder %s17, 0
    %p127 = por %p125, %p126
    %p128 = scmp.ne.s32.totalorder %s114, %s115
    %p129 = scmp.eq.s32.totalorder %s18, 1
    %p130 = por %p128, %p129
    %p132 = scmp.ne.s32.totalorder %s115, %s131
    %p133 = scmp.eq.s32.totalorder %s18, 0
    %p134 = por %p132, %p133
    %s135 = ssub.s32 %s12, %s19
    %p136 = scmp.eq.s32.totalorder %s135, 0
    %s138 = sadd.s32 %s137, 1
    %s139 = scalar_select %p136, %s137, %s138
    %p142 = pneg %p136
    %p143 = scmp.eq.s32.totalorder %s12, 1
    %p144 = por %p142, %p143
    %p145 = scmp.ne.s32.totalorder %s137, %s140
    %p146 = scmp.eq.s32.totalorder %s12, 0
    %p147 = por %p145, %p146
    %p148 = scmp.ne.s32.totalorder %s137, %s140
    %p149 = scmp.eq.s32.totalorder %s17, 1
    %p150 = por %p148, %p149
    %p151 = scmp.ne.s32.totalorder %s140, %s141
    %p152 = scmp.eq.s32.totalorder %s17, 0
    %p153 = por %p151, %p152
    %p154 = scmp.ne.s32.totalorder %s140, %s141
    %p155 = scmp.eq.s32.totalorder %s18, 1
    %p156 = por %p154, %p155
    %p158 = scmp.ne.s32.totalorder %s141, %s157
    %p159 = scmp.eq.s32.totalorder %s18, 0
    %p160 = por %p158, %p159
    %p161 = scmp.le.s32.totalorder 1, %s12
    %p162 = scmp.lt.s32.totalorder %s12, 3
    %p163 = pnand %p161, %p162
    %p164 = pneg %p163
    // Predicated region
    $region9: #{basic_block_woskip.4} parent=5 // pred_check
      _
    $region10: #{basic_block_woskip.4} parent=5 // pred_check_branch
      %166 = sbr.rel (%p163) target = $region12
    $region11: #{basic_block_woskip.4} parent=5 // pred_region
      %s167 = ssub.s32 %s12, 1
      // Predicated region
      $region13: #{basic_block_woskip.4} parent=11 // pred_check
        %p168 = pneg %p59
      $region14: #{basic_block_woskip.4} parent=11 // pred_check_branch
        %170 = sbr.rel (%p168) target = $region16
      $region15: #{basic_block_woskip.4} parent=11 // pred_region
        _
      $region16: #{basic_block_woskip.4} parent=11 // pred_fallthru
        _
      // Predicated region
      $region17: #{basic_block_woskip.4} parent=11 // pred_check
        %p171 = pneg %p80
      $region18: #{basic_block_woskip.4} parent=11 // pred_check_branch
        %173 = sbr.rel (%p171) target = $region20
      $region19: #{basic_block_woskip.4} parent=11 // pred_region
        _
      $region20: #{basic_block_woskip.4} parent=11 // pred_fallthru
        _
      // Predicated region
      $region21: #{basic_block_woskip.4} parent=11 // pred_check
        %p174 = pneg %p101
      $region22: #{basic_block_woskip.4} parent=11 // pred_check_branch
        %176 = sbr.rel (%p174) target = $region24
      $region23: #{basic_block_woskip.4} parent=11 // pred_region
        _
      $region24: #{basic_block_woskip.4} parent=11 // pred_fallthru
        _
    $region12: #{basic_block_woskip.4} parent=5 // pred_fallthru
      _
    %p177 = scmp.lt.s32.totalorder %s12, 2
    // Predicated region
    $region25: #{basic_block_woskip.4} parent=5 // pred_check
      %p178 = pneg %p177
    $region26: #{basic_block_woskip.4} parent=5 // pred_check_branch
      %180 = sbr.rel (%p178) target = $region28
    $region27: #{basic_block_woskip.4} parent=5 // pred_region
      // Predicated region
      $region29: #{basic_block_woskip.4} parent=27 // pred_check
        %p181 = pneg %p32
      $region30: #{basic_block_woskip.4} parent=27 // pred_check_branch
        %183 = sbr.rel (%p181) target = $region32
      $region31: #{basic_block_woskip.4} parent=27 // pred_region
        %p184 = scmp.lt.s32.totalorder %s12, 1
        %s185 = scalar_select %p184, %s12, 1
        %s186 = smul.addr %s185, 32
        %s187 = smul.addr %s186, 8
        %s188 = scalar_lea.vmem %s0, %s187
      $region32: #{basic_block_woskip.4} parent=27 // pred_fallthru
        _
    $region28: #{basic_block_woskip.4} parent=5 // pred_fallthru
      _
    %p189 = scmp.le.s32.totalorder 1, %s12
    %p190 = scmp.lt.s32.totalorder %s12, 3
    %p191 = pnand %p189, %p190
    %p192 = pneg %p191
    // Predicated region
    $region33: #{basic_block_woskip.4} parent=5 // pred_check
      _
    $region34: #{basic_block_woskip.4} parent=5 // pred_check_branch
      %194 = sbr.rel (%p191) target = $region36
    $region35: #{basic_block_woskip.4} parent=5 // pred_region
      %s195 = ssub.s32 %s12, 1
      %p196 = scmp.lt.s32.totalorder %s17, 1
      %s197 = scalar_select %p196, %s17, 1
      %s198 = smul.addr %s197, 32
      %s199 = smul.addr %s198, 8
      %s200 = scalar_lea.vmem %s0, %s199
      %p201 = pneg %p38
      %p202 = pneg %p35
      %p203 = pneg %p59
      %p204 = pneg %p56
      %p205 = pneg %p80
      %p206 = pneg %p77
      %p207 = pneg %p101
      %p208 = pneg %p98
      %p209 = pneg %p127
      %p210 = pneg %p124
      %p211 = scmp.lt.s32.totalorder %s17, 1
      %s212 = scalar_select %p211, %s17, 1
      %s213 = smul.addr %s212, 32
      %s214 = smul.addr %s213, 8
      %s215 = scalar_lea.vmem %s4, %s214
      %p216 = pneg %p153
      %p217 = pneg %p150
      %p218 = scmp.lt.s32.totalorder %s17, 1
      %s219 = scalar_select %p218, %s17, 1
      %s220 = smul.addr %s219, 2
      %s221 = scalar_lea.vmem %s5, %s220
      %p222 = scmp.lt.s32.totalorder %s17, 1
      %s223 = scalar_select %p222, %s17, 1
      %s224 = smul.addr %s223, 32
      %s225 = smul.addr %s224, 8
      %s226 = scalar_lea.vmem %s0, %s225
      %p227 = scmp.lt.s32.totalorder %s17, 1
      %s228 = scalar_select %p227, %s17, 1
      %s229 = smul.addr %s228, 32
      %s230 = smul.addr %s229, 8
      %s231 = scalar_lea.vmem %s4, %s230
      %p232 = scmp.lt.s32.totalorder %s17, 1
      %s233 = scalar_select %p232, %s17, 1
      %s234 = smul.addr %s233, 2
      %s235 = scalar_lea.vmem %s5, %s234
      %v237 = vld [vmem:[%s226] sm:$0xff]
      %v238 = vld [vmem:[%s226 + $0x8] sm:$0xff]
      %v239 = vld [vmem:[%s226 + $0x10] sm:$0xff]
      %v240 = vld [vmem:[%s226 + $0x18] sm:$0xff]
      %v241 = vld [vmem:[%s226 + $0x20] sm:$0xff]
      %v242 = vld [vmem:[%s226 + $0x28] sm:$0xff]
      %v243 = vld [vmem:[%s226 + $0x30] sm:$0xff]
      %v244 = vld [vmem:[%s226 + $0x38] sm:$0xff]
      %v245 = vld [vmem:[%s226 + $0x40] sm:$0xff]
      %v246 = vld [vmem:[%s226 + $0x48] sm:$0xff]
      %v247 = vld [vmem:[%s226 + $0x50] sm:$0xff]
      %v248 = vld [vmem:[%s226 + $0x58] sm:$0xff]
      %v249 = vld [vmem:[%s226 + $0x60] sm:$0xff]
      %v250 = vld [vmem:[%s226 + $0x68] sm:$0xff]
      %v251 = vld [vmem:[%s226 + $0x70] sm:$0xff]
      %v252 = vld [vmem:[%s226 + $0x78] sm:$0xff]
      %v253 = vld [vmem:[%s226 + $0x80] sm:$0xff]
      %v254 = vld [vmem:[%s226 + $0x88] sm:$0xff]
      %v255 = vld [vmem:[%s226 + $0x90] sm:$0xff]
      %v256 = vld [vmem:[%s226 + $0x98] sm:$0xff]
      %v257 = vld [vmem:[%s226 + $0xa0] sm:$0xff]
      %v258 = vld [vmem:[%s226 + $0xa8] sm:$0xff]
      %v259 = vld [vmem:[%s226 + $0xb0] sm:$0xff]
      %v260 = vld [vmem:[%s226 + $0xb8] sm:$0xff]
      %v261 = vld [vmem:[%s226 + $0xc0] sm:$0xff]
      %v262 = vld [vmem:[%s226 + $0xc8] sm:$0xff]
      %v263 = vld [vmem:[%s226 + $0xd0] sm:$0xff]
      %v264 = vld [vmem:[%s226 + $0xd8] sm:$0xff]
      %v265 = vld [vmem:[%s226 + $0xe0] sm:$0xff]
      %v266 = vld [vmem:[%s226 + $0xe8] sm:$0xff]
      %v267 = vld [vmem:[%s226 + $0xf0] sm:$0xff]
      %v268 = vld [vmem:[%s226 + $0xf8] sm:$0xff]
      %v269 = vld [vmem:[%s2] sm:$0x1]
      %v271 = vlaneseq
      %v272 = vshrl.u32 %v271, 7
      %v273 = vsub.s32 0, %v272
      %v274 = vrot.slane %v269, %v273
      %v276 = vmul.f32 %v237, %v274
      %v277 = vmul.f32 %v238, %v274
      %v278 = vmul.f32 %v239, %v274
      %v279 = vmul.f32 %v240, %v274
      %v280 = vmul.f32 %v241, %v274
      %v281 = vmul.f32 %v242, %v274
      %v282 = vmul.f32 %v243, %v274
      %v283 = vmul.f32 %v244, %v274
      %v284 = vmul.f32 %v245, %v274
      %v285 = vmul.f32 %v246, %v274
      %v286 = vmul.f32 %v247, %v274
      %v287 = vmul.f32 %v248, %v274
      %v288 = vmul.f32 %v249, %v274
      %v289 = vmul.f32 %v250, %v274
      %v290 = vmul.f32 %v251, %v274
      %v291 = vmul.f32 %v252, %v274
      %v292 = vmul.f32 %v253, %v274
      %v293 = vmul.f32 %v254, %v274
      %v294 = vmul.f32 %v255, %v274
      %v295 = vmul.f32 %v256, %v274
      %v296 = vmul.f32 %v257, %v274
      %v297 = vmul.f32 %v258, %v274
      %v298 = vmul.f32 %v259, %v274
      %v299 = vmul.f32 %v260, %v274
      %v300 = vmul.f32 %v261, %v274
      %v301 = vmul.f32 %v262, %v274
      %v302 = vmul.f32 %v263, %v274
      %v303 = vmul.f32 %v264, %v274
      %v304 = vmul.f32 %v265, %v274
      %v305 = vmul.f32 %v266, %v274
      %v306 = vmul.f32 %v267, %v274
      %v307 = vmul.f32 %v268, %v274
      %v308 = vld [vmem:[%s3] sm:$0x1]
      %v310 = vlaneseq
      %v311 = vshrl.u32 %v310, 7
      %v312 = vsub.s32 0, %v311
      %v313 = vrot.slane %v308, %v312
      %v315 = vadd.f32 %v276, %v313
      %v316 = vadd.f32 %v277, %v313
      %v317 = vadd.f32 %v278, %v313
      %v318 = vadd.f32 %v279, %v313
      %v319 = vadd.f32 %v280, %v313
      %v320 = vadd.f32 %v281, %v313
      %v321 = vadd.f32 %v282, %v313
      %v322 = vadd.f32 %v283, %v313
      %v323 = vadd.f32 %v284, %v313
      %v324 = vadd.f32 %v285, %v313
      %v325 = vadd.f32 %v286, %v313
      %v326 = vadd.f32 %v287, %v313
      %v327 = vadd.f32 %v288, %v313
      %v328 = vadd.f32 %v289, %v313
      %v329 = vadd.f32 %v290, %v313
      %v330 = vadd.f32 %v291, %v313
      %v331 = vadd.f32 %v292, %v313
      %v332 = vadd.f32 %v293, %v313
      %v333 = vadd.f32 %v294, %v313
      %v334 = vadd.f32 %v295, %v313
      %v335 = vadd.f32 %v296, %v313
      %v336 = vadd.f32 %v297, %v313
      %v337 = vadd.f32 %v298, %v313
      %v338 = vadd.f32 %v299, %v313
      %v339 = vadd.f32 %v300, %v313
      %v340 = vadd.f32 %v301, %v313
      %v341 = vadd.f32 %v302, %v313
      %v342 = vadd.f32 %v303, %v313
      %v343 = vadd.f32 %v304, %v313
      %v344 = vadd.f32 %v305, %v313
      %v345 = vadd.f32 %v306, %v313
      %v346 = vadd.f32 %v307, %v313
      %v347 = vmax.f32 %v315, 0.0
      %v348 = vmax.f32 %v316, 0.0
      %v349 = vmax.f32 %v317, 0.0
      %v350 = vmax.f32 %v318, 0.0
      %v351 = vmax.f32 %v319, 0.0
      %v352 = vmax.f32 %v320, 0.0
      %v353 = vmax.f32 %v321, 0.0
      %v354 = vmax.f32 %v322, 0.0
      %v355 = vmax.f32 %v323, 0.0
      %v356 = vmax.f32 %v324, 0.0
      %v357 = vmax.f32 %v325, 0.0
      %v358 = vmax.f32 %v326, 0.0
      %v359 = vmax.f32 %v327, 0.0
      %v360 = vmax.f32 %v328, 0.0
      %v361 = vmax.f32 %v329, 0.0
      %v362 = vmax.f32 %v330, 0.0
      %v363 = vmax.f32 %v331, 0.0
      %v364 = vmax.f32 %v332, 0.0
      %v365 = vmax.f32 %v333, 0.0
      %v366 = vmax.f32 %v334, 0.0
      %v367 = vmax.f32 %v335, 0.0
      %v368 = vmax.f32 %v336, 0.0
      %v369 = vmax.f32 %v337, 0.0
      %v370 = vmax.f32 %v338, 0.0
      %v371 = vmax.f32 %v339, 0.0
      %v372 = vmax.f32 %v340, 0.0
      %v373 = vmax.f32 %v341, 0.0
      %v374 = vmax.f32 %v342, 0.0
      %v375 = vmax.f32 %v343, 0.0
      %v376 = vmax.f32 %v344, 0.0
      %v377 = vmax.f32 %v345, 0.0
      %v378 = vmax.f32 %v346, 0.0
      %379 = vst [vmem:[#allocation2] sm:$0xf] 0
      %380 = vst [vmem:[#allocation2 + $0x4] sm:$0xf] 0
      %381 = vst [vmem:[#allocation2 + $0x8] sm:$0x1] 0
      %s382 = scalar_lea.vmem [#allocation2], 204
      %383 = vst [vmem:[%s382] sm:$0xf] 0
      %384 = vst [vmem:[%s382 + $0x4] sm:$0xf] 0
      %385 = vst [vmem:[%s382 + $0x8] sm:$0x1] 0
      %vm386 = vcmask 1040384
      %vm387 = vsmask.f32 256
      %vm388 = vmand %vm386, %vm387
      %v389 = vld [vmem:[#allocation2] sm:$0x1]
      %v390 = vsel %vm388, 0, %v389
      %391 = vst [vmem:[#allocation2] sm:$0x1] %v390
      %v392 = vld [vmem:[#allocation2 + $0xc] sm:$0x1]
      %v393 = vsel %vm388, 0, %v392
      %394 = vst [vmem:[#allocation2 + $0xc] sm:$0x1] %v393
      %v395 = vld [vmem:[#allocation2 + $0x18] sm:$0x1]
      %v396 = vsel %vm388, 0, %v395
      %397 = vst [vmem:[#allocation2 + $0x18] sm:$0x1] %v396
      %v398 = vld [vmem:[#allocation2 + $0x24] sm:$0x1]
      %v399 = vsel %vm388, 0, %v398
      %400 = vst [vmem:[#allocation2 + $0x24] sm:$0x1] %v399
      %v401 = vld [vmem:[#allocation2 + $0x30] sm:$0x1]
      %v402 = vsel %vm388, 0, %v401
      %403 = vst [vmem:[#allocation2 + $0x30] sm:$0x1] %v402
      %v404 = vld [vmem:[#allocation2 + $0x3c] sm:$0x1]
      %v405 = vsel %vm388, 0, %v404
      %406 = vst [vmem:[#allocation2 + $0x3c] sm:$0x1] %v405
      %v407 = vld [vmem:[#allocation2 + $0x48] sm:$0x1]
      %v408 = vsel %vm388, 0, %v407
      %409 = vst [vmem:[#allocation2 + $0x48] sm:$0x1] %v408
      %v410 = vld [vmem:[#allocation2 + $0x54] sm:$0x1]
      %v411 = vsel %vm388, 0, %v410
      %412 = vst [vmem:[#allocation2 + $0x54] sm:$0x1] %v411
      %v413 = vld [vmem:[#allocation2 + $0x60] sm:$0x1]
      %v414 = vsel %vm388, 0, %v413
      %415 = vst [vmem:[#allocation2 + $0x60] sm:$0x1] %v414
      %v416 = vld [vmem:[#allocation2 + $0x6c] sm:$0x1]
      %v417 = vsel %vm388, 0, %v416
      %418 = vst [vmem:[#allocation2 + $0x6c] sm:$0x1] %v417
      %v419 = vld [vmem:[#allocation2 + $0x78] sm:$0x1]
      %v420 = vsel %vm388, 0, %v419
      %421 = vst [vmem:[#allocation2 + $0x78] sm:$0x1] %v420
      %v422 = vld [vmem:[#allocation2 + $0x84] sm:$0x1]
      %v423 = vsel %vm388, 0, %v422
      %424 = vst [vmem:[#allocation2 + $0x84] sm:$0x1] %v423
      %v425 = vld [vmem:[#allocation2 + $0x90] sm:$0x1]
      %v426 = vsel %vm388, 0, %v425
      %427 = vst [vmem:[#allocation2 + $0x90] sm:$0x1] %v426
      %v428 = vld [vmem:[#allocation2 + $0x9c] sm:$0x1]
      %v429 = vsel %vm388, 0, %v428
      %430 = vst [vmem:[#allocation2 + $0x9c] sm:$0x1] %v429
      %v431 = vld [vmem:[#allocation2 + $0xa8] sm:$0x1]
      %v432 = vsel %vm388, 0, %v431
      %433 = vst [vmem:[#allocation2 + $0xa8] sm:$0x1] %v432
      %v434 = vld [vmem:[#allocation2 + $0xb4] sm:$0x1]
      %v435 = vsel %vm388, 0, %v434
      %436 = vst [vmem:[#allocation2 + $0xb4] sm:$0x1] %v435
      %v437 = vld [vmem:[#allocation2 + $0xc0] sm:$0x1]
      %v438 = vsel %vm388, 0, %v437
      %439 = vst [vmem:[#allocation2 + $0xc0] sm:$0x1] %v438
      %v440 = vld [vmem:[#allocation2 + $0xcc] sm:$0x1]
      %v441 = vsel %vm388, 0, %v440
      %442 = vst [vmem:[#allocation2 + $0xcc] sm:$0x1] %v441
      %vm443 = vsmask.f32 7938
      %vm444 = vmand %vm386, %vm443
      %v445 = vld [vmem:[#allocation2 + $0x8] sm:$0x1]
      %v446 = vsel %vm444, 0, %v445
      %447 = vst [vmem:[#allocation2 + $0x8] sm:$0x1] %v446
      %v448 = vld [vmem:[#allocation2 + $0x14] sm:$0x1]
      %v449 = vsel %vm444, 0, %v448
      %450 = vst [vmem:[#allocation2 + $0x14] sm:$0x1] %v449
      %v451 = vld [vmem:[#allocation2 + $0x20] sm:$0x1]
      %v452 = vsel %vm444, 0, %v451
      %453 = vst [vmem:[#allocation2 + $0x20] sm:$0x1] %v452
      %v454 = vld [vmem:[#allocation2 + $0x2c] sm:$0x1]
      %v455 = vsel %vm444, 0, %v454
      %456 = vst [vmem:[#allocation2 + $0x2c] sm:$0x1] %v455
      %v457 = vld [vmem:[#allocation2 + $0x38] sm:$0x1]
      %v458 = vsel %vm444, 0, %v457
      %459 = vst [vmem:[#allocation2 + $0x38] sm:$0x1] %v458
      %v460 = vld [vmem:[#allocation2 + $0x44] sm:$0x1]
      %v461 = vsel %vm444, 0, %v460
      %462 = vst [vmem:[#allocation2 + $0x44] sm:$0x1] %v461
      %v463 = vld [vmem:[#allocation2 + $0x50] sm:$0x1]
      %v464 = vsel %vm444, 0, %v463
      %465 = vst [vmem:[#allocation2 + $0x50] sm:$0x1] %v464
      %v466 = vld [vmem:[#allocation2 + $0x5c] sm:$0x1]
      %v467 = vsel %vm444, 0, %v466
      %468 = vst [vmem:[#allocation2 + $0x5c] sm:$0x1] %v467
      %v469 = vld [vmem:[#allocation2 + $0x68] sm:$0x1]
      %v470 = vsel %vm444, 0, %v469
      %471 = vst [vmem:[#allocation2 + $0x68] sm:$0x1] %v470
      %v472 = vld [vmem:[#allocation2 + $0x74] sm:$0x1]
      %v473 = vsel %vm444, 0, %v472
      %474 = vst [vmem:[#allocation2 + $0x74] sm:$0x1] %v473
      %v475 = vld [vmem:[#allocation2 + $0x80] sm:$0x1]
      %v476 = vsel %vm444, 0, %v475
      %477 = vst [vmem:[#allocation2 + $0x80] sm:$0x1] %v476
      %v478 = vld [vmem:[#allocation2 + $0x8c] sm:$0x1]
      %v479 = vsel %vm444, 0, %v478
      %480 = vst [vmem:[#allocation2 + $0x8c] sm:$0x1] %v479
      %v481 = vld [vmem:[#allocation2 + $0x98] sm:$0x1]
      %v482 = vsel %vm444, 0, %v481
      %483 = vst [vmem:[#allocation2 + $0x98] sm:$0x1] %v482
      %v484 = vld [vmem:[#allocation2 + $0xa4] sm:$0x1]
      %v485 = vsel %vm444, 0, %v484
      %486 = vst [vmem:[#allocation2 + $0xa4] sm:$0x1] %v485
      %v487 = vld [vmem:[#allocation2 + $0xb0] sm:$0x1]
      %v488 = vsel %vm444, 0, %v487
      %489 = vst [vmem:[#allocation2 + $0xb0] sm:$0x1] %v488
      %v490 = vld [vmem:[#allocation2 + $0xbc] sm:$0x1]
      %v491 = vsel %vm444, 0, %v490
      %492 = vst [vmem:[#allocation2 + $0xbc] sm:$0x1] %v491
      %v493 = vld [vmem:[#allocation2 + $0xc8] sm:$0x1]
      %v494 = vsel %vm444, 0, %v493
      %495 = vst [vmem:[#allocation2 + $0xc8] sm:$0x1] %v494
      %v496 = vld [vmem:[#allocation2 + $0xd4] sm:$0x1]
      %v497 = vsel %vm444, 0, %v496
      %498 = vst [vmem:[#allocation2 + $0xd4] sm:$0x1] %v497
      %v499 = vpack.c.bf16 %v348, %v347
      %v500 = vpack.c.bf16 %v350, %v349
      %v501 = vpack.c.bf16 %v352, %v351
      %v502 = vpack.c.bf16 %v354, %v353
      %v503 = vpack.c.bf16 %v356, %v355
      %v504 = vpack.c.bf16 %v358, %v357
      %v505 = vpack.c.bf16 %v360, %v359
      %v506 = vpack.c.bf16 %v362, %v361
      %v507 = vpack.c.bf16 %v364, %v363
      %v508 = vpack.c.bf16 %v366, %v365
      %v509 = vpack.c.bf16 %v368, %v367
      %v510 = vpack.c.bf16 %v370, %v369
      %v511 = vpack.c.bf16 %v372, %v371
      %v512 = vpack.c.bf16 %v374, %v373
      %v513 = vpack.c.bf16 %v376, %v375
      %v514 = vpack.c.bf16 %v378, %v377
      %v531 = vunpack.c.l.b16 %v499
      %v532 = vunpack.c.h.b16 %v499
      %v533 = vunpack.c.l.b16 %v500
      %v534 = vunpack.c.h.b16 %v500
      %v535 = vunpack.c.l.b16 %v501
      %v536 = vunpack.c.h.b16 %v501
      %v537 = vunpack.c.l.b16 %v502
      %v538 = vunpack.c.h.b16 %v502
      %v539 = vunpack.c.l.b16 %v503
      %v540 = vunpack.c.h.b16 %v503
      %v541 = vunpack.c.l.b16 %v504
      %v542 = vunpack.c.h.b16 %v504
      %v543 = vunpack.c.l.b16 %v505
      %v544 = vunpack.c.h.b16 %v505
      %v545 = vunpack.c.l.b16 %v506
      %v546 = vunpack.c.h.b16 %v506
      %v547 = vunpack.c.l.b16 %v507
      %v548 = vunpack.c.h.b16 %v507
      %v549 = vunpack.c.l.b16 %v508
      %v550 = vunpack.c.h.b16 %v508
      %v551 = vunpack.c.l.b16 %v509
      %v552 = vunpack.c.h.b16 %v509
      %v553 = vunpack.c.l.b16 %v510
      %v554 = vunpack.c.h.b16 %v510
      %v555 = vunpack.c.l.b16 %v511
      %v556 = vunpack.c.h.b16 %v511
      %v557 = vunpack.c.l.b16 %v512
      %v558 = vunpack.c.h.b16 %v512
      %v559 = vunpack.c.l.b16 %v513
      %v560 = vunpack.c.h.b16 %v513
      %v561 = vunpack.c.l.b16 %v514
      %v562 = vunpack.c.h.b16 %v514
      %v563 = vpack.c.b16 %v531, %v531
      %v564 = vpack.c.b16 %v532, %v532
      %v565 = vpack.c.b16 %v533, %v533
      %v566 = vpack.c.b16 %v534, %v534
      %v567 = vpack.c.b16 %v535, %v535
      %v568 = vpack.c.b16 %v536, %v536
      %v569 = vpack.c.b16 %v537, %v537
      %v570 = vpack.c.b16 %v538, %v538
      %v571 = vpack.c.b16 %v539, %v539
      %v572 = vpack.c.b16 %v540, %v540
      %v573 = vpack.c.b16 %v541, %v541
      %v574 = vpack.c.b16 %v542, %v542
      %v575 = vpack.c.b16 %v543, %v543
      %v576 = vpack.c.b16 %v544, %v544
      %v577 = vpack.c.b16 %v545, %v545
      %v578 = vpack.c.b16 %v546, %v546
      %v579 = vpack.c.b16 %v547, %v547
      %v580 = vpack.c.b16 %v548, %v548
      %v581 = vpack.c.b16 %v549, %v549
      %v582 = vpack.c.b16 %v550, %v550
      %v583 = vpack.c.b16 %v551, %v551
      %v584 = vpack.c.b16 %v552, %v552
      %v585 = vpack.c.b16 %v553, %v553
      %v586 = vpack.c.b16 %v554, %v554
      %v587 = vpack.c.b16 %v555, %v555
      %v588 = vpack.c.b16 %v556, %v556
      %v589 = vpack.c.b16 %v557, %v557
      %v590 = vpack.c.b16 %v558, %v558
      %v591 = vpack.c.b16 %v559, %v559
      %v592 = vpack.c.b16 %v560, %v560
      %v593 = vpack.c.b16 %v561, %v561
      %v594 = vpack.c.b16 %v562, %v562
      %vm595 = vsmask.f32 4368
      %vm596 = vmor %vm387, %vm595
      %v598 = vshrl.u32 %v563, 16
      %v600 = vrot.slane %v598, 7
      %v601 = vshll.u32 %v563, 16
      %v603 = vor.u32 %v600, %v601
      %v604 = vrot.slane %v600, 4
      %v606 = vshrl.u32 %v564, 16
      %v608 = vrot.slane %v606, 7
      %v609 = vshll.u32 %v564, 16
      %v611 = vor.u32 %v608, %v609
      %v612 = vsel %vm596, %v604, %v611
      %v613 = vrot.slane %v608, 4
      %v615 = vshrl.u32 %v565, 16
      %v617 = vrot.slane %v615, 7
      %v618 = vshll.u32 %v565, 16
      %v620 = vor.u32 %v617, %v618
      %v621 = vrot.slane %v617, 4
      %v623 = vshrl.u32 %v566, 16
      %v625 = vrot.slane %v623, 7
      %v626 = vshll.u32 %v566, 16
      %v628 = vor.u32 %v625, %v626
      %v629 = vsel %vm596, %v621, %v628
      %v630 = vrot.slane %v625, 4
      %v632 = vshrl.u32 %v567, 16
      %v634 = vrot.slane %v632, 7
      %v635 = vshll.u32 %v567, 16
      %v637 = vor.u32 %v634, %v635
      %v638 = vrot.slane %v634, 4
      %v640 = vshrl.u32 %v568, 16
      %v642 = vrot.slane %v640, 7
      %v643 = vshll.u32 %v568, 16
      %v645 = vor.u32 %v642, %v643
      %v646 = vsel %vm596, %v638, %v645
      %v647 = vrot.slane %v642, 4
      %v649 = vshrl.u32 %v569, 16
      %v651 = vrot.slane %v649, 7
      %v652 = vshll.u32 %v569, 16
      %v654 = vor.u32 %v651, %v652
      %v655 = vrot.slane %v651, 4
      %v657 = vshrl.u32 %v570, 16
      %v659 = vrot.slane %v657, 7
      %v660 = vshll.u32 %v570, 16
      %v662 = vor.u32 %v659, %v660
      %v663 = vsel %vm596, %v655, %v662
      %v664 = vrot.slane %v659, 4
      %v666 = vshrl.u32 %v571, 16
      %v668 = vrot.slane %v666, 7
      %v669 = vshll.u32 %v571, 16
      %v671 = vor.u32 %v668, %v669
      %v672 = vrot.slane %v668, 4
      %v674 = vshrl.u32 %v572, 16
      %v676 = vrot.slane %v674, 7
      %v677 = vshll.u32 %v572, 16
      %v679 = vor.u32 %v676, %v677
      %v680 = vsel %vm596, %v672, %v679
      %v681 = vrot.slane %v676, 4
      %v683 = vshrl.u32 %v573, 16
      %v685 = vrot.slane %v683, 7
      %v686 = vshll.u32 %v573, 16
      %v688 = vor.u32 %v685, %v686
      %v689 = vrot.slane %v685, 4
      %v691 = vshrl.u32 %v574, 16
      %v693 = vrot.slane %v691, 7
      %v694 = vshll.u32 %v574, 16
      %v696 = vor.u32 %v693, %v694
      %v697 = vsel %vm596, %v689, %v696
      %v698 = vrot.slane %v693, 4
      %v700 = vshrl.u32 %v575, 16
      %v702 = vrot.slane %v700, 7
      %v703 = vshll.u32 %v575, 16
      %v705 = vor.u32 %v702, %v703
      %v706 = vrot.slane %v702, 4
      %v708 = vshrl.u32 %v576, 16
      %v710 = vrot.slane %v708, 7
      %v711 = vshll.u32 %v576, 16
      %v713 = vor.u32 %v710, %v711
      %v714 = vsel %vm596, %v706, %v713
      %v715 = vrot.slane %v710, 4
      %v717 = vshrl.u32 %v577, 16
      %v719 = vrot.slane %v717, 7
      %v720 = vshll.u32 %v577, 16
      %v722 = vor.u32 %v719, %v720
      %v723 = vrot.slane %v719, 4
      %v725 = vshrl.u32 %v578, 16
      %v727 = vrot.slane %v725, 7
      %v728 = vshll.u32 %v578, 16
      %v730 = vor.u32 %v727, %v728
      %v731 = vsel %vm596, %v723, %v730
      %v732 = vrot.slane %v727, 4
      %v734 = vshrl.u32 %v579, 16
      %v736 = vrot.slane %v734, 7
      %v737 = vshll.u32 %v579, 16
      %v739 = vor.u32 %v736, %v737
      %v740 = vrot.slane %v736, 4
      %v742 = vshrl.u32 %v580, 16
      %v744 = vrot.slane %v742, 7
      %v745 = vshll.u32 %v580, 16
      %v747 = vor.u32 %v744, %v745
      %v748 = vsel %vm596, %v740, %v747
      %v749 = vrot.slane %v744, 4
      %v751 = vshrl.u32 %v581, 16
      %v753 = vrot.slane %v751, 7
      %v754 = vshll.u32 %v581, 16
      %v756 = vor.u32 %v753, %v754
      %v757 = vrot.slane %v753, 4
      %v759 = vshrl.u32 %v582, 16
      %v761 = vrot.slane %v759, 7
      %v762 = vshll.u32 %v582, 16
      %v764 = vor.u32 %v761, %v762
      %v765 = vsel %vm596, %v757, %v764
      %v766 = vrot.slane %v761, 4
      %v768 = vshrl.u32 %v583, 16
      %v770 = vrot.slane %v768, 7
      %v771 = vshll.u32 %v583, 16
      %v773 = vor.u32 %v770, %v771
      %v774 = vrot.slane %v770, 4
      %v776 = vshrl.u32 %v584, 16
      %v778 = vrot.slane %v776, 7
      %v779 = vshll.u32 %v584, 16
      %v781 = vor.u32 %v778, %v779
      %v782 = vsel %vm596, %v774, %v781
      %v783 = vrot.slane %v778, 4
      %v785 = vshrl.u32 %v585, 16
      %v787 = vrot.slane %v785, 7
      %v788 = vshll.u32 %v585, 16
      %v790 = vor.u32 %v787, %v788
      %v791 = vrot.slane %v787, 4
      %v793 = vshrl.u32 %v586, 16
      %v795 = vrot.slane %v793, 7
      %v796 = vshll.u32 %v586, 16
      %v798 = vor.u32 %v795, %v796
      %v799 = vsel %vm596, %v791, %v798
      %v800 = vrot.slane %v795, 4
      %v802 = vshrl.u32 %v587, 16
      %v804 = vrot.slane %v802, 7
      %v805 = vshll.u32 %v587, 16
      %v807 = vor.u32 %v804, %v805
      %v808 = vrot.slane %v804, 4
      %v810 = vshrl.u32 %v588, 16
      %v812 = vrot.slane %v810, 7
      %v813 = vshll.u32 %v588, 16
      %v815 = vor.u32 %v812, %v813
      %v816 = vsel %vm596, %v808, %v815
      %v817 = vrot.slane %v812, 4
      %v819 = vshrl.u32 %v589, 16
      %v821 = vrot.slane %v819, 7
      %v822 = vshll.u32 %v589, 16
      %v824 = vor.u32 %v821, %v822
      %v825 = vrot.slane %v821, 4
      %v827 = vshrl.u32 %v590, 16
      %v829 = vrot.slane %v827, 7
      %v830 = vshll.u32 %v590, 16
      %v832 = vor.u32 %v829, %v830
      %v833 = vsel %vm596, %v825, %v832
      %v834 = vrot.slane %v829, 4
      %v836 = vshrl.u32 %v591, 16
      %v838 = vrot.slane %v836, 7
      %v839 = vshll.u32 %v591, 16
      %v841 = vor.u32 %v838, %v839
      %v842 = vrot.slane %v838, 4
      %v844 = vshrl.u32 %v592, 16
      %v846 = vrot.slane %v844, 7
      %v847 = vshll.u32 %v592, 16
      %v849 = vor.u32 %v846, %v847
      %v850 = vsel %vm596, %v842, %v849
      %v851 = vrot.slane %v846, 4
      %v853 = vshrl.u32 %v593, 16
      %v855 = vrot.slane %v853, 7
      %v856 = vshll.u32 %v593, 16
      %v858 = vor.u32 %v855, %v856
      %v859 = vrot.slane %v855, 4
      %v861 = vshrl.u32 %v594, 16
      %v863 = vrot.slane %v861, 7
      %v864 = vshll.u32 %v594, 16
      %v866 = vor.u32 %v863, %v864
      %v867 = vsel %vm596, %v859, %v866
      %v868 = vrot.slane %v863, 4
      %s917 = scalar_lea.vmem [#allocation2], 12
      %vm918 = vcmask 1043456
      %vm919 = vmand %vm918, %vm443
      %v920 = vld [vmem:[%s917] sm:$0xf]
      %v921 = vsel %vm919, %v603, %v920
      %922 = vst [vmem:[%s917] sm:$0xf] %v921
      %923 = vst [vmem:[%s917 + $0x4] sm:$0xf] %v612
      %v924 = vld [vmem:[%s917 + $0x8] sm:$0x1]
      %v925 = vsel %vm388, %v613, %v924
      %926 = vst [vmem:[%s917 + $0x8] sm:$0x1] %v925
      %v927 = vld [vmem:[%s917 + $0xc] sm:$0xf]
      %v928 = vsel %vm919, %v620, %v927
      %929 = vst [vmem:[%s917 + $0xc] sm:$0xf] %v928
      %930 = vst [vmem:[%s917 + $0x10] sm:$0xf] %v629
      %v931 = vld [vmem:[%s917 + $0x14] sm:$0x1]
      %v932 = vsel %vm388, %v630, %v931
      %933 = vst [vmem:[%s917 + $0x14] sm:$0x1] %v932
      %v934 = vld [vmem:[%s917 + $0x18] sm:$0xf]
      %v935 = vsel %vm919, %v637, %v934
      %936 = vst [vmem:[%s917 + $0x18] sm:$0xf] %v935
      %937 = vst [vmem:[%s917 + $0x1c] sm:$0xf] %v646
      %v938 = vld [vmem:[%s917 + $0x20] sm:$0x1]
      %v939 = vsel %vm388, %v647, %v938
      %940 = vst [vmem:[%s917 + $0x20] sm:$0x1] %v939
      %v941 = vld [vmem:[%s917 + $0x24] sm:$0xf]
      %v942 = vsel %vm919, %v654, %v941
      %943 = vst [vmem:[%s917 + $0x24] sm:$0xf] %v942
      %944 = vst [vmem:[%s917 + $0x28] sm:$0xf] %v663
      %v945 = vld [vmem:[%s917 + $0x2c] sm:$0x1]
      %v946 = vsel %vm388, %v664, %v945
      %947 = vst [vmem:[%s917 + $0x2c] sm:$0x1] %v946
      %v948 = vld [vmem:[%s917 + $0x30] sm:$0xf]
      %v949 = vsel %vm919, %v671, %v948
      %950 = vst [vmem:[%s917 + $0x30] sm:$0xf] %v949
      %951 = vst [vmem:[%s917 + $0x34] sm:$0xf] %v680
      %v952 = vld [vmem:[%s917 + $0x38] sm:$0x1]
      %v953 = vsel %vm388, %v681, %v952
      %954 = vst [vmem:[%s917 + $0x38] sm:$0x1] %v953
      %v955 = vld [vmem:[%s917 + $0x3c] sm:$0xf]
      %v956 = vsel %vm919, %v688, %v955
      %957 = vst [vmem:[%s917 + $0x3c] sm:$0xf] %v956
      %958 = vst [vmem:[%s917 + $0x40] sm:$0xf] %v697
      %v959 = vld [vmem:[%s917 + $0x44] sm:$0x1]
      %v960 = vsel %vm388, %v698, %v959
      %961 = vst [vmem:[%s917 + $0x44] sm:$0x1] %v960
      %v962 = vld [vmem:[%s917 + $0x48] sm:$0xf]
      %v963 = vsel %vm919, %v705, %v962
      %964 = vst [vmem:[%s917 + $0x48] sm:$0xf] %v963
      %965 = vst [vmem:[%s917 + $0x4c] sm:$0xf] %v714
      %v966 = vld [vmem:[%s917 + $0x50] sm:$0x1]
      %v967 = vsel %vm388, %v715, %v966
      %968 = vst [vmem:[%s917 + $0x50] sm:$0x1] %v967
      %v969 = vld [vmem:[%s917 + $0x54] sm:$0xf]
      %v970 = vsel %vm919, %v722, %v969
      %971 = vst [vmem:[%s917 + $0x54] sm:$0xf] %v970
      %972 = vst [vmem:[%s917 + $0x58] sm:$0xf] %v731
      %v973 = vld [vmem:[%s917 + $0x5c] sm:$0x1]
      %v974 = vsel %vm388, %v732, %v973
      %975 = vst [vmem:[%s917 + $0x5c] sm:$0x1] %v974
      %v976 = vld [vmem:[%s917 + $0x60] sm:$0xf]
      %v977 = vsel %vm919, %v739, %v976
      %978 = vst [vmem:[%s917 + $0x60] sm:$0xf] %v977
      %979 = vst [vmem:[%s917 + $0x64] sm:$0xf] %v748
      %v980 = vld [vmem:[%s917 + $0x68] sm:$0x1]
      %v981 = vsel %vm388, %v749, %v980
      %982 = vst [vmem:[%s917 + $0x68] sm:$0x1] %v981
      %v983 = vld [vmem:[%s917 + $0x6c] sm:$0xf]
      %v984 = vsel %vm919, %v756, %v983
      %985 = vst [vmem:[%s917 + $0x6c] sm:$0xf] %v984
      %986 = vst [vmem:[%s917 + $0x70] sm:$0xf] %v765
      %v987 = vld [vmem:[%s917 + $0x74] sm:$0x1]
      %v988 = vsel %vm388, %v766, %v987
      %989 = vst [vmem:[%s917 + $0x74] sm:$0x1] %v988
      %v990 = vld [vmem:[%s917 + $0x78] sm:$0xf]
      %v991 = vsel %vm919, %v773, %v990
      %992 = vst [vmem:[%s917 + $0x78] sm:$0xf] %v991
      %993 = vst [vmem:[%s917 + $0x7c] sm:$0xf] %v782
      %v994 = vld [vmem:[%s917 + $0x80] sm:$0x1]
      %v995 = vsel %vm388, %v783, %v994
      %996 = vst [vmem:[%s917 + $0x80] sm:$0x1] %v995
      %v997 = vld [vmem:[%s917 + $0x84] sm:$0xf]
      %v998 = vsel %vm919, %v790, %v997
      %999 = vst [vmem:[%s917 + $0x84] sm:$0xf] %v998
      %1000 = vst [vmem:[%s917 + $0x88] sm:$0xf] %v799
      %v1001 = vld [vmem:[%s917 + $0x8c] sm:$0x1]
      %v1002 = vsel %vm388, %v800, %v1001
      %1003 = vst [vmem:[%s917 + $0x8c] sm:$0x1] %v1002
      %v1004 = vld [vmem:[%s917 + $0x90] sm:$0xf]
      %v1005 = vsel %vm919, %v807, %v1004
      %1006 = vst [vmem:[%s917 + $0x90] sm:$0xf] %v1005
      %1007 = vst [vmem:[%s917 + $0x94] sm:$0xf] %v816
      %v1008 = vld [vmem:[%s917 + $0x98] sm:$0x1]
      %v1009 = vsel %vm388, %v817, %v1008
      %1010 = vst [vmem:[%s917 + $0x98] sm:$0x1] %v1009
      %v1011 = vld [vmem:[%s917 + $0x9c] sm:$0xf]
      %v1012 = vsel %vm919, %v824, %v1011
      %1013 = vst [vmem:[%s917 + $0x9c] sm:$0xf] %v1012
      %1014 = vst [vmem:[%s917 + $0xa0] sm:$0xf] %v833
      %v1015 = vld [vmem:[%s917 + $0xa4] sm:$0x1]
      %v1016 = vsel %vm388, %v834, %v1015
      %1017 = vst [vmem:[%s917 + $0xa4] sm:$0x1] %v1016
      %v1018 = vld [vmem:[%s917 + $0xa8] sm:$0xf]
      %v1019 = vsel %vm919, %v841, %v1018
      %1020 = vst [vmem:[%s917 + $0xa8] sm:$0xf] %v1019
      %1021 = vst [vmem:[%s917 + $0xac] sm:$0xf] %v850
      %v1022 = vld [vmem:[%s917 + $0xb0] sm:$0x1]
      %v1023 = vsel %vm388, %v851, %v1022
      %1024 = vst [vmem:[%s917 + $0xb0] sm:$0x1] %v1023
      %v1025 = vld [vmem:[%s917 + $0xb4] sm:$0xf]
      %v1026 = vsel %vm919, %v858, %v1025
      %1027 = vst [vmem:[%s917 + $0xb4] sm:$0xf] %v1026
      %1028 = vst [vmem:[%s917 + $0xb8] sm:$0xf] %v867
      %v1029 = vld [vmem:[%s917 + $0xbc] sm:$0x1]
      %v1030 = vsel %vm388, %v868, %v1029
      %1031 = vst [vmem:[%s917 + $0xbc] sm:$0x1] %v1030
      %v1032 = vld [vmem:[#allocation2] sm:$0xf]
      %v1033 = vld [vmem:[#allocation2 + $0x4] sm:$0xf]
      %v1034 = vld [vmem:[#allocation2 + $0xc] sm:$0xf]
      %v1035 = vld [vmem:[#allocation2 + $0x10] sm:$0xf]
      %v1036 = vld [vmem:[#allocation2 + $0x18] sm:$0xf]
      %v1037 = vld [vmem:[#allocation2 + $0x1c] sm:$0xf]
      %v1038 = vld [vmem:[#allocation2 + $0x24] sm:$0xf]
      %v1039 = vld [vmem:[#allocation2 + $0x28] sm:$0xf]
      %v1040 = vld [vmem:[#allocation2 + $0x30] sm:$0xf]
      %v1041 = vld [vmem:[#allocation2 + $0x34] sm:$0xf]
      %v1042 = vld [vmem:[#allocation2 + $0x3c] sm:$0xf]
      %v1043 = vld [vmem:[#allocation2 + $0x40] sm:$0xf]
      %v1044 = vld [vmem:[#allocation2 + $0x48] sm:$0xf]
      %v1045 = vld [vmem:[#allocation2 + $0x4c] sm:$0xf]
      %v1046 = vld [vmem:[#allocation2 + $0x54] sm:$0xf]
      %v1047 = vld [vmem:[#allocation2 + $0x58] sm:$0xf]
      %v1048 = vld [vmem:[#allocation2 + $0x60] sm:$0xf]
      %v1049 = vld [vmem:[#allocation2 + $0x64] sm:$0xf]
      %v1050 = vld [vmem:[#allocation2 + $0x6c] sm:$0xf]
      %v1051 = vld [vmem:[#allocation2 + $0x70] sm:$0xf]
      %v1052 = vld [vmem:[#allocation2 + $0x78] sm:$0xf]
      %v1053 = vld [vmem:[#allocation2 + $0x7c] sm:$0xf]
      %v1054 = vld [vmem:[#allocation2 + $0x84] sm:$0xf]
      %v1055 = vld [vmem:[#allocation2 + $0x88] sm:$0xf]
      %v1056 = vld [vmem:[#allocation2 + $0x90] sm:$0xf]
      %v1057 = vld [vmem:[#allocation2 + $0x94] sm:$0xf]
      %v1058 = vld [vmem:[#allocation2 + $0x9c] sm:$0xf]
      %v1059 = vld [vmem:[#allocation2 + $0xa0] sm:$0xf]
      %v1060 = vld [vmem:[#allocation2 + $0xa8] sm:$0xf]
      %v1061 = vld [vmem:[#allocation2 + $0xac] sm:$0xf]
      %v1062 = vld [vmem:[#allocation2 + $0xb4] sm:$0xf]
      %v1063 = vld [vmem:[#allocation2 + $0xb8] sm:$0xf]
      %v1064 = vld [vmem:[#allocation2 + $0x8] sm:$0x1]
      %v1065 = vld [vmem:[#allocation2 + $0x14] sm:$0x1]
      %v1066 = vld [vmem:[#allocation2 + $0x20] sm:$0x1]
      %v1067 = vld [vmem:[#allocation2 + $0x2c] sm:$0x1]
      %v1068 = vld [vmem:[#allocation2 + $0x38] sm:$0x1]
      %v1069 = vld [vmem:[#allocation2 + $0x44] sm:$0x1]
      %v1070 = vld [vmem:[#allocation2 + $0x50] sm:$0x1]
      %v1071 = vld [vmem:[#allocation2 + $0x5c] sm:$0x1]
      %v1072 = vld [vmem:[#allocation2 + $0x68] sm:$0x1]
      %v1073 = vld [vmem:[#allocation2 + $0x74] sm:$0x1]
      %v1074 = vld [vmem:[#allocation2 + $0x80] sm:$0x1]
      %v1075 = vld [vmem:[#allocation2 + $0x8c] sm:$0x1]
      %v1076 = vld [vmem:[#allocation2 + $0x98] sm:$0x1]
      %v1077 = vld [vmem:[#allocation2 + $0xa4] sm:$0x1]
      %v1078 = vld [vmem:[#allocation2 + $0xb0] sm:$0x1]
      %v1079 = vld [vmem:[#allocation2 + $0xbc] sm:$0x1]
      %v1080 = vld [vmem:[#allocation2] sm:$0xe]
      %v1081 = vld [vmem:[#allocation2 + $0xc] sm:$0xe]
      %v1082 = vld [vmem:[#allocation2 + $0x18] sm:$0xe]
      %v1083 = vld [vmem:[#allocation2 + $0x24] sm:$0xe]
      %v1084 = vld [vmem:[#allocation2 + $0x30] sm:$0xe]
      %v1085 = vld [vmem:[#allocation2 + $0x3c] sm:$0xe]
      %v1086 = vld [vmem:[#allocation2 + $0x48] sm:$0xe]
      %v1087 = vld [vmem:[#allocation2 + $0x54] sm:$0xe]
      %v1088 = vld [vmem:[#allocation2 + $0x60] sm:$0xe]
      %v1089 = vld [vmem:[#allocation2 + $0x6c] sm:$0xe]
      %v1090 = vld [vmem:[#allocation2 + $0x78] sm:$0xe]
      %v1091 = vld [vmem:[#allocation2 + $0x84] sm:$0xe]
      %v1092 = vld [vmem:[#allocation2 + $0x90] sm:$0xe]
      %v1093 = vld [vmem:[#allocation2 + $0x9c] sm:$0xe]
      %v1094 = vld [vmem:[#allocation2 + $0xa8] sm:$0xe]
      %v1095 = vld [vmem:[#allocation2 + $0xb4] sm:$0xe]
      %v1128 = vunpack.c.l.b16 %v1032
      %v1129 = vunpack.c.l.b16 %v1033
      %v1130 = vunpack.c.l.b16 %v1034
      %v1131 = vunpack.c.l.b16 %v1035
      %v1132 = vunpack.c.l.b16 %v1036
      %v1133 = vunpack.c.l.b16 %v1037
      %v1134 = vunpack.c.l.b16 %v1038
      %v1135 = vunpack.c.l.b16 %v1039
      %v1136 = vunpack.c.l.b16 %v1040
      %v1137 = vunpack.c.l.b16 %v1041
      %v1138 = vunpack.c.l.b16 %v1042
      %v1139 = vunpack.c.l.b16 %v1043
      %v1140 = vunpack.c.l.b16 %v1044
      %v1141 = vunpack.c.l.b16 %v1045
      %v1142 = vunpack.c.l.b16 %v1046
      %v1143 = vunpack.c.l.b16 %v1047
      %v1144 = vunpack.c.l.b16 %v1048
      %v1145 = vunpack.c.l.b16 %v1049
      %v1146 = vunpack.c.l.b16 %v1050
      %v1147 = vunpack.c.l.b16 %v1051
      %v1148 = vunpack.c.l.b16 %v1052
      %v1149 = vunpack.c.l.b16 %v1053
      %v1150 = vunpack.c.l.b16 %v1054
      %v1151 = vunpack.c.l.b16 %v1055
      %v1152 = vunpack.c.l.b16 %v1056
      %v1153 = vunpack.c.l.b16 %v1057
      %v1154 = vunpack.c.l.b16 %v1058
      %v1155 = vunpack.c.l.b16 %v1059
      %v1156 = vunpack.c.l.b16 %v1060
      %v1157 = vunpack.c.l.b16 %v1061
      %v1158 = vunpack.c.l.b16 %v1062
      %v1159 = vunpack.c.l.b16 %v1063
      %v1160 = vpack.c.b16 %v1129, %v1128
      %v1161 = vpack.c.b16 %v1131, %v1130
      %v1162 = vpack.c.b16 %v1133, %v1132
      %v1163 = vpack.c.b16 %v1135, %v1134
      %v1164 = vpack.c.b16 %v1137, %v1136
      %v1165 = vpack.c.b16 %v1139, %v1138
      %v1166 = vpack.c.b16 %v1141, %v1140
      %v1167 = vpack.c.b16 %v1143, %v1142
      %v1168 = vpack.c.b16 %v1145, %v1144
      %v1169 = vpack.c.b16 %v1147, %v1146
      %v1170 = vpack.c.b16 %v1149, %v1148
      %v1171 = vpack.c.b16 %v1151, %v1150
      %v1172 = vpack.c.b16 %v1153, %v1152
      %v1173 = vpack.c.b16 %v1155, %v1154
      %v1174 = vpack.c.b16 %v1157, %v1156
      %v1175 = vpack.c.b16 %v1159, %v1158
      %v1208 = vunpack.c.l.b16 %v1064
      %v1209 = vunpack.c.l.b16 %v1065
      %v1210 = vunpack.c.l.b16 %v1066
      %v1211 = vunpack.c.l.b16 %v1067
      %v1212 = vunpack.c.l.b16 %v1068
      %v1213 = vunpack.c.l.b16 %v1069
      %v1214 = vunpack.c.l.b16 %v1070
      %v1215 = vunpack.c.l.b16 %v1071
      %v1216 = vunpack.c.l.b16 %v1072
      %v1217 = vunpack.c.l.b16 %v1073
      %v1218 = vunpack.c.l.b16 %v1074
      %v1219 = vunpack.c.l.b16 %v1075
      %v1220 = vunpack.c.l.b16 %v1076
      %v1221 = vunpack.c.l.b16 %v1077
      %v1222 = vunpack.c.l.b16 %v1078
      %v1223 = vunpack.c.l.b16 %v1079
      %v1224 = vpack.c.b16 %v1208, %v1208
      %v1225 = vpack.c.b16 %v1209, %v1209
      %v1226 = vpack.c.b16 %v1210, %v1210
      %v1227 = vpack.c.b16 %v1211, %v1211
      %v1228 = vpack.c.b16 %v1212, %v1212
      %v1229 = vpack.c.b16 %v1213, %v1213
      %v1230 = vpack.c.b16 %v1214, %v1214
      %v1231 = vpack.c.b16 %v1215, %v1215
      %v1232 = vpack.c.b16 %v1216, %v1216
      %v1233 = vpack.c.b16 %v1217, %v1217
      %v1234 = vpack.c.b16 %v1218, %v1218
      %v1235 = vpack.c.b16 %v1219, %v1219
      %v1236 = vpack.c.b16 %v1220, %v1220
      %v1237 = vpack.c.b16 %v1221, %v1221
      %v1238 = vpack.c.b16 %v1222, %v1222
      %v1239 = vpack.c.b16 %v1223, %v1223
      %vm1240 = vsmask.f32 7424
      %v1242 = vshrl.u32 %v1160, 16
      %v1244 = vshll.u32 %v1160, 16
      %v1246 = vrot.slane %v1244, 1
      %v1247 = vor.u32 %v1242, %v1246
      %v1249 = vshll.u32 %v1224, 16
      %v1251 = vrot.slane %v1249, 1
      %v1252 = vsel %vm1240, %v1247, %v1251
      %v1254 = vshrl.u32 %v1161, 16
      %v1256 = vshll.u32 %v1161, 16
      %v1258 = vrot.slane %v1256, 1
      %v1259 = vor.u32 %v1254, %v1258
      %v1261 = vshll.u32 %v1225, 16
      %v1263 = vrot.slane %v1261, 1
      %v1264 = vsel %vm1240, %v1259, %v1263
      %v1266 = vshrl.u32 %v1162, 16
      %v1268 = vshll.u32 %v1162, 16
      %v1270 = vrot.slane %v1268, 1
      %v1271 = vor.u32 %v1266, %v1270
      %v1273 = vshll.u32 %v1226, 16
      %v1275 = vrot.slane %v1273, 1
      %v1276 = vsel %vm1240, %v1271, %v1275
      %v1278 = vshrl.u32 %v1163, 16
      %v1280 = vshll.u32 %v1163, 16
      %v1282 = vrot.slane %v1280, 1
      %v1283 = vor.u32 %v1278, %v1282
      %v1285 = vshll.u32 %v1227, 16
      %v1287 = vrot.slane %v1285, 1
      %v1288 = vsel %vm1240, %v1283, %v1287
      %v1290 = vshrl.u32 %v1164, 16
      %v1292 = vshll.u32 %v1164, 16
      %v1294 = vrot.slane %v1292, 1
      %v1295 = vor.u32 %v1290, %v1294
      %v1297 = vshll.u32 %v1228, 16
      %v1299 = vrot.slane %v1297, 1
      %v1300 = vsel %vm1240, %v1295, %v1299
      %v1302 = vshrl.u32 %v1165, 16
      %v1304 = vshll.u32 %v1165, 16
      %v1306 = vrot.slane %v1304, 1
      %v1307 = vor.u32 %v1302, %v1306
      %v1309 = vshll.u32 %v1229, 16
      %v1311 = vrot.slane %v1309, 1
      %v1312 = vsel %vm1240, %v1307, %v1311
      %v1314 = vshrl.u32 %v1166, 16
      %v1316 = vshll.u32 %v1166, 16
      %v1318 = vrot.slane %v1316, 1
      %v1319 = vor.u32 %v1314, %v1318
      %v1321 = vshll.u32 %v1230, 16
      %v1323 = vrot.slane %v1321, 1
      %v1324 = vsel %vm1240, %v1319, %v1323
      %v1326 = vshrl.u32 %v1167, 16
      %v1328 = vshll.u32 %v1167, 16
      %v1330 = vrot.slane %v1328, 1
      %v1331 = vor.u32 %v1326, %v1330
      %v1333 = vshll.u32 %v1231, 16
      %v1335 = vrot.slane %v1333, 1
      %v1336 = vsel %vm1240, %v1331, %v1335
      %v1338 = vshrl.u32 %v1168, 16
      %v1340 = vshll.u32 %v1168, 16
      %v1342 = vrot.slane %v1340, 1
      %v1343 = vor.u32 %v1338, %v1342
      %v1345 = vshll.u32 %v1232, 16
      %v1347 = vrot.slane %v1345, 1
      %v1348 = vsel %vm1240, %v1343, %v1347
      %v1350 = vshrl.u32 %v1169, 16
      %v1352 = vshll.u32 %v1169, 16
      %v1354 = vrot.slane %v1352, 1
      %v1355 = vor.u32 %v1350, %v1354
      %v1357 = vshll.u32 %v1233, 16
      %v1359 = vrot.slane %v1357, 1
      %v1360 = vsel %vm1240, %v1355, %v1359
      %v1362 = vshrl.u32 %v1170, 16
      %v1364 = vshll.u32 %v1170, 16
      %v1366 = vrot.slane %v1364, 1
      %v1367 = vor.u32 %v1362, %v1366
      %v1369 = vshll.u32 %v1234, 16
      %v1371 = vrot.slane %v1369, 1
      %v1372 = vsel %vm1240, %v1367, %v1371
      %v1374 = vshrl.u32 %v1171, 16
      %v1376 = vshll.u32 %v1171, 16
      %v1378 = vrot.slane %v1376, 1
      %v1379 = vor.u32 %v1374, %v1378
      %v1381 = vshll.u32 %v1235, 16
      %v1383 = vrot.slane %v1381, 1
      %v1384 = vsel %vm1240, %v1379, %v1383
      %v1386 = vshrl.u32 %v1172, 16
      %v1388 = vshll.u32 %v1172, 16
      %v1390 = vrot.slane %v1388, 1
      %v1391 = vor.u32 %v1386, %v1390
      %v1393 = vshll.u32 %v1236, 16
      %v1395 = vrot.slane %v1393, 1
      %v1396 = vsel %vm1240, %v1391, %v1395
      %v1398 = vshrl.u32 %v1173, 16
      %v1400 = vshll.u32 %v1173, 16
      %v1402 = vrot.slane %v1400, 1
      %v1403 = vor.u32 %v1398, %v1402
      %v1405 = vshll.u32 %v1237, 16
      %v1407 = vrot.slane %v1405, 1
      %v1408 = vsel %vm1240, %v1403, %v1407
      %v1410 = vshrl.u32 %v1174, 16
      %v1412 = vshll.u32 %v1174, 16
      %v1414 = vrot.slane %v1412, 1
      %v1415 = vor.u32 %v1410, %v1414
      %v1417 = vshll.u32 %v1238, 16
      %v1419 = vrot.slane %v1417, 1
      %v1420 = vsel %vm1240, %v1415, %v1419
      %v1422 = vshrl.u32 %v1175, 16
      %v1424 = vshll.u32 %v1175, 16
      %v1426 = vrot.slane %v1424, 1
      %v1427 = vor.u32 %v1422, %v1426
      %v1429 = vshll.u32 %v1239, 16
      %v1431 = vrot.slane %v1429, 1
      %v1432 = vsel %vm1240, %v1427, %v1431
      %v1465 = vunpack.c.l.b16 %v1080
      %v1466 = vunpack.c.l.b16 %v1081
      %v1467 = vunpack.c.l.b16 %v1082
      %v1468 = vunpack.c.l.b16 %v1083
      %v1469 = vunpack.c.l.b16 %v1084
      %v1470 = vunpack.c.l.b16 %v1085
      %v1471 = vunpack.c.l.b16 %v1086
      %v1472 = vunpack.c.l.b16 %v1087
      %v1473 = vunpack.c.l.b16 %v1088
      %v1474 = vunpack.c.l.b16 %v1089
      %v1475 = vunpack.c.l.b16 %v1090
      %v1476 = vunpack.c.l.b16 %v1091
      %v1477 = vunpack.c.l.b16 %v1092
      %v1478 = vunpack.c.l.b16 %v1093
      %v1479 = vunpack.c.l.b16 %v1094
      %v1480 = vunpack.c.l.b16 %v1095
      %v1481 = vpack.c.b16 %v1129, %v1465
      %v1482 = vpack.c.b16 %v1131, %v1466
      %v1483 = vpack.c.b16 %v1133, %v1467
      %v1484 = vpack.c.b16 %v1135, %v1468
      %v1485 = vpack.c.b16 %v1137, %v1469
      %v1486 = vpack.c.b16 %v1139, %v1470
      %v1487 = vpack.c.b16 %v1141, %v1471
      %v1488 = vpack.c.b16 %v1143, %v1472
      %v1489 = vpack.c.b16 %v1145, %v1473
      %v1490 = vpack.c.b16 %v1147, %v1474
      %v1491 = vpack.c.b16 %v1149, %v1475
      %v1492 = vpack.c.b16 %v1151, %v1476
      %v1493 = vpack.c.b16 %v1153, %v1477
      %v1494 = vpack.c.b16 %v1155, %v1478
      %v1495 = vpack.c.b16 %v1157, %v1479
      %v1496 = vpack.c.b16 %v1159, %v1480
      %vm1497 = vcmask 1046528
      %v1498 = vrot.slane %v1481, 1
      %v1499 = vrot.slane %v1224, 1
      %v1500 = vsel %vm1497, %v1498, %v1499
      %v1501 = vrot.slane %v1482, 1
      %v1502 = vrot.slane %v1225, 1
      %v1503 = vsel %vm1497, %v1501, %v1502
      %v1504 = vrot.slane %v1483, 1
      %v1505 = vrot.slane %v1226, 1
      %v1506 = vsel %vm1497, %v1504, %v1505
      %v1507 = vrot.slane %v1484, 1
      %v1508 = vrot.slane %v1227, 1
      %v1509 = vsel %vm1497, %v1507, %v1508
      %v1510 = vrot.slane %v1485, 1
      %v1511 = vrot.slane %v1228, 1
      %v1512 = vsel %vm1497, %v1510, %v1511
      %v1513 = vrot.slane %v1486, 1
      %v1514 = vrot.slane %v1229, 1
      %v1515 = vsel %vm1497, %v1513, %v1514
      %v1516 = vrot.slane %v1487, 1
      %v1517 = vrot.slane %v1230, 1
      %v1518 = vsel %vm1497, %v1516, %v1517
      %v1519 = vrot.slane %v1488, 1
      %v1520 = vrot.slane %v1231, 1
      %v1521 = vsel %vm1497, %v1519, %v1520
      %v1522 = vrot.slane %v1489, 1
      %v1523 = vrot.slane %v1232, 1
      %v1524 = vsel %vm1497, %v1522, %v1523
      %v1525 = vrot.slane %v1490, 1
      %v1526 = vrot.slane %v1233, 1
      %v1527 = vsel %vm1497, %v1525, %v1526
      %v1528 = vrot.slane %v1491, 1
      %v1529 = vrot.slane %v1234, 1
      %v1530 = vsel %vm1497, %v1528, %v1529
      %v1531 = vrot.slane %v1492, 1
      %v1532 = vrot.slane %v1235, 1
      %v1533 = vsel %vm1497, %v1531, %v1532
      %v1534 = vrot.slane %v1493, 1
      %v1535 = vrot.slane %v1236, 1
      %v1536 = vsel %vm1497, %v1534, %v1535
      %v1537 = vrot.slane %v1494, 1
      %v1538 = vrot.slane %v1237, 1
      %v1539 = vsel %vm1497, %v1537, %v1538
      %v1540 = vrot.slane %v1495, 1
      %v1541 = vrot.slane %v1238, 1
      %v1542 = vsel %vm1497, %v1540, %v1541
      %v1543 = vrot.slane %v1496, 1
      %v1544 = vrot.slane %v1239, 1
      %v1545 = vsel %vm1497, %v1543, %v1544
      %v1562 = vld [vmem:[%s1] sm:$0xf]
      %v1563 = vld [vmem:[%s1 + $0x4] sm:$0xf]
      %v1564 = vld [vmem:[%s1 + $0x8] sm:$0xf]
      %v1565 = vld [vmem:[%s1 + $0xc] sm:$0xf]
      %v1566 = vld [vmem:[%s1 + $0x10] sm:$0xf]
      %v1567 = vld [vmem:[%s1 + $0x14] sm:$0xf]
      %v1568 = vld [vmem:[%s1 + $0x18] sm:$0xf]
      %v1569 = vld [vmem:[%s1 + $0x1c] sm:$0xf]
      %v1570 = vld [vmem:[%s1 + $0x20] sm:$0xf]
      %v1571 = vld [vmem:[%s1 + $0x24] sm:$0xf]
      %v1572 = vld [vmem:[%s1 + $0x28] sm:$0xf]
      %v1573 = vld [vmem:[%s1 + $0x2c] sm:$0xf]
      %v1574 = vld [vmem:[%s1 + $0x30] sm:$0xf]
      %v1575 = vld [vmem:[%s1 + $0x34] sm:$0xf]
      %v1576 = vld [vmem:[%s1 + $0x38] sm:$0xf]
      %v1577 = vld [vmem:[%s1 + $0x3c] sm:$0xf]
      %v1578 = vld [vmem:[%s1 + $0x40] sm:$0xf]
      %v1579 = vld [vmem:[%s1 + $0x44] sm:$0xf]
      %v1580 = vld [vmem:[%s1 + $0x48] sm:$0xf]
      %v1581 = vld [vmem:[%s1 + $0x4c] sm:$0xf]
      %v1582 = vld [vmem:[%s1 + $0x50] sm:$0xf]
      %v1583 = vld [vmem:[%s1 + $0x54] sm:$0xf]
      %v1584 = vld [vmem:[%s1 + $0x58] sm:$0xf]
      %v1585 = vld [vmem:[%s1 + $0x5c] sm:$0xf]
      %v1586 = vld [vmem:[%s1 + $0x60] sm:$0xf]
      %v1587 = vld [vmem:[%s1 + $0x64] sm:$0xf]
      %v1588 = vld [vmem:[%s1 + $0x68] sm:$0xf]
      %v1589 = vld [vmem:[%s1 + $0x6c] sm:$0xf]
      %v1590 = vld [vmem:[%s1 + $0x70] sm:$0xf]
      %v1591 = vld [vmem:[%s1 + $0x74] sm:$0xf]
      %v1592 = vld [vmem:[%s1 + $0x78] sm:$0xf]
      %v1593 = vld [vmem:[%s1 + $0x7c] sm:$0xf]
      %v1594 = vld [vmem:[%s1 + $0x80] sm:$0xf]
      %v1595 = vld [vmem:[%s1 + $0x84] sm:$0xf]
      %v1596 = vld [vmem:[%s1 + $0x88] sm:$0xf]
      %v1597 = vld [vmem:[%s1 + $0x8c] sm:$0xf]
      %v1598 = vld [vmem:[%s1 + $0x90] sm:$0xf]
      %v1599 = vld [vmem:[%s1 + $0x94] sm:$0xf]
      %v1600 = vld [vmem:[%s1 + $0x98] sm:$0xf]
      %v1601 = vld [vmem:[%s1 + $0x9c] sm:$0xf]
      %v1602 = vld [vmem:[%s1 + $0xa0] sm:$0xf]
      %v1603 = vld [vmem:[%s1 + $0xa4] sm:$0xf]
      %v1604 = vld [vmem:[%s1 + $0xa8] sm:$0xf]
      %v1605 = vld [vmem:[%s1 + $0xac] sm:$0xf]
      %v1606 = vld [vmem:[%s1 + $0xb0] sm:$0xf]
      %v1607 = vld [vmem:[%s1 + $0xb4] sm:$0xf]
      %v1608 = vld [vmem:[%s1 + $0xb8] sm:$0xf]
      %v1609 = vld [vmem:[%s1 + $0xbc] sm:$0xf]
      %v1610 = vld [vmem:[%s917] sm:$0xf]
      %v1611 = vld [vmem:[%s917 + $0x4] sm:$0xf]
      %v1612 = vld [vmem:[%s917 + $0xc] sm:$0xf]
      %v1613 = vld [vmem:[%s917 + $0x10] sm:$0xf]
      %v1614 = vld [vmem:[%s917 + $0x18] sm:$0xf]
      %v1615 = vld [vmem:[%s917 + $0x1c] sm:$0xf]
      %v1616 = vld [vmem:[%s917 + $0x24] sm:$0xf]
      %v1617 = vld [vmem:[%s917 + $0x28] sm:$0xf]
      %v1618 = vld [vmem:[%s917 + $0x30] sm:$0xf]
      %v1619 = vld [vmem:[%s917 + $0x34] sm:$0xf]
      %v1620 = vld [vmem:[%s917 + $0x3c] sm:$0xf]
      %v1621 = vld [vmem:[%s917 + $0x40] sm:$0xf]
      %v1622 = vld [vmem:[%s917 + $0x48] sm:$0xf]
      %v1623 = vld [vmem:[%s917 + $0x4c] sm:$0xf]
      %v1624 = vld [vmem:[%s917 + $0x54] sm:$0xf]
      %v1625 = vld [vmem:[%s917 + $0x58] sm:$0xf]
      %v1626 = vld [vmem:[%s917 + $0x60] sm:$0xf]
      %v1627 = vld [vmem:[%s917 + $0x64] sm:$0xf]
      %v1628 = vld [vmem:[%s917 + $0x6c] sm:$0xf]
      %v1629 = vld [vmem:[%s917 + $0x70] sm:$0xf]
      %v1630 = vld [vmem:[%s917 + $0x78] sm:$0xf]
      %v1631 = vld [vmem:[%s917 + $0x7c] sm:$0xf]
      %v1632 = vld [vmem:[%s917 + $0x84] sm:$0xf]
      %v1633 = vld [vmem:[%s917 + $0x88] sm:$0xf]
      %v1634 = vld [vmem:[%s917 + $0x90] sm:$0xf]
      %v1635 = vld [vmem:[%s917 + $0x94] sm:$0xf]
      %v1636 = vld [vmem:[%s917 + $0x9c] sm:$0xf]
      %v1637 = vld [vmem:[%s917 + $0xa0] sm:$0xf]
      %v1638 = vld [vmem:[%s917 + $0xa8] sm:$0xf]
      %v1639 = vld [vmem:[%s917 + $0xac] sm:$0xf]
      %v1640 = vld [vmem:[%s917 + $0xb4] sm:$0xf]
      %v1641 = vld [vmem:[%s917 + $0xb8] sm:$0xf]
      %v1642 = vld [vmem:[%s917 + $0x8] sm:$0x1]
      %v1643 = vld [vmem:[%s917 + $0x14] sm:$0x1]
      %v1644 = vld [vmem:[%s917 + $0x20] sm:$0x1]
      %v1645 = vld [vmem:[%s917 + $0x2c] sm:$0x1]
      %v1646 = vld [vmem:[%s917 + $0x38] sm:$0x1]
      %v1647 = vld [vmem:[%s917 + $0x44] sm:$0x1]
      %v1648 = vld [vmem:[%s917 + $0x50] sm:$0x1]
      %v1649 = vld [vmem:[%s917 + $0x5c] sm:$0x1]
      %v1650 = vld [vmem:[%s917 + $0x68] sm:$0x1]
      %v1651 = vld [vmem:[%s917 + $0x74] sm:$0x1]
      %v1652 = vld [vmem:[%s917 + $0x80] sm:$0x1]
      %v1653 = vld [vmem:[%s917 + $0x8c] sm:$0x1]
      %v1654 = vld [vmem:[%s917 + $0x98] sm:$0x1]
      %v1655 = vld [vmem:[%s917 + $0xa4] sm:$0x1]
      %v1656 = vld [vmem:[%s917 + $0xb0] sm:$0x1]
      %v1657 = vld [vmem:[%s917 + $0xbc] sm:$0x1]
      %v1658 = vld [vmem:[%s917] sm:$0xe]
      %v1659 = vld [vmem:[%s917 + $0xc] sm:$0xe]
      %v1660 = vld [vmem:[%s917 + $0x18] sm:$0xe]
      %v1661 = vld [vmem:[%s917 + $0x24] sm:$0xe]
      %v1662 = vld [vmem:[%s917 + $0x30] sm:$0xe]
      %v1663 = vld [vmem:[%s917 + $0x3c] sm:$0xe]
      %v1664 = vld [vmem:[%s917 + $0x48] sm:$0xe]
      %v1665 = vld [vmem:[%s917 + $0x54] sm:$0xe]
      %v1666 = vld [vmem:[%s917 + $0x60] sm:$0xe]
      %v1667 = vld [vmem:[%s917 + $0x6c] sm:$0xe]
      %v1668 = vld [vmem:[%s917 + $0x78] sm:$0xe]
      %v1669 = vld [vmem:[%s917 + $0x84] sm:$0xe]
      %v1670 = vld [vmem:[%s917 + $0x90] sm:$0xe]
      %v1671 = vld [vmem:[%s917 + $0x9c] sm:$0xe]
      %v1672 = vld [vmem:[%s917 + $0xa8] sm:$0xe]
      %v1673 = vld [vmem:[%s917 + $0xb4] sm:$0xe]
      %v1706 = vunpack.c.l.b16 %v1610
      %v1707 = vunpack.c.l.b16 %v1611
      %v1708 = vunpack.c.l.b16 %v1612
      %v1709 = vunpack.c.l.b16 %v1613
      %v1710 = vunpack.c.l.b16 %v1614
      %v1711 = vunpack.c.l.b16 %v1615
      %v1712 = vunpack.c.l.b16 %v1616
      %v1713 = vunpack.c.l.b16 %v1617
      %v1714 = vunpack.c.l.b16 %v1618
      %v1715 = vunpack.c.l.b16 %v1619
      %v1716 = vunpack.c.l.b16 %v1620
      %v1717 = vunpack.c.l.b16 %v1621
      %v1718 = vunpack.c.l.b16 %v1622
      %v1719 = vunpack.c.l.b16 %v1623
      %v1720 = vunpack.c.l.b16 %v1624
      %v1721 = vunpack.c.l.b16 %v1625
      %v1722 = vunpack.c.l.b16 %v1626
      %v1723 = vunpack.c.l.b16 %v1627
      %v1724 = vunpack.c.l.b16 %v1628
      %v1725 = vunpack.c.l.b16 %v1629
      %v1726 = vunpack.c.l.b16 %v1630
      %v1727 = vunpack.c.l.b16 %v1631
      %v1728 = vunpack.c.l.b16 %v1632
      %v1729 = vunpack.c.l.b16 %v1633
      %v1730 = vunpack.c.l.b16 %v1634
      %v1731 = vunpack.c.l.b16 %v1635
      %v1732 = vunpack.c.l.b16 %v1636
      %v1733 = vunpack.c.l.b16 %v1637
      %v1734 = vunpack.c.l.b16 %v1638
      %v1735 = vunpack.c.l.b16 %v1639
      %v1736 = vunpack.c.l.b16 %v1640
      %v1737 = vunpack.c.l.b16 %v1641
      %v1738 = vpack.c.b16 %v1707, %v1706
      %v1739 = vpack.c.b16 %v1709, %v1708
      %v1740 = vpack.c.b16 %v1711, %v1710
      %v1741 = vpack.c.b16 %v1713, %v1712
      %v1742 = vpack.c.b16 %v1715, %v1714
      %v1743 = vpack.c.b16 %v1717, %v1716
      %v1744 = vpack.c.b16 %v1719, %v1718
      %v1745 = vpack.c.b16 %v1721, %v1720
      %v1746 = vpack.c.b16 %v1723, %v1722
      %v1747 = vpack.c.b16 %v1725, %v1724
      %v1748 = vpack.c.b16 %v1727, %v1726
      %v1749 = vpack.c.b16 %v1729, %v1728
      %v1750 = vpack.c.b16 %v1731, %v1730
      %v1751 = vpack.c.b16 %v1733, %v1732
      %v1752 = vpack.c.b16 %v1735, %v1734
      %v1753 = vpack.c.b16 %v1737, %v1736
      %v1786 = vunpack.c.l.b16 %v1642
      %v1787 = vunpack.c.l.b16 %v1643
      %v1788 = vunpack.c.l.b16 %v1644
      %v1789 = vunpack.c.l.b16 %v1645
      %v1790 = vunpack.c.l.b16 %v1646
      %v1791 = vunpack.c.l.b16 %v1647
      %v1792 = vunpack.c.l.b16 %v1648
      %v1793 = vunpack.c.l.b16 %v1649
      %v1794 = vunpack.c.l.b16 %v1650
      %v1795 = vunpack.c.l.b16 %v1651
      %v1796 = vunpack.c.l.b16 %v1652
      %v1797 = vunpack.c.l.b16 %v1653
      %v1798 = vunpack.c.l.b16 %v1654
      %v1799 = vunpack.c.l.b16 %v1655
      %v1800 = vunpack.c.l.b16 %v1656
      %v1801 = vunpack.c.l.b16 %v1657
      %v1802 = vpack.c.b16 %v1786, %v1786
      %v1803 = vpack.c.b16 %v1787, %v1787
      %v1804 = vpack.c.b16 %v1788, %v1788
      %v1805 = vpack.c.b16 %v1789, %v1789
      %v1806 = vpack.c.b16 %v1790, %v1790
      %v1807 = vpack.c.b16 %v1791, %v1791
      %v1808 = vpack.c.b16 %v1792, %v1792
      %v1809 = vpack.c.b16 %v1793, %v1793
      %v1810 = vpack.c.b16 %v1794, %v1794
      %v1811 = vpack.c.b16 %v1795, %v1795
      %v1812 = vpack.c.b16 %v1796, %v1796
      %v1813 = vpack.c.b16 %v1797, %v1797
      %v1814 = vpack.c.b16 %v1798, %v1798
      %v1815 = vpack.c.b16 %v1799, %v1799
      %v1816 = vpack.c.b16 %v1800, %v1800
      %v1817 = vpack.c.b16 %v1801, %v1801
      %v1819 = vshrl.u32 %v1738, 16
      %v1821 = vshll.u32 %v1738, 16
      %v1823 = vrot.slane %v1821, 1
      %v1824 = vor.u32 %v1819, %v1823
      %v1826 = vshll.u32 %v1802, 16
      %v1828 = vrot.slane %v1826, 1
      %v1829 = vsel %vm1240, %v1824, %v1828
      %v1831 = vshrl.u32 %v1739, 16
      %v1833 = vshll.u32 %v1739, 16
      %v1835 = vrot.slane %v1833, 1
      %v1836 = vor.u32 %v1831, %v1835
      %v1838 = vshll.u32 %v1803, 16
      %v1840 = vrot.slane %v1838, 1
      %v1841 = vsel %vm1240, %v1836, %v1840
      %v1843 = vshrl.u32 %v1740, 16
      %v1845 = vshll.u32 %v1740, 16
      %v1847 = vrot.slane %v1845, 1
      %v1848 = vor.u32 %v1843, %v1847
      %v1850 = vshll.u32 %v1804, 16
      %v1852 = vrot.slane %v1850, 1
      %v1853 = vsel %vm1240, %v1848, %v1852
      %v1855 = vshrl.u32 %v1741, 16
      %v1857 = vshll.u32 %v1741, 16
      %v1859 = vrot.slane %v1857, 1
      %v1860 = vor.u32 %v1855, %v1859
      %v1862 = vshll.u32 %v1805, 16
      %v1864 = vrot.slane %v1862, 1
      %v1865 = vsel %vm1240, %v1860, %v1864
      %v1867 = vshrl.u32 %v1742, 16
      %v1869 = vshll.u32 %v1742, 16
      %v1871 = vrot.slane %v1869, 1
      %v1872 = vor.u32 %v1867, %v1871
      %v1874 = vshll.u32 %v1806, 16
      %v1876 = vrot.slane %v1874, 1
      %v1877 = vsel %vm1240, %v1872, %v1876
      %v1879 = vshrl.u32 %v1743, 16
      %v1881 = vshll.u32 %v1743, 16
      %v1883 = vrot.slane %v1881, 1
      %v1884 = vor.u32 %v1879, %v1883
      %v1886 = vshll.u32 %v1807, 16
      %v1888 = vrot.slane %v1886, 1
      %v1889 = vsel %vm1240, %v1884, %v1888
      %v1891 = vshrl.u32 %v1744, 16
      %v1893 = vshll.u32 %v1744, 16
      %v1895 = vrot.slane %v1893, 1
      %v1896 = vor.u32 %v1891, %v1895
      %v1898 = vshll.u32 %v1808, 16
      %v1900 = vrot.slane %v1898, 1
      %v1901 = vsel %vm1240, %v1896, %v1900
      %v1903 = vshrl.u32 %v1745, 16
      %v1905 = vshll.u32 %v1745, 16
      %v1907 = vrot.slane %v1905, 1
      %v1908 = vor.u32 %v1903, %v1907
      %v1910 = vshll.u32 %v1809, 16
      %v1912 = vrot.slane %v1910, 1
      %v1913 = vsel %vm1240, %v1908, %v1912
      %v1915 = vshrl.u32 %v1746, 16
      %v1917 = vshll.u32 %v1746, 16
      %v1919 = vrot.slane %v1917, 1
      %v1920 = vor.u32 %v1915, %v1919
      %v1922 = vshll.u32 %v1810, 16
      %v1924 = vrot.slane %v1922, 1
      %v1925 = vsel %vm1240, %v1920, %v1924
      %v1927 = vshrl.u32 %v1747, 16
      %v1929 = vshll.u32 %v1747, 16
      %v1931 = vrot.slane %v1929, 1
      %v1932 = vor.u32 %v1927, %v1931
      %v1934 = vshll.u32 %v1811, 16
      %v1936 = vrot.slane %v1934, 1
      %v1937 = vsel %vm1240, %v1932, %v1936
      %v1939 = vshrl.u32 %v1748, 16
      %v1941 = vshll.u32 %v1748, 16
      %v1943 = vrot.slane %v1941, 1
      %v1944 = vor.u32 %v1939, %v1943
      %v1946 = vshll.u32 %v1812, 16
      %v1948 = vrot.slane %v1946, 1
      %v1949 = vsel %vm1240, %v1944, %v1948
      %v1951 = vshrl.u32 %v1749, 16
      %v1953 = vshll.u32 %v1749, 16
      %v1955 = vrot.slane %v1953, 1
      %v1956 = vor.u32 %v1951, %v1955
      %v1958 = vshll.u32 %v1813, 16
      %v1960 = vrot.slane %v1958, 1
      %v1961 = vsel %vm1240, %v1956, %v1960
      %v1963 = vshrl.u32 %v1750, 16
      %v1965 = vshll.u32 %v1750, 16
      %v1967 = vrot.slane %v1965, 1
      %v1968 = vor.u32 %v1963, %v1967
      %v1970 = vshll.u32 %v1814, 16
      %v1972 = vrot.slane %v1970, 1
      %v1973 = vsel %vm1240, %v1968, %v1972
      %v1975 = vshrl.u32 %v1751, 16
      %v1977 = vshll.u32 %v1751, 16
      %v1979 = vrot.slane %v1977, 1
      %v1980 = vor.u32 %v1975, %v1979
      %v1982 = vshll.u32 %v1815, 16
      %v1984 = vrot.slane %v1982, 1
      %v1985 = vsel %vm1240, %v1980, %v1984
      %v1987 = vshrl.u32 %v1752, 16
      %v1989 = vshll.u32 %v1752, 16
      %v1991 = vrot.slane %v1989, 1
      %v1992 = vor.u32 %v1987, %v1991
      %v1994 = vshll.u32 %v1816, 16
      %v1996 = vrot.slane %v1994, 1
      %v1997 = vsel %vm1240, %v1992, %v1996
      %v1999 = vshrl.u32 %v1753, 16
      %v2001 = vshll.u32 %v1753, 16
      %v2003 = vrot.slane %v2001, 1
      %v2004 = vor.u32 %v1999, %v2003
      %v2006 = vshll.u32 %v1817, 16
      %v2008 = vrot.slane %v2006, 1
      %v2009 = vsel %vm1240, %v2004, %v2008
      %v2042 = vunpack.c.l.b16 %v1658
      %v2043 = vunpack.c.l.b16 %v1659
      %v2044 = vunpack.c.l.b16 %v1660
      %v2045 = vunpack.c.l.b16 %v1661
      %v2046 = vunpack.c.l.b16 %v1662
      %v2047 = vunpack.c.l.b16 %v1663
      %v2048 = vunpack.c.l.b16 %v1664
      %v2049 = vunpack.c.l.b16 %v1665
      %v2050 = vunpack.c.l.b16 %v1666
      %v2051 = vunpack.c.l.b16 %v1667
      %v2052 = vunpack.c.l.b16 %v1668
      %v2053 = vunpack.c.l.b16 %v1669
      %v2054 = vunpack.c.l.b16 %v1670
      %v2055 = vunpack.c.l.b16 %v1671
      %v2056 = vunpack.c.l.b16 %v1672
      %v2057 = vunpack.c.l.b16 %v1673
      %v2058 = vpack.c.b16 %v1707, %v2042
      %v2059 = vpack.c.b16 %v1709, %v2043
      %v2060 = vpack.c.b16 %v1711, %v2044
      %v2061 = vpack.c.b16 %v1713, %v2045
      %v2062 = vpack.c.b16 %v1715, %v2046
      %v2063 = vpack.c.b16 %v1717, %v2047
      %v2064 = vpack.c.b16 %v1719, %v2048
      %v2065 = vpack.c.b16 %v1721, %v2049
      %v2066 = vpack.c.b16 %v1723, %v2050
      %v2067 = vpack.c.b16 %v1725, %v2051
      %v2068 = vpack.c.b16 %v1727, %v2052
      %v2069 = vpack.c.b16 %v1729, %v2053
      %v2070 = vpack.c.b16 %v1731, %v2054
      %v2071 = vpack.c.b16 %v1733, %v2055
      %v2072 = vpack.c.b16 %v1735, %v2056
      %v2073 = vpack.c.b16 %v1737, %v2057
      %v2074 = vrot.slane %v2058, 1
      %v2075 = vrot.slane %v1802, 1
      %v2076 = vsel %vm1497, %v2074, %v2075
      %v2077 = vrot.slane %v2059, 1
      %v2078 = vrot.slane %v1803, 1
      %v2079 = vsel %vm1497, %v2077, %v2078
      %v2080 = vrot.slane %v2060, 1
      %v2081 = vrot.slane %v1804, 1
      %v2082 = vsel %vm1497, %v2080, %v2081
      %v2083 = vrot.slane %v2061, 1
      %v2084 = vrot.slane %v1805, 1
      %v2085 = vsel %vm1497, %v2083, %v2084
      %v2086 = vrot.slane %v2062, 1
      %v2087 = vrot.slane %v1806, 1
      %v2088 = vsel %vm1497, %v2086, %v2087
      %v2089 = vrot.slane %v2063, 1
      %v2090 = vrot.slane %v1807, 1
      %v2091 = vsel %vm1497, %v2089, %v2090
      %v2092 = vrot.slane %v2064, 1
      %v2093 = vrot.slane %v1808, 1
      %v2094 = vsel %vm1497, %v2092, %v2093
      %v2095 = vrot.slane %v2065, 1
      %v2096 = vrot.slane %v1809, 1
      %v2097 = vsel %vm1497, %v2095, %v2096
      %v2098 = vrot.slane %v2066, 1
      %v2099 = vrot.slane %v1810, 1
      %v2100 = vsel %vm1497, %v2098, %v2099
      %v2101 = vrot.slane %v2067, 1
      %v2102 = vrot.slane %v1811, 1
      %v2103 = vsel %vm1497, %v2101, %v2102
      %v2104 = vrot.slane %v2068, 1
      %v2105 = vrot.slane %v1812, 1
      %v2106 = vsel %vm1497, %v2104, %v2105
      %v2107 = vrot.slane %v2069, 1
      %v2108 = vrot.slane %v1813, 1
      %v2109 = vsel %vm1497, %v2107, %v2108
      %v2110 = vrot.slane %v2070, 1
      %v2111 = vrot.slane %v1814, 1
      %v2112 = vsel %vm1497, %v2110, %v2111
      %v2113 = vrot.slane %v2071, 1
      %v2114 = vrot.slane %v1815, 1
      %v2115 = vsel %vm1497, %v2113, %v2114
      %v2116 = vrot.slane %v2072, 1
      %v2117 = vrot.slane %v1816, 1
      %v2118 = vsel %vm1497, %v2116, %v2117
      %v2119 = vrot.slane %v2073, 1
      %v2120 = vrot.slane %v1817, 1
      %v2121 = vsel %vm1497, %v2119, %v2120
      %s2138 = scalar_lea.vmem %s1, 192
      %v2139 = vld [vmem:[%s2138] sm:$0xf]
      %v2140 = vld [vmem:[%s2138 + $0x4] sm:$0xf]
      %v2141 = vld [vmem:[%s2138 + $0x8] sm:$0xf]
      %v2142 = vld [vmem:[%s2138 + $0xc] sm:$0xf]
      %v2143 = vld [vmem:[%s2138 + $0x10] sm:$0xf]
      %v2144 = vld [vmem:[%s2138 + $0x14] sm:$0xf]
      %v2145 = vld [vmem:[%s2138 + $0x18] sm:$0xf]
      %v2146 = vld [vmem:[%s2138 + $0x1c] sm:$0xf]
      %v2147 = vld [vmem:[%s2138 + $0x20] sm:$0xf]
      %v2148 = vld [vmem:[%s2138 + $0x24] sm:$0xf]
      %v2149 = vld [vmem:[%s2138 + $0x28] sm:$0xf]
      %v2150 = vld [vmem:[%s2138 + $0x2c] sm:$0xf]
      %v2151 = vld [vmem:[%s2138 + $0x30] sm:$0xf]
      %v2152 = vld [vmem:[%s2138 + $0x34] sm:$0xf]
      %v2153 = vld [vmem:[%s2138 + $0x38] sm:$0xf]
      %v2154 = vld [vmem:[%s2138 + $0x3c] sm:$0xf]
      %v2155 = vld [vmem:[%s2138 + $0x40] sm:$0xf]
      %v2156 = vld [vmem:[%s2138 + $0x44] sm:$0xf]
      %v2157 = vld [vmem:[%s2138 + $0x48] sm:$0xf]
      %v2158 = vld [vmem:[%s2138 + $0x4c] sm:$0xf]
      %v2159 = vld [vmem:[%s2138 + $0x50] sm:$0xf]
      %v2160 = vld [vmem:[%s2138 + $0x54] sm:$0xf]
      %v2161 = vld [vmem:[%s2138 + $0x58] sm:$0xf]
      %v2162 = vld [vmem:[%s2138 + $0x5c] sm:$0xf]
      %v2163 = vld [vmem:[%s2138 + $0x60] sm:$0xf]
      %v2164 = vld [vmem:[%s2138 + $0x64] sm:$0xf]
      %v2165 = vld [vmem:[%s2138 + $0x68] sm:$0xf]
      %v2166 = vld [vmem:[%s2138 + $0x6c] sm:$0xf]
      %v2167 = vld [vmem:[%s2138 + $0x70] sm:$0xf]
      %v2168 = vld [vmem:[%s2138 + $0x74] sm:$0xf]
      %v2169 = vld [vmem:[%s2138 + $0x78] sm:$0xf]
      %v2170 = vld [vmem:[%s2138 + $0x7c] sm:$0xf]
      %v2171 = vld [vmem:[%s2138 + $0x80] sm:$0xf]
      %v2172 = vld [vmem:[%s2138 + $0x84] sm:$0xf]
      %v2173 = vld [vmem:[%s2138 + $0x88] sm:$0xf]
      %v2174 = vld [vmem:[%s2138 + $0x8c] sm:$0xf]
      %v2175 = vld [vmem:[%s2138 + $0x90] sm:$0xf]
      %v2176 = vld [vmem:[%s2138 + $0x94] sm:$0xf]
      %v2177 = vld [vmem:[%s2138 + $0x98] sm:$0xf]
      %v2178 = vld [vmem:[%s2138 + $0x9c] sm:$0xf]
      %v2179 = vld [vmem:[%s2138 + $0xa0] sm:$0xf]
      %v2180 = vld [vmem:[%s2138 + $0xa4] sm:$0xf]
      %v2181 = vld [vmem:[%s2138 + $0xa8] sm:$0xf]
      %v2182 = vld [vmem:[%s2138 + $0xac] sm:$0xf]
      %v2183 = vld [vmem:[%s2138 + $0xb0] sm:$0xf]
      %v2184 = vld [vmem:[%s2138 + $0xb4] sm:$0xf]
      %v2185 = vld [vmem:[%s2138 + $0xb8] sm:$0xf]
      %v2186 = vld [vmem:[%s2138 + $0xbc] sm:$0xf]
      %v2235 = vunpack.c.l.b16 %v2139
      %v2236 = vunpack.c.l.b16 %v2140
      %v2237 = vunpack.c.l.b16 %v2141
      %v2238 = vunpack.c.l.b16 %v2142
      %v2239 = vunpack.c.l.b16 %v2143
      %v2240 = vunpack.c.l.b16 %v2144
      %v2241 = vunpack.c.l.b16 %v2145
      %v2242 = vunpack.c.l.b16 %v2146
      %v2243 = vunpack.c.l.b16 %v2147
      %v2244 = vunpack.c.l.b16 %v2148
      %v2245 = vunpack.c.l.b16 %v2149
      %v2246 = vunpack.c.l.b16 %v2150
      %v2247 = vunpack.c.l.b16 %v2151
      %v2248 = vunpack.c.l.b16 %v2152
      %v2249 = vunpack.c.l.b16 %v2153
      %v2250 = vunpack.c.l.b16 %v2154
      %v2251 = vunpack.c.l.b16 %v2155
      %v2252 = vunpack.c.l.b16 %v2156
      %v2253 = vunpack.c.l.b16 %v2157
      %v2254 = vunpack.c.l.b16 %v2158
      %v2255 = vunpack.c.l.b16 %v2159
      %v2256 = vunpack.c.l.b16 %v2160
      %v2257 = vunpack.c.l.b16 %v2161
      %v2258 = vunpack.c.l.b16 %v2162
      %v2259 = vunpack.c.l.b16 %v2163
      %v2260 = vunpack.c.l.b16 %v2164
      %v2261 = vunpack.c.l.b16 %v2165
      %v2262 = vunpack.c.l.b16 %v2166
      %v2263 = vunpack.c.l.b16 %v2167
      %v2264 = vunpack.c.l.b16 %v2168
      %v2265 = vunpack.c.l.b16 %v2169
      %v2266 = vunpack.c.l.b16 %v2170
      %v2267 = vunpack.c.l.b16 %v2171
      %v2268 = vunpack.c.l.b16 %v2172
      %v2269 = vunpack.c.l.b16 %v2173
      %v2270 = vunpack.c.l.b16 %v2174
      %v2271 = vunpack.c.l.b16 %v2175
      %v2272 = vunpack.c.l.b16 %v2176
      %v2273 = vunpack.c.l.b16 %v2177
      %v2274 = vunpack.c.l.b16 %v2178
      %v2275 = vunpack.c.l.b16 %v2179
      %v2276 = vunpack.c.l.b16 %v2180
      %v2277 = vunpack.c.l.b16 %v2181
      %v2278 = vunpack.c.l.b16 %v2182
      %v2279 = vunpack.c.l.b16 %v2183
      %v2280 = vunpack.c.l.b16 %v2184
      %v2281 = vunpack.c.l.b16 %v2185
      %v2282 = vunpack.c.l.b16 %v2186
      %v2283 = vpack.c.b16 %v2236, %v2235
      %v2284 = vpack.c.b16 %v2238, %v2237
      %v2285 = vpack.c.b16 %v2240, %v2239
      %v2286 = vpack.c.b16 %v2242, %v2241
      %v2287 = vpack.c.b16 %v2244, %v2243
      %v2288 = vpack.c.b16 %v2246, %v2245
      %v2289 = vpack.c.b16 %v2248, %v2247
      %v2290 = vpack.c.b16 %v2250, %v2249
      %v2291 = vpack.c.b16 %v2252, %v2251
      %v2292 = vpack.c.b16 %v2254, %v2253
      %v2293 = vpack.c.b16 %v2256, %v2255
      %v2294 = vpack.c.b16 %v2258, %v2257
      %v2295 = vpack.c.b16 %v2260, %v2259
      %v2296 = vpack.c.b16 %v2262, %v2261
      %v2297 = vpack.c.b16 %v2264, %v2263
      %v2298 = vpack.c.b16 %v2266, %v2265
      %v2299 = vpack.c.b16 %v2268, %v2267
      %v2300 = vpack.c.b16 %v2270, %v2269
      %v2301 = vpack.c.b16 %v2272, %v2271
      %v2302 = vpack.c.b16 %v2274, %v2273
      %v2303 = vpack.c.b16 %v2276, %v2275
      %v2304 = vpack.c.b16 %v2278, %v2277
      %v2305 = vpack.c.b16 %v2280, %v2279
      %v2306 = vpack.c.b16 %v2282, %v2281
      %2331 = vmatprep.subr.bf16.mxu0 0
      %2332 = vmatpush1.bf16.msra.mxu0 %v2290
      %2333 = vmatprep.subr.bf16.mxu0 0
      %2334 = vmatpush1.bf16.msra.mxu0 %v2289
      %2335 = vmatprep.subr.bf16.mxu0 0
      %2336 = vmatpush1.bf16.msra.mxu0 %v2288
      %2337 = vmatprep.subr.bf16.mxu0 0
      %2338 = vmatpush1.bf16.msra.mxu0 %v2287
      %2339 = vmatprep.subr.bf16.mxu0 0
      %2340 = vmatpush1.bf16.msra.mxu0 %v2286
      %2341 = vmatprep.subr.bf16.mxu0 0
      %2342 = vmatpush1.bf16.msra.mxu0 %v2285
      %2343 = vmatprep.subr.bf16.mxu0 0
      %2344 = vmatpush1.bf16.msra.mxu0 %v2284
      %2345 = vmatprep.subr.bf16.mxu0 0
      %2346 = vmatpush1.bf16.msra.mxu0 %v2283
      %2347 = vmatprep.subr.bf16.mxu0 0
      %2348 = vmatpush2.bf16.msra.mxu0 %v2298
      %2349 = vmatprep.subr.bf16.mxu0 0
      %2350 = vmatpush2.bf16.msra.mxu0 %v2297
      %2351 = vmatprep.subr.bf16.mxu0 0
      %2352 = vmatpush2.bf16.msra.mxu0 %v2296
      %2353 = vmatprep.subr.bf16.mxu0 0
      %2354 = vmatpush2.bf16.msra.mxu0 %v2295
      %2355 = vmatprep.subr.bf16.mxu0 0
      %2356 = vmatpush2.bf16.msra.mxu0 %v2294
      %2357 = vmatprep.subr.bf16.mxu0 0
      %2358 = vmatpush2.bf16.msra.mxu0 %v2293
      %2359 = vmatprep.subr.bf16.mxu0 0
      %2360 = vmatpush2.bf16.msra.mxu0 %v2292
      %2361 = vmatprep.subr.bf16.mxu0 0
      %2362 = vmatpush2.bf16.msra.mxu0 %v2291
      %2363 = vmatprep.mubr.bf16.mxu0 %v1829
      %2364 = vmatmul.mubr.bf16.gmra.mxu0 %v1738
      %v2365 = vpop.f32.mrf.mxu0
      %v2366 = vadd.f32 0.0, %v2365
      %v2367 = vpop.f32.mrf.mxu0
      %v2368 = vpop.f32.mrf.mxu0
      %v2369 = vadd.f32 0.0, %v2368
      %v2370 = vpop.f32.mrf.mxu0
      %2371 = vmatprep.mubr.bf16.mxu0 %v1841
      %2372 = vmatmul.mubr.bf16.gmra.mxu0 %v1739
      %v2373 = vpop.f32.mrf.mxu0
      %v2374 = vadd.f32 0.0, %v2373
      %v2375 = vpop.f32.mrf.mxu0
      %v2376 = vpop.f32.mrf.mxu0
      %v2377 = vadd.f32 0.0, %v2376
      %v2378 = vpop.f32.mrf.mxu0
      %2379 = vmatprep.mubr.bf16.mxu0 %v1853
      %2380 = vmatmul.mubr.bf16.gmra.mxu0 %v1740
      %v2381 = vpop.f32.mrf.mxu0
      %v2382 = vadd.f32 0.0, %v2381
      %v2383 = vpop.f32.mrf.mxu0
      %v2384 = vpop.f32.mrf.mxu0
      %v2385 = vadd.f32 0.0, %v2384
      %v2386 = vpop.f32.mrf.mxu0
      %2387 = vmatprep.mubr.bf16.mxu0 %v1865
      %2388 = vmatmul.mubr.bf16.gmra.mxu0 %v1741
      %v2389 = vpop.f32.mrf.mxu0
      %v2390 = vadd.f32 0.0, %v2389
      %v2391 = vpop.f32.mrf.mxu0
      %v2392 = vpop.f32.mrf.mxu0
      %v2393 = vadd.f32 0.0, %v2392
      %v2394 = vpop.f32.mrf.mxu0
      %2395 = vmatprep.mubr.bf16.mxu0 %v1877
      %2396 = vmatmul.mubr.bf16.gmra.mxu0 %v1742
      %v2397 = vpop.f32.mrf.mxu0
      %v2398 = vadd.f32 0.0, %v2397
      %v2399 = vpop.f32.mrf.mxu0
      %v2400 = vpop.f32.mrf.mxu0
      %v2401 = vadd.f32 0.0, %v2400
      %v2402 = vpop.f32.mrf.mxu0
      %2403 = vmatprep.mubr.bf16.mxu0 %v1889
      %2404 = vmatmul.mubr.bf16.gmra.mxu0 %v1743
      %v2405 = vpop.f32.mrf.mxu0
      %v2406 = vadd.f32 0.0, %v2405
      %v2407 = vpop.f32.mrf.mxu0
      %v2408 = vpop.f32.mrf.mxu0
      %v2409 = vadd.f32 0.0, %v2408
      %v2410 = vpop.f32.mrf.mxu0
      %2411 = vmatprep.mubr.bf16.mxu0 %v1901
      %2412 = vmatmul.mubr.bf16.gmra.mxu0 %v1744
      %v2413 = vpop.f32.mrf.mxu0
      %v2414 = vadd.f32 0.0, %v2413
      %v2415 = vpop.f32.mrf.mxu0
      %v2416 = vpop.f32.mrf.mxu0
      %v2417 = vadd.f32 0.0, %v2416
      %v2418 = vpop.f32.mrf.mxu0
      %2419 = vmatprep.mubr.bf16.mxu0 %v1913
      %2420 = vmatmul.mubr.bf16.gmra.mxu0 %v1745
      %v2421 = vpop.f32.mrf.mxu0
      %v2422 = vadd.f32 0.0, %v2421
      %v2423 = vpop.f32.mrf.mxu0
      %v2424 = vpop.f32.mrf.mxu0
      %v2425 = vadd.f32 0.0, %v2424
      %v2426 = vpop.f32.mrf.mxu0
      %2427 = vmatprep.mubr.bf16.mxu0 %v1925
      %2428 = vmatmul.mubr.bf16.gmra.mxu0 %v1746
      %v2429 = vpop.f32.mrf.mxu0
      %v2430 = vadd.f32 0.0, %v2429
      %v2431 = vpop.f32.mrf.mxu0
      %v2432 = vpop.f32.mrf.mxu0
      %v2433 = vadd.f32 0.0, %v2432
      %v2434 = vpop.f32.mrf.mxu0
      %2435 = vmatprep.mubr.bf16.mxu0 %v1937
      %2436 = vmatmul.mubr.bf16.gmra.mxu0 %v1747
      %v2437 = vpop.f32.mrf.mxu0
      %v2438 = vadd.f32 0.0, %v2437
      %v2439 = vpop.f32.mrf.mxu0
      %v2440 = vpop.f32.mrf.mxu0
      %v2441 = vadd.f32 0.0, %v2440
      %v2442 = vpop.f32.mrf.mxu0
      %2443 = vmatprep.mubr.bf16.mxu0 %v1949
      %2444 = vmatmul.mubr.bf16.gmra.mxu0 %v1748
      %v2445 = vpop.f32.mrf.mxu0
      %v2446 = vadd.f32 0.0, %v2445
      %v2447 = vpop.f32.mrf.mxu0
      %v2448 = vpop.f32.mrf.mxu0
      %v2449 = vadd.f32 0.0, %v2448
      %v2450 = vpop.f32.mrf.mxu0
      %2451 = vmatprep.mubr.bf16.mxu0 %v1961
      %2452 = vmatmul.mubr.bf16.gmra.mxu0 %v1749
      %v2453 = vpop.f32.mrf.mxu0
      %v2454 = vadd.f32 0.0, %v2453
      %v2455 = vpop.f32.mrf.mxu0
      %v2456 = vpop.f32.mrf.mxu0
      %v2457 = vadd.f32 0.0, %v2456
      %v2458 = vpop.f32.mrf.mxu0
      %2459 = vmatprep.mubr.bf16.mxu0 %v1973
      %2460 = vmatmul.mubr.bf16.gmra.mxu0 %v1750
      %v2461 = vpop.f32.mrf.mxu0
      %v2462 = vadd.f32 0.0, %v2461
      %v2463 = vpop.f32.mrf.mxu0
      %v2464 = vpop.f32.mrf.mxu0
      %v2465 = vadd.f32 0.0, %v2464
      %v2466 = vpop.f32.mrf.mxu0
      %2467 = vmatprep.mubr.bf16.mxu0 %v1985
      %2468 = vmatmul.mubr.bf16.gmra.mxu0 %v1751
      %v2469 = vpop.f32.mrf.mxu0
      %v2470 = vadd.f32 0.0, %v2469
      %v2471 = vpop.f32.mrf.mxu0
      %v2472 = vpop.f32.mrf.mxu0
      %v2473 = vadd.f32 0.0, %v2472
      %v2474 = vpop.f32.mrf.mxu0
      %2475 = vmatprep.mubr.bf16.mxu0 %v1997
      %2476 = vmatmul.mubr.bf16.gmra.mxu0 %v1752
      %v2477 = vpop.f32.mrf.mxu0
      %v2478 = vadd.f32 0.0, %v2477
      %v2479 = vpop.f32.mrf.mxu0
      %v2480 = vpop.f32.mrf.mxu0
      %v2481 = vadd.f32 0.0, %v2480
      %v2482 = vpop.f32.mrf.mxu0
      %2483 = vmatprep.mubr.bf16.mxu0 %v2009
      %2484 = vmatmul.mubr.bf16.gmra.mxu0 %v1753
      %v2485 = vpop.f32.mrf.mxu0
      %v2486 = vadd.f32 0.0, %v2485
      %v2487 = vpop.f32.mrf.mxu0
      %v2488 = vpop.f32.mrf.mxu0
      %v2489 = vadd.f32 0.0, %v2488
      %v2490 = vpop.f32.mrf.mxu0
      %2491 = vdwg.mxu0
      %2492 = vmatprep.subr.bf16.mxu0 0
      %2493 = vmatpush1.bf16.msra.mxu0 %v2306
      %2494 = vmatprep.subr.bf16.mxu0 0
      %2495 = vmatpush1.bf16.msra.mxu0 %v2305
      %2496 = vmatprep.subr.bf16.mxu0 0
      %2497 = vmatpush1.bf16.msra.mxu0 %v2304
      %2498 = vmatprep.subr.bf16.mxu0 0
      %2499 = vmatpush1.bf16.msra.mxu0 %v2303
      %2500 = vmatprep.subr.bf16.mxu0 0
      %2501 = vmatpush1.bf16.msra.mxu0 %v2302
      %2502 = vmatprep.subr.bf16.mxu0 0
      %2503 = vmatpush1.bf16.msra.mxu0 %v2301
      %2504 = vmatprep.subr.bf16.mxu0 0
      %2505 = vmatpush1.bf16.msra.mxu0 %v2300
      %2506 = vmatprep.subr.bf16.mxu0 0
      %2507 = vmatpush1.bf16.msra.mxu0 %v2299
      %2508 = vmatprep.subr.bf16.mxu0 0
      %2509 = vmatpush2.bf16.msra.mxu0 0
      %2510 = vmatprep.subr.bf16.mxu0 0
      %2511 = vmatpush2.bf16.msra.mxu0 0
      %2512 = vmatprep.subr.bf16.mxu0 0
      %2513 = vmatpush2.bf16.msra.mxu0 0
      %2514 = vmatprep.subr.bf16.mxu0 0
      %2515 = vmatpush2.bf16.msra.mxu0 0
      %2516 = vmatprep.subr.bf16.mxu0 0
      %2517 = vmatpush2.bf16.msra.mxu0 0
      %2518 = vmatprep.subr.bf16.mxu0 0
      %2519 = vmatpush2.bf16.msra.mxu0 0
      %2520 = vmatprep.subr.bf16.mxu0 0
      %2521 = vmatpush2.bf16.msra.mxu0 0
      %2522 = vmatprep.subr.bf16.mxu0 0
      %2523 = vmatpush2.bf16.msra.mxu0 0
      %2524 = vmatprep.mubr.bf16.mxu0 0
      %2525 = vmatmul.mubr.bf16.gmra.mxu0 %v2076
      %v2526 = vpop.f32.mrf.mxu0
      %v2527 = vadd.f32 %v2366, %v2526
      %v2528 = vpop.f32.mrf.mxu0
      %v2529 = vpop.f32.mrf.mxu0
      %v2530 = vadd.f32 %v2369, %v2529
      %v2531 = vpop.f32.mrf.mxu0
      %2532 = vmatprep.mubr.bf16.mxu0 0
      %2533 = vmatmul.mubr.bf16.gmra.mxu0 %v2079
      %v2534 = vpop.f32.mrf.mxu0
      %v2535 = vadd.f32 %v2374, %v2534
      %v2536 = vpop.f32.mrf.mxu0
      %v2537 = vpop.f32.mrf.mxu0
      %v2538 = vadd.f32 %v2377, %v2537
      %v2539 = vpop.f32.mrf.mxu0
      %2540 = vmatprep.mubr.bf16.mxu0 0
      %2541 = vmatmul.mubr.bf16.gmra.mxu0 %v2082
      %v2542 = vpop.f32.mrf.mxu0
      %v2543 = vadd.f32 %v2382, %v2542
      %v2544 = vpop.f32.mrf.mxu0
      %v2545 = vpop.f32.mrf.mxu0
      %v2546 = vadd.f32 %v2385, %v2545
      %v2547 = vpop.f32.mrf.mxu0
      %2548 = vmatprep.mubr.bf16.mxu0 0
      %2549 = vmatmul.mubr.bf16.gmra.mxu0 %v2085
      %v2550 = vpop.f32.mrf.mxu0
      %v2551 = vadd.f32 %v2390, %v2550
      %v2552 = vpop.f32.mrf.mxu0
      %v2553 = vpop.f32.mrf.mxu0
      %v2554 = vadd.f32 %v2393, %v2553
      %v2555 = vpop.f32.mrf.mxu0
      %2556 = vmatprep.mubr.bf16.mxu0 0
      %2557 = vmatmul.mubr.bf16.gmra.mxu0 %v2088
      %v2558 = vpop.f32.mrf.mxu0
      %v2559 = vadd.f32 %v2398, %v2558
      %v2560 = vpop.f32.mrf.mxu0
      %v2561 = vpop.f32.mrf.mxu0
      %v2562 = vadd.f32 %v2401, %v2561
      %v2563 = vpop.f32.mrf.mxu0
      %2564 = vmatprep.mubr.bf16.mxu0 0
      %2565 = vmatmul.mubr.bf16.gmra.mxu0 %v2091
      %v2566 = vpop.f32.mrf.mxu0
      %v2567 = vadd.f32 %v2406, %v2566
      %v2568 = vpop.f32.mrf.mxu0
      %v2569 = vpop.f32.mrf.mxu0
      %v2570 = vadd.f32 %v2409, %v2569
      %v2571 = vpop.f32.mrf.mxu0
      %2572 = vmatprep.mubr.bf16.mxu0 0
      %2573 = vmatmul.mubr.bf16.gmra.mxu0 %v2094
      %v2574 = vpop.f32.mrf.mxu0
      %v2575 = vadd.f32 %v2414, %v2574
      %v2576 = vpop.f32.mrf.mxu0
      %v2577 = vpop.f32.mrf.mxu0
      %v2578 = vadd.f32 %v2417, %v2577
      %v2579 = vpop.f32.mrf.mxu0
      %2580 = vmatprep.mubr.bf16.mxu0 0
      %2581 = vmatmul.mubr.bf16.gmra.mxu0 %v2097
      %v2582 = vpop.f32.mrf.mxu0
      %v2583 = vadd.f32 %v2422, %v2582
      %v2584 = vpop.f32.mrf.mxu0
      %v2585 = vpop.f32.mrf.mxu0
      %v2586 = vadd.f32 %v2425, %v2585
      %v2587 = vpop.f32.mrf.mxu0
      %2588 = vmatprep.mubr.bf16.mxu0 0
      %2589 = vmatmul.mubr.bf16.gmra.mxu0 %v2100
      %v2590 = vpop.f32.mrf.mxu0
      %v2591 = vadd.f32 %v2430, %v2590
      %v2592 = vpop.f32.mrf.mxu0
      %v2593 = vpop.f32.mrf.mxu0
      %v2594 = vadd.f32 %v2433, %v2593
      %v2595 = vpop.f32.mrf.mxu0
      %2596 = vmatprep.mubr.bf16.mxu0 0
      %2597 = vmatmul.mubr.bf16.gmra.mxu0 %v2103
      %v2598 = vpop.f32.mrf.mxu0
      %v2599 = vadd.f32 %v2438, %v2598
      %v2600 = vpop.f32.mrf.mxu0
      %v2601 = vpop.f32.mrf.mxu0
      %v2602 = vadd.f32 %v2441, %v2601
      %v2603 = vpop.f32.mrf.mxu0
      %2604 = vmatprep.mubr.bf16.mxu0 0
      %2605 = vmatmul.mubr.bf16.gmra.mxu0 %v2106
      %v2606 = vpop.f32.mrf.mxu0
      %v2607 = vadd.f32 %v2446, %v2606
      %v2608 = vpop.f32.mrf.mxu0
      %v2609 = vpop.f32.mrf.mxu0
      %v2610 = vadd.f32 %v2449, %v2609
      %v2611 = vpop.f32.mrf.mxu0
      %2612 = vmatprep.mubr.bf16.mxu0 0
      %2613 = vmatmul.mubr.bf16.gmra.mxu0 %v2109
      %v2614 = vpop.f32.mrf.mxu0
      %v2615 = vadd.f32 %v2454, %v2614
      %v2616 = vpop.f32.mrf.mxu0
      %v2617 = vpop.f32.mrf.mxu0
      %v2618 = vadd.f32 %v2457, %v2617
      %v2619 = vpop.f32.mrf.mxu0
      %2620 = vmatprep.mubr.bf16.mxu0 0
      %2621 = vmatmul.mubr.bf16.gmra.mxu0 %v2112
      %v2622 = vpop.f32.mrf.mxu0
      %v2623 = vadd.f32 %v2462, %v2622
      %v2624 = vpop.f32.mrf.mxu0
      %v2625 = vpop.f32.mrf.mxu0
      %v2626 = vadd.f32 %v2465, %v2625
      %v2627 = vpop.f32.mrf.mxu0
      %2628 = vmatprep.mubr.bf16.mxu0 0
      %2629 = vmatmul.mubr.bf16.gmra.mxu0 %v2115
      %v2630 = vpop.f32.mrf.mxu0
      %v2631 = vadd.f32 %v2470, %v2630
      %v2632 = vpop.f32.mrf.mxu0
      %v2633 = vpop.f32.mrf.mxu0
      %v2634 = vadd.f32 %v2473, %v2633
      %v2635 = vpop.f32.mrf.mxu0
      %2636 = vmatprep.mubr.bf16.mxu0 0
      %2637 = vmatmul.mubr.bf16.gmra.mxu0 %v2118
      %v2638 = vpop.f32.mrf.mxu0
      %v2639 = vadd.f32 %v2478, %v2638
      %v2640 = vpop.f32.mrf.mxu0
      %v2641 = vpop.f32.mrf.mxu0
      %v2642 = vadd.f32 %v2481, %v2641
      %v2643 = vpop.f32.mrf.mxu0
      %2644 = vmatprep.mubr.bf16.mxu0 0
      %2645 = vmatmul.mubr.bf16.gmra.mxu0 %v2121
      %v2646 = vpop.f32.mrf.mxu0
      %v2647 = vadd.f32 %v2486, %v2646
      %v2648 = vpop.f32.mrf.mxu0
      %v2649 = vpop.f32.mrf.mxu0
      %v2650 = vadd.f32 %v2489, %v2649
      %v2651 = vpop.f32.mrf.mxu0
      %2652 = vdwg.mxu0
      %v2701 = vunpack.c.l.b16 %v1562
      %v2702 = vunpack.c.l.b16 %v1563
      %v2703 = vunpack.c.l.b16 %v1564
      %v2704 = vunpack.c.l.b16 %v1565
      %v2705 = vunpack.c.l.b16 %v1566
      %v2706 = vunpack.c.l.b16 %v1567
      %v2707 = vunpack.c.l.b16 %v1568
      %v2708 = vunpack.c.l.b16 %v1569
      %v2709 = vunpack.c.l.b16 %v1570
      %v2710 = vunpack.c.l.b16 %v1571
      %v2711 = vunpack.c.l.b16 %v1572
      %v2712 = vunpack.c.l.b16 %v1573
      %v2713 = vunpack.c.l.b16 %v1574
      %v2714 = vunpack.c.l.b16 %v1575
      %v2715 = vunpack.c.l.b16 %v1576
      %v2716 = vunpack.c.l.b16 %v1577
      %v2717 = vunpack.c.l.b16 %v1578
      %v2718 = vunpack.c.l.b16 %v1579
      %v2719 = vunpack.c.l.b16 %v1580
      %v2720 = vunpack.c.l.b16 %v1581
      %v2721 = vunpack.c.l.b16 %v1582
      %v2722 = vunpack.c.l.b16 %v1583
      %v2723 = vunpack.c.l.b16 %v1584
      %v2724 = vunpack.c.l.b16 %v1585
      %v2725 = vunpack.c.l.b16 %v1586
      %v2726 = vunpack.c.l.b16 %v1587
      %v2727 = vunpack.c.l.b16 %v1588
      %v2728 = vunpack.c.l.b16 %v1589
      %v2729 = vunpack.c.l.b16 %v1590
      %v2730 = vunpack.c.l.b16 %v1591
      %v2731 = vunpack.c.l.b16 %v1592
      %v2732 = vunpack.c.l.b16 %v1593
      %v2733 = vunpack.c.l.b16 %v1594
      %v2734 = vunpack.c.l.b16 %v1595
      %v2735 = vunpack.c.l.b16 %v1596
      %v2736 = vunpack.c.l.b16 %v1597
      %v2737 = vunpack.c.l.b16 %v1598
      %v2738 = vunpack.c.l.b16 %v1599
      %v2739 = vunpack.c.l.b16 %v1600
      %v2740 = vunpack.c.l.b16 %v1601
      %v2741 = vunpack.c.l.b16 %v1602
      %v2742 = vunpack.c.l.b16 %v1603
      %v2743 = vunpack.c.l.b16 %v1604
      %v2744 = vunpack.c.l.b16 %v1605
      %v2745 = vunpack.c.l.b16 %v1606
      %v2746 = vunpack.c.l.b16 %v1607
      %v2747 = vunpack.c.l.b16 %v1608
      %v2748 = vunpack.c.l.b16 %v1609
      %v2749 = vpack.c.b16 %v2702, %v2701
      %v2750 = vpack.c.b16 %v2704, %v2703
      %v2751 = vpack.c.b16 %v2706, %v2705
      %v2752 = vpack.c.b16 %v2708, %v2707
      %v2753 = vpack.c.b16 %v2710, %v2709
      %v2754 = vpack.c.b16 %v2712, %v2711
      %v2755 = vpack.c.b16 %v2714, %v2713
      %v2756 = vpack.c.b16 %v2716, %v2715
      %v2757 = vpack.c.b16 %v2718, %v2717
      %v2758 = vpack.c.b16 %v2720, %v2719
      %v2759 = vpack.c.b16 %v2722, %v2721
      %v2760 = vpack.c.b16 %v2724, %v2723
      %v2761 = vpack.c.b16 %v2726, %v2725
      %v2762 = vpack.c.b16 %v2728, %v2727
      %v2763 = vpack.c.b16 %v2730, %v2729
      %v2764 = vpack.c.b16 %v2732, %v2731
      %v2765 = vpack.c.b16 %v2734, %v2733
      %v2766 = vpack.c.b16 %v2736, %v2735
      %v2767 = vpack.c.b16 %v2738, %v2737
      %v2768 = vpack.c.b16 %v2740, %v2739
      %v2769 = vpack.c.b16 %v2742, %v2741
      %v2770 = vpack.c.b16 %v2744, %v2743
      %v2771 = vpack.c.b16 %v2746, %v2745
      %v2772 = vpack.c.b16 %v2748, %v2747
      %2797 = vmatprep.subr.bf16.mxu0 0
      %2798 = vmatpush1.bf16.msra.mxu0 %v2756
      %2799 = vmatprep.subr.bf16.mxu0 0
      %2800 = vmatpush1.bf16.msra.mxu0 %v2755
      %2801 = vmatprep.subr.bf16.mxu0 0
      %2802 = vmatpush1.bf16.msra.mxu0 %v2754
      %2803 = vmatprep.subr.bf16.mxu0 0
      %2804 = vmatpush1.bf16.msra.mxu0 %v2753
      %2805 = vmatprep.subr.bf16.mxu0 0
      %2806 = vmatpush1.bf16.msra.mxu0 %v2752
      %2807 = vmatprep.subr.bf16.mxu0 0
      %2808 = vmatpush1.bf16.msra.mxu0 %v2751
      %2809 = vmatprep.subr.bf16.mxu0 0
      %2810 = vmatpush1.bf16.msra.mxu0 %v2750
      %2811 = vmatprep.subr.bf16.mxu0 0
      %2812 = vmatpush1.bf16.msra.mxu0 %v2749
      %2813 = vmatprep.subr.bf16.mxu0 0
      %2814 = vmatpush2.bf16.msra.mxu0 %v2764
      %2815 = vmatprep.subr.bf16.mxu0 0
      %2816 = vmatpush2.bf16.msra.mxu0 %v2763
      %2817 = vmatprep.subr.bf16.mxu0 0
      %2818 = vmatpush2.bf16.msra.mxu0 %v2762
      %2819 = vmatprep.subr.bf16.mxu0 0
      %2820 = vmatpush2.bf16.msra.mxu0 %v2761
      %2821 = vmatprep.subr.bf16.mxu0 0
      %2822 = vmatpush2.bf16.msra.mxu0 %v2760
      %2823 = vmatprep.subr.bf16.mxu0 0
      %2824 = vmatpush2.bf16.msra.mxu0 %v2759
      %2825 = vmatprep.subr.bf16.mxu0 0
      %2826 = vmatpush2.bf16.msra.mxu0 %v2758
      %2827 = vmatprep.subr.bf16.mxu0 0
      %2828 = vmatpush2.bf16.msra.mxu0 %v2757
      %2829 = vmatprep.mubr.bf16.mxu0 %v1252
      %2830 = vmatmul.mubr.bf16.gmra.mxu0 %v1160
      %v2831 = vpop.f32.mrf.mxu0
      %v2832 = vadd.f32 %v2527, %v2831
      %v2833 = vpop.f32.mrf.mxu0
      %v2834 = vpop.f32.mrf.mxu0
      %v2835 = vadd.f32 %v2530, %v2834
      %v2836 = vpop.f32.mrf.mxu0
      %2837 = vmatprep.mubr.bf16.mxu0 %v1264
      %2838 = vmatmul.mubr.bf16.gmra.mxu0 %v1161
      %v2839 = vpop.f32.mrf.mxu0
      %v2840 = vadd.f32 %v2535, %v2839
      %v2841 = vpop.f32.mrf.mxu0
      %v2842 = vpop.f32.mrf.mxu0
      %v2843 = vadd.f32 %v2538, %v2842
      %v2844 = vpop.f32.mrf.mxu0
      %2845 = vmatprep.mubr.bf16.mxu0 %v1276
      %2846 = vmatmul.mubr.bf16.gmra.mxu0 %v1162
      %v2847 = vpop.f32.mrf.mxu0
      %v2848 = vadd.f32 %v2543, %v2847
      %v2849 = vpop.f32.mrf.mxu0
      %v2850 = vpop.f32.mrf.mxu0
      %v2851 = vadd.f32 %v2546, %v2850
      %v2852 = vpop.f32.mrf.mxu0
      %2853 = vmatprep.mubr.bf16.mxu0 %v1288
      %2854 = vmatmul.mubr.bf16.gmra.mxu0 %v1163
      %v2855 = vpop.f32.mrf.mxu0
      %v2856 = vadd.f32 %v2551, %v2855
      %v2857 = vpop.f32.mrf.mxu0
      %v2858 = vpop.f32.mrf.mxu0
      %v2859 = vadd.f32 %v2554, %v2858
      %v2860 = vpop.f32.mrf.mxu0
      %2861 = vmatprep.mubr.bf16.mxu0 %v1300
      %2862 = vmatmul.mubr.bf16.gmra.mxu0 %v1164
      %v2863 = vpop.f32.mrf.mxu0
      %v2864 = vadd.f32 %v2559, %v2863
      %v2865 = vpop.f32.mrf.mxu0
      %v2866 = vpop.f32.mrf.mxu0
      %v2867 = vadd.f32 %v2562, %v2866
      %v2868 = vpop.f32.mrf.mxu0
      %2869 = vmatprep.mubr.bf16.mxu0 %v1312
      %2870 = vmatmul.mubr.bf16.gmra.mxu0 %v1165
      %v2871 = vpop.f32.mrf.mxu0
      %v2872 = vadd.f32 %v2567, %v2871
      %v2873 = vpop.f32.mrf.mxu0
      %v2874 = vpop.f32.mrf.mxu0
      %v2875 = vadd.f32 %v2570, %v2874
      %v2876 = vpop.f32.mrf.mxu0
      %2877 = vmatprep.mubr.bf16.mxu0 %v1324
      %2878 = vmatmul.mubr.bf16.gmra.mxu0 %v1166
      %v2879 = vpop.f32.mrf.mxu0
      %v2880 = vadd.f32 %v2575, %v2879
      %v2881 = vpop.f32.mrf.mxu0
      %v2882 = vpop.f32.mrf.mxu0
      %v2883 = vadd.f32 %v2578, %v2882
      %v2884 = vpop.f32.mrf.mxu0
      %2885 = vmatprep.mubr.bf16.mxu0 %v1336
      %2886 = vmatmul.mubr.bf16.gmra.mxu0 %v1167
      %v2887 = vpop.f32.mrf.mxu0
      %v2888 = vadd.f32 %v2583, %v2887
      %v2889 = vpop.f32.mrf.mxu0
      %v2890 = vpop.f32.mrf.mxu0
      %v2891 = vadd.f32 %v2586, %v2890
      %v2892 = vpop.f32.mrf.mxu0
      %2893 = vmatprep.mubr.bf16.mxu0 %v1348
      %2894 = vmatmul.mubr.bf16.gmra.mxu0 %v1168
      %v2895 = vpop.f32.mrf.mxu0
      %v2896 = vadd.f32 %v2591, %v2895
      %v2897 = vpop.f32.mrf.mxu0
      %v2898 = vpop.f32.mrf.mxu0
      %v2899 = vadd.f32 %v2594, %v2898
      %v2900 = vpop.f32.mrf.mxu0
      %2901 = vmatprep.mubr.bf16.mxu0 %v1360
      %2902 = vmatmul.mubr.bf16.gmra.mxu0 %v1169
      %v2903 = vpop.f32.mrf.mxu0
      %v2904 = vadd.f32 %v2599, %v2903
      %v2905 = vpop.f32.mrf.mxu0
      %v2906 = vpop.f32.mrf.mxu0
      %v2907 = vadd.f32 %v2602, %v2906
      %v2908 = vpop.f32.mrf.mxu0
      %2909 = vmatprep.mubr.bf16.mxu0 %v1372
      %2910 = vmatmul.mubr.bf16.gmra.mxu0 %v1170
      %v2911 = vpop.f32.mrf.mxu0
      %v2912 = vadd.f32 %v2607, %v2911
      %v2913 = vpop.f32.mrf.mxu0
      %v2914 = vpop.f32.mrf.mxu0
      %v2915 = vadd.f32 %v2610, %v2914
      %v2916 = vpop.f32.mrf.mxu0
      %2917 = vmatprep.mubr.bf16.mxu0 %v1384
      %2918 = vmatmul.mubr.bf16.gmra.mxu0 %v1171
      %v2919 = vpop.f32.mrf.mxu0
      %v2920 = vadd.f32 %v2615, %v2919
      %v2921 = vpop.f32.mrf.mxu0
      %v2922 = vpop.f32.mrf.mxu0
      %v2923 = vadd.f32 %v2618, %v2922
      %v2924 = vpop.f32.mrf.mxu0
      %2925 = vmatprep.mubr.bf16.mxu0 %v1396
      %2926 = vmatmul.mubr.bf16.gmra.mxu0 %v1172
      %v2927 = vpop.f32.mrf.mxu0
      %v2928 = vadd.f32 %v2623, %v2927
      %v2929 = vpop.f32.mrf.mxu0
      %v2930 = vpop.f32.mrf.mxu0
      %v2931 = vadd.f32 %v2626, %v2930
      %v2932 = vpop.f32.mrf.mxu0
      %2933 = vmatprep.mubr.bf16.mxu0 %v1408
      %2934 = vmatmul.mubr.bf16.gmra.mxu0 %v1173
      %v2935 = vpop.f32.mrf.mxu0
      %v2936 = vadd.f32 %v2631, %v2935
      %v2937 = vpop.f32.mrf.mxu0
      %v2938 = vpop.f32.mrf.mxu0
      %v2939 = vadd.f32 %v2634, %v2938
      %v2940 = vpop.f32.mrf.mxu0
      %2941 = vmatprep.mubr.bf16.mxu0 %v1420
      %2942 = vmatmul.mubr.bf16.gmra.mxu0 %v1174
      %v2943 = vpop.f32.mrf.mxu0
      %v2944 = vadd.f32 %v2639, %v2943
      %v2945 = vpop.f32.mrf.mxu0
      %v2946 = vpop.f32.mrf.mxu0
      %v2947 = vadd.f32 %v2642, %v2946
      %v2948 = vpop.f32.mrf.mxu0
      %2949 = vmatprep.mubr.bf16.mxu0 %v1432
      %2950 = vmatmul.mubr.bf16.gmra.mxu0 %v1175
      %v2951 = vpop.f32.mrf.mxu0
      %v2952 = vadd.f32 %v2647, %v2951
      %v2953 = vpop.f32.mrf.mxu0
      %v2954 = vpop.f32.mrf.mxu0
      %v2955 = vadd.f32 %v2650, %v2954
      %v2956 = vpop.f32.mrf.mxu0
      %2957 = vdwg.mxu0
      %2958 = vmatprep.subr.bf16.mxu0 0
      %2959 = vmatpush1.bf16.msra.mxu0 %v2772
      %2960 = vmatprep.subr.bf16.mxu0 0
      %2961 = vmatpush1.bf16.msra.mxu0 %v2771
      %2962 = vmatprep.subr.bf16.mxu0 0
      %2963 = vmatpush1.bf16.msra.mxu0 %v2770
      %2964 = vmatprep.subr.bf16.mxu0 0
      %2965 = vmatpush1.bf16.msra.mxu0 %v2769
      %2966 = vmatprep.subr.bf16.mxu0 0
      %2967 = vmatpush1.bf16.msra.mxu0 %v2768
      %2968 = vmatprep.subr.bf16.mxu0 0
      %2969 = vmatpush1.bf16.msra.mxu0 %v2767
      %2970 = vmatprep.subr.bf16.mxu0 0
      %2971 = vmatpush1.bf16.msra.mxu0 %v2766
      %2972 = vmatprep.subr.bf16.mxu0 0
      %2973 = vmatpush1.bf16.msra.mxu0 %v2765
      %2974 = vmatprep.subr.bf16.mxu0 0
      %2975 = vmatpush2.bf16.msra.mxu0 0
      %2976 = vmatprep.subr.bf16.mxu0 0
      %2977 = vmatpush2.bf16.msra.mxu0 0
      %2978 = vmatprep.subr.bf16.mxu0 0
      %2979 = vmatpush2.bf16.msra.mxu0 0
      %2980 = vmatprep.subr.bf16.mxu0 0
      %2981 = vmatpush2.bf16.msra.mxu0 0
      %2982 = vmatprep.subr.bf16.mxu0 0
      %2983 = vmatpush2.bf16.msra.mxu0 0
      %2984 = vmatprep.subr.bf16.mxu0 0
      %2985 = vmatpush2.bf16.msra.mxu0 0
      %2986 = vmatprep.subr.bf16.mxu0 0
      %2987 = vmatpush2.bf16.msra.mxu0 0
      %2988 = vmatprep.subr.bf16.mxu0 0
      %2989 = vmatpush2.bf16.msra.mxu0 0
      %2990 = vmatprep.mubr.bf16.mxu0 0
      %2991 = vmatmul.mubr.bf16.gmra.mxu0 %v1500
      %v2992 = vpop.f32.mrf.mxu0
      %v2993 = vadd.f32 %v2832, %v2992
      %v2994 = vpop.f32.mrf.mxu0
      %v2995 = vpop.f32.mrf.mxu0
      %v2996 = vadd.f32 %v2835, %v2995
      %v2997 = vpop.f32.mrf.mxu0
      %2998 = vmatprep.mubr.bf16.mxu0 0
      %2999 = vmatmul.mubr.bf16.gmra.mxu0 %v1503
      %v3000 = vpop.f32.mrf.mxu0
      %v3001 = vadd.f32 %v2840, %v3000
      %v3002 = vpop.f32.mrf.mxu0
      %v3003 = vpop.f32.mrf.mxu0
      %v3004 = vadd.f32 %v2843, %v3003
      %v3005 = vpop.f32.mrf.mxu0
      %3006 = vmatprep.mubr.bf16.mxu0 0
      %3007 = vmatmul.mubr.bf16.gmra.mxu0 %v1506
      %v3008 = vpop.f32.mrf.mxu0
      %v3009 = vadd.f32 %v2848, %v3008
      %v3010 = vpop.f32.mrf.mxu0
      %v3011 = vpop.f32.mrf.mxu0
      %v3012 = vadd.f32 %v2851, %v3011
      %v3013 = vpop.f32.mrf.mxu0
      %3014 = vmatprep.mubr.bf16.mxu0 0
      %3015 = vmatmul.mubr.bf16.gmra.mxu0 %v1509
      %v3016 = vpop.f32.mrf.mxu0
      %v3017 = vadd.f32 %v2856, %v3016
      %v3018 = vpop.f32.mrf.mxu0
      %v3019 = vpop.f32.mrf.mxu0
      %v3020 = vadd.f32 %v2859, %v3019
      %v3021 = vpop.f32.mrf.mxu0
      %3022 = vmatprep.mubr.bf16.mxu0 0
      %3023 = vmatmul.mubr.bf16.gmra.mxu0 %v1512
      %v3024 = vpop.f32.mrf.mxu0
      %v3025 = vadd.f32 %v2864, %v3024
      %v3026 = vpop.f32.mrf.mxu0
      %v3027 = vpop.f32.mrf.mxu0
      %v3028 = vadd.f32 %v2867, %v3027
      %v3029 = vpop.f32.mrf.mxu0
      %3030 = vmatprep.mubr.bf16.mxu0 0
      %3031 = vmatmul.mubr.bf16.gmra.mxu0 %v1515
      %v3032 = vpop.f32.mrf.mxu0
      %v3033 = vadd.f32 %v2872, %v3032
      %v3034 = vpop.f32.mrf.mxu0
      %v3035 = vpop.f32.mrf.mxu0
      %v3036 = vadd.f32 %v2875, %v3035
      %v3037 = vpop.f32.mrf.mxu0
      %3038 = vmatprep.mubr.bf16.mxu0 0
      %3039 = vmatmul.mubr.bf16.gmra.mxu0 %v1518
      %v3040 = vpop.f32.mrf.mxu0
      %v3041 = vadd.f32 %v2880, %v3040
      %v3042 = vpop.f32.mrf.mxu0
      %v3043 = vpop.f32.mrf.mxu0
      %v3044 = vadd.f32 %v2883, %v3043
      %v3045 = vpop.f32.mrf.mxu0
      %3046 = vmatprep.mubr.bf16.mxu0 0
      %3047 = vmatmul.mubr.bf16.gmra.mxu0 %v1521
      %v3048 = vpop.f32.mrf.mxu0
      %v3049 = vadd.f32 %v2888, %v3048
      %v3050 = vpop.f32.mrf.mxu0
      %v3051 = vpop.f32.mrf.mxu0
      %v3052 = vadd.f32 %v2891, %v3051
      %v3053 = vpop.f32.mrf.mxu0
      %3054 = vmatprep.mubr.bf16.mxu0 0
      %3055 = vmatmul.mubr.bf16.gmra.mxu0 %v1524
      %v3056 = vpop.f32.mrf.mxu0
      %v3057 = vadd.f32 %v2896, %v3056
      %v3058 = vpop.f32.mrf.mxu0
      %v3059 = vpop.f32.mrf.mxu0
      %v3060 = vadd.f32 %v2899, %v3059
      %v3061 = vpop.f32.mrf.mxu0
      %3062 = vmatprep.mubr.bf16.mxu0 0
      %3063 = vmatmul.mubr.bf16.gmra.mxu0 %v1527
      %v3064 = vpop.f32.mrf.mxu0
      %v3065 = vadd.f32 %v2904, %v3064
      %v3066 = vpop.f32.mrf.mxu0
      %v3067 = vpop.f32.mrf.mxu0
      %v3068 = vadd.f32 %v2907, %v3067
      %v3069 = vpop.f32.mrf.mxu0
      %3070 = vmatprep.mubr.bf16.mxu0 0
      %3071 = vmatmul.mubr.bf16.gmra.mxu0 %v1530
      %v3072 = vpop.f32.mrf.mxu0
      %v3073 = vadd.f32 %v2912, %v3072
      %v3074 = vpop.f32.mrf.mxu0
      %v3075 = vpop.f32.mrf.mxu0
      %v3076 = vadd.f32 %v2915, %v3075
      %v3077 = vpop.f32.mrf.mxu0
      %3078 = vmatprep.mubr.bf16.mxu0 0
      %3079 = vmatmul.mubr.bf16.gmra.mxu0 %v1533
      %v3080 = vpop.f32.mrf.mxu0
      %v3081 = vadd.f32 %v2920, %v3080
      %v3082 = vpop.f32.mrf.mxu0
      %v3083 = vpop.f32.mrf.mxu0
      %v3084 = vadd.f32 %v2923, %v3083
      %v3085 = vpop.f32.mrf.mxu0
      %3086 = vmatprep.mubr.bf16.mxu0 0
      %3087 = vmatmul.mubr.bf16.gmra.mxu0 %v1536
      %v3088 = vpop.f32.mrf.mxu0
      %v3089 = vadd.f32 %v2928, %v3088
      %v3090 = vpop.f32.mrf.mxu0
      %v3091 = vpop.f32.mrf.mxu0
      %v3092 = vadd.f32 %v2931, %v3091
      %v3093 = vpop.f32.mrf.mxu0
      %3094 = vmatprep.mubr.bf16.mxu0 0
      %3095 = vmatmul.mubr.bf16.gmra.mxu0 %v1539
      %v3096 = vpop.f32.mrf.mxu0
      %v3097 = vadd.f32 %v2936, %v3096
      %v3098 = vpop.f32.mrf.mxu0
      %v3099 = vpop.f32.mrf.mxu0
      %v3100 = vadd.f32 %v2939, %v3099
      %v3101 = vpop.f32.mrf.mxu0
      %3102 = vmatprep.mubr.bf16.mxu0 0
      %3103 = vmatmul.mubr.bf16.gmra.mxu0 %v1542
      %v3104 = vpop.f32.mrf.mxu0
      %v3105 = vadd.f32 %v2944, %v3104
      %v3106 = vpop.f32.mrf.mxu0
      %v3107 = vpop.f32.mrf.mxu0
      %v3108 = vadd.f32 %v2947, %v3107
      %v3109 = vpop.f32.mrf.mxu0
      %3110 = vmatprep.mubr.bf16.mxu0 0
      %3111 = vmatmul.mubr.bf16.gmra.mxu0 %v1545
      %v3112 = vpop.f32.mrf.mxu0
      %v3113 = vadd.f32 %v2952, %v3112
      %v3114 = vpop.f32.mrf.mxu0
      %v3115 = vpop.f32.mrf.mxu0
      %v3116 = vadd.f32 %v2955, %v3115
      %v3117 = vpop.f32.mrf.mxu0
      %3118 = vdwg.mxu0
      %s3119 = scalar_lea.vmem [#allocation2], 24
      %v3120 = vld [vmem:[%s3119] sm:$0xf]
      %v3121 = vld [vmem:[%s3119 + $0x4] sm:$0xf]
      %v3122 = vld [vmem:[%s3119 + $0xc] sm:$0xf]
      %v3123 = vld [vmem:[%s3119 + $0x10] sm:$0xf]
      %v3124 = vld [vmem:[%s3119 + $0x18] sm:$0xf]
      %v3125 = vld [vmem:[%s3119 + $0x1c] sm:$0xf]
      %v3126 = vld [vmem:[%s3119 + $0x24] sm:$0xf]
      %v3127 = vld [vmem:[%s3119 + $0x28] sm:$0xf]
      %v3128 = vld [vmem:[%s3119 + $0x30] sm:$0xf]
      %v3129 = vld [vmem:[%s3119 + $0x34] sm:$0xf]
      %v3130 = vld [vmem:[%s3119 + $0x3c] sm:$0xf]
      %v3131 = vld [vmem:[%s3119 + $0x40] sm:$0xf]
      %v3132 = vld [vmem:[%s3119 + $0x48] sm:$0xf]
      %v3133 = vld [vmem:[%s3119 + $0x4c] sm:$0xf]
      %v3134 = vld [vmem:[%s3119 + $0x54] sm:$0xf]
      %v3135 = vld [vmem:[%s3119 + $0x58] sm:$0xf]
      %v3136 = vld [vmem:[%s3119 + $0x60] sm:$0xf]
      %v3137 = vld [vmem:[%s3119 + $0x64] sm:$0xf]
      %v3138 = vld [vmem:[%s3119 + $0x6c] sm:$0xf]
      %v3139 = vld [vmem:[%s3119 + $0x70] sm:$0xf]
      %v3140 = vld [vmem:[%s3119 + $0x78] sm:$0xf]
      %v3141 = vld [vmem:[%s3119 + $0x7c] sm:$0xf]
      %v3142 = vld [vmem:[%s3119 + $0x84] sm:$0xf]
      %v3143 = vld [vmem:[%s3119 + $0x88] sm:$0xf]
      %v3144 = vld [vmem:[%s3119 + $0x90] sm:$0xf]
      %v3145 = vld [vmem:[%s3119 + $0x94] sm:$0xf]
      %v3146 = vld [vmem:[%s3119 + $0x9c] sm:$0xf]
      %v3147 = vld [vmem:[%s3119 + $0xa0] sm:$0xf]
      %v3148 = vld [vmem:[%s3119 + $0xa8] sm:$0xf]
      %v3149 = vld [vmem:[%s3119 + $0xac] sm:$0xf]
      %v3150 = vld [vmem:[%s3119 + $0xb4] sm:$0xf]
      %v3151 = vld [vmem:[%s3119 + $0xb8] sm:$0xf]
      %v3152 = vld [vmem:[%s3119 + $0x8] sm:$0x1]
      %v3153 = vld [vmem:[%s3119 + $0x14] sm:$0x1]
      %v3154 = vld [vmem:[%s3119 + $0x20] sm:$0x1]
      %v3155 = vld [vmem:[%s3119 + $0x2c] sm:$0x1]
      %v3156 = vld [vmem:[%s3119 + $0x38] sm:$0x1]
      %v3157 = vld [vmem:[%s3119 + $0x44] sm:$0x1]
      %v3158 = vld [vmem:[%s3119 + $0x50] sm:$0x1]
      %v3159 = vld [vmem:[%s3119 + $0x5c] sm:$0x1]
      %v3160 = vld [vmem:[%s3119 + $0x68] sm:$0x1]
      %v3161 = vld [vmem:[%s3119 + $0x74] sm:$0x1]
      %v3162 = vld [vmem:[%s3119 + $0x80] sm:$0x1]
      %v3163 = vld [vmem:[%s3119 + $0x8c] sm:$0x1]
      %v3164 = vld [vmem:[%s3119 + $0x98] sm:$0x1]
      %v3165 = vld [vmem:[%s3119 + $0xa4] sm:$0x1]
      %v3166 = vld [vmem:[%s3119 + $0xb0] sm:$0x1]
      %v3167 = vld [vmem:[%s3119 + $0xbc] sm:$0x1]
      %v3168 = vld [vmem:[%s3119] sm:$0xe]
      %v3169 = vld [vmem:[%s3119 + $0xc] sm:$0xe]
      %v3170 = vld [vmem:[%s3119 + $0x18] sm:$0xe]
      %v3171 = vld [vmem:[%s3119 + $0x24] sm:$0xe]
      %v3172 = vld [vmem:[%s3119 + $0x30] sm:$0xe]
      %v3173 = vld [vmem:[%s3119 + $0x3c] sm:$0xe]
      %v3174 = vld [vmem:[%s3119 + $0x48] sm:$0xe]
      %v3175 = vld [vmem:[%s3119 + $0x54] sm:$0xe]
      %v3176 = vld [vmem:[%s3119 + $0x60] sm:$0xe]
      %v3177 = vld [vmem:[%s3119 + $0x6c] sm:$0xe]
      %v3178 = vld [vmem:[%s3119 + $0x78] sm:$0xe]
      %v3179 = vld [vmem:[%s3119 + $0x84] sm:$0xe]
      %v3180 = vld [vmem:[%s3119 + $0x90] sm:$0xe]
      %v3181 = vld [vmem:[%s3119 + $0x9c] sm:$0xe]
      %v3182 = vld [vmem:[%s3119 + $0xa8] sm:$0xe]
      %v3183 = vld [vmem:[%s3119 + $0xb4] sm:$0xe]
      %v3216 = vunpack.c.l.b16 %v3120
      %v3217 = vunpack.c.l.b16 %v3121
      %v3218 = vunpack.c.l.b16 %v3122
      %v3219 = vunpack.c.l.b16 %v3123
      %v3220 = vunpack.c.l.b16 %v3124
      %v3221 = vunpack.c.l.b16 %v3125
      %v3222 = vunpack.c.l.b16 %v3126
      %v3223 = vunpack.c.l.b16 %v3127
      %v3224 = vunpack.c.l.b16 %v3128
      %v3225 = vunpack.c.l.b16 %v3129
      %v3226 = vunpack.c.l.b16 %v3130
      %v3227 = vunpack.c.l.b16 %v3131
      %v3228 = vunpack.c.l.b16 %v3132
      %v3229 = vunpack.c.l.b16 %v3133
      %v3230 = vunpack.c.l.b16 %v3134
      %v3231 = vunpack.c.l.b16 %v3135
      %v3232 = vunpack.c.l.b16 %v3136
      %v3233 = vunpack.c.l.b16 %v3137
      %v3234 = vunpack.c.l.b16 %v3138
      %v3235 = vunpack.c.l.b16 %v3139
      %v3236 = vunpack.c.l.b16 %v3140
      %v3237 = vunpack.c.l.b16 %v3141
      %v3238 = vunpack.c.l.b16 %v3142
      %v3239 = vunpack.c.l.b16 %v3143
      %v3240 = vunpack.c.l.b16 %v3144
      %v3241 = vunpack.c.l.b16 %v3145
      %v3242 = vunpack.c.l.b16 %v3146
      %v3243 = vunpack.c.l.b16 %v3147
      %v3244 = vunpack.c.l.b16 %v3148
      %v3245 = vunpack.c.l.b16 %v3149
      %v3246 = vunpack.c.l.b16 %v3150
      %v3247 = vunpack.c.l.b16 %v3151
      %v3248 = vpack.c.b16 %v3217, %v3216
      %v3249 = vpack.c.b16 %v3219, %v3218
      %v3250 = vpack.c.b16 %v3221, %v3220
      %v3251 = vpack.c.b16 %v3223, %v3222
      %v3252 = vpack.c.b16 %v3225, %v3224
      %v3253 = vpack.c.b16 %v3227, %v3226
      %v3254 = vpack.c.b16 %v3229, %v3228
      %v3255 = vpack.c.b16 %v3231, %v3230
      %v3256 = vpack.c.b16 %v3233, %v3232
      %v3257 = vpack.c.b16 %v3235, %v3234
      %v3258 = vpack.c.b16 %v3237, %v3236
      %v3259 = vpack.c.b16 %v3239, %v3238
      %v3260 = vpack.c.b16 %v3241, %v3240
      %v3261 = vpack.c.b16 %v3243, %v3242
      %v3262 = vpack.c.b16 %v3245, %v3244
      %v3263 = vpack.c.b16 %v3247, %v3246
      %v3296 = vunpack.c.l.b16 %v3152
      %v3297 = vunpack.c.l.b16 %v3153
      %v3298 = vunpack.c.l.b16 %v3154
      %v3299 = vunpack.c.l.b16 %v3155
      %v3300 = vunpack.c.l.b16 %v3156
      %v3301 = vunpack.c.l.b16 %v3157
      %v3302 = vunpack.c.l.b16 %v3158
      %v3303 = vunpack.c.l.b16 %v3159
      %v3304 = vunpack.c.l.b16 %v3160
      %v3305 = vunpack.c.l.b16 %v3161
      %v3306 = vunpack.c.l.b16 %v3162
      %v3307 = vunpack.c.l.b16 %v3163
      %v3308 = vunpack.c.l.b16 %v3164
      %v3309 = vunpack.c.l.b16 %v3165
      %v3310 = vunpack.c.l.b16 %v3166
      %v3311 = vunpack.c.l.b16 %v3167
      %v3312 = vpack.c.b16 %v3296, %v3296
      %v3313 = vpack.c.b16 %v3297, %v3297
      %v3314 = vpack.c.b16 %v3298, %v3298
      %v3315 = vpack.c.b16 %v3299, %v3299
      %v3316 = vpack.c.b16 %v3300, %v3300
      %v3317 = vpack.c.b16 %v3301, %v3301
      %v3318 = vpack.c.b16 %v3302, %v3302
      %v3319 = vpack.c.b16 %v3303, %v3303
      %v3320 = vpack.c.b16 %v3304, %v3304
      %v3321 = vpack.c.b16 %v3305, %v3305
      %v3322 = vpack.c.b16 %v3306, %v3306
      %v3323 = vpack.c.b16 %v3307, %v3307
      %v3324 = vpack.c.b16 %v3308, %v3308
      %v3325 = vpack.c.b16 %v3309, %v3309
      %v3326 = vpack.c.b16 %v3310, %v3310
      %v3327 = vpack.c.b16 %v3311, %v3311
      %v3329 = vshrl.u32 %v3248, 16
      %v3331 = vshll.u32 %v3248, 16
      %v3333 = vrot.slane %v3331, 1
      %v3334 = vor.u32 %v3329, %v3333
      %v3336 = vshll.u32 %v3312, 16
      %v3338 = vrot.slane %v3336, 1
      %v3339 = vsel %vm1240, %v3334, %v3338
      %v3341 = vshrl.u32 %v3249, 16
      %v3343 = vshll.u32 %v3249, 16
      %v3345 = vrot.slane %v3343, 1
      %v3346 = vor.u32 %v3341, %v3345
      %v3348 = vshll.u32 %v3313, 16
      %v3350 = vrot.slane %v3348, 1
      %v3351 = vsel %vm1240, %v3346, %v3350
      %v3353 = vshrl.u32 %v3250, 16
      %v3355 = vshll.u32 %v3250, 16
      %v3357 = vrot.slane %v3355, 1
      %v3358 = vor.u32 %v3353, %v3357
      %v3360 = vshll.u32 %v3314, 16
      %v3362 = vrot.slane %v3360, 1
      %v3363 = vsel %vm1240, %v3358, %v3362
      %v3365 = vshrl.u32 %v3251, 16
      %v3367 = vshll.u32 %v3251, 16
      %v3369 = vrot.slane %v3367, 1
      %v3370 = vor.u32 %v3365, %v3369
      %v3372 = vshll.u32 %v3315, 16
      %v3374 = vrot.slane %v3372, 1
      %v3375 = vsel %vm1240, %v3370, %v3374
      %v3377 = vshrl.u32 %v3252, 16
      %v3379 = vshll.u32 %v3252, 16
      %v3381 = vrot.slane %v3379, 1
      %v3382 = vor.u32 %v3377, %v3381
      %v3384 = vshll.u32 %v3316, 16
      %v3386 = vrot.slane %v3384, 1
      %v3387 = vsel %vm1240, %v3382, %v3386
      %v3389 = vshrl.u32 %v3253, 16
      %v3391 = vshll.u32 %v3253, 16
      %v3393 = vrot.slane %v3391, 1
      %v3394 = vor.u32 %v3389, %v3393
      %v3396 = vshll.u32 %v3317, 16
      %v3398 = vrot.slane %v3396, 1
      %v3399 = vsel %vm1240, %v3394, %v3398
      %v3401 = vshrl.u32 %v3254, 16
      %v3403 = vshll.u32 %v3254, 16
      %v3405 = vrot.slane %v3403, 1
      %v3406 = vor.u32 %v3401, %v3405
      %v3408 = vshll.u32 %v3318, 16
      %v3410 = vrot.slane %v3408, 1
      %v3411 = vsel %vm1240, %v3406, %v3410
      %v3413 = vshrl.u32 %v3255, 16
      %v3415 = vshll.u32 %v3255, 16
      %v3417 = vrot.slane %v3415, 1
      %v3418 = vor.u32 %v3413, %v3417
      %v3420 = vshll.u32 %v3319, 16
      %v3422 = vrot.slane %v3420, 1
      %v3423 = vsel %vm1240, %v3418, %v3422
      %v3425 = vshrl.u32 %v3256, 16
      %v3427 = vshll.u32 %v3256, 16
      %v3429 = vrot.slane %v3427, 1
      %v3430 = vor.u32 %v3425, %v3429
      %v3432 = vshll.u32 %v3320, 16
      %v3434 = vrot.slane %v3432, 1
      %v3435 = vsel %vm1240, %v3430, %v3434
      %v3437 = vshrl.u32 %v3257, 16
      %v3439 = vshll.u32 %v3257, 16
      %v3441 = vrot.slane %v3439, 1
      %v3442 = vor.u32 %v3437, %v3441
      %v3444 = vshll.u32 %v3321, 16
      %v3446 = vrot.slane %v3444, 1
      %v3447 = vsel %vm1240, %v3442, %v3446
      %v3449 = vshrl.u32 %v3258, 16
      %v3451 = vshll.u32 %v3258, 16
      %v3453 = vrot.slane %v3451, 1
      %v3454 = vor.u32 %v3449, %v3453
      %v3456 = vshll.u32 %v3322, 16
      %v3458 = vrot.slane %v3456, 1
      %v3459 = vsel %vm1240, %v3454, %v3458
      %v3461 = vshrl.u32 %v3259, 16
      %v3463 = vshll.u32 %v3259, 16
      %v3465 = vrot.slane %v3463, 1
      %v3466 = vor.u32 %v3461, %v3465
      %v3468 = vshll.u32 %v3323, 16
      %v3470 = vrot.slane %v3468, 1
      %v3471 = vsel %vm1240, %v3466, %v3470
      %v3473 = vshrl.u32 %v3260, 16
      %v3475 = vshll.u32 %v3260, 16
      %v3477 = vrot.slane %v3475, 1
      %v3478 = vor.u32 %v3473, %v3477
      %v3480 = vshll.u32 %v3324, 16
      %v3482 = vrot.slane %v3480, 1
      %v3483 = vsel %vm1240, %v3478, %v3482
      %v3485 = vshrl.u32 %v3261, 16
      %v3487 = vshll.u32 %v3261, 16
      %v3489 = vrot.slane %v3487, 1
      %v3490 = vor.u32 %v3485, %v3489
      %v3492 = vshll.u32 %v3325, 16
      %v3494 = vrot.slane %v3492, 1
      %v3495 = vsel %vm1240, %v3490, %v3494
      %v3497 = vshrl.u32 %v3262, 16
      %v3499 = vshll.u32 %v3262, 16
      %v3501 = vrot.slane %v3499, 1
      %v3502 = vor.u32 %v3497, %v3501
      %v3504 = vshll.u32 %v3326, 16
      %v3506 = vrot.slane %v3504, 1
      %v3507 = vsel %vm1240, %v3502, %v3506
      %v3509 = vshrl.u32 %v3263, 16
      %v3511 = vshll.u32 %v3263, 16
      %v3513 = vrot.slane %v3511, 1
      %v3514 = vor.u32 %v3509, %v3513
      %v3516 = vshll.u32 %v3327, 16
      %v3518 = vrot.slane %v3516, 1
      %v3519 = vsel %vm1240, %v3514, %v3518
      %v3552 = vunpack.c.l.b16 %v3168
      %v3553 = vunpack.c.l.b16 %v3169
      %v3554 = vunpack.c.l.b16 %v3170
      %v3555 = vunpack.c.l.b16 %v3171
      %v3556 = vunpack.c.l.b16 %v3172
      %v3557 = vunpack.c.l.b16 %v3173
      %v3558 = vunpack.c.l.b16 %v3174
      %v3559 = vunpack.c.l.b16 %v3175
      %v3560 = vunpack.c.l.b16 %v3176
      %v3561 = vunpack.c.l.b16 %v3177
      %v3562 = vunpack.c.l.b16 %v3178
      %v3563 = vunpack.c.l.b16 %v3179
      %v3564 = vunpack.c.l.b16 %v3180
      %v3565 = vunpack.c.l.b16 %v3181
      %v3566 = vunpack.c.l.b16 %v3182
      %v3567 = vunpack.c.l.b16 %v3183
      %v3568 = vpack.c.b16 %v3217, %v3552
      %v3569 = vpack.c.b16 %v3219, %v3553
      %v3570 = vpack.c.b16 %v3221, %v3554
      %v3571 = vpack.c.b16 %v3223, %v3555
      %v3572 = vpack.c.b16 %v3225, %v3556
      %v3573 = vpack.c.b16 %v3227, %v3557
      %v3574 = vpack.c.b16 %v3229, %v3558
      %v3575 = vpack.c.b16 %v3231, %v3559
      %v3576 = vpack.c.b16 %v3233, %v3560
      %v3577 = vpack.c.b16 %v3235, %v3561
      %v3578 = vpack.c.b16 %v3237, %v3562
      %v3579 = vpack.c.b16 %v3239, %v3563
      %v3580 = vpack.c.b16 %v3241, %v3564
      %v3581 = vpack.c.b16 %v3243, %v3565
      %v3582 = vpack.c.b16 %v3245, %v3566
      %v3583 = vpack.c.b16 %v3247, %v3567
      %v3584 = vrot.slane %v3568, 1
      %v3585 = vrot.slane %v3312, 1
      %v3586 = vsel %vm1497, %v3584, %v3585
      %v3587 = vrot.slane %v3569, 1
      %v3588 = vrot.slane %v3313, 1
      %v3589 = vsel %vm1497, %v3587, %v3588
      %v3590 = vrot.slane %v3570, 1
      %v3591 = vrot.slane %v3314, 1
      %v3592 = vsel %vm1497, %v3590, %v3591
      %v3593 = vrot.slane %v3571, 1
      %v3594 = vrot.slane %v3315, 1
      %v3595 = vsel %vm1497, %v3593, %v3594
      %v3596 = vrot.slane %v3572, 1
      %v3597 = vrot.slane %v3316, 1
      %v3598 = vsel %vm1497, %v3596, %v3597
      %v3599 = vrot.slane %v3573, 1
      %v3600 = vrot.slane %v3317, 1
      %v3601 = vsel %vm1497, %v3599, %v3600
      %v3602 = vrot.slane %v3574, 1
      %v3603 = vrot.slane %v3318, 1
      %v3604 = vsel %vm1497, %v3602, %v3603
      %v3605 = vrot.slane %v3575, 1
      %v3606 = vrot.slane %v3319, 1
      %v3607 = vsel %vm1497, %v3605, %v3606
      %v3608 = vrot.slane %v3576, 1
      %v3609 = vrot.slane %v3320, 1
      %v3610 = vsel %vm1497, %v3608, %v3609
      %v3611 = vrot.slane %v3577, 1
      %v3612 = vrot.slane %v3321, 1
      %v3613 = vsel %vm1497, %v3611, %v3612
      %v3614 = vrot.slane %v3578, 1
      %v3615 = vrot.slane %v3322, 1
      %v3616 = vsel %vm1497, %v3614, %v3615
      %v3617 = vrot.slane %v3579, 1
      %v3618 = vrot.slane %v3323, 1
      %v3619 = vsel %vm1497, %v3617, %v3618
      %v3620 = vrot.slane %v3580, 1
      %v3621 = vrot.slane %v3324, 1
      %v3622 = vsel %vm1497, %v3620, %v3621
      %v3623 = vrot.slane %v3581, 1
      %v3624 = vrot.slane %v3325, 1
      %v3625 = vsel %vm1497, %v3623, %v3624
      %v3626 = vrot.slane %v3582, 1
      %v3627 = vrot.slane %v3326, 1
      %v3628 = vsel %vm1497, %v3626, %v3627
      %v3629 = vrot.slane %v3583, 1
      %v3630 = vrot.slane %v3327, 1
      %v3631 = vsel %vm1497, %v3629, %v3630
      %s3648 = scalar_lea.vmem %s1, 384
      %v3649 = vld [vmem:[%s3648] sm:$0xf]
      %v3650 = vld [vmem:[%s3648 + $0x4] sm:$0xf]
      %v3651 = vld [vmem:[%s3648 + $0x8] sm:$0xf]
      %v3652 = vld [vmem:[%s3648 + $0xc] sm:$0xf]
      %v3653 = vld [vmem:[%s3648 + $0x10] sm:$0xf]
      %v3654 = vld [vmem:[%s3648 + $0x14] sm:$0xf]
      %v3655 = vld [vmem:[%s3648 + $0x18] sm:$0xf]
      %v3656 = vld [vmem:[%s3648 + $0x1c] sm:$0xf]
      %v3657 = vld [vmem:[%s3648 + $0x20] sm:$0xf]
      %v3658 = vld [vmem:[%s3648 + $0x24] sm:$0xf]
      %v3659 = vld [vmem:[%s3648 + $0x28] sm:$0xf]
      %v3660 = vld [vmem:[%s3648 + $0x2c] sm:$0xf]
      %v3661 = vld [vmem:[%s3648 + $0x30] sm:$0xf]
      %v3662 = vld [vmem:[%s3648 + $0x34] sm:$0xf]
      %v3663 = vld [vmem:[%s3648 + $0x38] sm:$0xf]
      %v3664 = vld [vmem:[%s3648 + $0x3c] sm:$0xf]
      %v3665 = vld [vmem:[%s3648 + $0x40] sm:$0xf]
      %v3666 = vld [vmem:[%s3648 + $0x44] sm:$0xf]
      %v3667 = vld [vmem:[%s3648 + $0x48] sm:$0xf]
      %v3668 = vld [vmem:[%s3648 + $0x4c] sm:$0xf]
      %v3669 = vld [vmem:[%s3648 + $0x50] sm:$0xf]
      %v3670 = vld [vmem:[%s3648 + $0x54] sm:$0xf]
      %v3671 = vld [vmem:[%s3648 + $0x58] sm:$0xf]
      %v3672 = vld [vmem:[%s3648 + $0x5c] sm:$0xf]
      %v3673 = vld [vmem:[%s3648 + $0x60] sm:$0xf]
      %v3674 = vld [vmem:[%s3648 + $0x64] sm:$0xf]
      %v3675 = vld [vmem:[%s3648 + $0x68] sm:$0xf]
      %v3676 = vld [vmem:[%s3648 + $0x6c] sm:$0xf]
      %v3677 = vld [vmem:[%s3648 + $0x70] sm:$0xf]
      %v3678 = vld [vmem:[%s3648 + $0x74] sm:$0xf]
      %v3679 = vld [vmem:[%s3648 + $0x78] sm:$0xf]
      %v3680 = vld [vmem:[%s3648 + $0x7c] sm:$0xf]
      %v3681 = vld [vmem:[%s3648 + $0x80] sm:$0xf]
      %v3682 = vld [vmem:[%s3648 + $0x84] sm:$0xf]
      %v3683 = vld [vmem:[%s3648 + $0x88] sm:$0xf]
      %v3684 = vld [vmem:[%s3648 + $0x8c] sm:$0xf]
      %v3685 = vld [vmem:[%s3648 + $0x90] sm:$0xf]
      %v3686 = vld [vmem:[%s3648 + $0x94] sm:$0xf]
      %v3687 = vld [vmem:[%s3648 + $0x98] sm:$0xf]
      %v3688 = vld [vmem:[%s3648 + $0x9c] sm:$0xf]
      %v3689 = vld [vmem:[%s3648 + $0xa0] sm:$0xf]
      %v3690 = vld [vmem:[%s3648 + $0xa4] sm:$0xf]
      %v3691 = vld [vmem:[%s3648 + $0xa8] sm:$0xf]
      %v3692 = vld [vmem:[%s3648 + $0xac] sm:$0xf]
      %v3693 = vld [vmem:[%s3648 + $0xb0] sm:$0xf]
      %v3694 = vld [vmem:[%s3648 + $0xb4] sm:$0xf]
      %v3695 = vld [vmem:[%s3648 + $0xb8] sm:$0xf]
      %v3696 = vld [vmem:[%s3648 + $0xbc] sm:$0xf]
      %v3745 = vunpack.c.l.b16 %v3649
      %v3746 = vunpack.c.l.b16 %v3650
      %v3747 = vunpack.c.l.b16 %v3651
      %v3748 = vunpack.c.l.b16 %v3652
      %v3749 = vunpack.c.l.b16 %v3653
      %v3750 = vunpack.c.l.b16 %v3654
      %v3751 = vunpack.c.l.b16 %v3655
      %v3752 = vunpack.c.l.b16 %v3656
      %v3753 = vunpack.c.l.b16 %v3657
      %v3754 = vunpack.c.l.b16 %v3658
      %v3755 = vunpack.c.l.b16 %v3659
      %v3756 = vunpack.c.l.b16 %v3660
      %v3757 = vunpack.c.l.b16 %v3661
      %v3758 = vunpack.c.l.b16 %v3662
      %v3759 = vunpack.c.l.b16 %v3663
      %v3760 = vunpack.c.l.b16 %v3664
      %v3761 = vunpack.c.l.b16 %v3665
      %v3762 = vunpack.c.l.b16 %v3666
      %v3763 = vunpack.c.l.b16 %v3667
      %v3764 = vunpack.c.l.b16 %v3668
      %v3765 = vunpack.c.l.b16 %v3669
      %v3766 = vunpack.c.l.b16 %v3670
      %v3767 = vunpack.c.l.b16 %v3671
      %v3768 = vunpack.c.l.b16 %v3672
      %v3769 = vunpack.c.l.b16 %v3673
      %v3770 = vunpack.c.l.b16 %v3674
      %v3771 = vunpack.c.l.b16 %v3675
      %v3772 = vunpack.c.l.b16 %v3676
      %v3773 = vunpack.c.l.b16 %v3677
      %v3774 = vunpack.c.l.b16 %v3678
      %v3775 = vunpack.c.l.b16 %v3679
      %v3776 = vunpack.c.l.b16 %v3680
      %v3777 = vunpack.c.l.b16 %v3681
      %v3778 = vunpack.c.l.b16 %v3682
      %v3779 = vunpack.c.l.b16 %v3683
      %v3780 = vunpack.c.l.b16 %v3684
      %v3781 = vunpack.c.l.b16 %v3685
      %v3782 = vunpack.c.l.b16 %v3686
      %v3783 = vunpack.c.l.b16 %v3687
      %v3784 = vunpack.c.l.b16 %v3688
      %v3785 = vunpack.c.l.b16 %v3689
      %v3786 = vunpack.c.l.b16 %v3690
      %v3787 = vunpack.c.l.b16 %v3691
      %v3788 = vunpack.c.l.b16 %v3692
      %v3789 = vunpack.c.l.b16 %v3693
      %v3790 = vunpack.c.l.b16 %v3694
      %v3791 = vunpack.c.l.b16 %v3695
      %v3792 = vunpack.c.l.b16 %v3696
      %v3793 = vpack.c.b16 %v3746, %v3745
      %v3794 = vpack.c.b16 %v3748, %v3747
      %v3795 = vpack.c.b16 %v3750, %v3749
      %v3796 = vpack.c.b16 %v3752, %v3751
      %v3797 = vpack.c.b16 %v3754, %v3753
      %v3798 = vpack.c.b16 %v3756, %v3755
      %v3799 = vpack.c.b16 %v3758, %v3757
      %v3800 = vpack.c.b16 %v3760, %v3759
      %v3801 = vpack.c.b16 %v3762, %v3761
      %v3802 = vpack.c.b16 %v3764, %v3763
      %v3803 = vpack.c.b16 %v3766, %v3765
      %v3804 = vpack.c.b16 %v3768, %v3767
      %v3805 = vpack.c.b16 %v3770, %v3769
      %v3806 = vpack.c.b16 %v3772, %v3771
      %v3807 = vpack.c.b16 %v3774, %v3773
      %v3808 = vpack.c.b16 %v3776, %v3775
      %v3809 = vpack.c.b16 %v3778, %v3777
      %v3810 = vpack.c.b16 %v3780, %v3779
      %v3811 = vpack.c.b16 %v3782, %v3781
      %v3812 = vpack.c.b16 %v3784, %v3783
      %v3813 = vpack.c.b16 %v3786, %v3785
      %v3814 = vpack.c.b16 %v3788, %v3787
      %v3815 = vpack.c.b16 %v3790, %v3789
      %v3816 = vpack.c.b16 %v3792, %v3791
      %3841 = vmatprep.subr.bf16.mxu0 0
      %3842 = vmatpush1.bf16.msra.mxu0 %v3800
      %3843 = vmatprep.subr.bf16.mxu0 0
      %3844 = vmatpush1.bf16.msra.mxu0 %v3799
      %3845 = vmatprep.subr.bf16.mxu0 0
      %3846 = vmatpush1.bf16.msra.mxu0 %v3798
      %3847 = vmatprep.subr.bf16.mxu0 0
      %3848 = vmatpush1.bf16.msra.mxu0 %v3797
      %3849 = vmatprep.subr.bf16.mxu0 0
      %3850 = vmatpush1.bf16.msra.mxu0 %v3796
      %3851 = vmatprep.subr.bf16.mxu0 0
      %3852 = vmatpush1.bf16.msra.mxu0 %v3795
      %3853 = vmatprep.subr.bf16.mxu0 0
      %3854 = vmatpush1.bf16.msra.mxu0 %v3794
      %3855 = vmatprep.subr.bf16.mxu0 0
      %3856 = vmatpush1.bf16.msra.mxu0 %v3793
      %3857 = vmatprep.subr.bf16.mxu0 0
      %3858 = vmatpush2.bf16.msra.mxu0 %v3808
      %3859 = vmatprep.subr.bf16.mxu0 0
      %3860 = vmatpush2.bf16.msra.mxu0 %v3807
      %3861 = vmatprep.subr.bf16.mxu0 0
      %3862 = vmatpush2.bf16.msra.mxu0 %v3806
      %3863 = vmatprep.subr.bf16.mxu0 0
      %3864 = vmatpush2.bf16.msra.mxu0 %v3805
      %3865 = vmatprep.subr.bf16.mxu0 0
      %3866 = vmatpush2.bf16.msra.mxu0 %v3804
      %3867 = vmatprep.subr.bf16.mxu0 0
      %3868 = vmatpush2.bf16.msra.mxu0 %v3803
      %3869 = vmatprep.subr.bf16.mxu0 0
      %3870 = vmatpush2.bf16.msra.mxu0 %v3802
      %3871 = vmatprep.subr.bf16.mxu0 0
      %3872 = vmatpush2.bf16.msra.mxu0 %v3801
      %3873 = vmatprep.mubr.bf16.mxu0 %v3339
      %3874 = vmatmul.mubr.bf16.gmra.mxu0 %v3248
      %v3875 = vpop.f32.mrf.mxu0
      %v3876 = vadd.f32 0.0, %v3875
      %v3877 = vpop.f32.mrf.mxu0
      %v3878 = vpop.f32.mrf.mxu0
      %v3879 = vadd.f32 0.0, %v3878
      %v3880 = vpop.f32.mrf.mxu0
      %3881 = vmatprep.mubr.bf16.mxu0 %v3351
      %3882 = vmatmul.mubr.bf16.gmra.mxu0 %v3249
      %v3883 = vpop.f32.mrf.mxu0
      %v3884 = vadd.f32 0.0, %v3883
      %v3885 = vpop.f32.mrf.mxu0
      %v3886 = vpop.f32.mrf.mxu0
      %v3887 = vadd.f32 0.0, %v3886
      %v3888 = vpop.f32.mrf.mxu0
      %3889 = vmatprep.mubr.bf16.mxu0 %v3363
      %3890 = vmatmul.mubr.bf16.gmra.mxu0 %v3250
      %v3891 = vpop.f32.mrf.mxu0
      %v3892 = vadd.f32 0.0, %v3891
      %v3893 = vpop.f32.mrf.mxu0
      %v3894 = vpop.f32.mrf.mxu0
      %v3895 = vadd.f32 0.0, %v3894
      %v3896 = vpop.f32.mrf.mxu0
      %3897 = vmatprep.mubr.bf16.mxu0 %v3375
      %3898 = vmatmul.mubr.bf16.gmra.mxu0 %v3251
      %v3899 = vpop.f32.mrf.mxu0
      %v3900 = vadd.f32 0.0, %v3899
      %v3901 = vpop.f32.mrf.mxu0
      %v3902 = vpop.f32.mrf.mxu0
      %v3903 = vadd.f32 0.0, %v3902
      %v3904 = vpop.f32.mrf.mxu0
      %3905 = vmatprep.mubr.bf16.mxu0 %v3387
      %3906 = vmatmul.mubr.bf16.gmra.mxu0 %v3252
      %v3907 = vpop.f32.mrf.mxu0
      %v3908 = vadd.f32 0.0, %v3907
      %v3909 = vpop.f32.mrf.mxu0
      %v3910 = vpop.f32.mrf.mxu0
      %v3911 = vadd.f32 0.0, %v3910
      %v3912 = vpop.f32.mrf.mxu0
      %3913 = vmatprep.mubr.bf16.mxu0 %v3399
      %3914 = vmatmul.mubr.bf16.gmra.mxu0 %v3253
      %v3915 = vpop.f32.mrf.mxu0
      %v3916 = vadd.f32 0.0, %v3915
      %v3917 = vpop.f32.mrf.mxu0
      %v3918 = vpop.f32.mrf.mxu0
      %v3919 = vadd.f32 0.0, %v3918
      %v3920 = vpop.f32.mrf.mxu0
      %3921 = vmatprep.mubr.bf16.mxu0 %v3411
      %3922 = vmatmul.mubr.bf16.gmra.mxu0 %v3254
      %v3923 = vpop.f32.mrf.mxu0
      %v3924 = vadd.f32 0.0, %v3923
      %v3925 = vpop.f32.mrf.mxu0
      %v3926 = vpop.f32.mrf.mxu0
      %v3927 = vadd.f32 0.0, %v3926
      %v3928 = vpop.f32.mrf.mxu0
      %3929 = vmatprep.mubr.bf16.mxu0 %v3423
      %3930 = vmatmul.mubr.bf16.gmra.mxu0 %v3255
      %v3931 = vpop.f32.mrf.mxu0
      %v3932 = vadd.f32 0.0, %v3931
      %v3933 = vpop.f32.mrf.mxu0
      %v3934 = vpop.f32.mrf.mxu0
      %v3935 = vadd.f32 0.0, %v3934
      %v3936 = vpop.f32.mrf.mxu0
      %3937 = vmatprep.mubr.bf16.mxu0 %v3435
      %3938 = vmatmul.mubr.bf16.gmra.mxu0 %v3256
      %v3939 = vpop.f32.mrf.mxu0
      %v3940 = vadd.f32 0.0, %v3939
      %v3941 = vpop.f32.mrf.mxu0
      %v3942 = vpop.f32.mrf.mxu0
      %v3943 = vadd.f32 0.0, %v3942
      %v3944 = vpop.f32.mrf.mxu0
      %3945 = vmatprep.mubr.bf16.mxu0 %v3447
      %3946 = vmatmul.mubr.bf16.gmra.mxu0 %v3257
      %v3947 = vpop.f32.mrf.mxu0
      %v3948 = vadd.f32 0.0, %v3947
      %v3949 = vpop.f32.mrf.mxu0
      %v3950 = vpop.f32.mrf.mxu0
      %v3951 = vadd.f32 0.0, %v3950
      %v3952 = vpop.f32.mrf.mxu0
      %3953 = vmatprep.mubr.bf16.mxu0 %v3459
      %3954 = vmatmul.mubr.bf16.gmra.mxu0 %v3258
      %v3955 = vpop.f32.mrf.mxu0
      %v3956 = vadd.f32 0.0, %v3955
      %v3957 = vpop.f32.mrf.mxu0
      %v3958 = vpop.f32.mrf.mxu0
      %v3959 = vadd.f32 0.0, %v3958
      %v3960 = vpop.f32.mrf.mxu0
      %3961 = vmatprep.mubr.bf16.mxu0 %v3471
      %3962 = vmatmul.mubr.bf16.gmra.mxu0 %v3259
      %v3963 = vpop.f32.mrf.mxu0
      %v3964 = vadd.f32 0.0, %v3963
      %v3965 = vpop.f32.mrf.mxu0
      %v3966 = vpop.f32.mrf.mxu0
      %v3967 = vadd.f32 0.0, %v3966
      %v3968 = vpop.f32.mrf.mxu0
      %3969 = vmatprep.mubr.bf16.mxu0 %v3483
      %3970 = vmatmul.mubr.bf16.gmra.mxu0 %v3260
      %v3971 = vpop.f32.mrf.mxu0
      %v3972 = vadd.f32 0.0, %v3971
      %v3973 = vpop.f32.mrf.mxu0
      %v3974 = vpop.f32.mrf.mxu0
      %v3975 = vadd.f32 0.0, %v3974
      %v3976 = vpop.f32.mrf.mxu0
      %3977 = vmatprep.mubr.bf16.mxu0 %v3495
      %3978 = vmatmul.mubr.bf16.gmra.mxu0 %v3261
      %v3979 = vpop.f32.mrf.mxu0
      %v3980 = vadd.f32 0.0, %v3979
      %v3981 = vpop.f32.mrf.mxu0
      %v3982 = vpop.f32.mrf.mxu0
      %v3983 = vadd.f32 0.0, %v3982
      %v3984 = vpop.f32.mrf.mxu0
      %3985 = vmatprep.mubr.bf16.mxu0 %v3507
      %3986 = vmatmul.mubr.bf16.gmra.mxu0 %v3262
      %v3987 = vpop.f32.mrf.mxu0
      %v3988 = vadd.f32 0.0, %v3987
      %v3989 = vpop.f32.mrf.mxu0
      %v3990 = vpop.f32.mrf.mxu0
      %v3991 = vadd.f32 0.0, %v3990
      %v3992 = vpop.f32.mrf.mxu0
      %3993 = vmatprep.mubr.bf16.mxu0 %v3519
      %3994 = vmatmul.mubr.bf16.gmra.mxu0 %v3263
      %v3995 = vpop.f32.mrf.mxu0
      %v3996 = vadd.f32 0.0, %v3995
      %v3997 = vpop.f32.mrf.mxu0
      %v3998 = vpop.f32.mrf.mxu0
      %v3999 = vadd.f32 0.0, %v3998
      %v4000 = vpop.f32.mrf.mxu0
      %4001 = vdwg.mxu0
      %4002 = vmatprep.subr.bf16.mxu0 0
      %4003 = vmatpush1.bf16.msra.mxu0 %v3816
      %4004 = vmatprep.subr.bf16.mxu0 0
      %4005 = vmatpush1.bf16.msra.mxu0 %v3815
      %4006 = vmatprep.subr.bf16.mxu0 0
      %4007 = vmatpush1.bf16.msra.mxu0 %v3814
      %4008 = vmatprep.subr.bf16.mxu0 0
      %4009 = vmatpush1.bf16.msra.mxu0 %v3813
      %4010 = vmatprep.subr.bf16.mxu0 0
      %4011 = vmatpush1.bf16.msra.mxu0 %v3812
      %4012 = vmatprep.subr.bf16.mxu0 0
      %4013 = vmatpush1.bf16.msra.mxu0 %v3811
      %4014 = vmatprep.subr.bf16.mxu0 0
      %4015 = vmatpush1.bf16.msra.mxu0 %v3810
      %4016 = vmatprep.subr.bf16.mxu0 0
      %4017 = vmatpush1.bf16.msra.mxu0 %v3809
      %4018 = vmatprep.subr.bf16.mxu0 0
      %4019 = vmatpush2.bf16.msra.mxu0 0
      %4020 = vmatprep.subr.bf16.mxu0 0
      %4021 = vmatpush2.bf16.msra.mxu0 0
      %4022 = vmatprep.subr.bf16.mxu0 0
      %4023 = vmatpush2.bf16.msra.mxu0 0
      %4024 = vmatprep.subr.bf16.mxu0 0
      %4025 = vmatpush2.bf16.msra.mxu0 0
      %4026 = vmatprep.subr.bf16.mxu0 0
      %4027 = vmatpush2.bf16.msra.mxu0 0
      %4028 = vmatprep.subr.bf16.mxu0 0
      %4029 = vmatpush2.bf16.msra.mxu0 0
      %4030 = vmatprep.subr.bf16.mxu0 0
      %4031 = vmatpush2.bf16.msra.mxu0 0
      %4032 = vmatprep.subr.bf16.mxu0 0
      %4033 = vmatpush2.bf16.msra.mxu0 0
      %4034 = vmatprep.mubr.bf16.mxu0 0
      %4035 = vmatmul.mubr.bf16.gmra.mxu0 %v3586
      %v4036 = vpop.f32.mrf.mxu0
      %v4037 = vadd.f32 %v3876, %v4036
      %v4038 = vpop.f32.mrf.mxu0
      %v4039 = vpop.f32.mrf.mxu0
      %v4040 = vadd.f32 %v3879, %v4039
      %v4041 = vpop.f32.mrf.mxu0
      %4042 = vmatprep.mubr.bf16.mxu0 0
      %4043 = vmatmul.mubr.bf16.gmra.mxu0 %v3589
      %v4044 = vpop.f32.mrf.mxu0
      %v4045 = vadd.f32 %v3884, %v4044
      %v4046 = vpop.f32.mrf.mxu0
      %v4047 = vpop.f32.mrf.mxu0
      %v4048 = vadd.f32 %v3887, %v4047
      %v4049 = vpop.f32.mrf.mxu0
      %4050 = vmatprep.mubr.bf16.mxu0 0
      %4051 = vmatmul.mubr.bf16.gmra.mxu0 %v3592
      %v4052 = vpop.f32.mrf.mxu0
      %v4053 = vadd.f32 %v3892, %v4052
      %v4054 = vpop.f32.mrf.mxu0
      %v4055 = vpop.f32.mrf.mxu0
      %v4056 = vadd.f32 %v3895, %v4055
      %v4057 = vpop.f32.mrf.mxu0
      %4058 = vmatprep.mubr.bf16.mxu0 0
      %4059 = vmatmul.mubr.bf16.gmra.mxu0 %v3595
      %v4060 = vpop.f32.mrf.mxu0
      %v4061 = vadd.f32 %v3900, %v4060
      %v4062 = vpop.f32.mrf.mxu0
      %v4063 = vpop.f32.mrf.mxu0
      %v4064 = vadd.f32 %v3903, %v4063
      %v4065 = vpop.f32.mrf.mxu0
      %4066 = vmatprep.mubr.bf16.mxu0 0
      %4067 = vmatmul.mubr.bf16.gmra.mxu0 %v3598
      %v4068 = vpop.f32.mrf.mxu0
      %v4069 = vadd.f32 %v3908, %v4068
      %v4070 = vpop.f32.mrf.mxu0
      %v4071 = vpop.f32.mrf.mxu0
      %v4072 = vadd.f32 %v3911, %v4071
      %v4073 = vpop.f32.mrf.mxu0
      %4074 = vmatprep.mubr.bf16.mxu0 0
      %4075 = vmatmul.mubr.bf16.gmra.mxu0 %v3601
      %v4076 = vpop.f32.mrf.mxu0
      %v4077 = vadd.f32 %v3916, %v4076
      %v4078 = vpop.f32.mrf.mxu0
      %v4079 = vpop.f32.mrf.mxu0
      %v4080 = vadd.f32 %v3919, %v4079
      %v4081 = vpop.f32.mrf.mxu0
      %4082 = vmatprep.mubr.bf16.mxu0 0
      %4083 = vmatmul.mubr.bf16.gmra.mxu0 %v3604
      %v4084 = vpop.f32.mrf.mxu0
      %v4085 = vadd.f32 %v3924, %v4084
      %v4086 = vpop.f32.mrf.mxu0
      %v4087 = vpop.f32.mrf.mxu0
      %v4088 = vadd.f32 %v3927, %v4087
      %v4089 = vpop.f32.mrf.mxu0
      %4090 = vmatprep.mubr.bf16.mxu0 0
      %4091 = vmatmul.mubr.bf16.gmra.mxu0 %v3607
      %v4092 = vpop.f32.mrf.mxu0
      %v4093 = vadd.f32 %v3932, %v4092
      %v4094 = vpop.f32.mrf.mxu0
      %v4095 = vpop.f32.mrf.mxu0
      %v4096 = vadd.f32 %v3935, %v4095
      %v4097 = vpop.f32.mrf.mxu0
      %4098 = vmatprep.mubr.bf16.mxu0 0
      %4099 = vmatmul.mubr.bf16.gmra.mxu0 %v3610
      %v4100 = vpop.f32.mrf.mxu0
      %v4101 = vadd.f32 %v3940, %v4100
      %v4102 = vpop.f32.mrf.mxu0
      %v4103 = vpop.f32.mrf.mxu0
      %v4104 = vadd.f32 %v3943, %v4103
      %v4105 = vpop.f32.mrf.mxu0
      %4106 = vmatprep.mubr.bf16.mxu0 0
      %4107 = vmatmul.mubr.bf16.gmra.mxu0 %v3613
      %v4108 = vpop.f32.mrf.mxu0
      %v4109 = vadd.f32 %v3948, %v4108
      %v4110 = vpop.f32.mrf.mxu0
      %v4111 = vpop.f32.mrf.mxu0
      %v4112 = vadd.f32 %v3951, %v4111
      %v4113 = vpop.f32.mrf.mxu0
      %4114 = vmatprep.mubr.bf16.mxu0 0
      %4115 = vmatmul.mubr.bf16.gmra.mxu0 %v3616
      %v4116 = vpop.f32.mrf.mxu0
      %v4117 = vadd.f32 %v3956, %v4116
      %v4118 = vpop.f32.mrf.mxu0
      %v4119 = vpop.f32.mrf.mxu0
      %v4120 = vadd.f32 %v3959, %v4119
      %v4121 = vpop.f32.mrf.mxu0
      %4122 = vmatprep.mubr.bf16.mxu0 0
      %4123 = vmatmul.mubr.bf16.gmra.mxu0 %v3619
      %v4124 = vpop.f32.mrf.mxu0
      %v4125 = vadd.f32 %v3964, %v4124
      %v4126 = vpop.f32.mrf.mxu0
      %v4127 = vpop.f32.mrf.mxu0
      %v4128 = vadd.f32 %v3967, %v4127
      %v4129 = vpop.f32.mrf.mxu0
      %4130 = vmatprep.mubr.bf16.mxu0 0
      %4131 = vmatmul.mubr.bf16.gmra.mxu0 %v3622
      %v4132 = vpop.f32.mrf.mxu0
      %v4133 = vadd.f32 %v3972, %v4132
      %v4134 = vpop.f32.mrf.mxu0
      %v4135 = vpop.f32.mrf.mxu0
      %v4136 = vadd.f32 %v3975, %v4135
      %v4137 = vpop.f32.mrf.mxu0
      %4138 = vmatprep.mubr.bf16.mxu0 0
      %4139 = vmatmul.mubr.bf16.gmra.mxu0 %v3625
      %v4140 = vpop.f32.mrf.mxu0
      %v4141 = vadd.f32 %v3980, %v4140
      %v4142 = vpop.f32.mrf.mxu0
      %v4143 = vpop.f32.mrf.mxu0
      %v4144 = vadd.f32 %v3983, %v4143
      %v4145 = vpop.f32.mrf.mxu0
      %4146 = vmatprep.mubr.bf16.mxu0 0
      %4147 = vmatmul.mubr.bf16.gmra.mxu0 %v3628
      %v4148 = vpop.f32.mrf.mxu0
      %v4149 = vadd.f32 %v3988, %v4148
      %v4150 = vpop.f32.mrf.mxu0
      %v4151 = vpop.f32.mrf.mxu0
      %v4152 = vadd.f32 %v3991, %v4151
      %v4153 = vpop.f32.mrf.mxu0
      %4154 = vmatprep.mubr.bf16.mxu0 0
      %4155 = vmatmul.mubr.bf16.gmra.mxu0 %v3631
      %v4156 = vpop.f32.mrf.mxu0
      %v4157 = vadd.f32 %v3996, %v4156
      %v4158 = vpop.f32.mrf.mxu0
      %v4159 = vpop.f32.mrf.mxu0
      %v4160 = vadd.f32 %v3999, %v4159
      %v4161 = vpop.f32.mrf.mxu0
      %4162 = vdwg.mxu0
      %v4163 = vadd.f32 %v2993, %v4037
      %v4164 = vadd.f32 %v2996, %v4040
      %v4165 = vadd.f32 %v3001, %v4045
      %v4166 = vadd.f32 %v3004, %v4048
      %v4167 = vadd.f32 %v3009, %v4053
      %v4168 = vadd.f32 %v3012, %v4056
      %v4169 = vadd.f32 %v3017, %v4061
      %v4170 = vadd.f32 %v3020, %v4064
      %v4171 = vadd.f32 %v3025, %v4069
      %v4172 = vadd.f32 %v3028, %v4072
      %v4173 = vadd.f32 %v3033, %v4077
      %v4174 = vadd.f32 %v3036, %v4080
      %v4175 = vadd.f32 %v3041, %v4085
      %v4176 = vadd.f32 %v3044, %v4088
      %v4177 = vadd.f32 %v3049, %v4093
      %v4178 = vadd.f32 %v3052, %v4096
      %v4179 = vadd.f32 %v3057, %v4101
      %v4180 = vadd.f32 %v3060, %v4104
      %v4181 = vadd.f32 %v3065, %v4109
      %v4182 = vadd.f32 %v3068, %v4112
      %v4183 = vadd.f32 %v3073, %v4117
      %v4184 = vadd.f32 %v3076, %v4120
      %v4185 = vadd.f32 %v3081, %v4125
      %v4186 = vadd.f32 %v3084, %v4128
      %v4187 = vadd.f32 %v3089, %v4133
      %v4188 = vadd.f32 %v3092, %v4136
      %v4189 = vadd.f32 %v3097, %v4141
      %v4190 = vadd.f32 %v3100, %v4144
      %v4191 = vadd.f32 %v3105, %v4149
      %v4192 = vadd.f32 %v3108, %v4152
      %v4193 = vadd.f32 %v3113, %v4157
      %v4194 = vadd.f32 %v3116, %v4160
      %4195 = vst [vmem:[%s231] sm:$0xff] %v4163
      %4196 = vst [vmem:[%s231 + $0x8] sm:$0xff] %v4164
      %4197 = vst [vmem:[%s231 + $0x10] sm:$0xff] %v4165
      %4198 = vst [vmem:[%s231 + $0x18] sm:$0xff] %v4166
      %4199 = vst [vmem:[%s231 + $0x20] sm:$0xff] %v4167
      %4200 = vst [vmem:[%s231 + $0x28] sm:$0xff] %v4168
      %4201 = vst [vmem:[%s231 + $0x30] sm:$0xff] %v4169
      %4202 = vst [vmem:[%s231 + $0x38] sm:$0xff] %v4170
      %4203 = vst [vmem:[%s231 + $0x40] sm:$0xff] %v4171
      %4204 = vst [vmem:[%s231 + $0x48] sm:$0xff] %v4172
      %4205 = vst [vmem:[%s231 + $0x50] sm:$0xff] %v4173
      %4206 = vst [vmem:[%s231 + $0x58] sm:$0xff] %v4174
      %4207 = vst [vmem:[%s231 + $0x60] sm:$0xff] %v4175
      %4208 = vst [vmem:[%s231 + $0x68] sm:$0xff] %v4176
      %4209 = vst [vmem:[%s231 + $0x70] sm:$0xff] %v4177
      %4210 = vst [vmem:[%s231 + $0x78] sm:$0xff] %v4178
      %4211 = vst [vmem:[%s231 + $0x80] sm:$0xff] %v4179
      %4212 = vst [vmem:[%s231 + $0x88] sm:$0xff] %v4180
      %4213 = vst [vmem:[%s231 + $0x90] sm:$0xff] %v4181
      %4214 = vst [vmem:[%s231 + $0x98] sm:$0xff] %v4182
      %4215 = vst [vmem:[%s231 + $0xa0] sm:$0xff] %v4183
      %4216 = vst [vmem:[%s231 + $0xa8] sm:$0xff] %v4184
      %4217 = vst [vmem:[%s231 + $0xb0] sm:$0xff] %v4185
      %4218 = vst [vmem:[%s231 + $0xb8] sm:$0xff] %v4186
      %4219 = vst [vmem:[%s231 + $0xc0] sm:$0xff] %v4187
      %4220 = vst [vmem:[%s231 + $0xc8] sm:$0xff] %v4188
      %4221 = vst [vmem:[%s231 + $0xd0] sm:$0xff] %v4189
      %4222 = vst [vmem:[%s231 + $0xd8] sm:$0xff] %v4190
      %4223 = vst [vmem:[%s231 + $0xe0] sm:$0xff] %v4191
      %4224 = vst [vmem:[%s231 + $0xe8] sm:$0xff] %v4192
      %4225 = vst [vmem:[%s231 + $0xf0] sm:$0xff] %v4193
      %4226 = vst [vmem:[%s231 + $0xf8] sm:$0xff] %v4194
      %v4227 = vadd.f32 %v4163, %v4164
      %v4228 = vadd.f32 %v4227, %v4165
      %v4229 = vadd.f32 %v4228, %v4166
      %v4230 = vadd.f32 %v4229, %v4167
      %v4231 = vadd.f32 %v4230, %v4168
      %v4232 = vadd.f32 %v4231, %v4169
      %v4233 = vadd.f32 %v4232, %v4170
      %v4234 = vadd.f32 %v4233, %v4171
      %v4235 = vadd.f32 %v4234, %v4172
      %v4236 = vadd.f32 %v4235, %v4173
      %v4237 = vadd.f32 %v4236, %v4174
      %v4238 = vadd.f32 %v4237, %v4175
      %v4239 = vadd.f32 %v4238, %v4176
      %v4240 = vadd.f32 %v4239, %v4177
      %v4241 = vadd.f32 %v4240, %v4178
      %v4242 = vadd.f32 %v4241, %v4179
      %v4243 = vadd.f32 %v4242, %v4180
      %v4244 = vadd.f32 %v4243, %v4181
      %v4245 = vadd.f32 %v4244, %v4182
      %v4246 = vadd.f32 %v4245, %v4183
      %v4247 = vadd.f32 %v4246, %v4184
      %v4248 = vadd.f32 %v4247, %v4185
      %v4249 = vadd.f32 %v4248, %v4186
      %v4250 = vadd.f32 %v4249, %v4187
      %v4251 = vadd.f32 %v4250, %v4188
      %v4252 = vadd.f32 %v4251, %v4189
      %v4253 = vadd.f32 %v4252, %v4190
      %v4254 = vadd.f32 %v4253, %v4191
      %v4255 = vadd.f32 %v4254, %v4192
      %v4256 = vadd.f32 %v4255, %v4193
      %v4257 = vadd.f32 %v4256, %v4194
      %v4258 = vrot.slane %v4257, 4
      %v4259 = vadd.f32 %v4257, %v4258
      %v4260 = vrot.slane %v4259, 2
      %v4261 = vadd.f32 %v4259, %v4260
      %v4262 = vrot.slane %v4261, 1
      %v4263 = vadd.f32 %v4261, %v4262
      %v4264 = vmul.f32 %v4263, 0.00390625
      %v4265 = vsub.f32 %v4163, %v4264
      %v4266 = vsub.f32 %v4164, %v4264
      %v4267 = vsub.f32 %v4165, %v4264
      %v4268 = vsub.f32 %v4166, %v4264
      %v4269 = vsub.f32 %v4167, %v4264
      %v4270 = vsub.f32 %v4168, %v4264
      %v4271 = vsub.f32 %v4169, %v4264
      %v4272 = vsub.f32 %v4170, %v4264
      %v4273 = vsub.f32 %v4171, %v4264
      %v4274 = vsub.f32 %v4172, %v4264
      %v4275 = vsub.f32 %v4173, %v4264
      %v4276 = vsub.f32 %v4174, %v4264
      %v4277 = vsub.f32 %v4175, %v4264
      %v4278 = vsub.f32 %v4176, %v4264
      %v4279 = vsub.f32 %v4177, %v4264
      %v4280 = vsub.f32 %v4178, %v4264
      %v4281 = vsub.f32 %v4179, %v4264
      %v4282 = vsub.f32 %v4180, %v4264
      %v4283 = vsub.f32 %v4181, %v4264
      %v4284 = vsub.f32 %v4182, %v4264
      %v4285 = vsub.f32 %v4183, %v4264
      %v4286 = vsub.f32 %v4184, %v4264
      %v4287 = vsub.f32 %v4185, %v4264
      %v4288 = vsub.f32 %v4186, %v4264
      %v4289 = vsub.f32 %v4187, %v4264
      %v4290 = vsub.f32 %v4188, %v4264
      %v4291 = vsub.f32 %v4189, %v4264
      %v4292 = vsub.f32 %v4190, %v4264
      %v4293 = vsub.f32 %v4191, %v4264
      %v4294 = vsub.f32 %v4192, %v4264
      %v4295 = vsub.f32 %v4193, %v4264
      %v4296 = vsub.f32 %v4194, %v4264
      %4297 = vst [vmem:[%s235] sm:$0x1] %v4263
      %v4298 = vmul.f32 %v4265, %v4265
      %v4299 = vmul.f32 %v4266, %v4266
      %v4300 = vmul.f32 %v4267, %v4267
      %v4301 = vmul.f32 %v4268, %v4268
      %v4302 = vmul.f32 %v4269, %v4269
      %v4303 = vmul.f32 %v4270, %v4270
      %v4304 = vmul.f32 %v4271, %v4271
      %v4305 = vmul.f32 %v4272, %v4272
      %v4306 = vmul.f32 %v4273, %v4273
      %v4307 = vmul.f32 %v4274, %v4274
      %v4308 = vmul.f32 %v4275, %v4275
      %v4309 = vmul.f32 %v4276, %v4276
      %v4310 = vmul.f32 %v4277, %v4277
      %v4311 = vmul.f32 %v4278, %v4278
      %v4312 = vmul.f32 %v4279, %v4279
      %v4313 = vmul.f32 %v4280, %v4280
      %v4314 = vmul.f32 %v4281, %v4281
      %v4315 = vmul.f32 %v4282, %v4282
      %v4316 = vmul.f32 %v4283, %v4283
      %v4317 = vmul.f32 %v4284, %v4284
      %v4318 = vmul.f32 %v4285, %v4285
      %v4319 = vmul.f32 %v4286, %v4286
      %v4320 = vmul.f32 %v4287, %v4287
      %v4321 = vmul.f32 %v4288, %v4288
      %v4322 = vmul.f32 %v4289, %v4289
      %v4323 = vmul.f32 %v4290, %v4290
      %v4324 = vmul.f32 %v4291, %v4291
      %v4325 = vmul.f32 %v4292, %v4292
      %v4326 = vmul.f32 %v4293, %v4293
      %v4327 = vmul.f32 %v4294, %v4294
      %v4328 = vmul.f32 %v4295, %v4295
      %v4329 = vmul.f32 %v4296, %v4296
      %v4330 = vadd.f32 %v4298, %v4299
      %v4331 = vadd.f32 %v4330, %v4300
      %v4332 = vadd.f32 %v4331, %v4301
      %v4333 = vadd.f32 %v4332, %v4302
      %v4334 = vadd.f32 %v4333, %v4303
      %v4335 = vadd.f32 %v4334, %v4304
      %v4336 = vadd.f32 %v4335, %v4305
      %v4337 = vadd.f32 %v4336, %v4306
      %v4338 = vadd.f32 %v4337, %v4307
      %v4339 = vadd.f32 %v4338, %v4308
      %v4340 = vadd.f32 %v4339, %v4309
      %v4341 = vadd.f32 %v4340, %v4310
      %v4342 = vadd.f32 %v4341, %v4311
      %v4343 = vadd.f32 %v4342, %v4312
      %v4344 = vadd.f32 %v4343, %v4313
      %v4345 = vadd.f32 %v4344, %v4314
      %v4346 = vadd.f32 %v4345, %v4315
      %v4347 = vadd.f32 %v4346, %v4316
      %v4348 = vadd.f32 %v4347, %v4317
      %v4349 = vadd.f32 %v4348, %v4318
      %v4350 = vadd.f32 %v4349, %v4319
      %v4351 = vadd.f32 %v4350, %v4320
      %v4352 = vadd.f32 %v4351, %v4321
      %v4353 = vadd.f32 %v4352, %v4322
      %v4354 = vadd.f32 %v4353, %v4323
      %v4355 = vadd.f32 %v4354, %v4324
      %v4356 = vadd.f32 %v4355, %v4325
      %v4357 = vadd.f32 %v4356, %v4326
      %v4358 = vadd.f32 %v4357, %v4327
      %v4359 = vadd.f32 %v4358, %v4328
      %v4360 = vadd.f32 %v4359, %v4329
      %v4361 = vrot.slane %v4360, 4
      %v4362 = vadd.f32 %v4360, %v4361
      %v4363 = vrot.slane %v4362, 2
      %v4364 = vadd.f32 %v4362, %v4363
      %v4365 = vrot.slane %v4364, 1
      %v4366 = vadd.f32 %v4364, %v4365
      %4367 = vst [vmem:[%s235 + $0x1] sm:$0x1] %v4366
      %p4368 = scmp.lt.s32.totalorder %s17, 1
      %s4369 = scalar_select %p4368, %s17, 1
      %s4370 = smul.addr %s4369, 32
      %s4371 = smul.addr %s4370, 8
      %s4372 = scalar_lea.vmem %s4, %s4371
      %p4373 = scmp.lt.s32.totalorder %s17, 1
      %s4374 = scalar_select %p4373, %s17, 1
      %s4375 = smul.addr %s4374, 2
      %s4376 = scalar_lea.vmem %s5, %s4375
      // Predicated region
      $region37: #{basic_block_woskip.4} parent=35 // pred_check
        %p4377 = pneg %p124
      $region38: #{basic_block_woskip.4} parent=35 // pred_check_branch
        %4379 = sbr.rel (%p4377) target = $region40
      $region39: #{basic_block_woskip.4} parent=35 // pred_region
        _
      $region40: #{basic_block_woskip.4} parent=35 // pred_fallthru
        _
      // Predicated region
      $region41: #{basic_block_woskip.4} parent=35 // pred_check
        %p4380 = pneg %p150
      $region42: #{basic_block_woskip.4} parent=35 // pred_check_branch
        %4382 = sbr.rel (%p4380) target = $region44
      $region43: #{basic_block_woskip.4} parent=35 // pred_region
        _
      $region44: #{basic_block_woskip.4} parent=35 // pred_fallthru
        _
    $region36: #{basic_block_woskip.4} parent=5 // pred_fallthru
      _
    %p4383 = scmp.le.s32.totalorder 2, %s12
    // Predicated region
    $region45: #{basic_block_woskip.4} parent=5 // pred_check
      %p4384 = pneg %p4383
    $region46: #{basic_block_woskip.4} parent=5 // pred_check_branch
      %4386 = sbr.rel (%p4384) target = $region48
    $region47: #{basic_block_woskip.4} parent=5 // pred_region
      %s4387 = ssub.s32 %s12, 2
      // Predicated region
      $region49: #{basic_block_woskip.4} parent=47 // pred_check
        %p4388 = pneg %p130
      $region50: #{basic_block_woskip.4} parent=47 // pred_check_branch
        %4390 = sbr.rel (%p4388) target = $region52
      $region51: #{basic_block_woskip.4} parent=47 // pred_region
        %p4391 = scmp.lt.s32.totalorder %s18, 1
        %s4392 = scalar_select %p4391, %s18, 1
        %s4393 = smul.addr %s4392, 32
        %s4394 = smul.addr %s4393, 8
        %s4395 = scalar_lea.vmem %s4, %s4394
      $region52: #{basic_block_woskip.4} parent=47 // pred_fallthru
        _
      // Predicated region
      $region53: #{basic_block_woskip.4} parent=47 // pred_check
        %p4396 = pneg %p156
      $region54: #{basic_block_woskip.4} parent=47 // pred_check_branch
        %4398 = sbr.rel (%p4396) target = $region56
      $region55: #{basic_block_woskip.4} parent=47 // pred_region
        %p4399 = scmp.lt.s32.totalorder %s18, 1
        %s4400 = scalar_select %p4399, %s18, 1
        %s4401 = smul.addr %s4400, 2
        %s4402 = scalar_lea.vmem %s5, %s4401
      $region56: #{basic_block_woskip.4} parent=47 // pred_fallthru
        _
    $region48: #{basic_block_woskip.4} parent=5 // pred_fallthru
      _
  $region6: #{basic_block_woskip.4} parent=0 // loop_footer
    %s16 = sadd.s32 1, %s12
  $region7: #{basic_block_woskip.4} parent=0 // loop_footer_branch
    %11 = sbr.rel target = $region3
  $region8: #{basic_block_woskip.4} parent=0 // loop_exit
    _

</llo_original>
